<compile_context>
chip_gen: v7x
topology: tpu7x:2x2x1
jax: 0.10.0
libtpu: 0.0.40
codegen_flags: <defaults>
</compile_context>

<pallas_src>
import math
import functools

import jax
import jax.numpy as jnp
from jax.experimental import pallas as pl
from jax.experimental.pallas import tpu as pltpu


def encoder_block_kernel(x_ref, ln1_g_ref, ln1_b_ref,
                         wq_ref, bq_ref, wk_ref, bk_ref, wv_ref, bv_ref,
                         wo_ref, bo_ref, ln2_g_ref, ln2_b_ref,
                         w1_ref, b1_ref, w2_ref, b2_ref,
                         out_ref, x1_scr,
                         *, num_heads, batch_tile, seq_len):
    eps = 1e-5
    f32 = jnp.float32
    bf16 = jnp.bfloat16

    def layernorm(v, g, b):
        mu = jnp.mean(v, axis=-1, keepdims=True)
        c = v - mu
        var = jnp.mean(c * c, axis=-1, keepdims=True)
        return c * jax.lax.rsqrt(var + eps) * g + b

    x3 = x_ref[...]                                        # (Bt, S, H) f32
    H = x3.shape[-1]

    # ---- LN1 + multi-head self-attention (per batch element, per head) ----
    xn_bf = layernorm(x3, ln1_g_ref[...], ln1_b_ref[...]).astype(bf16)

    # contract the hidden dim of the activation with the last dim of the weight
    # (i.e. x @ W_head.T) -- the standard "trans_b" MXU pattern, no relayouts.
    dn = (((1,), (1,)), ((), ()))

    for b in range(batch_tile):                            # static unroll (small)
        xnb = xn_bf[b]                                     # (S, H), leading-dim index
        acc = jnp.zeros((seq_len, H), f32)
        for h in range(num_heads):                         # static unroll (small)
            qh = jax.lax.dot_general(xnb, wq_ref[h], dn,
                                     preferred_element_type=f32) + bq_ref[h]
            kh = jax.lax.dot_general(xnb, wk_ref[h], dn,
                                     preferred_element_type=f32) + bk_ref[h]
            vh = jax.lax.dot_general(xnb, wv_ref[h], dn,
                                     preferred_element_type=f32) + bv_ref[h]
            # scores: q @ k.T  (1/sqrt(dh) already folded into wq/bq in the wrapper)
            s = jax.lax.dot_general(qh.astype(bf16), kh.astype(bf16), dn,
                                    preferred_element_type=f32)      # (S, S)
            s = s - jnp.max(s, axis=-1, keepdims=True)
            p = jnp.exp(s)
            p = p * pl.reciprocal(jnp.sum(p, axis=-1, keepdims=True), approx=True)
            o = jnp.dot(p.astype(bf16), vh.astype(bf16),
                        preferred_element_type=f32)                  # (S, dh)
            # project this head's context straight into the (S, H) accumulator
            acc = acc + jnp.dot(o.astype(bf16), wo_ref[h],
                                preferred_element_type=f32)          # (S, H)
        # residual 1 (dropout rate 0 -> identity); out-proj bias added once
        x1_scr[b] = x3[b] + acc + bo_ref[...]

    # ---- LN2 + MLP on batch-folded 2D activations ----
    x1 = x1_scr[...]                                       # (Bt, S, H) f32
    x1_2d = x1.reshape(batch_tile * seq_len, H)
    yn_bf = layernorm(x1_2d, ln2_g_ref[...], ln2_b_ref[...]).astype(bf16)
    h1 = jnp.dot(yn_bf, w1_ref[...], preferred_element_type=f32) + b1_ref[...]
    # exact (erf-based) GELU, matching torch nn.GELU() default
    h1 = 0.5 * h1 * (1.0 + jax.lax.erf(h1 * (1.0 / math.sqrt(2.0))))
    y2 = jnp.dot(h1.astype(bf16), w2_ref[...], preferred_element_type=f32) + b2_ref[...]

    out_ref[...] = (x1_2d + y2).reshape(batch_tile, seq_len, H).astype(out_ref.dtype)


def pack_params(p, num_heads):
    """Convert torch-layout parameters to the kernel layout (bf16, per-head slabs)."""
    H = p["ln1_g"].shape[0]
    mlp_dim = p["w1"].shape[0]
    dh = H // num_heads
    scale = 1.0 / math.sqrt(dh)
    bf16 = jnp.bfloat16

    wq, wk, wv = jnp.split(p["in_proj_w"], 3, axis=0)      # each (H, H)
    bq, bk, bv = jnp.split(p["in_proj_b"], 3, axis=0)      # each (H,)

    def heads_w(w):     # (H, H) -> (nh, dh, H): row block h = weights of head h
        return w.reshape(num_heads, dh, H)

    def heads_b(b):     # (H,) -> (nh, 1, dh)
        return b.reshape(num_heads, 1, dh)

    return {
        "ln1_g": p["ln1_g"].reshape(1, H), "ln1_b": p["ln1_b"].reshape(1, H),
        "wq": (heads_w(wq) * scale).astype(bf16),          # scale folded into Q
        "bq": heads_b(bq) * scale,
        "wk": heads_w(wk).astype(bf16), "bk": heads_b(bk),
        "wv": heads_w(wv).astype(bf16), "bv": heads_b(bv),
        "wo": p["out_proj_w"].T.reshape(num_heads, dh, H).astype(bf16),
        "bo": p["out_proj_b"].reshape(1, H),
        "ln2_g": p["ln2_g"].reshape(1, H), "ln2_b": p["ln2_b"].reshape(1, H),
        "w1": p["w1"].T.astype(bf16), "b1": p["b1"].reshape(1, mlp_dim),
        "w2": p["w2"].T.astype(bf16), "b2": p["b2"].reshape(1, H),
    }


def _vmem_limit_bytes(bt, S, H, mlp_dim, single_buffer):
    wbytes = 2 * (3 * H * H + H * H + H * mlp_dim + mlp_dim * H)   # bf16 weights
    wbytes += 4 * (8 * H + 3 * H + mlp_dim)                        # f32 biases / LN
    if not single_buffer:
        wbytes *= 2
    io = 2 * 2 * 4 * bt * S * H                    # x + out, double-buffered, f32
    scratch = 4 * bt * S * H                       # x1 scratch
    act = 4 * bt * S * (4 * H + 2 * mlp_dim)       # rough live-activation headroom
    limit = int(1.3 * (wbytes + io + scratch + act)) + (4 << 20)
    return max(32 << 20, min(limit, 96 << 20))


_WEIGHT_ORDER = ["ln1_g", "ln1_b", "wq", "bq", "wk", "bk", "wv", "bv",
                 "wo", "bo", "ln2_g", "ln2_b", "w1", "b1", "w2", "b2"]


def encoder1d_block(x, params, num_heads, *, batch_tile=1):
    B, S, H = x.shape
    assert B % batch_tile == 0, "batch must be divisible by batch_tile"
    assert H % num_heads == 0, "hidden must be divisible by num_heads"

    kp = pack_params(params, num_heads)
    mlp_dim = kp["w1"].shape[1]
    weight_args = [kp[k] for k in _WEIGHT_ORDER]

    kernel = functools.partial(encoder_block_kernel, num_heads=num_heads,
                               batch_tile=batch_tile, seq_len=S)

    def run(single_buffer):
        def const_spec(arr):
            n = arr.ndim
            kwargs = {}
            if single_buffer and hasattr(pl, "Buffered"):
                # Weights are revisited every grid step -> single buffering halves
                # their resident VMEM (important on v7x's 64 MiB VMEM).
                kwargs["pipeline_mode"] = pl.Buffered(1)
            return pl.BlockSpec(arr.shape, lambda i, _n=n: (0,) * _n, **kwargs)

        in_specs = [pl.BlockSpec((batch_tile, S, H), lambda i: (i, 0, 0))]
        in_specs += [const_spec(a) for a in weight_args]

        out = pl.pallas_call(
            kernel,
            out_shape=jax.ShapeDtypeStruct((B, S, H), x.dtype),
            grid=(B // batch_tile,),
            in_specs=in_specs,
            out_specs=pl.BlockSpec((batch_tile, S, H), lambda i: (i, 0, 0)),
            scratch_shapes=[pltpu.VMEM((batch_tile, S, H), jnp.float32)],
            compiler_params=pltpu.CompilerParams(
                dimension_semantics=("parallel",),
                vmem_limit_bytes=_vmem_limit_bytes(batch_tile, S, H, mlp_dim,
                                                   single_buffer),
            ),
        )(x, *weight_args)
        return jax.block_until_ready(out)

    try:
        return run(single_buffer=True)
    except Exception:
        # Fallback for JAX builds where pipeline_mode on pallas_call specs is rejected.
        return run(single_buffer=False)


def reference(x, p, num_heads):
    """Pure-JAX f32 reference of the same forward pass (torch-layout params)."""
    eps = 1e-5
    B, S, H = x.shape
    dh = H // num_heads
    scale = 1.0 / math.sqrt(dh)

    def ln(v, g, b):
        mu = jnp.mean(v, axis=-1, keepdims=True)
        var = jnp.mean((v - mu) ** 2, axis=-1, keepdims=True)
        return (v - mu) / jnp.sqrt(var + eps) * g + b

    xn = ln(x, p["ln1_g"], p["ln1_b"])
    qkv = xn @ p["in_proj_w"].T + p["in_proj_b"]
    q, k, v = qkv[..., :H], qkv[..., H:2 * H], qkv[..., 2 * H:]
    qh = q.reshape(B, S, num_heads, dh).transpose(0, 2, 1, 3) * scale
    kh = k.reshape(B, S, num_heads, dh).transpose(0, 2, 1, 3)
    vh = v.reshape(B, S, num_heads, dh).transpose(0, 2, 1, 3)
    s = jnp.einsum("bhqd,bhkd->bhqk", qh, kh)
    a = jax.nn.softmax(s, axis=-1)
    o = jnp.einsum("bhqk,bhkd->bhqd", a, vh).transpose(0, 2, 1, 3).reshape(B, S, H)
    attn = o @ p["out_proj_w"].T + p["out_proj_b"]
    x1 = attn + x
    yn = ln(x1, p["ln2_g"], p["ln2_b"])
    h1 = yn @ p["w1"].T + p["b1"]
    h1 = 0.5 * h1 * (1.0 + jax.lax.erf(h1 / math.sqrt(2.0)))
    y2 = h1 @ p["w2"].T + p["b2"]
    return x1 + y2


def init_params(key, hidden, mlp_dim):
    """Deterministic synthetic parameters in the torch module's native layout."""
    ks = jax.random.split(key, 12)
    std = 0.02
    return {
        "ln1_g": 1.0 + 0.1 * jax.random.normal(ks[0], (hidden,), jnp.float32),
        "ln1_b": 0.1 * jax.random.normal(ks[1], (hidden,), jnp.float32),
        "in_proj_w": std * jax.random.normal(ks[2], (3 * hidden, hidden), jnp.float32),
        "in_proj_b": std * jax.random.normal(ks[3], (3 * hidden,), jnp.float32),
        "out_proj_w": std * jax.random.normal(ks[4], (hidden, hidden), jnp.float32),
        "out_proj_b": std * jax.random.normal(ks[5], (hidden,), jnp.float32),
        "ln2_g": 1.0 + 0.1 * jax.random.normal(ks[6], (hidden,), jnp.float32),
        "ln2_b": 0.1 * jax.random.normal(ks[7], (hidden,), jnp.float32),
        "w1": std * jax.random.normal(ks[8], (mlp_dim, hidden), jnp.float32),
        "b1": std * jax.random.normal(ks[9], (mlp_dim,), jnp.float32),
        "w2": std * jax.random.normal(ks[10], (hidden, mlp_dim), jnp.float32),
        "b2": std * jax.random.normal(ks[11], (hidden,), jnp.float32),
    }


if __name__ == "__main__":
    B, S, H, MLP, HEADS = 4, 8, 32, 64, 4

    key = jax.random.PRNGKey(0)
    kx, kp = jax.random.split(key)
    x = jax.random.normal(kx, (B, S, H), jnp.float32)
    params = init_params(kp, H, MLP)

    out = encoder1d_block(x, params, HEADS, batch_tile=2)
    out = jax.block_until_ready(out)

    ref = reference(x, params, HEADS)
    assert out.shape == (B, S, H)
    err = float(jnp.max(jnp.abs(out - ref)))
    # bf16 matmul operands + approximate softmax reciprocal vs a pure-f32 reference,
    # so the tolerance is looser than a bitwise check.
    assert jnp.allclose(out, ref, atol=1e-2, rtol=1e-2), f"max abs diff = {err}"

    print("KERNEL_OK")
</pallas_src>

<mosaic_0001>
module attributes {stable_mosaic.version = 11 : i64} {
  func.func @encoder_block_kernel(%arg0: i32, %arg1: memref<2x8x32xf32, #tpu.memory_space<vmem>>, %arg2: memref<1x32xf32, #tpu.memory_space<vmem>>, %arg3: memref<1x32xf32, #tpu.memory_space<vmem>>, %arg4: memref<4x8x32xbf16, #tpu.memory_space<vmem>>, %arg5: memref<4x1x8xf32, #tpu.memory_space<vmem>>, %arg6: memref<4x8x32xbf16, #tpu.memory_space<vmem>>, %arg7: memref<4x1x8xf32, #tpu.memory_space<vmem>>, %arg8: memref<4x8x32xbf16, #tpu.memory_space<vmem>>, %arg9: memref<4x1x8xf32, #tpu.memory_space<vmem>>, %arg10: memref<4x8x32xbf16, #tpu.memory_space<vmem>>, %arg11: memref<1x32xf32, #tpu.memory_space<vmem>>, %arg12: memref<1x32xf32, #tpu.memory_space<vmem>>, %arg13: memref<1x32xf32, #tpu.memory_space<vmem>>, %arg14: memref<32x64xbf16, #tpu.memory_space<vmem>>, %arg15: memref<1x64xf32, #tpu.memory_space<vmem>>, %arg16: memref<64x32xbf16, #tpu.memory_space<vmem>>, %arg17: memref<1x32xf32, #tpu.memory_space<vmem>>, %arg18: memref<2x8x32xf32, #tpu.memory_space<vmem>>, %arg19: memref<2x8x32xf32, #tpu.memory_space<vmem>>) attributes {dimension_semantics = [#tpu.dimension_semantics<parallel>], iteration_bounds = array<i64: 2>, scalar_prefetch = 0 : i64, scratch_operands = 1 : i64, tpu.core_type = #tpu.core_type<tc>, window_params = [{transform_indices = @transform_0, window_bounds = array<i64: 2, 8, 32>}, {pipeline_mode = #tpu.pipeline_mode<synchronous>, transform_indices = @transform_1, window_bounds = array<i64: 1, 32>}, {pipeline_mode = #tpu.pipeline_mode<synchronous>, transform_indices = @transform_2, window_bounds = array<i64: 1, 32>}, {pipeline_mode = #tpu.pipeline_mode<synchronous>, transform_indices = @transform_3, window_bounds = array<i64: 4, 8, 32>}, {pipeline_mode = #tpu.pipeline_mode<synchronous>, transform_indices = @transform_4, window_bounds = array<i64: 4, 1, 8>}, {pipeline_mode = #tpu.pipeline_mode<synchronous>, transform_indices = @transform_5, window_bounds = array<i64: 4, 8, 32>}, {pipeline_mode = #tpu.pipeline_mode<synchronous>, transform_indices = @transform_6, window_bounds = array<i64: 4, 1, 8>}, {pipeline_mode = #tpu.pipeline_mode<synchronous>, transform_indices = @transform_7, window_bounds = array<i64: 4, 8, 32>}, {pipeline_mode = #tpu.pipeline_mode<synchronous>, transform_indices = @transform_8, window_bounds = array<i64: 4, 1, 8>}, {pipeline_mode = #tpu.pipeline_mode<synchronous>, transform_indices = @transform_9, window_bounds = array<i64: 4, 8, 32>}, {pipeline_mode = #tpu.pipeline_mode<synchronous>, transform_indices = @transform_10, window_bounds = array<i64: 1, 32>}, {pipeline_mode = #tpu.pipeline_mode<synchronous>, transform_indices = @transform_11, window_bounds = array<i64: 1, 32>}, {pipeline_mode = #tpu.pipeline_mode<synchronous>, transform_indices = @transform_12, window_bounds = array<i64: 1, 32>}, {pipeline_mode = #tpu.pipeline_mode<synchronous>, transform_indices = @transform_13, window_bounds = array<i64: 32, 64>}, {pipeline_mode = #tpu.pipeline_mode<synchronous>, transform_indices = @transform_14, window_bounds = array<i64: 1, 64>}, {pipeline_mode = #tpu.pipeline_mode<synchronous>, transform_indices = @transform_15, window_bounds = array<i64: 64, 32>}, {pipeline_mode = #tpu.pipeline_mode<synchronous>, transform_indices = @transform_16, window_bounds = array<i64: 1, 32>}, {transform_indices = @transform_17, window_bounds = array<i64: 2, 8, 32>}]} {
    %c0 = arith.constant 0 : index
    %c0_0 = arith.constant 0 : index
    %c0_1 = arith.constant 0 : index
    %0 = vector.load %arg1[%c0, %c0_0, %c0_1] : memref<2x8x32xf32, #tpu.memory_space<vmem>>, vector<2x8x32xf32>
    %c0_2 = arith.constant 0 : index
    %c0_3 = arith.constant 0 : index
    %1 = vector.load %arg2[%c0_2, %c0_3] : memref<1x32xf32, #tpu.memory_space<vmem>>, vector<1x32xf32>
    %c0_4 = arith.constant 0 : index
    %c0_5 = arith.constant 0 : index
    %2 = vector.load %arg3[%c0_4, %c0_5] : memref<1x32xf32, #tpu.memory_space<vmem>>, vector<1x32xf32>
    %cst = arith.constant dense<0.000000e+00> : vector<2x8xf32>
    %3 = vector.multi_reduction <add>, %0, %cst [2] : vector<2x8x32xf32> to vector<2x8xf32>
    %4 = vector.shape_cast %3 : vector<2x8xf32> to vector<2x8x1xf32>
    %cst_6 = arith.constant 3.200000e+01 : f32
    %5 = vector.broadcast %cst_6 : f32 to vector<2x8x1xf32>
    %6 = arith.divf %4, %5 : vector<2x8x1xf32>
    %7 = vector.broadcast %6 : vector<2x8x1xf32> to vector<2x8x32xf32>
    %8 = arith.subf %0, %7 : vector<2x8x32xf32>
    %9 = arith.mulf %8, %8 : vector<2x8x32xf32>
    %cst_7 = arith.constant dense<0.000000e+00> : vector<2x8xf32>
    %10 = vector.multi_reduction <add>, %9, %cst_7 [2] : vector<2x8x32xf32> to vector<2x8xf32>
    %11 = vector.shape_cast %10 : vector<2x8xf32> to vector<2x8x1xf32>
    %cst_8 = arith.constant 3.200000e+01 : f32
    %12 = vector.broadcast %cst_8 : f32 to vector<2x8x1xf32>
    %13 = arith.divf %11, %12 : vector<2x8x1xf32>
    %cst_9 = arith.constant 9.99999974E-6 : f32
    %14 = vector.broadcast %cst_9 : f32 to vector<2x8x1xf32>
    %15 = arith.addf %13, %14 : vector<2x8x1xf32>
    %16 = math.rsqrt %15 : vector<2x8x1xf32>
    %17 = vector.broadcast %16 : vector<2x8x1xf32> to vector<2x8x32xf32>
    %18 = arith.mulf %8, %17 : vector<2x8x32xf32>
    %19 = vector.shape_cast %1 : vector<1x32xf32> to vector<1x1x32xf32>
    %20 = vector.broadcast %19 : vector<1x1x32xf32> to vector<2x8x32xf32>
    %21 = arith.mulf %18, %20 : vector<2x8x32xf32>
    %22 = vector.shape_cast %2 : vector<1x32xf32> to vector<1x1x32xf32>
    %23 = vector.broadcast %22 : vector<1x1x32xf32> to vector<2x8x32xf32>
    %24 = arith.addf %21, %23 : vector<2x8x32xf32>
    %25 = arith.truncf %24 : vector<2x8x32xf32> to vector<2x8x32xbf16>
    %26 = vector.extract_strided_slice %25 {offsets = [0, 0, 0], sizes = [1, 8, 32], strides = [1, 1, 1]} : vector<2x8x32xbf16> to vector<1x8x32xbf16>
    %27 = vector.shape_cast %26 : vector<1x8x32xbf16> to vector<8x32xbf16>
    %cst_10 = arith.constant 0.000000e+00 : f32
    %28 = vector.broadcast %cst_10 : f32 to vector<8x32xf32>
    %c0_11 = arith.constant 0 : index
    %c0_12 = arith.constant 0 : index
    %c0_13 = arith.constant 0 : index
    %29 = vector.load %arg4[%c0_11, %c0_12, %c0_13] : memref<4x8x32xbf16, #tpu.memory_space<vmem>>, vector<1x8x32xbf16>
    %30 = vector.shape_cast %29 : vector<1x8x32xbf16> to vector<8x32xbf16>
    %cst_14 = arith.constant dense<0.000000e+00> : vector<8x8xf32>
    %31 = tpu.matmul %27, %30, %cst_14 {dimension_numbers = #tpu.dot_dimension_numbers<[1], [1], [0], [0], [0, 0, 1, 0], [], []>} : vector<8x32xbf16>, vector<8x32xbf16>, vector<8x8xf32> -> vector<8x8xf32>
    %c0_15 = arith.constant 0 : index
    %c0_16 = arith.constant 0 : index
    %c0_17 = arith.constant 0 : index
    %32 = vector.load %arg5[%c0_15, %c0_16, %c0_17] : memref<4x1x8xf32, #tpu.memory_space<vmem>>, vector<1x1x8xf32>
    %33 = vector.shape_cast %32 : vector<1x1x8xf32> to vector<1x8xf32>
    %34 = vector.broadcast %33 : vector<1x8xf32> to vector<8x8xf32>
    %35 = arith.addf %31, %34 : vector<8x8xf32>
    %c0_18 = arith.constant 0 : index
    %c0_19 = arith.constant 0 : index
    %c0_20 = arith.constant 0 : index
    %36 = vector.load %arg6[%c0_18, %c0_19, %c0_20] : memref<4x8x32xbf16, #tpu.memory_space<vmem>>, vector<1x8x32xbf16>
    %37 = vector.shape_cast %36 : vector<1x8x32xbf16> to vector<8x32xbf16>
    %cst_21 = arith.constant dense<0.000000e+00> : vector<8x8xf32>
    %38 = tpu.matmul %27, %37, %cst_21 {dimension_numbers = #tpu.dot_dimension_numbers<[1], [1], [0], [0], [0, 0, 1, 0], [], []>} : vector<8x32xbf16>, vector<8x32xbf16>, vector<8x8xf32> -> vector<8x8xf32>
    %c0_22 = arith.constant 0 : index
    %c0_23 = arith.constant 0 : index
    %c0_24 = arith.constant 0 : index
    %39 = vector.load %arg7[%c0_22, %c0_23, %c0_24] : memref<4x1x8xf32, #tpu.memory_space<vmem>>, vector<1x1x8xf32>
    %40 = vector.shape_cast %39 : vector<1x1x8xf32> to vector<1x8xf32>
    %41 = vector.broadcast %40 : vector<1x8xf32> to vector<8x8xf32>
    %42 = arith.addf %38, %41 : vector<8x8xf32>
    %c0_25 = arith.constant 0 : index
    %c0_26 = arith.constant 0 : index
    %c0_27 = arith.constant 0 : index
    %43 = vector.load %arg8[%c0_25, %c0_26, %c0_27] : memref<4x8x32xbf16, #tpu.memory_space<vmem>>, vector<1x8x32xbf16>
    %44 = vector.shape_cast %43 : vector<1x8x32xbf16> to vector<8x32xbf16>
    %cst_28 = arith.constant dense<0.000000e+00> : vector<8x8xf32>
    %45 = tpu.matmul %27, %44, %cst_28 {dimension_numbers = #tpu.dot_dimension_numbers<[1], [1], [0], [0], [0, 0, 1, 0], [], []>} : vector<8x32xbf16>, vector<8x32xbf16>, vector<8x8xf32> -> vector<8x8xf32>
    %c0_29 = arith.constant 0 : index
    %c0_30 = arith.constant 0 : index
    %c0_31 = arith.constant 0 : index
    %46 = vector.load %arg9[%c0_29, %c0_30, %c0_31] : memref<4x1x8xf32, #tpu.memory_space<vmem>>, vector<1x1x8xf32>
    %47 = vector.shape_cast %46 : vector<1x1x8xf32> to vector<1x8xf32>
    %48 = vector.broadcast %47 : vector<1x8xf32> to vector<8x8xf32>
    %49 = arith.addf %45, %48 : vector<8x8xf32>
    %50 = arith.truncf %35 : vector<8x8xf32> to vector<8x8xbf16>
    %51 = arith.truncf %42 : vector<8x8xf32> to vector<8x8xbf16>
    %cst_32 = arith.constant dense<0.000000e+00> : vector<8x8xf32>
    %52 = tpu.matmul %50, %51, %cst_32 {dimension_numbers = #tpu.dot_dimension_numbers<[1], [1], [0], [0], [0, 0, 1, 0], [], []>} : vector<8x8xbf16>, vector<8x8xbf16>, vector<8x8xf32> -> vector<8x8xf32>
    %cst_33 = arith.constant dense<0xFF800000> : vector<8xf32>
    %53 = vector.multi_reduction <maximumf>, %52, %cst_33 [1] : vector<8x8xf32> to vector<8xf32>
    %54 = vector.shape_cast %53 : vector<8xf32> to vector<8x1xf32>
    %55 = vector.broadcast %54 : vector<8x1xf32> to vector<8x8xf32>
    %56 = arith.subf %52, %55 : vector<8x8xf32>
    %57 = math.exp %56 : vector<8x8xf32>
    %cst_34 = arith.constant dense<0.000000e+00> : vector<8xf32>
    %58 = vector.multi_reduction <add>, %57, %cst_34 [1] : vector<8x8xf32> to vector<8xf32>
    %59 = vector.shape_cast %58 : vector<8xf32> to vector<8x1xf32>
    %60 = tpu.reciprocal %59 {approx = true} : vector<8x1xf32> -> vector<8x1xf32>
    %61 = vector.broadcast %60 : vector<8x1xf32> to vector<8x8xf32>
    %62 = arith.mulf %57, %61 : vector<8x8xf32>
    %63 = arith.truncf %62 : vector<8x8xf32> to vector<8x8xbf16>
    %64 = arith.truncf %49 : vector<8x8xf32> to vector<8x8xbf16>
    %cst_35 = arith.constant dense<0.000000e+00> : vector<8x8xf32>
    %65 = tpu.matmul %63, %64, %cst_35 {dimension_numbers = #tpu.dot_dimension_numbers<[1], [0], [0], [1], [0, 0, 1, 1], [], []>} : vector<8x8xbf16>, vector<8x8xbf16>, vector<8x8xf32> -> vector<8x8xf32>
    %66 = arith.truncf %65 : vector<8x8xf32> to vector<8x8xbf16>
    %c0_36 = arith.constant 0 : index
    %c0_37 = arith.constant 0 : index
    %c0_38 = arith.constant 0 : index
    %67 = vector.load %arg10[%c0_36, %c0_37, %c0_38] : memref<4x8x32xbf16, #tpu.memory_space<vmem>>, vector<1x8x32xbf16>
    %68 = vector.shape_cast %67 : vector<1x8x32xbf16> to vector<8x32xbf16>
    %cst_39 = arith.constant dense<0.000000e+00> : vector<8x32xf32>
    %69 = tpu.matmul %66, %68, %cst_39 {dimension_numbers = #tpu.dot_dimension_numbers<[1], [0], [0], [1], [0, 0, 1, 1], [], []>} : vector<8x8xbf16>, vector<8x32xbf16>, vector<8x32xf32> -> vector<8x32xf32>
    %70 = arith.addf %28, %69 : vector<8x32xf32>
    %c1 = arith.constant 1 : index
    %c0_40 = arith.constant 0 : index
    %c0_41 = arith.constant 0 : index
    %71 = vector.load %arg4[%c1, %c0_40, %c0_41] : memref<4x8x32xbf16, #tpu.memory_space<vmem>>, vector<1x8x32xbf16>
    %72 = vector.shape_cast %71 : vector<1x8x32xbf16> to vector<8x32xbf16>
    %cst_42 = arith.constant dense<0.000000e+00> : vector<8x8xf32>
    %73 = tpu.matmul %27, %72, %cst_42 {dimension_numbers = #tpu.dot_dimension_numbers<[1], [1], [0], [0], [0, 0, 1, 0], [], []>} : vector<8x32xbf16>, vector<8x32xbf16>, vector<8x8xf32> -> vector<8x8xf32>
    %c1_43 = arith.constant 1 : index
    %c0_44 = arith.constant 0 : index
    %c0_45 = arith.constant 0 : index
    %74 = vector.load %arg5[%c1_43, %c0_44, %c0_45] : memref<4x1x8xf32, #tpu.memory_space<vmem>>, vector<1x1x8xf32>
    %75 = vector.shape_cast %74 : vector<1x1x8xf32> to vector<1x8xf32>
    %76 = vector.broadcast %75 : vector<1x8xf32> to vector<8x8xf32>
    %77 = arith.addf %73, %76 : vector<8x8xf32>
    %c1_46 = arith.constant 1 : index
    %c0_47 = arith.constant 0 : index
    %c0_48 = arith.constant 0 : index
    %78 = vector.load %arg6[%c1_46, %c0_47, %c0_48] : memref<4x8x32xbf16, #tpu.memory_space<vmem>>, vector<1x8x32xbf16>
    %79 = vector.shape_cast %78 : vector<1x8x32xbf16> to vector<8x32xbf16>
    %cst_49 = arith.constant dense<0.000000e+00> : vector<8x8xf32>
    %80 = tpu.matmul %27, %79, %cst_49 {dimension_numbers = #tpu.dot_dimension_numbers<[1], [1], [0], [0], [0, 0, 1, 0], [], []>} : vector<8x32xbf16>, vector<8x32xbf16>, vector<8x8xf32> -> vector<8x8xf32>
    %c1_50 = arith.constant 1 : index
    %c0_51 = arith.constant 0 : index
    %c0_52 = arith.constant 0 : index
    %81 = vector.load %arg7[%c1_50, %c0_51, %c0_52] : memref<4x1x8xf32, #tpu.memory_space<vmem>>, vector<1x1x8xf32>
    %82 = vector.shape_cast %81 : vector<1x1x8xf32> to vector<1x8xf32>
    %83 = vector.broadcast %82 : vector<1x8xf32> to vector<8x8xf32>
    %84 = arith.addf %80, %83 : vector<8x8xf32>
    %c1_53 = arith.constant 1 : index
    %c0_54 = arith.constant 0 : index
    %c0_55 = arith.constant 0 : index
    %85 = vector.load %arg8[%c1_53, %c0_54, %c0_55] : memref<4x8x32xbf16, #tpu.memory_space<vmem>>, vector<1x8x32xbf16>
    %86 = vector.shape_cast %85 : vector<1x8x32xbf16> to vector<8x32xbf16>
    %cst_56 = arith.constant dense<0.000000e+00> : vector<8x8xf32>
    %87 = tpu.matmul %27, %86, %cst_56 {dimension_numbers = #tpu.dot_dimension_numbers<[1], [1], [0], [0], [0, 0, 1, 0], [], []>} : vector<8x32xbf16>, vector<8x32xbf16>, vector<8x8xf32> -> vector<8x8xf32>
    %c1_57 = arith.constant 1 : index
    %c0_58 = arith.constant 0 : index
    %c0_59 = arith.constant 0 : index
    %88 = vector.load %arg9[%c1_57, %c0_58, %c0_59] : memref<4x1x8xf32, #tpu.memory_space<vmem>>, vector<1x1x8xf32>
    %89 = vector.shape_cast %88 : vector<1x1x8xf32> to vector<1x8xf32>
    %90 = vector.broadcast %89 : vector<1x8xf32> to vector<8x8xf32>
    %91 = arith.addf %87, %90 : vector<8x8xf32>
    %92 = arith.truncf %77 : vector<8x8xf32> to vector<8x8xbf16>
    %93 = arith.truncf %84 : vector<8x8xf32> to vector<8x8xbf16>
    %cst_60 = arith.constant dense<0.000000e+00> : vector<8x8xf32>
    %94 = tpu.matmul %92, %93, %cst_60 {dimension_numbers = #tpu.dot_dimension_numbers<[1], [1], [0], [0], [0, 0, 1, 0], [], []>} : vector<8x8xbf16>, vector<8x8xbf16>, vector<8x8xf32> -> vector<8x8xf32>
    %cst_61 = arith.constant dense<0xFF800000> : vector<8xf32>
    %95 = vector.multi_reduction <maximumf>, %94, %cst_61 [1] : vector<8x8xf32> to vector<8xf32>
    %96 = vector.shape_cast %95 : vector<8xf32> to vector<8x1xf32>
    %97 = vector.broadcast %96 : vector<8x1xf32> to vector<8x8xf32>
    %98 = arith.subf %94, %97 : vector<8x8xf32>
    %99 = math.exp %98 : vector<8x8xf32>
    %cst_62 = arith.constant dense<0.000000e+00> : vector<8xf32>
    %100 = vector.multi_reduction <add>, %99, %cst_62 [1] : vector<8x8xf32> to vector<8xf32>
    %101 = vector.shape_cast %100 : vector<8xf32> to vector<8x1xf32>
    %102 = tpu.reciprocal %101 {approx = true} : vector<8x1xf32> -> vector<8x1xf32>
    %103 = vector.broadcast %102 : vector<8x1xf32> to vector<8x8xf32>
    %104 = arith.mulf %99, %103 : vector<8x8xf32>
    %105 = arith.truncf %104 : vector<8x8xf32> to vector<8x8xbf16>
    %106 = arith.truncf %91 : vector<8x8xf32> to vector<8x8xbf16>
    %cst_63 = arith.constant dense<0.000000e+00> : vector<8x8xf32>
    %107 = tpu.matmul %105, %106, %cst_63 {dimension_numbers = #tpu.dot_dimension_numbers<[1], [0], [0], [1], [0, 0, 1, 1], [], []>} : vector<8x8xbf16>, vector<8x8xbf16>, vector<8x8xf32> -> vector<8x8xf32>
    %108 = arith.truncf %107 : vector<8x8xf32> to vector<8x8xbf16>
    %c1_64 = arith.constant 1 : index
    %c0_65 = arith.constant 0 : index
    %c0_66 = arith.constant 0 : index
    %109 = vector.load %arg10[%c1_64, %c0_65, %c0_66] : memref<4x8x32xbf16, #tpu.memory_space<vmem>>, vector<1x8x32xbf16>
    %110 = vector.shape_cast %109 : vector<1x8x32xbf16> to vector<8x32xbf16>
    %cst_67 = arith.constant dense<0.000000e+00> : vector<8x32xf32>
    %111 = tpu.matmul %108, %110, %cst_67 {dimension_numbers = #tpu.dot_dimension_numbers<[1], [0], [0], [1], [0, 0, 1, 1], [], []>} : vector<8x8xbf16>, vector<8x32xbf16>, vector<8x32xf32> -> vector<8x32xf32>
    %112 = arith.addf %70, %111 : vector<8x32xf32>
    %c2 = arith.constant 2 : index
    %c0_68 = arith.constant 0 : index
    %c0_69 = arith.constant 0 : index
    %113 = vector.load %arg4[%c2, %c0_68, %c0_69] : memref<4x8x32xbf16, #tpu.memory_space<vmem>>, vector<1x8x32xbf16>
    %114 = vector.shape_cast %113 : vector<1x8x32xbf16> to vector<8x32xbf16>
    %cst_70 = arith.constant dense<0.000000e+00> : vector<8x8xf32>
    %115 = tpu.matmul %27, %114, %cst_70 {dimension_numbers = #tpu.dot_dimension_numbers<[1], [1], [0], [0], [0, 0, 1, 0], [], []>} : vector<8x32xbf16>, vector<8x32xbf16>, vector<8x8xf32> -> vector<8x8xf32>
    %c2_71 = arith.constant 2 : index
    %c0_72 = arith.constant 0 : index
    %c0_73 = arith.constant 0 : index
    %116 = vector.load %arg5[%c2_71, %c0_72, %c0_73] : memref<4x1x8xf32, #tpu.memory_space<vmem>>, vector<1x1x8xf32>
    %117 = vector.shape_cast %116 : vector<1x1x8xf32> to vector<1x8xf32>
    %118 = vector.broadcast %117 : vector<1x8xf32> to vector<8x8xf32>
    %119 = arith.addf %115, %118 : vector<8x8xf32>
    %c2_74 = arith.constant 2 : index
    %c0_75 = arith.constant 0 : index
    %c0_76 = arith.constant 0 : index
    %120 = vector.load %arg6[%c2_74, %c0_75, %c0_76] : memref<4x8x32xbf16, #tpu.memory_space<vmem>>, vector<1x8x32xbf16>
    %121 = vector.shape_cast %120 : vector<1x8x32xbf16> to vector<8x32xbf16>
    %cst_77 = arith.constant dense<0.000000e+00> : vector<8x8xf32>
    %122 = tpu.matmul %27, %121, %cst_77 {dimension_numbers = #tpu.dot_dimension_numbers<[1], [1], [0], [0], [0, 0, 1, 0], [], []>} : vector<8x32xbf16>, vector<8x32xbf16>, vector<8x8xf32> -> vector<8x8xf32>
    %c2_78 = arith.constant 2 : index
    %c0_79 = arith.constant 0 : index
    %c0_80 = arith.constant 0 : index
    %123 = vector.load %arg7[%c2_78, %c0_79, %c0_80] : memref<4x1x8xf32, #tpu.memory_space<vmem>>, vector<1x1x8xf32>
    %124 = vector.shape_cast %123 : vector<1x1x8xf32> to vector<1x8xf32>
    %125 = vector.broadcast %124 : vector<1x8xf32> to vector<8x8xf32>
    %126 = arith.addf %122, %125 : vector<8x8xf32>
    %c2_81 = arith.constant 2 : index
    %c0_82 = arith.constant 0 : index
    %c0_83 = arith.constant 0 : index
    %127 = vector.load %arg8[%c2_81, %c0_82, %c0_83] : memref<4x8x32xbf16, #tpu.memory_space<vmem>>, vector<1x8x32xbf16>
    %128 = vector.shape_cast %127 : vector<1x8x32xbf16> to vector<8x32xbf16>
    %cst_84 = arith.constant dense<0.000000e+00> : vector<8x8xf32>
    %129 = tpu.matmul %27, %128, %cst_84 {dimension_numbers = #tpu.dot_dimension_numbers<[1], [1], [0], [0], [0, 0, 1, 0], [], []>} : vector<8x32xbf16>, vector<8x32xbf16>, vector<8x8xf32> -> vector<8x8xf32>
    %c2_85 = arith.constant 2 : index
    %c0_86 = arith.constant 0 : index
    %c0_87 = arith.constant 0 : index
    %130 = vector.load %arg9[%c2_85, %c0_86, %c0_87] : memref<4x1x8xf32, #tpu.memory_space<vmem>>, vector<1x1x8xf32>
    %131 = vector.shape_cast %130 : vector<1x1x8xf32> to vector<1x8xf32>
    %132 = vector.broadcast %131 : vector<1x8xf32> to vector<8x8xf32>
    %133 = arith.addf %129, %132 : vector<8x8xf32>
    %134 = arith.truncf %119 : vector<8x8xf32> to vector<8x8xbf16>
    %135 = arith.truncf %126 : vector<8x8xf32> to vector<8x8xbf16>
    %cst_88 = arith.constant dense<0.000000e+00> : vector<8x8xf32>
    %136 = tpu.matmul %134, %135, %cst_88 {dimension_numbers = #tpu.dot_dimension_numbers<[1], [1], [0], [0], [0, 0, 1, 0], [], []>} : vector<8x8xbf16>, vector<8x8xbf16>, vector<8x8xf32> -> vector<8x8xf32>
    %cst_89 = arith.constant dense<0xFF800000> : vector<8xf32>
    %137 = vector.multi_reduction <maximumf>, %136, %cst_89 [1] : vector<8x8xf32> to vector<8xf32>
    %138 = vector.shape_cast %137 : vector<8xf32> to vector<8x1xf32>
    %139 = vector.broadcast %138 : vector<8x1xf32> to vector<8x8xf32>
    %140 = arith.subf %136, %139 : vector<8x8xf32>
    %141 = math.exp %140 : vector<8x8xf32>
    %cst_90 = arith.constant dense<0.000000e+00> : vector<8xf32>
    %142 = vector.multi_reduction <add>, %141, %cst_90 [1] : vector<8x8xf32> to vector<8xf32>
    %143 = vector.shape_cast %142 : vector<8xf32> to vector<8x1xf32>
    %144 = tpu.reciprocal %143 {approx = true} : vector<8x1xf32> -> vector<8x1xf32>
    %145 = vector.broadcast %144 : vector<8x1xf32> to vector<8x8xf32>
    %146 = arith.mulf %141, %145 : vector<8x8xf32>
    %147 = arith.truncf %146 : vector<8x8xf32> to vector<8x8xbf16>
    %148 = arith.truncf %133 : vector<8x8xf32> to vector<8x8xbf16>
    %cst_91 = arith.constant dense<0.000000e+00> : vector<8x8xf32>
    %149 = tpu.matmul %147, %148, %cst_91 {dimension_numbers = #tpu.dot_dimension_numbers<[1], [0], [0], [1], [0, 0, 1, 1], [], []>} : vector<8x8xbf16>, vector<8x8xbf16>, vector<8x8xf32> -> vector<8x8xf32>
    %150 = arith.truncf %149 : vector<8x8xf32> to vector<8x8xbf16>
    %c2_92 = arith.constant 2 : index
    %c0_93 = arith.constant 0 : index
    %c0_94 = arith.constant 0 : index
    %151 = vector.load %arg10[%c2_92, %c0_93, %c0_94] : memref<4x8x32xbf16, #tpu.memory_space<vmem>>, vector<1x8x32xbf16>
    %152 = vector.shape_cast %151 : vector<1x8x32xbf16> to vector<8x32xbf16>
    %cst_95 = arith.constant dense<0.000000e+00> : vector<8x32xf32>
    %153 = tpu.matmul %150, %152, %cst_95 {dimension_numbers = #tpu.dot_dimension_numbers<[1], [0], [0], [1], [0, 0, 1, 1], [], []>} : vector<8x8xbf16>, vector<8x32xbf16>, vector<8x32xf32> -> vector<8x32xf32>
    %154 = arith.addf %112, %153 : vector<8x32xf32>
    %c3 = arith.constant 3 : index
    %c0_96 = arith.constant 0 : index
    %c0_97 = arith.constant 0 : index
    %155 = vector.load %arg4[%c3, %c0_96, %c0_97] : memref<4x8x32xbf16, #tpu.memory_space<vmem>>, vector<1x8x32xbf16>
    %156 = vector.shape_cast %155 : vector<1x8x32xbf16> to vector<8x32xbf16>
    %cst_98 = arith.constant dense<0.000000e+00> : vector<8x8xf32>
    %157 = tpu.matmul %27, %156, %cst_98 {dimension_numbers = #tpu.dot_dimension_numbers<[1], [1], [0], [0], [0, 0, 1, 0], [], []>} : vector<8x32xbf16>, vector<8x32xbf16>, vector<8x8xf32> -> vector<8x8xf32>
    %c3_99 = arith.constant 3 : index
    %c0_100 = arith.constant 0 : index
    %c0_101 = arith.constant 0 : index
    %158 = vector.load %arg5[%c3_99, %c0_100, %c0_101] : memref<4x1x8xf32, #tpu.memory_space<vmem>>, vector<1x1x8xf32>
    %159 = vector.shape_cast %158 : vector<1x1x8xf32> to vector<1x8xf32>
    %160 = vector.broadcast %159 : vector<1x8xf32> to vector<8x8xf32>
    %161 = arith.addf %157, %160 : vector<8x8xf32>
    %c3_102 = arith.constant 3 : index
    %c0_103 = arith.constant 0 : index
    %c0_104 = arith.constant 0 : index
    %162 = vector.load %arg6[%c3_102, %c0_103, %c0_104] : memref<4x8x32xbf16, #tpu.memory_space<vmem>>, vector<1x8x32xbf16>
    %163 = vector.shape_cast %162 : vector<1x8x32xbf16> to vector<8x32xbf16>
    %cst_105 = arith.constant dense<0.000000e+00> : vector<8x8xf32>
    %164 = tpu.matmul %27, %163, %cst_105 {dimension_numbers = #tpu.dot_dimension_numbers<[1], [1], [0], [0], [0, 0, 1, 0], [], []>} : vector<8x32xbf16>, vector<8x32xbf16>, vector<8x8xf32> -> vector<8x8xf32>
    %c3_106 = arith.constant 3 : index
    %c0_107 = arith.constant 0 : index
    %c0_108 = arith.constant 0 : index
    %165 = vector.load %arg7[%c3_106, %c0_107, %c0_108] : memref<4x1x8xf32, #tpu.memory_space<vmem>>, vector<1x1x8xf32>
    %166 = vector.shape_cast %165 : vector<1x1x8xf32> to vector<1x8xf32>
    %167 = vector.broadcast %166 : vector<1x8xf32> to vector<8x8xf32>
    %168 = arith.addf %164, %167 : vector<8x8xf32>
    %c3_109 = arith.constant 3 : index
    %c0_110 = arith.constant 0 : index
    %c0_111 = arith.constant 0 : index
    %169 = vector.load %arg8[%c3_109, %c0_110, %c0_111] : memref<4x8x32xbf16, #tpu.memory_space<vmem>>, vector<1x8x32xbf16>
    %170 = vector.shape_cast %169 : vector<1x8x32xbf16> to vector<8x32xbf16>
    %cst_112 = arith.constant dense<0.000000e+00> : vector<8x8xf32>
    %171 = tpu.matmul %27, %170, %cst_112 {dimension_numbers = #tpu.dot_dimension_numbers<[1], [1], [0], [0], [0, 0, 1, 0], [], []>} : vector<8x32xbf16>, vector<8x32xbf16>, vector<8x8xf32> -> vector<8x8xf32>
    %c3_113 = arith.constant 3 : index
    %c0_114 = arith.constant 0 : index
    %c0_115 = arith.constant 0 : index
    %172 = vector.load %arg9[%c3_113, %c0_114, %c0_115] : memref<4x1x8xf32, #tpu.memory_space<vmem>>, vector<1x1x8xf32>
    %173 = vector.shape_cast %172 : vector<1x1x8xf32> to vector<1x8xf32>
    %174 = vector.broadcast %173 : vector<1x8xf32> to vector<8x8xf32>
    %175 = arith.addf %171, %174 : vector<8x8xf32>
    %176 = arith.truncf %161 : vector<8x8xf32> to vector<8x8xbf16>
    %177 = arith.truncf %168 : vector<8x8xf32> to vector<8x8xbf16>
    %cst_116 = arith.constant dense<0.000000e+00> : vector<8x8xf32>
    %178 = tpu.matmul %176, %177, %cst_116 {dimension_numbers = #tpu.dot_dimension_numbers<[1], [1], [0], [0], [0, 0, 1, 0], [], []>} : vector<8x8xbf16>, vector<8x8xbf16>, vector<8x8xf32> -> vector<8x8xf32>
    %cst_117 = arith.constant dense<0xFF800000> : vector<8xf32>
    %179 = vector.multi_reduction <maximumf>, %178, %cst_117 [1] : vector<8x8xf32> to vector<8xf32>
    %180 = vector.shape_cast %179 : vector<8xf32> to vector<8x1xf32>
    %181 = vector.broadcast %180 : vector<8x1xf32> to vector<8x8xf32>
    %182 = arith.subf %178, %181 : vector<8x8xf32>
    %183 = math.exp %182 : vector<8x8xf32>
    %cst_118 = arith.constant dense<0.000000e+00> : vector<8xf32>
    %184 = vector.multi_reduction <add>, %183, %cst_118 [1] : vector<8x8xf32> to vector<8xf32>
    %185 = vector.shape_cast %184 : vector<8xf32> to vector<8x1xf32>
    %186 = tpu.reciprocal %185 {approx = true} : vector<8x1xf32> -> vector<8x1xf32>
    %187 = vector.broadcast %186 : vector<8x1xf32> to vector<8x8xf32>
    %188 = arith.mulf %183, %187 : vector<8x8xf32>
    %189 = arith.truncf %188 : vector<8x8xf32> to vector<8x8xbf16>
    %190 = arith.truncf %175 : vector<8x8xf32> to vector<8x8xbf16>
    %cst_119 = arith.constant dense<0.000000e+00> : vector<8x8xf32>
    %191 = tpu.matmul %189, %190, %cst_119 {dimension_numbers = #tpu.dot_dimension_numbers<[1], [0], [0], [1], [0, 0, 1, 1], [], []>} : vector<8x8xbf16>, vector<8x8xbf16>, vector<8x8xf32> -> vector<8x8xf32>
    %192 = arith.truncf %191 : vector<8x8xf32> to vector<8x8xbf16>
    %c3_120 = arith.constant 3 : index
    %c0_121 = arith.constant 0 : index
    %c0_122 = arith.constant 0 : index
    %193 = vector.load %arg10[%c3_120, %c0_121, %c0_122] : memref<4x8x32xbf16, #tpu.memory_space<vmem>>, vector<1x8x32xbf16>
    %194 = vector.shape_cast %193 : vector<1x8x32xbf16> to vector<8x32xbf16>
    %cst_123 = arith.constant dense<0.000000e+00> : vector<8x32xf32>
    %195 = tpu.matmul %192, %194, %cst_123 {dimension_numbers = #tpu.dot_dimension_numbers<[1], [0], [0], [1], [0, 0, 1, 1], [], []>} : vector<8x8xbf16>, vector<8x32xbf16>, vector<8x32xf32> -> vector<8x32xf32>
    %196 = arith.addf %154, %195 : vector<8x32xf32>
    %197 = vector.extract_strided_slice %0 {offsets = [0, 0, 0], sizes = [1, 8, 32], strides = [1, 1, 1]} : vector<2x8x32xf32> to vector<1x8x32xf32>
    %198 = vector.shape_cast %197 : vector<1x8x32xf32> to vector<8x32xf32>
    %199 = arith.addf %198, %196 : vector<8x32xf32>
    %c0_124 = arith.constant 0 : index
    %c0_125 = arith.constant 0 : index
    %200 = vector.load %arg11[%c0_124, %c0_125] : memref<1x32xf32, #tpu.memory_space<vmem>>, vector<1x32xf32>
    %201 = vector.broadcast %200 : vector<1x32xf32> to vector<8x32xf32>
    %202 = arith.addf %199, %201 : vector<8x32xf32>
    %c0_126 = arith.constant 0 : index
    %c0_127 = arith.constant 0 : index
    %c0_128 = arith.constant 0 : index
    %203 = vector.load %arg19[%c0_126, %c0_127, %c0_128] : memref<2x8x32xf32, #tpu.memory_space<vmem>>, vector<1x8x32xf32>
    %204 = vector.shape_cast %203 : vector<1x8x32xf32> to vector<8x32xf32>
    %205 = vector.shape_cast %202 : vector<8x32xf32> to vector<1x8x32xf32>
    tpu.vector_store %arg19[%c0_126, %c0_127, %c0_128], %205 {strides = array<i32>} : memref<2x8x32xf32, #tpu.memory_space<vmem>>, vector<1x8x32xf32>,
    %206 = vector.extract_strided_slice %25 {offsets = [1, 0, 0], sizes = [1, 8, 32], strides = [1, 1, 1]} : vector<2x8x32xbf16> to vector<1x8x32xbf16>
    %207 = vector.shape_cast %206 : vector<1x8x32xbf16> to vector<8x32xbf16>
    %cst_129 = arith.constant 0.000000e+00 : f32
    %208 = vector.broadcast %cst_129 : f32 to vector<8x32xf32>
    %c0_130 = arith.constant 0 : index
    %c0_131 = arith.constant 0 : index
    %c0_132 = arith.constant 0 : index
    %209 = vector.load %arg4[%c0_130, %c0_131, %c0_132] : memref<4x8x32xbf16, #tpu.memory_space<vmem>>, vector<1x8x32xbf16>
    %210 = vector.shape_cast %209 : vector<1x8x32xbf16> to vector<8x32xbf16>
    %cst_133 = arith.constant dense<0.000000e+00> : vector<8x8xf32>
    %211 = tpu.matmul %207, %210, %cst_133 {dimension_numbers = #tpu.dot_dimension_numbers<[1], [1], [0], [0], [0, 0, 1, 0], [], []>} : vector<8x32xbf16>, vector<8x32xbf16>, vector<8x8xf32> -> vector<8x8xf32>
    %c0_134 = arith.constant 0 : index
    %c0_135 = arith.constant 0 : index
    %c0_136 = arith.constant 0 : index
    %212 = vector.load %arg5[%c0_134, %c0_135, %c0_136] : memref<4x1x8xf32, #tpu.memory_space<vmem>>, vector<1x1x8xf32>
    %213 = vector.shape_cast %212 : vector<1x1x8xf32> to vector<1x8xf32>
    %214 = vector.broadcast %213 : vector<1x8xf32> to vector<8x8xf32>
    %215 = arith.addf %211, %214 : vector<8x8xf32>
    %c0_137 = arith.constant 0 : index
    %c0_138 = arith.constant 0 : index
    %c0_139 = arith.constant 0 : index
    %216 = vector.load %arg6[%c0_137, %c0_138, %c0_139] : memref<4x8x32xbf16, #tpu.memory_space<vmem>>, vector<1x8x32xbf16>
    %217 = vector.shape_cast %216 : vector<1x8x32xbf16> to vector<8x32xbf16>
    %cst_140 = arith.constant dense<0.000000e+00> : vector<8x8xf32>
    %218 = tpu.matmul %207, %217, %cst_140 {dimension_numbers = #tpu.dot_dimension_numbers<[1], [1], [0], [0], [0, 0, 1, 0], [], []>} : vector<8x32xbf16>, vector<8x32xbf16>, vector<8x8xf32> -> vector<8x8xf32>
    %c0_141 = arith.constant 0 : index
    %c0_142 = arith.constant 0 : index
    %c0_143 = arith.constant 0 : index
    %219 = vector.load %arg7[%c0_141, %c0_142, %c0_143] : memref<4x1x8xf32, #tpu.memory_space<vmem>>, vector<1x1x8xf32>
    %220 = vector.shape_cast %219 : vector<1x1x8xf32> to vector<1x8xf32>
    %221 = vector.broadcast %220 : vector<1x8xf32> to vector<8x8xf32>
    %222 = arith.addf %218, %221 : vector<8x8xf32>
    %c0_144 = arith.constant 0 : index
    %c0_145 = arith.constant 0 : index
    %c0_146 = arith.constant 0 : index
    %223 = vector.load %arg8[%c0_144, %c0_145, %c0_146] : memref<4x8x32xbf16, #tpu.memory_space<vmem>>, vector<1x8x32xbf16>
    %224 = vector.shape_cast %223 : vector<1x8x32xbf16> to vector<8x32xbf16>
    %cst_147 = arith.constant dense<0.000000e+00> : vector<8x8xf32>
    %225 = tpu.matmul %207, %224, %cst_147 {dimension_numbers = #tpu.dot_dimension_numbers<[1], [1], [0], [0], [0, 0, 1, 0], [], []>} : vector<8x32xbf16>, vector<8x32xbf16>, vector<8x8xf32> -> vector<8x8xf32>
    %c0_148 = arith.constant 0 : index
    %c0_149 = arith.constant 0 : index
    %c0_150 = arith.constant 0 : index
    %226 = vector.load %arg9[%c0_148, %c0_149, %c0_150] : memref<4x1x8xf32, #tpu.memory_space<vmem>>, vector<1x1x8xf32>
    %227 = vector.shape_cast %226 : vector<1x1x8xf32> to vector<1x8xf32>
    %228 = vector.broadcast %227 : vector<1x8xf32> to vector<8x8xf32>
    %229 = arith.addf %225, %228 : vector<8x8xf32>
    %230 = arith.truncf %215 : vector<8x8xf32> to vector<8x8xbf16>
    %231 = arith.truncf %222 : vector<8x8xf32> to vector<8x8xbf16>
    %cst_151 = arith.constant dense<0.000000e+00> : vector<8x8xf32>
    %232 = tpu.matmul %230, %231, %cst_151 {dimension_numbers = #tpu.dot_dimension_numbers<[1], [1], [0], [0], [0, 0, 1, 0], [], []>} : vector<8x8xbf16>, vector<8x8xbf16>, vector<8x8xf32> -> vector<8x8xf32>
    %cst_152 = arith.constant dense<0xFF800000> : vector<8xf32>
    %233 = vector.multi_reduction <maximumf>, %232, %cst_152 [1] : vector<8x8xf32> to vector<8xf32>
    %234 = vector.shape_cast %233 : vector<8xf32> to vector<8x1xf32>
    %235 = vector.broadcast %234 : vector<8x1xf32> to vector<8x8xf32>
    %236 = arith.subf %232, %235 : vector<8x8xf32>
    %237 = math.exp %236 : vector<8x8xf32>
    %cst_153 = arith.constant dense<0.000000e+00> : vector<8xf32>
    %238 = vector.multi_reduction <add>, %237, %cst_153 [1] : vector<8x8xf32> to vector<8xf32>
    %239 = vector.shape_cast %238 : vector<8xf32> to vector<8x1xf32>
    %240 = tpu.reciprocal %239 {approx = true} : vector<8x1xf32> -> vector<8x1xf32>
    %241 = vector.broadcast %240 : vector<8x1xf32> to vector<8x8xf32>
    %242 = arith.mulf %237, %241 : vector<8x8xf32>
    %243 = arith.truncf %242 : vector<8x8xf32> to vector<8x8xbf16>
    %244 = arith.truncf %229 : vector<8x8xf32> to vector<8x8xbf16>
    %cst_154 = arith.constant dense<0.000000e+00> : vector<8x8xf32>
    %245 = tpu.matmul %243, %244, %cst_154 {dimension_numbers = #tpu.dot_dimension_numbers<[1], [0], [0], [1], [0, 0, 1, 1], [], []>} : vector<8x8xbf16>, vector<8x8xbf16>, vector<8x8xf32> -> vector<8x8xf32>
    %246 = arith.truncf %245 : vector<8x8xf32> to vector<8x8xbf16>
    %c0_155 = arith.constant 0 : index
    %c0_156 = arith.constant 0 : index
    %c0_157 = arith.constant 0 : index
    %247 = vector.load %arg10[%c0_155, %c0_156, %c0_157] : memref<4x8x32xbf16, #tpu.memory_space<vmem>>, vector<1x8x32xbf16>
    %248 = vector.shape_cast %247 : vector<1x8x32xbf16> to vector<8x32xbf16>
    %cst_158 = arith.constant dense<0.000000e+00> : vector<8x32xf32>
    %249 = tpu.matmul %246, %248, %cst_158 {dimension_numbers = #tpu.dot_dimension_numbers<[1], [0], [0], [1], [0, 0, 1, 1], [], []>} : vector<8x8xbf16>, vector<8x32xbf16>, vector<8x32xf32> -> vector<8x32xf32>
    %250 = arith.addf %208, %249 : vector<8x32xf32>
    %c1_159 = arith.constant 1 : index
    %c0_160 = arith.constant 0 : index
    %c0_161 = arith.constant 0 : index
    %251 = vector.load %arg4[%c1_159, %c0_160, %c0_161] : memref<4x8x32xbf16, #tpu.memory_space<vmem>>, vector<1x8x32xbf16>
    %252 = vector.shape_cast %251 : vector<1x8x32xbf16> to vector<8x32xbf16>
    %cst_162 = arith.constant dense<0.000000e+00> : vector<8x8xf32>
    %253 = tpu.matmul %207, %252, %cst_162 {dimension_numbers = #tpu.dot_dimension_numbers<[1], [1], [0], [0], [0, 0, 1, 0], [], []>} : vector<8x32xbf16>, vector<8x32xbf16>, vector<8x8xf32> -> vector<8x8xf32>
    %c1_163 = arith.constant 1 : index
    %c0_164 = arith.constant 0 : index
    %c0_165 = arith.constant 0 : index
    %254 = vector.load %arg5[%c1_163, %c0_164, %c0_165] : memref<4x1x8xf32, #tpu.memory_space<vmem>>, vector<1x1x8xf32>
    %255 = vector.shape_cast %254 : vector<1x1x8xf32> to vector<1x8xf32>
    %256 = vector.broadcast %255 : vector<1x8xf32> to vector<8x8xf32>
    %257 = arith.addf %253, %256 : vector<8x8xf32>
    %c1_166 = arith.constant 1 : index
    %c0_167 = arith.constant 0 : index
    %c0_168 = arith.constant 0 : index
    %258 = vector.load %arg6[%c1_166, %c0_167, %c0_168] : memref<4x8x32xbf16, #tpu.memory_space<vmem>>, vector<1x8x32xbf16>
    %259 = vector.shape_cast %258 : vector<1x8x32xbf16> to vector<8x32xbf16>
    %cst_169 = arith.constant dense<0.000000e+00> : vector<8x8xf32>
    %260 = tpu.matmul %207, %259, %cst_169 {dimension_numbers = #tpu.dot_dimension_numbers<[1], [1], [0], [0], [0, 0, 1, 0], [], []>} : vector<8x32xbf16>, vector<8x32xbf16>, vector<8x8xf32> -> vector<8x8xf32>
    %c1_170 = arith.constant 1 : index
    %c0_171 = arith.constant 0 : index
    %c0_172 = arith.constant 0 : index
    %261 = vector.load %arg7[%c1_170, %c0_171, %c0_172] : memref<4x1x8xf32, #tpu.memory_space<vmem>>, vector<1x1x8xf32>
    %262 = vector.shape_cast %261 : vector<1x1x8xf32> to vector<1x8xf32>
    %263 = vector.broadcast %262 : vector<1x8xf32> to vector<8x8xf32>
    %264 = arith.addf %260, %263 : vector<8x8xf32>
    %c1_173 = arith.constant 1 : index
    %c0_174 = arith.constant 0 : index
    %c0_175 = arith.constant 0 : index
    %265 = vector.load %arg8[%c1_173, %c0_174, %c0_175] : memref<4x8x32xbf16, #tpu.memory_space<vmem>>, vector<1x8x32xbf16>
    %266 = vector.shape_cast %265 : vector<1x8x32xbf16> to vector<8x32xbf16>
    %cst_176 = arith.constant dense<0.000000e+00> : vector<8x8xf32>
    %267 = tpu.matmul %207, %266, %cst_176 {dimension_numbers = #tpu.dot_dimension_numbers<[1], [1], [0], [0], [0, 0, 1, 0], [], []>} : vector<8x32xbf16>, vector<8x32xbf16>, vector<8x8xf32> -> vector<8x8xf32>
    %c1_177 = arith.constant 1 : index
    %c0_178 = arith.constant 0 : index
    %c0_179 = arith.constant 0 : index
    %268 = vector.load %arg9[%c1_177, %c0_178, %c0_179] : memref<4x1x8xf32, #tpu.memory_space<vmem>>, vector<1x1x8xf32>
    %269 = vector.shape_cast %268 : vector<1x1x8xf32> to vector<1x8xf32>
    %270 = vector.broadcast %269 : vector<1x8xf32> to vector<8x8xf32>
    %271 = arith.addf %267, %270 : vector<8x8xf32>
    %272 = arith.truncf %257 : vector<8x8xf32> to vector<8x8xbf16>
    %273 = arith.truncf %264 : vector<8x8xf32> to vector<8x8xbf16>
    %cst_180 = arith.constant dense<0.000000e+00> : vector<8x8xf32>
    %274 = tpu.matmul %272, %273, %cst_180 {dimension_numbers = #tpu.dot_dimension_numbers<[1], [1], [0], [0], [0, 0, 1, 0], [], []>} : vector<8x8xbf16>, vector<8x8xbf16>, vector<8x8xf32> -> vector<8x8xf32>
    %cst_181 = arith.constant dense<0xFF800000> : vector<8xf32>
    %275 = vector.multi_reduction <maximumf>, %274, %cst_181 [1] : vector<8x8xf32> to vector<8xf32>
    %276 = vector.shape_cast %275 : vector<8xf32> to vector<8x1xf32>
    %277 = vector.broadcast %276 : vector<8x1xf32> to vector<8x8xf32>
    %278 = arith.subf %274, %277 : vector<8x8xf32>
    %279 = math.exp %278 : vector<8x8xf32>
    %cst_182 = arith.constant dense<0.000000e+00> : vector<8xf32>
    %280 = vector.multi_reduction <add>, %279, %cst_182 [1] : vector<8x8xf32> to vector<8xf32>
    %281 = vector.shape_cast %280 : vector<8xf32> to vector<8x1xf32>
    %282 = tpu.reciprocal %281 {approx = true} : vector<8x1xf32> -> vector<8x1xf32>
    %283 = vector.broadcast %282 : vector<8x1xf32> to vector<8x8xf32>
    %284 = arith.mulf %279, %283 : vector<8x8xf32>
    %285 = arith.truncf %284 : vector<8x8xf32> to vector<8x8xbf16>
    %286 = arith.truncf %271 : vector<8x8xf32> to vector<8x8xbf16>
    %cst_183 = arith.constant dense<0.000000e+00> : vector<8x8xf32>
    %287 = tpu.matmul %285, %286, %cst_183 {dimension_numbers = #tpu.dot_dimension_numbers<[1], [0], [0], [1], [0, 0, 1, 1], [], []>} : vector<8x8xbf16>, vector<8x8xbf16>, vector<8x8xf32> -> vector<8x8xf32>
    %288 = arith.truncf %287 : vector<8x8xf32> to vector<8x8xbf16>
    %c1_184 = arith.constant 1 : index
    %c0_185 = arith.constant 0 : index
    %c0_186 = arith.constant 0 : index
    %289 = vector.load %arg10[%c1_184, %c0_185, %c0_186] : memref<4x8x32xbf16, #tpu.memory_space<vmem>>, vector<1x8x32xbf16>
    %290 = vector.shape_cast %289 : vector<1x8x32xbf16> to vector<8x32xbf16>
    %cst_187 = arith.constant dense<0.000000e+00> : vector<8x32xf32>
    %291 = tpu.matmul %288, %290, %cst_187 {dimension_numbers = #tpu.dot_dimension_numbers<[1], [0], [0], [1], [0, 0, 1, 1], [], []>} : vector<8x8xbf16>, vector<8x32xbf16>, vector<8x32xf32> -> vector<8x32xf32>
    %292 = arith.addf %250, %291 : vector<8x32xf32>
    %c2_188 = arith.constant 2 : index
    %c0_189 = arith.constant 0 : index
    %c0_190 = arith.constant 0 : index
    %293 = vector.load %arg4[%c2_188, %c0_189, %c0_190] : memref<4x8x32xbf16, #tpu.memory_space<vmem>>, vector<1x8x32xbf16>
    %294 = vector.shape_cast %293 : vector<1x8x32xbf16> to vector<8x32xbf16>
    %cst_191 = arith.constant dense<0.000000e+00> : vector<8x8xf32>
    %295 = tpu.matmul %207, %294, %cst_191 {dimension_numbers = #tpu.dot_dimension_numbers<[1], [1], [0], [0], [0, 0, 1, 0], [], []>} : vector<8x32xbf16>, vector<8x32xbf16>, vector<8x8xf32> -> vector<8x8xf32>
    %c2_192 = arith.constant 2 : index
    %c0_193 = arith.constant 0 : index
    %c0_194 = arith.constant 0 : index
    %296 = vector.load %arg5[%c2_192, %c0_193, %c0_194] : memref<4x1x8xf32, #tpu.memory_space<vmem>>, vector<1x1x8xf32>
    %297 = vector.shape_cast %296 : vector<1x1x8xf32> to vector<1x8xf32>
    %298 = vector.broadcast %297 : vector<1x8xf32> to vector<8x8xf32>
    %299 = arith.addf %295, %298 : vector<8x8xf32>
    %c2_195 = arith.constant 2 : index
    %c0_196 = arith.constant 0 : index
    %c0_197 = arith.constant 0 : index
    %300 = vector.load %arg6[%c2_195, %c0_196, %c0_197] : memref<4x8x32xbf16, #tpu.memory_space<vmem>>, vector<1x8x32xbf16>
    %301 = vector.shape_cast %300 : vector<1x8x32xbf16> to vector<8x32xbf16>
    %cst_198 = arith.constant dense<0.000000e+00> : vector<8x8xf32>
    %302 = tpu.matmul %207, %301, %cst_198 {dimension_numbers = #tpu.dot_dimension_numbers<[1], [1], [0], [0], [0, 0, 1, 0], [], []>} : vector<8x32xbf16>, vector<8x32xbf16>, vector<8x8xf32> -> vector<8x8xf32>
    %c2_199 = arith.constant 2 : index
    %c0_200 = arith.constant 0 : index
    %c0_201 = arith.constant 0 : index
    %303 = vector.load %arg7[%c2_199, %c0_200, %c0_201] : memref<4x1x8xf32, #tpu.memory_space<vmem>>, vector<1x1x8xf32>
    %304 = vector.shape_cast %303 : vector<1x1x8xf32> to vector<1x8xf32>
    %305 = vector.broadcast %304 : vector<1x8xf32> to vector<8x8xf32>
    %306 = arith.addf %302, %305 : vector<8x8xf32>
    %c2_202 = arith.constant 2 : index
    %c0_203 = arith.constant 0 : index
    %c0_204 = arith.constant 0 : index
    %307 = vector.load %arg8[%c2_202, %c0_203, %c0_204] : memref<4x8x32xbf16, #tpu.memory_space<vmem>>, vector<1x8x32xbf16>
    %308 = vector.shape_cast %307 : vector<1x8x32xbf16> to vector<8x32xbf16>
    %cst_205 = arith.constant dense<0.000000e+00> : vector<8x8xf32>
    %309 = tpu.matmul %207, %308, %cst_205 {dimension_numbers = #tpu.dot_dimension_numbers<[1], [1], [0], [0], [0, 0, 1, 0], [], []>} : vector<8x32xbf16>, vector<8x32xbf16>, vector<8x8xf32> -> vector<8x8xf32>
    %c2_206 = arith.constant 2 : index
    %c0_207 = arith.constant 0 : index
    %c0_208 = arith.constant 0 : index
    %310 = vector.load %arg9[%c2_206, %c0_207, %c0_208] : memref<4x1x8xf32, #tpu.memory_space<vmem>>, vector<1x1x8xf32>
    %311 = vector.shape_cast %310 : vector<1x1x8xf32> to vector<1x8xf32>
    %312 = vector.broadcast %311 : vector<1x8xf32> to vector<8x8xf32>
    %313 = arith.addf %309, %312 : vector<8x8xf32>
    %314 = arith.truncf %299 : vector<8x8xf32> to vector<8x8xbf16>
    %315 = arith.truncf %306 : vector<8x8xf32> to vector<8x8xbf16>
    %cst_209 = arith.constant dense<0.000000e+00> : vector<8x8xf32>
    %316 = tpu.matmul %314, %315, %cst_209 {dimension_numbers = #tpu.dot_dimension_numbers<[1], [1], [0], [0], [0, 0, 1, 0], [], []>} : vector<8x8xbf16>, vector<8x8xbf16>, vector<8x8xf32> -> vector<8x8xf32>
    %cst_210 = arith.constant dense<0xFF800000> : vector<8xf32>
    %317 = vector.multi_reduction <maximumf>, %316, %cst_210 [1] : vector<8x8xf32> to vector<8xf32>
    %318 = vector.shape_cast %317 : vector<8xf32> to vector<8x1xf32>
    %319 = vector.broadcast %318 : vector<8x1xf32> to vector<8x8xf32>
    %320 = arith.subf %316, %319 : vector<8x8xf32>
    %321 = math.exp %320 : vector<8x8xf32>
    %cst_211 = arith.constant dense<0.000000e+00> : vector<8xf32>
    %322 = vector.multi_reduction <add>, %321, %cst_211 [1] : vector<8x8xf32> to vector<8xf32>
    %323 = vector.shape_cast %322 : vector<8xf32> to vector<8x1xf32>
    %324 = tpu.reciprocal %323 {approx = true} : vector<8x1xf32> -> vector<8x1xf32>
    %325 = vector.broadcast %324 : vector<8x1xf32> to vector<8x8xf32>
    %326 = arith.mulf %321, %325 : vector<8x8xf32>
    %327 = arith.truncf %326 : vector<8x8xf32> to vector<8x8xbf16>
    %328 = arith.truncf %313 : vector<8x8xf32> to vector<8x8xbf16>
    %cst_212 = arith.constant dense<0.000000e+00> : vector<8x8xf32>
    %329 = tpu.matmul %327, %328, %cst_212 {dimension_numbers = #tpu.dot_dimension_numbers<[1], [0], [0], [1], [0, 0, 1, 1], [], []>} : vector<8x8xbf16>, vector<8x8xbf16>, vector<8x8xf32> -> vector<8x8xf32>
    %330 = arith.truncf %329 : vector<8x8xf32> to vector<8x8xbf16>
    %c2_213 = arith.constant 2 : index
    %c0_214 = arith.constant 0 : index
    %c0_215 = arith.constant 0 : index
    %331 = vector.load %arg10[%c2_213, %c0_214, %c0_215] : memref<4x8x32xbf16, #tpu.memory_space<vmem>>, vector<1x8x32xbf16>
    %332 = vector.shape_cast %331 : vector<1x8x32xbf16> to vector<8x32xbf16>
    %cst_216 = arith.constant dense<0.000000e+00> : vector<8x32xf32>
    %333 = tpu.matmul %330, %332, %cst_216 {dimension_numbers = #tpu.dot_dimension_numbers<[1], [0], [0], [1], [0, 0, 1, 1], [], []>} : vector<8x8xbf16>, vector<8x32xbf16>, vector<8x32xf32> -> vector<8x32xf32>
    %334 = arith.addf %292, %333 : vector<8x32xf32>
    %c3_217 = arith.constant 3 : index
    %c0_218 = arith.constant 0 : index
    %c0_219 = arith.constant 0 : index
    %335 = vector.load %arg4[%c3_217, %c0_218, %c0_219] : memref<4x8x32xbf16, #tpu.memory_space<vmem>>, vector<1x8x32xbf16>
    %336 = vector.shape_cast %335 : vector<1x8x32xbf16> to vector<8x32xbf16>
    %cst_220 = arith.constant dense<0.000000e+00> : vector<8x8xf32>
    %337 = tpu.matmul %207, %336, %cst_220 {dimension_numbers = #tpu.dot_dimension_numbers<[1], [1], [0], [0], [0, 0, 1, 0], [], []>} : vector<8x32xbf16>, vector<8x32xbf16>, vector<8x8xf32> -> vector<8x8xf32>
    %c3_221 = arith.constant 3 : index
    %c0_222 = arith.constant 0 : index
    %c0_223 = arith.constant 0 : index
    %338 = vector.load %arg5[%c3_221, %c0_222, %c0_223] : memref<4x1x8xf32, #tpu.memory_space<vmem>>, vector<1x1x8xf32>
    %339 = vector.shape_cast %338 : vector<1x1x8xf32> to vector<1x8xf32>
    %340 = vector.broadcast %339 : vector<1x8xf32> to vector<8x8xf32>
    %341 = arith.addf %337, %340 : vector<8x8xf32>
    %c3_224 = arith.constant 3 : index
    %c0_225 = arith.constant 0 : index
    %c0_226 = arith.constant 0 : index
    %342 = vector.load %arg6[%c3_224, %c0_225, %c0_226] : memref<4x8x32xbf16, #tpu.memory_space<vmem>>, vector<1x8x32xbf16>
    %343 = vector.shape_cast %342 : vector<1x8x32xbf16> to vector<8x32xbf16>
    %cst_227 = arith.constant dense<0.000000e+00> : vector<8x8xf32>
    %344 = tpu.matmul %207, %343, %cst_227 {dimension_numbers = #tpu.dot_dimension_numbers<[1], [1], [0], [0], [0, 0, 1, 0], [], []>} : vector<8x32xbf16>, vector<8x32xbf16>, vector<8x8xf32> -> vector<8x8xf32>
    %c3_228 = arith.constant 3 : index
    %c0_229 = arith.constant 0 : index
    %c0_230 = arith.constant 0 : index
    %345 = vector.load %arg7[%c3_228, %c0_229, %c0_230] : memref<4x1x8xf32, #tpu.memory_space<vmem>>, vector<1x1x8xf32>
    %346 = vector.shape_cast %345 : vector<1x1x8xf32> to vector<1x8xf32>
    %347 = vector.broadcast %346 : vector<1x8xf32> to vector<8x8xf32>
    %348 = arith.addf %344, %347 : vector<8x8xf32>
    %c3_231 = arith.constant 3 : index
    %c0_232 = arith.constant 0 : index
    %c0_233 = arith.constant 0 : index
    %349 = vector.load %arg8[%c3_231, %c0_232, %c0_233] : memref<4x8x32xbf16, #tpu.memory_space<vmem>>, vector<1x8x32xbf16>
    %350 = vector.shape_cast %349 : vector<1x8x32xbf16> to vector<8x32xbf16>
    %cst_234 = arith.constant dense<0.000000e+00> : vector<8x8xf32>
    %351 = tpu.matmul %207, %350, %cst_234 {dimension_numbers = #tpu.dot_dimension_numbers<[1], [1], [0], [0], [0, 0, 1, 0], [], []>} : vector<8x32xbf16>, vector<8x32xbf16>, vector<8x8xf32> -> vector<8x8xf32>
    %c3_235 = arith.constant 3 : index
    %c0_236 = arith.constant 0 : index
    %c0_237 = arith.constant 0 : index
    %352 = vector.load %arg9[%c3_235, %c0_236, %c0_237] : memref<4x1x8xf32, #tpu.memory_space<vmem>>, vector<1x1x8xf32>
    %353 = vector.shape_cast %352 : vector<1x1x8xf32> to vector<1x8xf32>
    %354 = vector.broadcast %353 : vector<1x8xf32> to vector<8x8xf32>
    %355 = arith.addf %351, %354 : vector<8x8xf32>
    %356 = arith.truncf %341 : vector<8x8xf32> to vector<8x8xbf16>
    %357 = arith.truncf %348 : vector<8x8xf32> to vector<8x8xbf16>
    %cst_238 = arith.constant dense<0.000000e+00> : vector<8x8xf32>
    %358 = tpu.matmul %356, %357, %cst_238 {dimension_numbers = #tpu.dot_dimension_numbers<[1], [1], [0], [0], [0, 0, 1, 0], [], []>} : vector<8x8xbf16>, vector<8x8xbf16>, vector<8x8xf32> -> vector<8x8xf32>
    %cst_239 = arith.constant dense<0xFF800000> : vector<8xf32>
    %359 = vector.multi_reduction <maximumf>, %358, %cst_239 [1] : vector<8x8xf32> to vector<8xf32>
    %360 = vector.shape_cast %359 : vector<8xf32> to vector<8x1xf32>
    %361 = vector.broadcast %360 : vector<8x1xf32> to vector<8x8xf32>
    %362 = arith.subf %358, %361 : vector<8x8xf32>
    %363 = math.exp %362 : vector<8x8xf32>
    %cst_240 = arith.constant dense<0.000000e+00> : vector<8xf32>
    %364 = vector.multi_reduction <add>, %363, %cst_240 [1] : vector<8x8xf32> to vector<8xf32>
    %365 = vector.shape_cast %364 : vector<8xf32> to vector<8x1xf32>
    %366 = tpu.reciprocal %365 {approx = true} : vector<8x1xf32> -> vector<8x1xf32>
    %367 = vector.broadcast %366 : vector<8x1xf32> to vector<8x8xf32>
    %368 = arith.mulf %363, %367 : vector<8x8xf32>
    %369 = arith.truncf %368 : vector<8x8xf32> to vector<8x8xbf16>
    %370 = arith.truncf %355 : vector<8x8xf32> to vector<8x8xbf16>
    %cst_241 = arith.constant dense<0.000000e+00> : vector<8x8xf32>
    %371 = tpu.matmul %369, %370, %cst_241 {dimension_numbers = #tpu.dot_dimension_numbers<[1], [0], [0], [1], [0, 0, 1, 1], [], []>} : vector<8x8xbf16>, vector<8x8xbf16>, vector<8x8xf32> -> vector<8x8xf32>
    %372 = arith.truncf %371 : vector<8x8xf32> to vector<8x8xbf16>
    %c3_242 = arith.constant 3 : index
    %c0_243 = arith.constant 0 : index
    %c0_244 = arith.constant 0 : index
    %373 = vector.load %arg10[%c3_242, %c0_243, %c0_244] : memref<4x8x32xbf16, #tpu.memory_space<vmem>>, vector<1x8x32xbf16>
    %374 = vector.shape_cast %373 : vector<1x8x32xbf16> to vector<8x32xbf16>
    %cst_245 = arith.constant dense<0.000000e+00> : vector<8x32xf32>
    %375 = tpu.matmul %372, %374, %cst_245 {dimension_numbers = #tpu.dot_dimension_numbers<[1], [0], [0], [1], [0, 0, 1, 1], [], []>} : vector<8x8xbf16>, vector<8x32xbf16>, vector<8x32xf32> -> vector<8x32xf32>
    %376 = arith.addf %334, %375 : vector<8x32xf32>
    %377 = vector.extract_strided_slice %0 {offsets = [1, 0, 0], sizes = [1, 8, 32], strides = [1, 1, 1]} : vector<2x8x32xf32> to vector<1x8x32xf32>
    %378 = vector.shape_cast %377 : vector<1x8x32xf32> to vector<8x32xf32>
    %379 = arith.addf %378, %376 : vector<8x32xf32>
    %c0_246 = arith.constant 0 : index
    %c0_247 = arith.constant 0 : index
    %380 = vector.load %arg11[%c0_246, %c0_247] : memref<1x32xf32, #tpu.memory_space<vmem>>, vector<1x32xf32>
    %381 = vector.broadcast %380 : vector<1x32xf32> to vector<8x32xf32>
    %382 = arith.addf %379, %381 : vector<8x32xf32>
    %c1_248 = arith.constant 1 : index
    %c0_249 = arith.constant 0 : index
    %c0_250 = arith.constant 0 : index
    %383 = vector.load %arg19[%c1_248, %c0_249, %c0_250] : memref<2x8x32xf32, #tpu.memory_space<vmem>>, vector<1x8x32xf32>
    %384 = vector.shape_cast %383 : vector<1x8x32xf32> to vector<8x32xf32>
    %385 = vector.shape_cast %382 : vector<8x32xf32> to vector<1x8x32xf32>
    tpu.vector_store %arg19[%c1_248, %c0_249, %c0_250], %385 {strides = array<i32>} : memref<2x8x32xf32, #tpu.memory_space<vmem>>, vector<1x8x32xf32>,
    %c0_251 = arith.constant 0 : index
    %c0_252 = arith.constant 0 : index
    %c0_253 = arith.constant 0 : index
    %386 = vector.load %arg19[%c0_251, %c0_252, %c0_253] : memref<2x8x32xf32, #tpu.memory_space<vmem>>, vector<2x8x32xf32>
    %387 = vector.shape_cast %386 : vector<2x8x32xf32> to vector<16x32xf32>
    %c0_254 = arith.constant 0 : index
    %c0_255 = arith.constant 0 : index
    %388 = vector.load %arg12[%c0_254, %c0_255] : memref<1x32xf32, #tpu.memory_space<vmem>>, vector<1x32xf32>
    %c0_256 = arith.constant 0 : index
    %c0_257 = arith.constant 0 : index
    %389 = vector.load %arg13[%c0_256, %c0_257] : memref<1x32xf32, #tpu.memory_space<vmem>>, vector<1x32xf32>
    %cst_258 = arith.constant dense<0.000000e+00> : vector<16xf32>
    %390 = vector.multi_reduction <add>, %387, %cst_258 [1] : vector<16x32xf32> to vector<16xf32>
    %391 = vector.shape_cast %390 : vector<16xf32> to vector<16x1xf32>
    %cst_259 = arith.constant 3.200000e+01 : f32
    %392 = vector.broadcast %cst_259 : f32 to vector<16x1xf32>
    %393 = arith.divf %391, %392 : vector<16x1xf32>
    %394 = vector.broadcast %393 : vector<16x1xf32> to vector<16x32xf32>
    %395 = arith.subf %387, %394 : vector<16x32xf32>
    %396 = arith.mulf %395, %395 : vector<16x32xf32>
    %cst_260 = arith.constant dense<0.000000e+00> : vector<16xf32>
    %397 = vector.multi_reduction <add>, %396, %cst_260 [1] : vector<16x32xf32> to vector<16xf32>
    %398 = vector.shape_cast %397 : vector<16xf32> to vector<16x1xf32>
    %cst_261 = arith.constant 3.200000e+01 : f32
    %399 = vector.broadcast %cst_261 : f32 to vector<16x1xf32>
    %400 = arith.divf %398, %399 : vector<16x1xf32>
    %cst_262 = arith.constant 9.99999974E-6 : f32
    %401 = vector.broadcast %cst_262 : f32 to vector<16x1xf32>
    %402 = arith.addf %400, %401 : vector<16x1xf32>
    %403 = math.rsqrt %402 : vector<16x1xf32>
    %404 = vector.broadcast %403 : vector<16x1xf32> to vector<16x32xf32>
    %405 = arith.mulf %395, %404 : vector<16x32xf32>
    %406 = vector.broadcast %388 : vector<1x32xf32> to vector<16x32xf32>
    %407 = arith.mulf %405, %406 : vector<16x32xf32>
    %408 = vector.broadcast %389 : vector<1x32xf32> to vector<16x32xf32>
    %409 = arith.addf %407, %408 : vector<16x32xf32>
    %410 = arith.truncf %409 : vector<16x32xf32> to vector<16x32xbf16>
    %c0_263 = arith.constant 0 : index
    %c0_264 = arith.constant 0 : index
    %411 = vector.load %arg14[%c0_263, %c0_264] : memref<32x64xbf16, #tpu.memory_space<vmem>>, vector<32x64xbf16>
    %cst_265 = arith.constant dense<0.000000e+00> : vector<16x64xf32>
    %412 = tpu.matmul %410, %411, %cst_265 {dimension_numbers = #tpu.dot_dimension_numbers<[1], [0], [0], [1], [0, 0, 1, 1], [], []>} : vector<16x32xbf16>, vector<32x64xbf16>, vector<16x64xf32> -> vector<16x64xf32>
    %c0_266 = arith.constant 0 : index
    %c0_267 = arith.constant 0 : index
    %413 = vector.load %arg15[%c0_266, %c0_267] : memref<1x64xf32, #tpu.memory_space<vmem>>, vector<1x64xf32>
    %414 = vector.broadcast %413 : vector<1x64xf32> to vector<16x64xf32>
    %415 = arith.addf %412, %414 : vector<16x64xf32>
    %cst_268 = arith.constant 5.000000e-01 : f32
    %416 = vector.broadcast %cst_268 : f32 to vector<16x64xf32>
    %417 = arith.mulf %416, %415 : vector<16x64xf32>
    %cst_269 = arith.constant 0.707106769 : f32
    %418 = vector.broadcast %cst_269 : f32 to vector<16x64xf32>
    %419 = arith.mulf %415, %418 : vector<16x64xf32>
    %420 = math.erf %419 : vector<16x64xf32>
    %cst_270 = arith.constant 1.000000e+00 : f32
    %421 = vector.broadcast %cst_270 : f32 to vector<16x64xf32>
    %422 = arith.addf %421, %420 : vector<16x64xf32>
    %423 = arith.mulf %417, %422 : vector<16x64xf32>
    %424 = arith.truncf %423 : vector<16x64xf32> to vector<16x64xbf16>
    %c0_271 = arith.constant 0 : index
    %c0_272 = arith.constant 0 : index
    %425 = vector.load %arg16[%c0_271, %c0_272] : memref<64x32xbf16, #tpu.memory_space<vmem>>, vector<64x32xbf16>
    %cst_273 = arith.constant dense<0.000000e+00> : vector<16x32xf32>
    %426 = tpu.matmul %424, %425, %cst_273 {dimension_numbers = #tpu.dot_dimension_numbers<[1], [0], [0], [1], [0, 0, 1, 1], [], []>} : vector<16x64xbf16>, vector<64x32xbf16>, vector<16x32xf32> -> vector<16x32xf32>
    %c0_274 = arith.constant 0 : index
    %c0_275 = arith.constant 0 : index
    %427 = vector.load %arg17[%c0_274, %c0_275] : memref<1x32xf32, #tpu.memory_space<vmem>>, vector<1x32xf32>
    %428 = vector.broadcast %427 : vector<1x32xf32> to vector<16x32xf32>
    %429 = arith.addf %426, %428 : vector<16x32xf32>
    %430 = arith.addf %387, %429 : vector<16x32xf32>
    %431 = vector.shape_cast %430 : vector<16x32xf32> to vector<2x8x32xf32>
    %c0_276 = arith.constant 0 : index
    %c0_277 = arith.constant 0 : index
    %c0_278 = arith.constant 0 : index
    %432 = vector.load %arg18[%c0_276, %c0_277, %c0_278] : memref<2x8x32xf32, #tpu.memory_space<vmem>>, vector<2x8x32xf32>
    tpu.vector_store %arg18[%c0_276, %c0_277, %c0_278], %431 {strides = array<i32>} : memref<2x8x32xf32, #tpu.memory_space<vmem>>, vector<2x8x32xf32>,
    return
  }
  func.func @transform_0(%arg0: i32) -> (i32, i32, i32) {
    %c0_i32 = arith.constant 0 : i32
    %c0_i32_0 = arith.constant 0 : i32
    %c0_i32_1 = arith.constant 0 : i32
    return %arg0, %c0_i32, %c0_i32_0 : i32, i32, i32
  }
  func.func @transform_1(%arg0: i32) -> (i32, i32) {
    %c0_i32 = arith.constant 0 : i32
    %c0_i32_0 = arith.constant 0 : i32
    %c0_i32_1 = arith.constant 0 : i32
    return %c0_i32, %c0_i32_0 : i32, i32
  }
  func.func @transform_2(%arg0: i32) -> (i32, i32) {
    %c0_i32 = arith.constant 0 : i32
    %c0_i32_0 = arith.constant 0 : i32
    %c0_i32_1 = arith.constant 0 : i32
    return %c0_i32, %c0_i32_0 : i32, i32
  }
  func.func @transform_3(%arg0: i32) -> (i32, i32, i32) {
    %c0_i32 = arith.constant 0 : i32
    %c0_i32_0 = arith.constant 0 : i32
    %c0_i32_1 = arith.constant 0 : i32
    %c0_i32_2 = arith.constant 0 : i32
    return %c0_i32, %c0_i32_0, %c0_i32_1 : i32, i32, i32
  }
  func.func @transform_4(%arg0: i32) -> (i32, i32, i32) {
    %c0_i32 = arith.constant 0 : i32
    %c0_i32_0 = arith.constant 0 : i32
    %c0_i32_1 = arith.constant 0 : i32
    %c0_i32_2 = arith.constant 0 : i32
    return %c0_i32, %c0_i32_0, %c0_i32_1 : i32, i32, i32
  }
  func.func @transform_5(%arg0: i32) -> (i32, i32, i32) {
    %c0_i32 = arith.constant 0 : i32
    %c0_i32_0 = arith.constant 0 : i32
    %c0_i32_1 = arith.constant 0 : i32
    %c0_i32_2 = arith.constant 0 : i32
    return %c0_i32, %c0_i32_0, %c0_i32_1 : i32, i32, i32
  }
  func.func @transform_6(%arg0: i32) -> (i32, i32, i32) {
    %c0_i32 = arith.constant 0 : i32
    %c0_i32_0 = arith.constant 0 : i32
    %c0_i32_1 = arith.constant 0 : i32
    %c0_i32_2 = arith.constant 0 : i32
    return %c0_i32, %c0_i32_0, %c0_i32_1 : i32, i32, i32
  }
  func.func @transform_7(%arg0: i32) -> (i32, i32, i32) {
    %c0_i32 = arith.constant 0 : i32
    %c0_i32_0 = arith.constant 0 : i32
    %c0_i32_1 = arith.constant 0 : i32
    %c0_i32_2 = arith.constant 0 : i32
    return %c0_i32, %c0_i32_0, %c0_i32_1 : i32, i32, i32
  }
  func.func @transform_8(%arg0: i32) -> (i32, i32, i32) {
    %c0_i32 = arith.constant 0 : i32
    %c0_i32_0 = arith.constant 0 : i32
    %c0_i32_1 = arith.constant 0 : i32
    %c0_i32_2 = arith.constant 0 : i32
    return %c0_i32, %c0_i32_0, %c0_i32_1 : i32, i32, i32
  }
  func.func @transform_9(%arg0: i32) -> (i32, i32, i32) {
    %c0_i32 = arith.constant 0 : i32
    %c0_i32_0 = arith.constant 0 : i32
    %c0_i32_1 = arith.constant 0 : i32
    %c0_i32_2 = arith.constant 0 : i32
    return %c0_i32, %c0_i32_0, %c0_i32_1 : i32, i32, i32
  }
  func.func @transform_10(%arg0: i32) -> (i32, i32) {
    %c0_i32 = arith.constant 0 : i32
    %c0_i32_0 = arith.constant 0 : i32
    %c0_i32_1 = arith.constant 0 : i32
    return %c0_i32, %c0_i32_0 : i32, i32
  }
  func.func @transform_11(%arg0: i32) -> (i32, i32) {
    %c0_i32 = arith.constant 0 : i32
    %c0_i32_0 = arith.constant 0 : i32
    %c0_i32_1 = arith.constant 0 : i32
    return %c0_i32, %c0_i32_0 : i32, i32
  }
  func.func @transform_12(%arg0: i32) -> (i32, i32) {
    %c0_i32 = arith.constant 0 : i32
    %c0_i32_0 = arith.constant 0 : i32
    %c0_i32_1 = arith.constant 0 : i32
    return %c0_i32, %c0_i32_0 : i32, i32
  }
  func.func @transform_13(%arg0: i32) -> (i32, i32) {
    %c0_i32 = arith.constant 0 : i32
    %c0_i32_0 = arith.constant 0 : i32
    %c0_i32_1 = arith.constant 0 : i32
    return %c0_i32, %c0_i32_0 : i32, i32
  }
  func.func @transform_14(%arg0: i32) -> (i32, i32) {
    %c0_i32 = arith.constant 0 : i32
    %c0_i32_0 = arith.constant 0 : i32
    %c0_i32_1 = arith.constant 0 : i32
    return %c0_i32, %c0_i32_0 : i32, i32
  }
  func.func @transform_15(%arg0: i32) -> (i32, i32) {
    %c0_i32 = arith.constant 0 : i32
    %c0_i32_0 = arith.constant 0 : i32
    %c0_i32_1 = arith.constant 0 : i32
    return %c0_i32, %c0_i32_0 : i32, i32
  }
  func.func @transform_16(%arg0: i32) -> (i32, i32) {
    %c0_i32 = arith.constant 0 : i32
    %c0_i32_0 = arith.constant 0 : i32
    %c0_i32_1 = arith.constant 0 : i32
    return %c0_i32, %c0_i32_0 : i32, i32
  }
  func.func @transform_17(%arg0: i32) -> (i32, i32, i32) {
    %c0_i32 = arith.constant 0 : i32
    %c0_i32_0 = arith.constant 0 : i32
    %c0_i32_1 = arith.constant 0 : i32
    return %arg0, %c0_i32, %c0_i32_0 : i32, i32, i32
  }
}

module attributes {stable_mosaic.version = 11 : i64} {
  func.func @encoder_block_kernel(%arg0: i32, %arg1: memref<2x8x32xf32, #tpu.memory_space<vmem>>, %arg2: memref<1x32xf32, #tpu.memory_space<vmem>>, %arg3: memref<1x32xf32, #tpu.memory_space<vmem>>, %arg4: memref<4x8x32xbf16, #tpu.memory_space<vmem>>, %arg5: memref<4x1x8xf32, #tpu.memory_space<vmem>>, %arg6: memref<4x8x32xbf16, #tpu.memory_space<vmem>>, %arg7: memref<4x1x8xf32, #tpu.memory_space<vmem>>, %arg8: memref<4x8x32xbf16, #tpu.memory_space<vmem>>, %arg9: memref<4x1x8xf32, #tpu.memory_space<vmem>>, %arg10: memref<4x8x32xbf16, #tpu.memory_space<vmem>>, %arg11: memref<1x32xf32, #tpu.memory_space<vmem>>, %arg12: memref<1x32xf32, #tpu.memory_space<vmem>>, %arg13: memref<1x32xf32, #tpu.memory_space<vmem>>, %arg14: memref<32x64xbf16, #tpu.memory_space<vmem>>, %arg15: memref<1x64xf32, #tpu.memory_space<vmem>>, %arg16: memref<64x32xbf16, #tpu.memory_space<vmem>>, %arg17: memref<1x32xf32, #tpu.memory_space<vmem>>, %arg18: memref<2x8x32xf32, #tpu.memory_space<vmem>>, %arg19: memref<2x8x32xf32, #tpu.memory_space<vmem>>) attributes {dimension_semantics = [#tpu.dimension_semantics<parallel>], iteration_bounds = array<i64: 2>, scalar_prefetch = 0 : i64, scratch_operands = 1 : i64, tpu.core_type = #tpu.core_type<tc>, window_params = [{transform_indices = @transform_0, window_bounds = array<i64: 2, 8, 32>}, {pipeline_mode = #tpu.pipeline_mode<synchronous>, transform_indices = @transform_1, window_bounds = array<i64: 1, 32>}, {pipeline_mode = #tpu.pipeline_mode<synchronous>, transform_indices = @transform_2, window_bounds = array<i64: 1, 32>}, {pipeline_mode = #tpu.pipeline_mode<synchronous>, transform_indices = @transform_3, window_bounds = array<i64: 4, 8, 32>}, {pipeline_mode = #tpu.pipeline_mode<synchronous>, transform_indices = @transform_4, window_bounds = array<i64: 4, 1, 8>}, {pipeline_mode = #tpu.pipeline_mode<synchronous>, transform_indices = @transform_5, window_bounds = array<i64: 4, 8, 32>}, {pipeline_mode = #tpu.pipeline_mode<synchronous>, transform_indices = @transform_6, window_bounds = array<i64: 4, 1, 8>}, {pipeline_mode = #tpu.pipeline_mode<synchronous>, transform_indices = @transform_7, window_bounds = array<i64: 4, 8, 32>}, {pipeline_mode = #tpu.pipeline_mode<synchronous>, transform_indices = @transform_8, window_bounds = array<i64: 4, 1, 8>}, {pipeline_mode = #tpu.pipeline_mode<synchronous>, transform_indices = @transform_9, window_bounds = array<i64: 4, 8, 32>}, {pipeline_mode = #tpu.pipeline_mode<synchronous>, transform_indices = @transform_10, window_bounds = array<i64: 1, 32>}, {pipeline_mode = #tpu.pipeline_mode<synchronous>, transform_indices = @transform_11, window_bounds = array<i64: 1, 32>}, {pipeline_mode = #tpu.pipeline_mode<synchronous>, transform_indices = @transform_12, window_bounds = array<i64: 1, 32>}, {pipeline_mode = #tpu.pipeline_mode<synchronous>, transform_indices = @transform_13, window_bounds = array<i64: 32, 64>}, {pipeline_mode = #tpu.pipeline_mode<synchronous>, transform_indices = @transform_14, window_bounds = array<i64: 1, 64>}, {pipeline_mode = #tpu.pipeline_mode<synchronous>, transform_indices = @transform_15, window_bounds = array<i64: 64, 32>}, {pipeline_mode = #tpu.pipeline_mode<synchronous>, transform_indices = @transform_16, window_bounds = array<i64: 1, 32>}, {transform_indices = @transform_17, window_bounds = array<i64: 2, 8, 32>}]} {
    %c0 = arith.constant 0 : index
    %c0_0 = arith.constant 0 : index
    %c0_1 = arith.constant 0 : index
    %0 = vector.load %arg1[%c0, %c0_0, %c0_1] : memref<2x8x32xf32, #tpu.memory_space<vmem>>, vector<2x8x32xf32>
    %c0_2 = arith.constant 0 : index
    %c0_3 = arith.constant 0 : index
    %1 = vector.load %arg2[%c0_2, %c0_3] : memref<1x32xf32, #tpu.memory_space<vmem>>, vector<1x32xf32>
    %c0_4 = arith.constant 0 : index
    %c0_5 = arith.constant 0 : index
    %2 = vector.load %arg3[%c0_4, %c0_5] : memref<1x32xf32, #tpu.memory_space<vmem>>, vector<1x32xf32>
    %cst = arith.constant dense<0.000000e+00> : vector<2x8xf32>
    %3 = vector.multi_reduction <add>, %0, %cst [2] : vector<2x8x32xf32> to vector<2x8xf32>
    %4 = vector.shape_cast %3 : vector<2x8xf32> to vector<2x8x1xf32>
    %cst_6 = arith.constant 3.200000e+01 : f32
    %5 = vector.broadcast %cst_6 : f32 to vector<2x8x1xf32>
    %6 = arith.divf %4, %5 : vector<2x8x1xf32>
    %7 = vector.broadcast %6 : vector<2x8x1xf32> to vector<2x8x32xf32>
    %8 = arith.subf %0, %7 : vector<2x8x32xf32>
    %9 = arith.mulf %8, %8 : vector<2x8x32xf32>
    %cst_7 = arith.constant dense<0.000000e+00> : vector<2x8xf32>
    %10 = vector.multi_reduction <add>, %9, %cst_7 [2] : vector<2x8x32xf32> to vector<2x8xf32>
    %11 = vector.shape_cast %10 : vector<2x8xf32> to vector<2x8x1xf32>
    %cst_8 = arith.constant 3.200000e+01 : f32
    %12 = vector.broadcast %cst_8 : f32 to vector<2x8x1xf32>
    %13 = arith.divf %11, %12 : vector<2x8x1xf32>
    %cst_9 = arith.constant 9.99999974E-6 : f32
    %14 = vector.broadcast %cst_9 : f32 to vector<2x8x1xf32>
    %15 = arith.addf %13, %14 : vector<2x8x1xf32>
    %16 = math.rsqrt %15 : vector<2x8x1xf32>
    %17 = vector.broadcast %16 : vector<2x8x1xf32> to vector<2x8x32xf32>
    %18 = arith.mulf %8, %17 : vector<2x8x32xf32>
    %19 = vector.shape_cast %1 : vector<1x32xf32> to vector<1x1x32xf32>
    %20 = vector.broadcast %19 : vector<1x1x32xf32> to vector<2x8x32xf32>
    %21 = arith.mulf %18, %20 : vector<2x8x32xf32>
    %22 = vector.shape_cast %2 : vector<1x32xf32> to vector<1x1x32xf32>
    %23 = vector.broadcast %22 : vector<1x1x32xf32> to vector<2x8x32xf32>
    %24 = arith.addf %21, %23 : vector<2x8x32xf32>
    %25 = arith.truncf %24 : vector<2x8x32xf32> to vector<2x8x32xbf16>
    %26 = vector.extract_strided_slice %25 {offsets = [0, 0, 0], sizes = [1, 8, 32], strides = [1, 1, 1]} : vector<2x8x32xbf16> to vector<1x8x32xbf16>
    %27 = vector.shape_cast %26 : vector<1x8x32xbf16> to vector<8x32xbf16>
    %cst_10 = arith.constant 0.000000e+00 : f32
    %28 = vector.broadcast %cst_10 : f32 to vector<8x32xf32>
    %c0_11 = arith.constant 0 : index
    %c0_12 = arith.constant 0 : index
    %c0_13 = arith.constant 0 : index
    %29 = vector.load %arg4[%c0_11, %c0_12, %c0_13] : memref<4x8x32xbf16, #tpu.memory_space<vmem>>, vector<1x8x32xbf16>
    %30 = vector.shape_cast %29 : vector<1x8x32xbf16> to vector<8x32xbf16>
    %cst_14 = arith.constant dense<0.000000e+00> : vector<8x8xf32>
    %31 = tpu.matmul %27, %30, %cst_14 {dimension_numbers = #tpu.dot_dimension_numbers<[1], [1], [0], [0], [0, 0, 1, 0], [], []>} : vector<8x32xbf16>, vector<8x32xbf16>, vector<8x8xf32> -> vector<8x8xf32>
    %c0_15 = arith.constant 0 : index
    %c0_16 = arith.constant 0 : index
    %c0_17 = arith.constant 0 : index
    %32 = vector.load %arg5[%c0_15, %c0_16, %c0_17] : memref<4x1x8xf32, #tpu.memory_space<vmem>>, vector<1x1x8xf32>
    %33 = vector.shape_cast %32 : vector<1x1x8xf32> to vector<1x8xf32>
    %34 = vector.broadcast %33 : vector<1x8xf32> to vector<8x8xf32>
    %35 = arith.addf %31, %34 : vector<8x8xf32>
    %c0_18 = arith.constant 0 : index
    %c0_19 = arith.constant 0 : index
    %c0_20 = arith.constant 0 : index
    %36 = vector.load %arg6[%c0_18, %c0_19, %c0_20] : memref<4x8x32xbf16, #tpu.memory_space<vmem>>, vector<1x8x32xbf16>
    %37 = vector.shape_cast %36 : vector<1x8x32xbf16> to vector<8x32xbf16>
    %cst_21 = arith.constant dense<0.000000e+00> : vector<8x8xf32>
    %38 = tpu.matmul %27, %37, %cst_21 {dimension_numbers = #tpu.dot_dimension_numbers<[1], [1], [0], [0], [0, 0, 1, 0], [], []>} : vector<8x32xbf16>, vector<8x32xbf16>, vector<8x8xf32> -> vector<8x8xf32>
    %c0_22 = arith.constant 0 : index
    %c0_23 = arith.constant 0 : index
    %c0_24 = arith.constant 0 : index
    %39 = vector.load %arg7[%c0_22, %c0_23, %c0_24] : memref<4x1x8xf32, #tpu.memory_space<vmem>>, vector<1x1x8xf32>
    %40 = vector.shape_cast %39 : vector<1x1x8xf32> to vector<1x8xf32>
    %41 = vector.broadcast %40 : vector<1x8xf32> to vector<8x8xf32>
    %42 = arith.addf %38, %41 : vector<8x8xf32>
    %c0_25 = arith.constant 0 : index
    %c0_26 = arith.constant 0 : index
    %c0_27 = arith.constant 0 : index
    %43 = vector.load %arg8[%c0_25, %c0_26, %c0_27] : memref<4x8x32xbf16, #tpu.memory_space<vmem>>, vector<1x8x32xbf16>
    %44 = vector.shape_cast %43 : vector<1x8x32xbf16> to vector<8x32xbf16>
    %cst_28 = arith.constant dense<0.000000e+00> : vector<8x8xf32>
    %45 = tpu.matmul %27, %44, %cst_28 {dimension_numbers = #tpu.dot_dimension_numbers<[1], [1], [0], [0], [0, 0, 1, 0], [], []>} : vector<8x32xbf16>, vector<8x32xbf16>, vector<8x8xf32> -> vector<8x8xf32>
    %c0_29 = arith.constant 0 : index
    %c0_30 = arith.constant 0 : index
    %c0_31 = arith.constant 0 : index
    %46 = vector.load %arg9[%c0_29, %c0_30, %c0_31] : memref<4x1x8xf32, #tpu.memory_space<vmem>>, vector<1x1x8xf32>
    %47 = vector.shape_cast %46 : vector<1x1x8xf32> to vector<1x8xf32>
    %48 = vector.broadcast %47 : vector<1x8xf32> to vector<8x8xf32>
    %49 = arith.addf %45, %48 : vector<8x8xf32>
    %50 = arith.truncf %35 : vector<8x8xf32> to vector<8x8xbf16>
    %51 = arith.truncf %42 : vector<8x8xf32> to vector<8x8xbf16>
    %cst_32 = arith.constant dense<0.000000e+00> : vector<8x8xf32>
    %52 = tpu.matmul %50, %51, %cst_32 {dimension_numbers = #tpu.dot_dimension_numbers<[1], [1], [0], [0], [0, 0, 1, 0], [], []>} : vector<8x8xbf16>, vector<8x8xbf16>, vector<8x8xf32> -> vector<8x8xf32>
    %cst_33 = arith.constant dense<0xFF800000> : vector<8xf32>
    %53 = vector.multi_reduction <maximumf>, %52, %cst_33 [1] : vector<8x8xf32> to vector<8xf32>
    %54 = vector.shape_cast %53 : vector<8xf32> to vector<8x1xf32>
    %55 = vector.broadcast %54 : vector<8x1xf32> to vector<8x8xf32>
    %56 = arith.subf %52, %55 : vector<8x8xf32>
    %57 = math.exp %56 : vector<8x8xf32>
    %cst_34 = arith.constant dense<0.000000e+00> : vector<8xf32>
    %58 = vector.multi_reduction <add>, %57, %cst_34 [1] : vector<8x8xf32> to vector<8xf32>
    %59 = vector.shape_cast %58 : vector<8xf32> to vector<8x1xf32>
    %60 = tpu.reciprocal %59 {approx = true} : vector<8x1xf32> -> vector<8x1xf32>
    %61 = vector.broadcast %60 : vector<8x1xf32> to vector<8x8xf32>
    %62 = arith.mulf %57, %61 : vector<8x8xf32>
    %63 = arith.truncf %62 : vector<8x8xf32> to vector<8x8xbf16>
    %64 = arith.truncf %49 : vector<8x8xf32> to vector<8x8xbf16>
    %cst_35 = arith.constant dense<0.000000e+00> : vector<8x8xf32>
    %65 = tpu.matmul %63, %64, %cst_35 {dimension_numbers = #tpu.dot_dimension_numbers<[1], [0], [0], [1], [0, 0, 1, 1], [], []>} : vector<8x8xbf16>, vector<8x8xbf16>, vector<8x8xf32> -> vector<8x8xf32>
    %66 = arith.truncf %65 : vector<8x8xf32> to vector<8x8xbf16>
    %c0_36 = arith.constant 0 : index
    %c0_37 = arith.constant 0 : index
    %c0_38 = arith.constant 0 : index
    %67 = vector.load %arg10[%c0_36, %c0_37, %c0_38] : memref<4x8x32xbf16, #tpu.memory_space<vmem>>, vector<1x8x32xbf16>
    %68 = vector.shape_cast %67 : vector<1x8x32xbf16> to vector<8x32xbf16>
    %cst_39 = arith.constant dense<0.000000e+00> : vector<8x32xf32>
    %69 = tpu.matmul %66, %68, %cst_39 {dimension_numbers = #tpu.dot_dimension_numbers<[1], [0], [0], [1], [0, 0, 1, 1], [], []>} : vector<8x8xbf16>, vector<8x32xbf16>, vector<8x32xf32> -> vector<8x32xf32>
    %70 = arith.addf %28, %69 : vector<8x32xf32>
    %c1 = arith.constant 1 : index
    %c0_40 = arith.constant 0 : index
    %c0_41 = arith.constant 0 : index
    %71 = vector.load %arg4[%c1, %c0_40, %c0_41] : memref<4x8x32xbf16, #tpu.memory_space<vmem>>, vector<1x8x32xbf16>
    %72 = vector.shape_cast %71 : vector<1x8x32xbf16> to vector<8x32xbf16>
    %cst_42 = arith.constant dense<0.000000e+00> : vector<8x8xf32>
    %73 = tpu.matmul %27, %72, %cst_42 {dimension_numbers = #tpu.dot_dimension_numbers<[1], [1], [0], [0], [0, 0, 1, 0], [], []>} : vector<8x32xbf16>, vector<8x32xbf16>, vector<8x8xf32> -> vector<8x8xf32>
    %c1_43 = arith.constant 1 : index
    %c0_44 = arith.constant 0 : index
    %c0_45 = arith.constant 0 : index
    %74 = vector.load %arg5[%c1_43, %c0_44, %c0_45] : memref<4x1x8xf32, #tpu.memory_space<vmem>>, vector<1x1x8xf32>
    %75 = vector.shape_cast %74 : vector<1x1x8xf32> to vector<1x8xf32>
    %76 = vector.broadcast %75 : vector<1x8xf32> to vector<8x8xf32>
    %77 = arith.addf %73, %76 : vector<8x8xf32>
    %c1_46 = arith.constant 1 : index
    %c0_47 = arith.constant 0 : index
    %c0_48 = arith.constant 0 : index
    %78 = vector.load %arg6[%c1_46, %c0_47, %c0_48] : memref<4x8x32xbf16, #tpu.memory_space<vmem>>, vector<1x8x32xbf16>
    %79 = vector.shape_cast %78 : vector<1x8x32xbf16> to vector<8x32xbf16>
    %cst_49 = arith.constant dense<0.000000e+00> : vector<8x8xf32>
    %80 = tpu.matmul %27, %79, %cst_49 {dimension_numbers = #tpu.dot_dimension_numbers<[1], [1], [0], [0], [0, 0, 1, 0], [], []>} : vector<8x32xbf16>, vector<8x32xbf16>, vector<8x8xf32> -> vector<8x8xf32>
    %c1_50 = arith.constant 1 : index
    %c0_51 = arith.constant 0 : index
    %c0_52 = arith.constant 0 : index
    %81 = vector.load %arg7[%c1_50, %c0_51, %c0_52] : memref<4x1x8xf32, #tpu.memory_space<vmem>>, vector<1x1x8xf32>
    %82 = vector.shape_cast %81 : vector<1x1x8xf32> to vector<1x8xf32>
    %83 = vector.broadcast %82 : vector<1x8xf32> to vector<8x8xf32>
    %84 = arith.addf %80, %83 : vector<8x8xf32>
    %c1_53 = arith.constant 1 : index
    %c0_54 = arith.constant 0 : index
    %c0_55 = arith.constant 0 : index
    %85 = vector.load %arg8[%c1_53, %c0_54, %c0_55] : memref<4x8x32xbf16, #tpu.memory_space<vmem>>, vector<1x8x32xbf16>
    %86 = vector.shape_cast %85 : vector<1x8x32xbf16> to vector<8x32xbf16>
    %cst_56 = arith.constant dense<0.000000e+00> : vector<8x8xf32>
    %87 = tpu.matmul %27, %86, %cst_56 {dimension_numbers = #tpu.dot_dimension_numbers<[1], [1], [0], [0], [0, 0, 1, 0], [], []>} : vector<8x32xbf16>, vector<8x32xbf16>, vector<8x8xf32> -> vector<8x8xf32>
    %c1_57 = arith.constant 1 : index
    %c0_58 = arith.constant 0 : index
    %c0_59 = arith.constant 0 : index
    %88 = vector.load %arg9[%c1_57, %c0_58, %c0_59] : memref<4x1x8xf32, #tpu.memory_space<vmem>>, vector<1x1x8xf32>
    %89 = vector.shape_cast %88 : vector<1x1x8xf32> to vector<1x8xf32>
    %90 = vector.broadcast %89 : vector<1x8xf32> to vector<8x8xf32>
    %91 = arith.addf %87, %90 : vector<8x8xf32>
    %92 = arith.truncf %77 : vector<8x8xf32> to vector<8x8xbf16>
    %93 = arith.truncf %84 : vector<8x8xf32> to vector<8x8xbf16>
    %cst_60 = arith.constant dense<0.000000e+00> : vector<8x8xf32>
    %94 = tpu.matmul %92, %93, %cst_60 {dimension_numbers = #tpu.dot_dimension_numbers<[1], [1], [0], [0], [0, 0, 1, 0], [], []>} : vector<8x8xbf16>, vector<8x8xbf16>, vector<8x8xf32> -> vector<8x8xf32>
    %cst_61 = arith.constant dense<0xFF800000> : vector<8xf32>
    %95 = vector.multi_reduction <maximumf>, %94, %cst_61 [1] : vector<8x8xf32> to vector<8xf32>
    %96 = vector.shape_cast %95 : vector<8xf32> to vector<8x1xf32>
    %97 = vector.broadcast %96 : vector<8x1xf32> to vector<8x8xf32>
    %98 = arith.subf %94, %97 : vector<8x8xf32>
    %99 = math.exp %98 : vector<8x8xf32>
    %cst_62 = arith.constant dense<0.000000e+00> : vector<8xf32>
    %100 = vector.multi_reduction <add>, %99, %cst_62 [1] : vector<8x8xf32> to vector<8xf32>
    %101 = vector.shape_cast %100 : vector<8xf32> to vector<8x1xf32>
    %102 = tpu.reciprocal %101 {approx = true} : vector<8x1xf32> -> vector<8x1xf32>
    %103 = vector.broadcast %102 : vector<8x1xf32> to vector<8x8xf32>
    %104 = arith.mulf %99, %103 : vector<8x8xf32>
    %105 = arith.truncf %104 : vector<8x8xf32> to vector<8x8xbf16>
    %106 = arith.truncf %91 : vector<8x8xf32> to vector<8x8xbf16>
    %cst_63 = arith.constant dense<0.000000e+00> : vector<8x8xf32>
    %107 = tpu.matmul %105, %106, %cst_63 {dimension_numbers = #tpu.dot_dimension_numbers<[1], [0], [0], [1], [0, 0, 1, 1], [], []>} : vector<8x8xbf16>, vector<8x8xbf16>, vector<8x8xf32> -> vector<8x8xf32>
    %108 = arith.truncf %107 : vector<8x8xf32> to vector<8x8xbf16>
    %c1_64 = arith.constant 1 : index
    %c0_65 = arith.constant 0 : index
    %c0_66 = arith.constant 0 : index
    %109 = vector.load %arg10[%c1_64, %c0_65, %c0_66] : memref<4x8x32xbf16, #tpu.memory_space<vmem>>, vector<1x8x32xbf16>
    %110 = vector.shape_cast %109 : vector<1x8x32xbf16> to vector<8x32xbf16>
    %cst_67 = arith.constant dense<0.000000e+00> : vector<8x32xf32>
    %111 = tpu.matmul %108, %110, %cst_67 {dimension_numbers = #tpu.dot_dimension_numbers<[1], [0], [0], [1], [0, 0, 1, 1], [], []>} : vector<8x8xbf16>, vector<8x32xbf16>, vector<8x32xf32> -> vector<8x32xf32>
    %112 = arith.addf %70, %111 : vector<8x32xf32>
    %c2 = arith.constant 2 : index
    %c0_68 = arith.constant 0 : index
    %c0_69 = arith.constant 0 : index
    %113 = vector.load %arg4[%c2, %c0_68, %c0_69] : memref<4x8x32xbf16, #tpu.memory_space<vmem>>, vector<1x8x32xbf16>
    %114 = vector.shape_cast %113 : vector<1x8x32xbf16> to vector<8x32xbf16>
    %cst_70 = arith.constant dense<0.000000e+00> : vector<8x8xf32>
    %115 = tpu.matmul %27, %114, %cst_70 {dimension_numbers = #tpu.dot_dimension_numbers<[1], [1], [0], [0], [0, 0, 1, 0], [], []>} : vector<8x32xbf16>, vector<8x32xbf16>, vector<8x8xf32> -> vector<8x8xf32>
    %c2_71 = arith.constant 2 : index
    %c0_72 = arith.constant 0 : index
    %c0_73 = arith.constant 0 : index
    %116 = vector.load %arg5[%c2_71, %c0_72, %c0_73] : memref<4x1x8xf32, #tpu.memory_space<vmem>>, vector<1x1x8xf32>
    %117 = vector.shape_cast %116 : vector<1x1x8xf32> to vector<1x8xf32>
    %118 = vector.broadcast %117 : vector<1x8xf32> to vector<8x8xf32>
    %119 = arith.addf %115, %118 : vector<8x8xf32>
    %c2_74 = arith.constant 2 : index
    %c0_75 = arith.constant 0 : index
    %c0_76 = arith.constant 0 : index
    %120 = vector.load %arg6[%c2_74, %c0_75, %c0_76] : memref<4x8x32xbf16, #tpu.memory_space<vmem>>, vector<1x8x32xbf16>
    %121 = vector.shape_cast %120 : vector<1x8x32xbf16> to vector<8x32xbf16>
    %cst_77 = arith.constant dense<0.000000e+00> : vector<8x8xf32>
    %122 = tpu.matmul %27, %121, %cst_77 {dimension_numbers = #tpu.dot_dimension_numbers<[1], [1], [0], [0], [0, 0, 1, 0], [], []>} : vector<8x32xbf16>, vector<8x32xbf16>, vector<8x8xf32> -> vector<8x8xf32>
    %c2_78 = arith.constant 2 : index
    %c0_79 = arith.constant 0 : index
    %c0_80 = arith.constant 0 : index
    %123 = vector.load %arg7[%c2_78, %c0_79, %c0_80] : memref<4x1x8xf32, #tpu.memory_space<vmem>>, vector<1x1x8xf32>
    %124 = vector.shape_cast %123 : vector<1x1x8xf32> to vector<1x8xf32>
    %125 = vector.broadcast %124 : vector<1x8xf32> to vector<8x8xf32>
    %126 = arith.addf %122, %125 : vector<8x8xf32>
    %c2_81 = arith.constant 2 : index
    %c0_82 = arith.constant 0 : index
    %c0_83 = arith.constant 0 : index
    %127 = vector.load %arg8[%c2_81, %c0_82, %c0_83] : memref<4x8x32xbf16, #tpu.memory_space<vmem>>, vector<1x8x32xbf16>
    %128 = vector.shape_cast %127 : vector<1x8x32xbf16> to vector<8x32xbf16>
    %cst_84 = arith.constant dense<0.000000e+00> : vector<8x8xf32>
    %129 = tpu.matmul %27, %128, %cst_84 {dimension_numbers = #tpu.dot_dimension_numbers<[1], [1], [0], [0], [0, 0, 1, 0], [], []>} : vector<8x32xbf16>, vector<8x32xbf16>, vector<8x8xf32> -> vector<8x8xf32>
    %c2_85 = arith.constant 2 : index
    %c0_86 = arith.constant 0 : index
    %c0_87 = arith.constant 0 : index
    %130 = vector.load %arg9[%c2_85, %c0_86, %c0_87] : memref<4x1x8xf32, #tpu.memory_space<vmem>>, vector<1x1x8xf32>
    %131 = vector.shape_cast %130 : vector<1x1x8xf32> to vector<1x8xf32>
    %132 = vector.broadcast %131 : vector<1x8xf32> to vector<8x8xf32>
    %133 = arith.addf %129, %132 : vector<8x8xf32>
    %134 = arith.truncf %119 : vector<8x8xf32> to vector<8x8xbf16>
    %135 = arith.truncf %126 : vector<8x8xf32> to vector<8x8xbf16>
    %cst_88 = arith.constant dense<0.000000e+00> : vector<8x8xf32>
    %136 = tpu.matmul %134, %135, %cst_88 {dimension_numbers = #tpu.dot_dimension_numbers<[1], [1], [0], [0], [0, 0, 1, 0], [], []>} : vector<8x8xbf16>, vector<8x8xbf16>, vector<8x8xf32> -> vector<8x8xf32>
    %cst_89 = arith.constant dense<0xFF800000> : vector<8xf32>
    %137 = vector.multi_reduction <maximumf>, %136, %cst_89 [1] : vector<8x8xf32> to vector<8xf32>
    %138 = vector.shape_cast %137 : vector<8xf32> to vector<8x1xf32>
    %139 = vector.broadcast %138 : vector<8x1xf32> to vector<8x8xf32>
    %140 = arith.subf %136, %139 : vector<8x8xf32>
    %141 = math.exp %140 : vector<8x8xf32>
    %cst_90 = arith.constant dense<0.000000e+00> : vector<8xf32>
    %142 = vector.multi_reduction <add>, %141, %cst_90 [1] : vector<8x8xf32> to vector<8xf32>
    %143 = vector.shape_cast %142 : vector<8xf32> to vector<8x1xf32>
    %144 = tpu.reciprocal %143 {approx = true} : vector<8x1xf32> -> vector<8x1xf32>
    %145 = vector.broadcast %144 : vector<8x1xf32> to vector<8x8xf32>
    %146 = arith.mulf %141, %145 : vector<8x8xf32>
    %147 = arith.truncf %146 : vector<8x8xf32> to vector<8x8xbf16>
    %148 = arith.truncf %133 : vector<8x8xf32> to vector<8x8xbf16>
    %cst_91 = arith.constant dense<0.000000e+00> : vector<8x8xf32>
    %149 = tpu.matmul %147, %148, %cst_91 {dimension_numbers = #tpu.dot_dimension_numbers<[1], [0], [0], [1], [0, 0, 1, 1], [], []>} : vector<8x8xbf16>, vector<8x8xbf16>, vector<8x8xf32> -> vector<8x8xf32>
    %150 = arith.truncf %149 : vector<8x8xf32> to vector<8x8xbf16>
    %c2_92 = arith.constant 2 : index
    %c0_93 = arith.constant 0 : index
    %c0_94 = arith.constant 0 : index
    %151 = vector.load %arg10[%c2_92, %c0_93, %c0_94] : memref<4x8x32xbf16, #tpu.memory_space<vmem>>, vector<1x8x32xbf16>
    %152 = vector.shape_cast %151 : vector<1x8x32xbf16> to vector<8x32xbf16>
    %cst_95 = arith.constant dense<0.000000e+00> : vector<8x32xf32>
    %153 = tpu.matmul %150, %152, %cst_95 {dimension_numbers = #tpu.dot_dimension_numbers<[1], [0], [0], [1], [0, 0, 1, 1], [], []>} : vector<8x8xbf16>, vector<8x32xbf16>, vector<8x32xf32> -> vector<8x32xf32>
    %154 = arith.addf %112, %153 : vector<8x32xf32>
    %c3 = arith.constant 3 : index
    %c0_96 = arith.constant 0 : index
    %c0_97 = arith.constant 0 : index
    %155 = vector.load %arg4[%c3, %c0_96, %c0_97] : memref<4x8x32xbf16, #tpu.memory_space<vmem>>, vector<1x8x32xbf16>
    %156 = vector.shape_cast %155 : vector<1x8x32xbf16> to vector<8x32xbf16>
    %cst_98 = arith.constant dense<0.000000e+00> : vector<8x8xf32>
    %157 = tpu.matmul %27, %156, %cst_98 {dimension_numbers = #tpu.dot_dimension_numbers<[1], [1], [0], [0], [0, 0, 1, 0], [], []>} : vector<8x32xbf16>, vector<8x32xbf16>, vector<8x8xf32> -> vector<8x8xf32>
    %c3_99 = arith.constant 3 : index
    %c0_100 = arith.constant 0 : index
    %c0_101 = arith.constant 0 : index
    %158 = vector.load %arg5[%c3_99, %c0_100, %c0_101] : memref<4x1x8xf32, #tpu.memory_space<vmem>>, vector<1x1x8xf32>
    %159 = vector.shape_cast %158 : vector<1x1x8xf32> to vector<1x8xf32>
    %160 = vector.broadcast %159 : vector<1x8xf32> to vector<8x8xf32>
    %161 = arith.addf %157, %160 : vector<8x8xf32>
    %c3_102 = arith.constant 3 : index
    %c0_103 = arith.constant 0 : index
    %c0_104 = arith.constant 0 : index
    %162 = vector.load %arg6[%c3_102, %c0_103, %c0_104] : memref<4x8x32xbf16, #tpu.memory_space<vmem>>, vector<1x8x32xbf16>
    %163 = vector.shape_cast %162 : vector<1x8x32xbf16> to vector<8x32xbf16>
    %cst_105 = arith.constant dense<0.000000e+00> : vector<8x8xf32>
    %164 = tpu.matmul %27, %163, %cst_105 {dimension_numbers = #tpu.dot_dimension_numbers<[1], [1], [0], [0], [0, 0, 1, 0], [], []>} : vector<8x32xbf16>, vector<8x32xbf16>, vector<8x8xf32> -> vector<8x8xf32>
    %c3_106 = arith.constant 3 : index
    %c0_107 = arith.constant 0 : index
    %c0_108 = arith.constant 0 : index
    %165 = vector.load %arg7[%c3_106, %c0_107, %c0_108] : memref<4x1x8xf32, #tpu.memory_space<vmem>>, vector<1x1x8xf32>
    %166 = vector.shape_cast %165 : vector<1x1x8xf32> to vector<1x8xf32>
    %167 = vector.broadcast %166 : vector<1x8xf32> to vector<8x8xf32>
    %168 = arith.addf %164, %167 : vector<8x8xf32>
    %c3_109 = arith.constant 3 : index
    %c0_110 = arith.constant 0 : index
    %c0_111 = arith.constant 0 : index
    %169 = vector.load %arg8[%c3_109, %c0_110, %c0_111] : memref<4x8x32xbf16, #tpu.memory_space<vmem>>, vector<1x8x32xbf16>
    %170 = vector.shape_cast %169 : vector<1x8x32xbf16> to vector<8x32xbf16>
    %cst_112 = arith.constant dense<0.000000e+00> : vector<8x8xf32>
    %171 = tpu.matmul %27, %170, %cst_112 {dimension_numbers = #tpu.dot_dimension_numbers<[1], [1], [0], [0], [0, 0, 1, 0], [], []>} : vector<8x32xbf16>, vector<8x32xbf16>, vector<8x8xf32> -> vector<8x8xf32>
    %c3_113 = arith.constant 3 : index
    %c0_114 = arith.constant 0 : index
    %c0_115 = arith.constant 0 : index
    %172 = vector.load %arg9[%c3_113, %c0_114, %c0_115] : memref<4x1x8xf32, #tpu.memory_space<vmem>>, vector<1x1x8xf32>
    %173 = vector.shape_cast %172 : vector<1x1x8xf32> to vector<1x8xf32>
    %174 = vector.broadcast %173 : vector<1x8xf32> to vector<8x8xf32>
    %175 = arith.addf %171, %174 : vector<8x8xf32>
    %176 = arith.truncf %161 : vector<8x8xf32> to vector<8x8xbf16>
    %177 = arith.truncf %168 : vector<8x8xf32> to vector<8x8xbf16>
    %cst_116 = arith.constant dense<0.000000e+00> : vector<8x8xf32>
    %178 = tpu.matmul %176, %177, %cst_116 {dimension_numbers = #tpu.dot_dimension_numbers<[1], [1], [0], [0], [0, 0, 1, 0], [], []>} : vector<8x8xbf16>, vector<8x8xbf16>, vector<8x8xf32> -> vector<8x8xf32>
    %cst_117 = arith.constant dense<0xFF800000> : vector<8xf32>
    %179 = vector.multi_reduction <maximumf>, %178, %cst_117 [1] : vector<8x8xf32> to vector<8xf32>
    %180 = vector.shape_cast %179 : vector<8xf32> to vector<8x1xf32>
    %181 = vector.broadcast %180 : vector<8x1xf32> to vector<8x8xf32>
    %182 = arith.subf %178, %181 : vector<8x8xf32>
    %183 = math.exp %182 : vector<8x8xf32>
    %cst_118 = arith.constant dense<0.000000e+00> : vector<8xf32>
    %184 = vector.multi_reduction <add>, %183, %cst_118 [1] : vector<8x8xf32> to vector<8xf32>
    %185 = vector.shape_cast %184 : vector<8xf32> to vector<8x1xf32>
    %186 = tpu.reciprocal %185 {approx = true} : vector<8x1xf32> -> vector<8x1xf32>
    %187 = vector.broadcast %186 : vector<8x1xf32> to vector<8x8xf32>
    %188 = arith.mulf %183, %187 : vector<8x8xf32>
    %189 = arith.truncf %188 : vector<8x8xf32> to vector<8x8xbf16>
    %190 = arith.truncf %175 : vector<8x8xf32> to vector<8x8xbf16>
    %cst_119 = arith.constant dense<0.000000e+00> : vector<8x8xf32>
    %191 = tpu.matmul %189, %190, %cst_119 {dimension_numbers = #tpu.dot_dimension_numbers<[1], [0], [0], [1], [0, 0, 1, 1], [], []>} : vector<8x8xbf16>, vector<8x8xbf16>, vector<8x8xf32> -> vector<8x8xf32>
    %192 = arith.truncf %191 : vector<8x8xf32> to vector<8x8xbf16>
    %c3_120 = arith.constant 3 : index
    %c0_121 = arith.constant 0 : index
    %c0_122 = arith.constant 0 : index
    %193 = vector.load %arg10[%c3_120, %c0_121, %c0_122] : memref<4x8x32xbf16, #tpu.memory_space<vmem>>, vector<1x8x32xbf16>
    %194 = vector.shape_cast %193 : vector<1x8x32xbf16> to vector<8x32xbf16>
    %cst_123 = arith.constant dense<0.000000e+00> : vector<8x32xf32>
    %195 = tpu.matmul %192, %194, %cst_123 {dimension_numbers = #tpu.dot_dimension_numbers<[1], [0], [0], [1], [0, 0, 1, 1], [], []>} : vector<8x8xbf16>, vector<8x32xbf16>, vector<8x32xf32> -> vector<8x32xf32>
    %196 = arith.addf %154, %195 : vector<8x32xf32>
    %197 = vector.extract_strided_slice %0 {offsets = [0, 0, 0], sizes = [1, 8, 32], strides = [1, 1, 1]} : vector<2x8x32xf32> to vector<1x8x32xf32>
    %198 = vector.shape_cast %197 : vector<1x8x32xf32> to vector<8x32xf32>
    %199 = arith.addf %198, %196 : vector<8x32xf32>
    %c0_124 = arith.constant 0 : index
    %c0_125 = arith.constant 0 : index
    %200 = vector.load %arg11[%c0_124, %c0_125] : memref<1x32xf32, #tpu.memory_space<vmem>>, vector<1x32xf32>
    %201 = vector.broadcast %200 : vector<1x32xf32> to vector<8x32xf32>
    %202 = arith.addf %199, %201 : vector<8x32xf32>
    %c0_126 = arith.constant 0 : index
    %c0_127 = arith.constant 0 : index
    %c0_128 = arith.constant 0 : index
    %203 = vector.load %arg19[%c0_126, %c0_127, %c0_128] : memref<2x8x32xf32, #tpu.memory_space<vmem>>, vector<1x8x32xf32>
    %204 = vector.shape_cast %203 : vector<1x8x32xf32> to vector<8x32xf32>
    %205 = vector.shape_cast %202 : vector<8x32xf32> to vector<1x8x32xf32>
    tpu.vector_store %arg19[%c0_126, %c0_127, %c0_128], %205 {strides = array<i32>} : memref<2x8x32xf32, #tpu.memory_space<vmem>>, vector<1x8x32xf32>,
    %206 = vector.extract_strided_slice %25 {offsets = [1, 0, 0], sizes = [1, 8, 32], strides = [1, 1, 1]} : vector<2x8x32xbf16> to vector<1x8x32xbf16>
    %207 = vector.shape_cast %206 : vector<1x8x32xbf16> to vector<8x32xbf16>
    %cst_129 = arith.constant 0.000000e+00 : f32
    %208 = vector.broadcast %cst_129 : f32 to vector<8x32xf32>
    %c0_130 = arith.constant 0 : index
    %c0_131 = arith.constant 0 : index
    %c0_132 = arith.constant 0 : index
    %209 = vector.load %arg4[%c0_130, %c0_131, %c0_132] : memref<4x8x32xbf16, #tpu.memory_space<vmem>>, vector<1x8x32xbf16>
    %210 = vector.shape_cast %209 : vector<1x8x32xbf16> to vector<8x32xbf16>
    %cst_133 = arith.constant dense<0.000000e+00> : vector<8x8xf32>
    %211 = tpu.matmul %207, %210, %cst_133 {dimension_numbers = #tpu.dot_dimension_numbers<[1], [1], [0], [0], [0, 0, 1, 0], [], []>} : vector<8x32xbf16>, vector<8x32xbf16>, vector<8x8xf32> -> vector<8x8xf32>
    %c0_134 = arith.constant 0 : index
    %c0_135 = arith.constant 0 : index
    %c0_136 = arith.constant 0 : index
    %212 = vector.load %arg5[%c0_134, %c0_135, %c0_136] : memref<4x1x8xf32, #tpu.memory_space<vmem>>, vector<1x1x8xf32>
    %213 = vector.shape_cast %212 : vector<1x1x8xf32> to vector<1x8xf32>
    %214 = vector.broadcast %213 : vector<1x8xf32> to vector<8x8xf32>
    %215 = arith.addf %211, %214 : vector<8x8xf32>
    %c0_137 = arith.constant 0 : index
    %c0_138 = arith.constant 0 : index
    %c0_139 = arith.constant 0 : index
    %216 = vector.load %arg6[%c0_137, %c0_138, %c0_139] : memref<4x8x32xbf16, #tpu.memory_space<vmem>>, vector<1x8x32xbf16>
    %217 = vector.shape_cast %216 : vector<1x8x32xbf16> to vector<8x32xbf16>
    %cst_140 = arith.constant dense<0.000000e+00> : vector<8x8xf32>
    %218 = tpu.matmul %207, %217, %cst_140 {dimension_numbers = #tpu.dot_dimension_numbers<[1], [1], [0], [0], [0, 0, 1, 0], [], []>} : vector<8x32xbf16>, vector<8x32xbf16>, vector<8x8xf32> -> vector<8x8xf32>
    %c0_141 = arith.constant 0 : index
    %c0_142 = arith.constant 0 : index
    %c0_143 = arith.constant 0 : index
    %219 = vector.load %arg7[%c0_141, %c0_142, %c0_143] : memref<4x1x8xf32, #tpu.memory_space<vmem>>, vector<1x1x8xf32>
    %220 = vector.shape_cast %219 : vector<1x1x8xf32> to vector<1x8xf32>
    %221 = vector.broadcast %220 : vector<1x8xf32> to vector<8x8xf32>
    %222 = arith.addf %218, %221 : vector<8x8xf32>
    %c0_144 = arith.constant 0 : index
    %c0_145 = arith.constant 0 : index
    %c0_146 = arith.constant 0 : index
    %223 = vector.load %arg8[%c0_144, %c0_145, %c0_146] : memref<4x8x32xbf16, #tpu.memory_space<vmem>>, vector<1x8x32xbf16>
    %224 = vector.shape_cast %223 : vector<1x8x32xbf16> to vector<8x32xbf16>
    %cst_147 = arith.constant dense<0.000000e+00> : vector<8x8xf32>
    %225 = tpu.matmul %207, %224, %cst_147 {dimension_numbers = #tpu.dot_dimension_numbers<[1], [1], [0], [0], [0, 0, 1, 0], [], []>} : vector<8x32xbf16>, vector<8x32xbf16>, vector<8x8xf32> -> vector<8x8xf32>
    %c0_148 = arith.constant 0 : index
    %c0_149 = arith.constant 0 : index
    %c0_150 = arith.constant 0 : index
    %226 = vector.load %arg9[%c0_148, %c0_149, %c0_150] : memref<4x1x8xf32, #tpu.memory_space<vmem>>, vector<1x1x8xf32>
    %227 = vector.shape_cast %226 : vector<1x1x8xf32> to vector<1x8xf32>
    %228 = vector.broadcast %227 : vector<1x8xf32> to vector<8x8xf32>
    %229 = arith.addf %225, %228 : vector<8x8xf32>
    %230 = arith.truncf %215 : vector<8x8xf32> to vector<8x8xbf16>
    %231 = arith.truncf %222 : vector<8x8xf32> to vector<8x8xbf16>
    %cst_151 = arith.constant dense<0.000000e+00> : vector<8x8xf32>
    %232 = tpu.matmul %230, %231, %cst_151 {dimension_numbers = #tpu.dot_dimension_numbers<[1], [1], [0], [0], [0, 0, 1, 0], [], []>} : vector<8x8xbf16>, vector<8x8xbf16>, vector<8x8xf32> -> vector<8x8xf32>
    %cst_152 = arith.constant dense<0xFF800000> : vector<8xf32>
    %233 = vector.multi_reduction <maximumf>, %232, %cst_152 [1] : vector<8x8xf32> to vector<8xf32>
    %234 = vector.shape_cast %233 : vector<8xf32> to vector<8x1xf32>
    %235 = vector.broadcast %234 : vector<8x1xf32> to vector<8x8xf32>
    %236 = arith.subf %232, %235 : vector<8x8xf32>
    %237 = math.exp %236 : vector<8x8xf32>
    %cst_153 = arith.constant dense<0.000000e+00> : vector<8xf32>
    %238 = vector.multi_reduction <add>, %237, %cst_153 [1] : vector<8x8xf32> to vector<8xf32>
    %239 = vector.shape_cast %238 : vector<8xf32> to vector<8x1xf32>
    %240 = tpu.reciprocal %239 {approx = true} : vector<8x1xf32> -> vector<8x1xf32>
    %241 = vector.broadcast %240 : vector<8x1xf32> to vector<8x8xf32>
    %242 = arith.mulf %237, %241 : vector<8x8xf32>
    %243 = arith.truncf %242 : vector<8x8xf32> to vector<8x8xbf16>
    %244 = arith.truncf %229 : vector<8x8xf32> to vector<8x8xbf16>
    %cst_154 = arith.constant dense<0.000000e+00> : vector<8x8xf32>
    %245 = tpu.matmul %243, %244, %cst_154 {dimension_numbers = #tpu.dot_dimension_numbers<[1], [0], [0], [1], [0, 0, 1, 1], [], []>} : vector<8x8xbf16>, vector<8x8xbf16>, vector<8x8xf32> -> vector<8x8xf32>
    %246 = arith.truncf %245 : vector<8x8xf32> to vector<8x8xbf16>
    %c0_155 = arith.constant 0 : index
    %c0_156 = arith.constant 0 : index
    %c0_157 = arith.constant 0 : index
    %247 = vector.load %arg10[%c0_155, %c0_156, %c0_157] : memref<4x8x32xbf16, #tpu.memory_space<vmem>>, vector<1x8x32xbf16>
    %248 = vector.shape_cast %247 : vector<1x8x32xbf16> to vector<8x32xbf16>
    %cst_158 = arith.constant dense<0.000000e+00> : vector<8x32xf32>
    %249 = tpu.matmul %246, %248, %cst_158 {dimension_numbers = #tpu.dot_dimension_numbers<[1], [0], [0], [1], [0, 0, 1, 1], [], []>} : vector<8x8xbf16>, vector<8x32xbf16>, vector<8x32xf32> -> vector<8x32xf32>
    %250 = arith.addf %208, %249 : vector<8x32xf32>
    %c1_159 = arith.constant 1 : index
    %c0_160 = arith.constant 0 : index
    %c0_161 = arith.constant 0 : index
    %251 = vector.load %arg4[%c1_159, %c0_160, %c0_161] : memref<4x8x32xbf16, #tpu.memory_space<vmem>>, vector<1x8x32xbf16>
    %252 = vector.shape_cast %251 : vector<1x8x32xbf16> to vector<8x32xbf16>
    %cst_162 = arith.constant dense<0.000000e+00> : vector<8x8xf32>
    %253 = tpu.matmul %207, %252, %cst_162 {dimension_numbers = #tpu.dot_dimension_numbers<[1], [1], [0], [0], [0, 0, 1, 0], [], []>} : vector<8x32xbf16>, vector<8x32xbf16>, vector<8x8xf32> -> vector<8x8xf32>
    %c1_163 = arith.constant 1 : index
    %c0_164 = arith.constant 0 : index
    %c0_165 = arith.constant 0 : index
    %254 = vector.load %arg5[%c1_163, %c0_164, %c0_165] : memref<4x1x8xf32, #tpu.memory_space<vmem>>, vector<1x1x8xf32>
    %255 = vector.shape_cast %254 : vector<1x1x8xf32> to vector<1x8xf32>
    %256 = vector.broadcast %255 : vector<1x8xf32> to vector<8x8xf32>
    %257 = arith.addf %253, %256 : vector<8x8xf32>
    %c1_166 = arith.constant 1 : index
    %c0_167 = arith.constant 0 : index
    %c0_168 = arith.constant 0 : index
    %258 = vector.load %arg6[%c1_166, %c0_167, %c0_168] : memref<4x8x32xbf16, #tpu.memory_space<vmem>>, vector<1x8x32xbf16>
    %259 = vector.shape_cast %258 : vector<1x8x32xbf16> to vector<8x32xbf16>
    %cst_169 = arith.constant dense<0.000000e+00> : vector<8x8xf32>
    %260 = tpu.matmul %207, %259, %cst_169 {dimension_numbers = #tpu.dot_dimension_numbers<[1], [1], [0], [0], [0, 0, 1, 0], [], []>} : vector<8x32xbf16>, vector<8x32xbf16>, vector<8x8xf32> -> vector<8x8xf32>
    %c1_170 = arith.constant 1 : index
    %c0_171 = arith.constant 0 : index
    %c0_172 = arith.constant 0 : index
    %261 = vector.load %arg7[%c1_170, %c0_171, %c0_172] : memref<4x1x8xf32, #tpu.memory_space<vmem>>, vector<1x1x8xf32>
    %262 = vector.shape_cast %261 : vector<1x1x8xf32> to vector<1x8xf32>
    %263 = vector.broadcast %262 : vector<1x8xf32> to vector<8x8xf32>
    %264 = arith.addf %260, %263 : vector<8x8xf32>
    %c1_173 = arith.constant 1 : index
    %c0_174 = arith.constant 0 : index
    %c0_175 = arith.constant 0 : index
    %265 = vector.load %arg8[%c1_173, %c0_174, %c0_175] : memref<4x8x32xbf16, #tpu.memory_space<vmem>>, vector<1x8x32xbf16>
    %266 = vector.shape_cast %265 : vector<1x8x32xbf16> to vector<8x32xbf16>
    %cst_176 = arith.constant dense<0.000000e+00> : vector<8x8xf32>
    %267 = tpu.matmul %207, %266, %cst_176 {dimension_numbers = #tpu.dot_dimension_numbers<[1], [1], [0], [0], [0, 0, 1, 0], [], []>} : vector<8x32xbf16>, vector<8x32xbf16>, vector<8x8xf32> -> vector<8x8xf32>
    %c1_177 = arith.constant 1 : index
    %c0_178 = arith.constant 0 : index
    %c0_179 = arith.constant 0 : index
    %268 = vector.load %arg9[%c1_177, %c0_178, %c0_179] : memref<4x1x8xf32, #tpu.memory_space<vmem>>, vector<1x1x8xf32>
    %269 = vector.shape_cast %268 : vector<1x1x8xf32> to vector<1x8xf32>
    %270 = vector.broadcast %269 : vector<1x8xf32> to vector<8x8xf32>
    %271 = arith.addf %267, %270 : vector<8x8xf32>
    %272 = arith.truncf %257 : vector<8x8xf32> to vector<8x8xbf16>
    %273 = arith.truncf %264 : vector<8x8xf32> to vector<8x8xbf16>
    %cst_180 = arith.constant dense<0.000000e+00> : vector<8x8xf32>
    %274 = tpu.matmul %272, %273, %cst_180 {dimension_numbers = #tpu.dot_dimension_numbers<[1], [1], [0], [0], [0, 0, 1, 0], [], []>} : vector<8x8xbf16>, vector<8x8xbf16>, vector<8x8xf32> -> vector<8x8xf32>
    %cst_181 = arith.constant dense<0xFF800000> : vector<8xf32>
    %275 = vector.multi_reduction <maximumf>, %274, %cst_181 [1] : vector<8x8xf32> to vector<8xf32>
    %276 = vector.shape_cast %275 : vector<8xf32> to vector<8x1xf32>
    %277 = vector.broadcast %276 : vector<8x1xf32> to vector<8x8xf32>
    %278 = arith.subf %274, %277 : vector<8x8xf32>
    %279 = math.exp %278 : vector<8x8xf32>
    %cst_182 = arith.constant dense<0.000000e+00> : vector<8xf32>
    %280 = vector.multi_reduction <add>, %279, %cst_182 [1] : vector<8x8xf32> to vector<8xf32>
    %281 = vector.shape_cast %280 : vector<8xf32> to vector<8x1xf32>
    %282 = tpu.reciprocal %281 {approx = true} : vector<8x1xf32> -> vector<8x1xf32>
    %283 = vector.broadcast %282 : vector<8x1xf32> to vector<8x8xf32>
    %284 = arith.mulf %279, %283 : vector<8x8xf32>
    %285 = arith.truncf %284 : vector<8x8xf32> to vector<8x8xbf16>
    %286 = arith.truncf %271 : vector<8x8xf32> to vector<8x8xbf16>
    %cst_183 = arith.constant dense<0.000000e+00> : vector<8x8xf32>
    %287 = tpu.matmul %285, %286, %cst_183 {dimension_numbers = #tpu.dot_dimension_numbers<[1], [0], [0], [1], [0, 0, 1, 1], [], []>} : vector<8x8xbf16>, vector<8x8xbf16>, vector<8x8xf32> -> vector<8x8xf32>
    %288 = arith.truncf %287 : vector<8x8xf32> to vector<8x8xbf16>
    %c1_184 = arith.constant 1 : index
    %c0_185 = arith.constant 0 : index
    %c0_186 = arith.constant 0 : index
    %289 = vector.load %arg10[%c1_184, %c0_185, %c0_186] : memref<4x8x32xbf16, #tpu.memory_space<vmem>>, vector<1x8x32xbf16>
    %290 = vector.shape_cast %289 : vector<1x8x32xbf16> to vector<8x32xbf16>
    %cst_187 = arith.constant dense<0.000000e+00> : vector<8x32xf32>
    %291 = tpu.matmul %288, %290, %cst_187 {dimension_numbers = #tpu.dot_dimension_numbers<[1], [0], [0], [1], [0, 0, 1, 1], [], []>} : vector<8x8xbf16>, vector<8x32xbf16>, vector<8x32xf32> -> vector<8x32xf32>
    %292 = arith.addf %250, %291 : vector<8x32xf32>
    %c2_188 = arith.constant 2 : index
    %c0_189 = arith.constant 0 : index
    %c0_190 = arith.constant 0 : index
    %293 = vector.load %arg4[%c2_188, %c0_189, %c0_190] : memref<4x8x32xbf16, #tpu.memory_space<vmem>>, vector<1x8x32xbf16>
    %294 = vector.shape_cast %293 : vector<1x8x32xbf16> to vector<8x32xbf16>
    %cst_191 = arith.constant dense<0.000000e+00> : vector<8x8xf32>
    %295 = tpu.matmul %207, %294, %cst_191 {dimension_numbers = #tpu.dot_dimension_numbers<[1], [1], [0], [0], [0, 0, 1, 0], [], []>} : vector<8x32xbf16>, vector<8x32xbf16>, vector<8x8xf32> -> vector<8x8xf32>
    %c2_192 = arith.constant 2 : index
    %c0_193 = arith.constant 0 : index
    %c0_194 = arith.constant 0 : index
    %296 = vector.load %arg5[%c2_192, %c0_193, %c0_194] : memref<4x1x8xf32, #tpu.memory_space<vmem>>, vector<1x1x8xf32>
    %297 = vector.shape_cast %296 : vector<1x1x8xf32> to vector<1x8xf32>
    %298 = vector.broadcast %297 : vector<1x8xf32> to vector<8x8xf32>
    %299 = arith.addf %295, %298 : vector<8x8xf32>
    %c2_195 = arith.constant 2 : index
    %c0_196 = arith.constant 0 : index
    %c0_197 = arith.constant 0 : index
    %300 = vector.load %arg6[%c2_195, %c0_196, %c0_197] : memref<4x8x32xbf16, #tpu.memory_space<vmem>>, vector<1x8x32xbf16>
    %301 = vector.shape_cast %300 : vector<1x8x32xbf16> to vector<8x32xbf16>
    %cst_198 = arith.constant dense<0.000000e+00> : vector<8x8xf32>
    %302 = tpu.matmul %207, %301, %cst_198 {dimension_numbers = #tpu.dot_dimension_numbers<[1], [1], [0], [0], [0, 0, 1, 0], [], []>} : vector<8x32xbf16>, vector<8x32xbf16>, vector<8x8xf32> -> vector<8x8xf32>
    %c2_199 = arith.constant 2 : index
    %c0_200 = arith.constant 0 : index
    %c0_201 = arith.constant 0 : index
    %303 = vector.load %arg7[%c2_199, %c0_200, %c0_201] : memref<4x1x8xf32, #tpu.memory_space<vmem>>, vector<1x1x8xf32>
    %304 = vector.shape_cast %303 : vector<1x1x8xf32> to vector<1x8xf32>
    %305 = vector.broadcast %304 : vector<1x8xf32> to vector<8x8xf32>
    %306 = arith.addf %302, %305 : vector<8x8xf32>
    %c2_202 = arith.constant 2 : index
    %c0_203 = arith.constant 0 : index
    %c0_204 = arith.constant 0 : index
    %307 = vector.load %arg8[%c2_202, %c0_203, %c0_204] : memref<4x8x32xbf16, #tpu.memory_space<vmem>>, vector<1x8x32xbf16>
    %308 = vector.shape_cast %307 : vector<1x8x32xbf16> to vector<8x32xbf16>
    %cst_205 = arith.constant dense<0.000000e+00> : vector<8x8xf32>
    %309 = tpu.matmul %207, %308, %cst_205 {dimension_numbers = #tpu.dot_dimension_numbers<[1], [1], [0], [0], [0, 0, 1, 0], [], []>} : vector<8x32xbf16>, vector<8x32xbf16>, vector<8x8xf32> -> vector<8x8xf32>
    %c2_206 = arith.constant 2 : index
    %c0_207 = arith.constant 0 : index
    %c0_208 = arith.constant 0 : index
    %310 = vector.load %arg9[%c2_206, %c0_207, %c0_208] : memref<4x1x8xf32, #tpu.memory_space<vmem>>, vector<1x1x8xf32>
    %311 = vector.shape_cast %310 : vector<1x1x8xf32> to vector<1x8xf32>
    %312 = vector.broadcast %311 : vector<1x8xf32> to vector<8x8xf32>
    %313 = arith.addf %309, %312 : vector<8x8xf32>
    %314 = arith.truncf %299 : vector<8x8xf32> to vector<8x8xbf16>
    %315 = arith.truncf %306 : vector<8x8xf32> to vector<8x8xbf16>
    %cst_209 = arith.constant dense<0.000000e+00> : vector<8x8xf32>
    %316 = tpu.matmul %314, %315, %cst_209 {dimension_numbers = #tpu.dot_dimension_numbers<[1], [1], [0], [0], [0, 0, 1, 0], [], []>} : vector<8x8xbf16>, vector<8x8xbf16>, vector<8x8xf32> -> vector<8x8xf32>
    %cst_210 = arith.constant dense<0xFF800000> : vector<8xf32>
    %317 = vector.multi_reduction <maximumf>, %316, %cst_210 [1] : vector<8x8xf32> to vector<8xf32>
    %318 = vector.shape_cast %317 : vector<8xf32> to vector<8x1xf32>
    %319 = vector.broadcast %318 : vector<8x1xf32> to vector<8x8xf32>
    %320 = arith.subf %316, %319 : vector<8x8xf32>
    %321 = math.exp %320 : vector<8x8xf32>
    %cst_211 = arith.constant dense<0.000000e+00> : vector<8xf32>
    %322 = vector.multi_reduction <add>, %321, %cst_211 [1] : vector<8x8xf32> to vector<8xf32>
    %323 = vector.shape_cast %322 : vector<8xf32> to vector<8x1xf32>
    %324 = tpu.reciprocal %323 {approx = true} : vector<8x1xf32> -> vector<8x1xf32>
    %325 = vector.broadcast %324 : vector<8x1xf32> to vector<8x8xf32>
    %326 = arith.mulf %321, %325 : vector<8x8xf32>
    %327 = arith.truncf %326 : vector<8x8xf32> to vector<8x8xbf16>
    %328 = arith.truncf %313 : vector<8x8xf32> to vector<8x8xbf16>
    %cst_212 = arith.constant dense<0.000000e+00> : vector<8x8xf32>
    %329 = tpu.matmul %327, %328, %cst_212 {dimension_numbers = #tpu.dot_dimension_numbers<[1], [0], [0], [1], [0, 0, 1, 1], [], []>} : vector<8x8xbf16>, vector<8x8xbf16>, vector<8x8xf32> -> vector<8x8xf32>
    %330 = arith.truncf %329 : vector<8x8xf32> to vector<8x8xbf16>
    %c2_213 = arith.constant 2 : index
    %c0_214 = arith.constant 0 : index
    %c0_215 = arith.constant 0 : index
    %331 = vector.load %arg10[%c2_213, %c0_214, %c0_215] : memref<4x8x32xbf16, #tpu.memory_space<vmem>>, vector<1x8x32xbf16>
    %332 = vector.shape_cast %331 : vector<1x8x32xbf16> to vector<8x32xbf16>
    %cst_216 = arith.constant dense<0.000000e+00> : vector<8x32xf32>
    %333 = tpu.matmul %330, %332, %cst_216 {dimension_numbers = #tpu.dot_dimension_numbers<[1], [0], [0], [1], [0, 0, 1, 1], [], []>} : vector<8x8xbf16>, vector<8x32xbf16>, vector<8x32xf32> -> vector<8x32xf32>
    %334 = arith.addf %292, %333 : vector<8x32xf32>
    %c3_217 = arith.constant 3 : index
    %c0_218 = arith.constant 0 : index
    %c0_219 = arith.constant 0 : index
    %335 = vector.load %arg4[%c3_217, %c0_218, %c0_219] : memref<4x8x32xbf16, #tpu.memory_space<vmem>>, vector<1x8x32xbf16>
    %336 = vector.shape_cast %335 : vector<1x8x32xbf16> to vector<8x32xbf16>
    %cst_220 = arith.constant dense<0.000000e+00> : vector<8x8xf32>
    %337 = tpu.matmul %207, %336, %cst_220 {dimension_numbers = #tpu.dot_dimension_numbers<[1], [1], [0], [0], [0, 0, 1, 0], [], []>} : vector<8x32xbf16>, vector<8x32xbf16>, vector<8x8xf32> -> vector<8x8xf32>
    %c3_221 = arith.constant 3 : index
    %c0_222 = arith.constant 0 : index
    %c0_223 = arith.constant 0 : index
    %338 = vector.load %arg5[%c3_221, %c0_222, %c0_223] : memref<4x1x8xf32, #tpu.memory_space<vmem>>, vector<1x1x8xf32>
    %339 = vector.shape_cast %338 : vector<1x1x8xf32> to vector<1x8xf32>
    %340 = vector.broadcast %339 : vector<1x8xf32> to vector<8x8xf32>
    %341 = arith.addf %337, %340 : vector<8x8xf32>
    %c3_224 = arith.constant 3 : index
    %c0_225 = arith.constant 0 : index
    %c0_226 = arith.constant 0 : index
    %342 = vector.load %arg6[%c3_224, %c0_225, %c0_226] : memref<4x8x32xbf16, #tpu.memory_space<vmem>>, vector<1x8x32xbf16>
    %343 = vector.shape_cast %342 : vector<1x8x32xbf16> to vector<8x32xbf16>
    %cst_227 = arith.constant dense<0.000000e+00> : vector<8x8xf32>
    %344 = tpu.matmul %207, %343, %cst_227 {dimension_numbers = #tpu.dot_dimension_numbers<[1], [1], [0], [0], [0, 0, 1, 0], [], []>} : vector<8x32xbf16>, vector<8x32xbf16>, vector<8x8xf32> -> vector<8x8xf32>
    %c3_228 = arith.constant 3 : index
    %c0_229 = arith.constant 0 : index
    %c0_230 = arith.constant 0 : index
    %345 = vector.load %arg7[%c3_228, %c0_229, %c0_230] : memref<4x1x8xf32, #tpu.memory_space<vmem>>, vector<1x1x8xf32>
    %346 = vector.shape_cast %345 : vector<1x1x8xf32> to vector<1x8xf32>
    %347 = vector.broadcast %346 : vector<1x8xf32> to vector<8x8xf32>
    %348 = arith.addf %344, %347 : vector<8x8xf32>
    %c3_231 = arith.constant 3 : index
    %c0_232 = arith.constant 0 : index
    %c0_233 = arith.constant 0 : index
    %349 = vector.load %arg8[%c3_231, %c0_232, %c0_233] : memref<4x8x32xbf16, #tpu.memory_space<vmem>>, vector<1x8x32xbf16>
    %350 = vector.shape_cast %349 : vector<1x8x32xbf16> to vector<8x32xbf16>
    %cst_234 = arith.constant dense<0.000000e+00> : vector<8x8xf32>
    %351 = tpu.matmul %207, %350, %cst_234 {dimension_numbers = #tpu.dot_dimension_numbers<[1], [1], [0], [0], [0, 0, 1, 0], [], []>} : vector<8x32xbf16>, vector<8x32xbf16>, vector<8x8xf32> -> vector<8x8xf32>
    %c3_235 = arith.constant 3 : index
    %c0_236 = arith.constant 0 : index
    %c0_237 = arith.constant 0 : index
    %352 = vector.load %arg9[%c3_235, %c0_236, %c0_237] : memref<4x1x8xf32, #tpu.memory_space<vmem>>, vector<1x1x8xf32>
    %353 = vector.shape_cast %352 : vector<1x1x8xf32> to vector<1x8xf32>
    %354 = vector.broadcast %353 : vector<1x8xf32> to vector<8x8xf32>
    %355 = arith.addf %351, %354 : vector<8x8xf32>
    %356 = arith.truncf %341 : vector<8x8xf32> to vector<8x8xbf16>
    %357 = arith.truncf %348 : vector<8x8xf32> to vector<8x8xbf16>
    %cst_238 = arith.constant dense<0.000000e+00> : vector<8x8xf32>
    %358 = tpu.matmul %356, %357, %cst_238 {dimension_numbers = #tpu.dot_dimension_numbers<[1], [1], [0], [0], [0, 0, 1, 0], [], []>} : vector<8x8xbf16>, vector<8x8xbf16>, vector<8x8xf32> -> vector<8x8xf32>
    %cst_239 = arith.constant dense<0xFF800000> : vector<8xf32>
    %359 = vector.multi_reduction <maximumf>, %358, %cst_239 [1] : vector<8x8xf32> to vector<8xf32>
    %360 = vector.shape_cast %359 : vector<8xf32> to vector<8x1xf32>
    %361 = vector.broadcast %360 : vector<8x1xf32> to vector<8x8xf32>
    %362 = arith.subf %358, %361 : vector<8x8xf32>
    %363 = math.exp %362 : vector<8x8xf32>
    %cst_240 = arith.constant dense<0.000000e+00> : vector<8xf32>
    %364 = vector.multi_reduction <add>, %363, %cst_240 [1] : vector<8x8xf32> to vector<8xf32>
    %365 = vector.shape_cast %364 : vector<8xf32> to vector<8x1xf32>
    %366 = tpu.reciprocal %365 {approx = true} : vector<8x1xf32> -> vector<8x1xf32>
    %367 = vector.broadcast %366 : vector<8x1xf32> to vector<8x8xf32>
    %368 = arith.mulf %363, %367 : vector<8x8xf32>
    %369 = arith.truncf %368 : vector<8x8xf32> to vector<8x8xbf16>
    %370 = arith.truncf %355 : vector<8x8xf32> to vector<8x8xbf16>
    %cst_241 = arith.constant dense<0.000000e+00> : vector<8x8xf32>
    %371 = tpu.matmul %369, %370, %cst_241 {dimension_numbers = #tpu.dot_dimension_numbers<[1], [0], [0], [1], [0, 0, 1, 1], [], []>} : vector<8x8xbf16>, vector<8x8xbf16>, vector<8x8xf32> -> vector<8x8xf32>
    %372 = arith.truncf %371 : vector<8x8xf32> to vector<8x8xbf16>
    %c3_242 = arith.constant 3 : index
    %c0_243 = arith.constant 0 : index
    %c0_244 = arith.constant 0 : index
    %373 = vector.load %arg10[%c3_242, %c0_243, %c0_244] : memref<4x8x32xbf16, #tpu.memory_space<vmem>>, vector<1x8x32xbf16>
    %374 = vector.shape_cast %373 : vector<1x8x32xbf16> to vector<8x32xbf16>
    %cst_245 = arith.constant dense<0.000000e+00> : vector<8x32xf32>
    %375 = tpu.matmul %372, %374, %cst_245 {dimension_numbers = #tpu.dot_dimension_numbers<[1], [0], [0], [1], [0, 0, 1, 1], [], []>} : vector<8x8xbf16>, vector<8x32xbf16>, vector<8x32xf32> -> vector<8x32xf32>
    %376 = arith.addf %334, %375 : vector<8x32xf32>
    %377 = vector.extract_strided_slice %0 {offsets = [1, 0, 0], sizes = [1, 8, 32], strides = [1, 1, 1]} : vector<2x8x32xf32> to vector<1x8x32xf32>
    %378 = vector.shape_cast %377 : vector<1x8x32xf32> to vector<8x32xf32>
    %379 = arith.addf %378, %376 : vector<8x32xf32>
    %c0_246 = arith.constant 0 : index
    %c0_247 = arith.constant 0 : index
    %380 = vector.load %arg11[%c0_246, %c0_247] : memref<1x32xf32, #tpu.memory_space<vmem>>, vector<1x32xf32>
    %381 = vector.broadcast %380 : vector<1x32xf32> to vector<8x32xf32>
    %382 = arith.addf %379, %381 : vector<8x32xf32>
    %c1_248 = arith.constant 1 : index
    %c0_249 = arith.constant 0 : index
    %c0_250 = arith.constant 0 : index
    %383 = vector.load %arg19[%c1_248, %c0_249, %c0_250] : memref<2x8x32xf32, #tpu.memory_space<vmem>>, vector<1x8x32xf32>
    %384 = vector.shape_cast %383 : vector<1x8x32xf32> to vector<8x32xf32>
    %385 = vector.shape_cast %382 : vector<8x32xf32> to vector<1x8x32xf32>
    tpu.vector_store %arg19[%c1_248, %c0_249, %c0_250], %385 {strides = array<i32>} : memref<2x8x32xf32, #tpu.memory_space<vmem>>, vector<1x8x32xf32>,
    %c0_251 = arith.constant 0 : index
    %c0_252 = arith.constant 0 : index
    %c0_253 = arith.constant 0 : index
    %386 = vector.load %arg19[%c0_251, %c0_252, %c0_253] : memref<2x8x32xf32, #tpu.memory_space<vmem>>, vector<2x8x32xf32>
    %387 = vector.shape_cast %386 : vector<2x8x32xf32> to vector<16x32xf32>
    %c0_254 = arith.constant 0 : index
    %c0_255 = arith.constant 0 : index
    %388 = vector.load %arg12[%c0_254, %c0_255] : memref<1x32xf32, #tpu.memory_space<vmem>>, vector<1x32xf32>
    %c0_256 = arith.constant 0 : index
    %c0_257 = arith.constant 0 : index
    %389 = vector.load %arg13[%c0_256, %c0_257] : memref<1x32xf32, #tpu.memory_space<vmem>>, vector<1x32xf32>
    %cst_258 = arith.constant dense<0.000000e+00> : vector<16xf32>
    %390 = vector.multi_reduction <add>, %387, %cst_258 [1] : vector<16x32xf32> to vector<16xf32>
    %391 = vector.shape_cast %390 : vector<16xf32> to vector<16x1xf32>
    %cst_259 = arith.constant 3.200000e+01 : f32
    %392 = vector.broadcast %cst_259 : f32 to vector<16x1xf32>
    %393 = arith.divf %391, %392 : vector<16x1xf32>
    %394 = vector.broadcast %393 : vector<16x1xf32> to vector<16x32xf32>
    %395 = arith.subf %387, %394 : vector<16x32xf32>
    %396 = arith.mulf %395, %395 : vector<16x32xf32>
    %cst_260 = arith.constant dense<0.000000e+00> : vector<16xf32>
    %397 = vector.multi_reduction <add>, %396, %cst_260 [1] : vector<16x32xf32> to vector<16xf32>
    %398 = vector.shape_cast %397 : vector<16xf32> to vector<16x1xf32>
    %cst_261 = arith.constant 3.200000e+01 : f32
    %399 = vector.broadcast %cst_261 : f32 to vector<16x1xf32>
    %400 = arith.divf %398, %399 : vector<16x1xf32>
    %cst_262 = arith.constant 9.99999974E-6 : f32
    %401 = vector.broadcast %cst_262 : f32 to vector<16x1xf32>
    %402 = arith.addf %400, %401 : vector<16x1xf32>
    %403 = math.rsqrt %402 : vector<16x1xf32>
    %404 = vector.broadcast %403 : vector<16x1xf32> to vector<16x32xf32>
    %405 = arith.mulf %395, %404 : vector<16x32xf32>
    %406 = vector.broadcast %388 : vector<1x32xf32> to vector<16x32xf32>
    %407 = arith.mulf %405, %406 : vector<16x32xf32>
    %408 = vector.broadcast %389 : vector<1x32xf32> to vector<16x32xf32>
    %409 = arith.addf %407, %408 : vector<16x32xf32>
    %410 = arith.truncf %409 : vector<16x32xf32> to vector<16x32xbf16>
    %c0_263 = arith.constant 0 : index
    %c0_264 = arith.constant 0 : index
    %411 = vector.load %arg14[%c0_263, %c0_264] : memref<32x64xbf16, #tpu.memory_space<vmem>>, vector<32x64xbf16>
    %cst_265 = arith.constant dense<0.000000e+00> : vector<16x64xf32>
    %412 = tpu.matmul %410, %411, %cst_265 {dimension_numbers = #tpu.dot_dimension_numbers<[1], [0], [0], [1], [0, 0, 1, 1], [], []>} : vector<16x32xbf16>, vector<32x64xbf16>, vector<16x64xf32> -> vector<16x64xf32>
    %c0_266 = arith.constant 0 : index
    %c0_267 = arith.constant 0 : index
    %413 = vector.load %arg15[%c0_266, %c0_267] : memref<1x64xf32, #tpu.memory_space<vmem>>, vector<1x64xf32>
    %414 = vector.broadcast %413 : vector<1x64xf32> to vector<16x64xf32>
    %415 = arith.addf %412, %414 : vector<16x64xf32>
    %cst_268 = arith.constant 5.000000e-01 : f32
    %416 = vector.broadcast %cst_268 : f32 to vector<16x64xf32>
    %417 = arith.mulf %416, %415 : vector<16x64xf32>
    %cst_269 = arith.constant 0.707106769 : f32
    %418 = vector.broadcast %cst_269 : f32 to vector<16x64xf32>
    %419 = arith.mulf %415, %418 : vector<16x64xf32>
    %420 = math.erf %419 : vector<16x64xf32>
    %cst_270 = arith.constant 1.000000e+00 : f32
    %421 = vector.broadcast %cst_270 : f32 to vector<16x64xf32>
    %422 = arith.addf %421, %420 : vector<16x64xf32>
    %423 = arith.mulf %417, %422 : vector<16x64xf32>
    %424 = arith.truncf %423 : vector<16x64xf32> to vector<16x64xbf16>
    %c0_271 = arith.constant 0 : index
    %c0_272 = arith.constant 0 : index
    %425 = vector.load %arg16[%c0_271, %c0_272] : memref<64x32xbf16, #tpu.memory_space<vmem>>, vector<64x32xbf16>
    %cst_273 = arith.constant dense<0.000000e+00> : vector<16x32xf32>
    %426 = tpu.matmul %424, %425, %cst_273 {dimension_numbers = #tpu.dot_dimension_numbers<[1], [0], [0], [1], [0, 0, 1, 1], [], []>} : vector<16x64xbf16>, vector<64x32xbf16>, vector<16x32xf32> -> vector<16x32xf32>
    %c0_274 = arith.constant 0 : index
    %c0_275 = arith.constant 0 : index
    %427 = vector.load %arg17[%c0_274, %c0_275] : memref<1x32xf32, #tpu.memory_space<vmem>>, vector<1x32xf32>
    %428 = vector.broadcast %427 : vector<1x32xf32> to vector<16x32xf32>
    %429 = arith.addf %426, %428 : vector<16x32xf32>
    %430 = arith.addf %387, %429 : vector<16x32xf32>
    %431 = vector.shape_cast %430 : vector<16x32xf32> to vector<2x8x32xf32>
    %c0_276 = arith.constant 0 : index
    %c0_277 = arith.constant 0 : index
    %c0_278 = arith.constant 0 : index
    %432 = vector.load %arg18[%c0_276, %c0_277, %c0_278] : memref<2x8x32xf32, #tpu.memory_space<vmem>>, vector<2x8x32xf32>
    tpu.vector_store %arg18[%c0_276, %c0_277, %c0_278], %431 {strides = array<i32>} : memref<2x8x32xf32, #tpu.memory_space<vmem>>, vector<2x8x32xf32>,
    return
  }
  func.func @transform_0(%arg0: i32) -> (i32, i32, i32) {
    %c0_i32 = arith.constant 0 : i32
    %c0_i32_0 = arith.constant 0 : i32
    %c0_i32_1 = arith.constant 0 : i32
    return %arg0, %c0_i32, %c0_i32_0 : i32, i32, i32
  }
  func.func @transform_1(%arg0: i32) -> (i32, i32) {
    %c0_i32 = arith.constant 0 : i32
    %c0_i32_0 = arith.constant 0 : i32
    %c0_i32_1 = arith.constant 0 : i32
    return %c0_i32, %c0_i32_0 : i32, i32
  }
  func.func @transform_2(%arg0: i32) -> (i32, i32) {
    %c0_i32 = arith.constant 0 : i32
    %c0_i32_0 = arith.constant 0 : i32
    %c0_i32_1 = arith.constant 0 : i32
    return %c0_i32, %c0_i32_0 : i32, i32
  }
  func.func @transform_3(%arg0: i32) -> (i32, i32, i32) {
    %c0_i32 = arith.constant 0 : i32
    %c0_i32_0 = arith.constant 0 : i32
    %c0_i32_1 = arith.constant 0 : i32
    %c0_i32_2 = arith.constant 0 : i32
    return %c0_i32, %c0_i32_0, %c0_i32_1 : i32, i32, i32
  }
  func.func @transform_4(%arg0: i32) -> (i32, i32, i32) {
    %c0_i32 = arith.constant 0 : i32
    %c0_i32_0 = arith.constant 0 : i32
    %c0_i32_1 = arith.constant 0 : i32
    %c0_i32_2 = arith.constant 0 : i32
    return %c0_i32, %c0_i32_0, %c0_i32_1 : i32, i32, i32
  }
  func.func @transform_5(%arg0: i32) -> (i32, i32, i32) {
    %c0_i32 = arith.constant 0 : i32
    %c0_i32_0 = arith.constant 0 : i32
    %c0_i32_1 = arith.constant 0 : i32
    %c0_i32_2 = arith.constant 0 : i32
    return %c0_i32, %c0_i32_0, %c0_i32_1 : i32, i32, i32
  }
  func.func @transform_6(%arg0: i32) -> (i32, i32, i32) {
    %c0_i32 = arith.constant 0 : i32
    %c0_i32_0 = arith.constant 0 : i32
    %c0_i32_1 = arith.constant 0 : i32
    %c0_i32_2 = arith.constant 0 : i32
    return %c0_i32, %c0_i32_0, %c0_i32_1 : i32, i32, i32
  }
  func.func @transform_7(%arg0: i32) -> (i32, i32, i32) {
    %c0_i32 = arith.constant 0 : i32
    %c0_i32_0 = arith.constant 0 : i32
    %c0_i32_1 = arith.constant 0 : i32
    %c0_i32_2 = arith.constant 0 : i32
    return %c0_i32, %c0_i32_0, %c0_i32_1 : i32, i32, i32
  }
  func.func @transform_8(%arg0: i32) -> (i32, i32, i32) {
    %c0_i32 = arith.constant 0 : i32
    %c0_i32_0 = arith.constant 0 : i32
    %c0_i32_1 = arith.constant 0 : i32
    %c0_i32_2 = arith.constant 0 : i32
    return %c0_i32, %c0_i32_0, %c0_i32_1 : i32, i32, i32
  }
  func.func @transform_9(%arg0: i32) -> (i32, i32, i32) {
    %c0_i32 = arith.constant 0 : i32
    %c0_i32_0 = arith.constant 0 : i32
    %c0_i32_1 = arith.constant 0 : i32
    %c0_i32_2 = arith.constant 0 : i32
    return %c0_i32, %c0_i32_0, %c0_i32_1 : i32, i32, i32
  }
  func.func @transform_10(%arg0: i32) -> (i32, i32) {
    %c0_i32 = arith.constant 0 : i32
    %c0_i32_0 = arith.constant 0 : i32
    %c0_i32_1 = arith.constant 0 : i32
    return %c0_i32, %c0_i32_0 : i32, i32
  }
  func.func @transform_11(%arg0: i32) -> (i32, i32) {
    %c0_i32 = arith.constant 0 : i32
    %c0_i32_0 = arith.constant 0 : i32
    %c0_i32_1 = arith.constant 0 : i32
    return %c0_i32, %c0_i32_0 : i32, i32
  }
  func.func @transform_12(%arg0: i32) -> (i32, i32) {
    %c0_i32 = arith.constant 0 : i32
    %c0_i32_0 = arith.constant 0 : i32
    %c0_i32_1 = arith.constant 0 : i32
    return %c0_i32, %c0_i32_0 : i32, i32
  }
  func.func @transform_13(%arg0: i32) -> (i32, i32) {
    %c0_i32 = arith.constant 0 : i32
    %c0_i32_0 = arith.constant 0 : i32
    %c0_i32_1 = arith.constant 0 : i32
    return %c0_i32, %c0_i32_0 : i32, i32
  }
  func.func @transform_14(%arg0: i32) -> (i32, i32) {
    %c0_i32 = arith.constant 0 : i32
    %c0_i32_0 = arith.constant 0 : i32
    %c0_i32_1 = arith.constant 0 : i32
    return %c0_i32, %c0_i32_0 : i32, i32
  }
  func.func @transform_15(%arg0: i32) -> (i32, i32) {
    %c0_i32 = arith.constant 0 : i32
    %c0_i32_0 = arith.constant 0 : i32
    %c0_i32_1 = arith.constant 0 : i32
    return %c0_i32, %c0_i32_0 : i32, i32
  }
  func.func @transform_16(%arg0: i32) -> (i32, i32) {
    %c0_i32 = arith.constant 0 : i32
    %c0_i32_0 = arith.constant 0 : i32
    %c0_i32_1 = arith.constant 0 : i32
    return %c0_i32, %c0_i32_0 : i32, i32
  }
  func.func @transform_17(%arg0: i32) -> (i32, i32, i32) {
    %c0_i32 = arith.constant 0 : i32
    %c0_i32_0 = arith.constant 0 : i32
    %c0_i32_1 = arith.constant 0 : i32
    return %arg0, %c0_i32, %c0_i32_0 : i32, i32, i32
  }
}

</mosaic_0001>

<llo_original>
// kernel: tpu_custom_call.1
$region0: #{tpu_custom_call.1}
  #allocation0 [shape = 'u32[]', space=smem, size = 0x4, offset = 0x4, fixed_abs, tag = 'smem constant byte address 0x4 - core index']
  #allocation1 [shape = 'u32[144,128]{1,0:T(1,128)}', space=vmem, size = 0x12000, scoped, tag = 'internal scratch']
  #allocation2 [shape = 'f32[2,8,32]{2,1,0:T(8,128)}', space=vmem, size = 0x2000, scoped, tag = 'scratch operand']
  %s0 = inlined_call_operand.vmem [shape: f32[4,8,32], index: 0, kind: input, shape index: {}]
  %s1 = inlined_call_operand.vmem [shape: f32[1,32], index: 1, kind: input, shape index: {}]
  %s2 = inlined_call_operand.hbm [shape: f32[1,32], index: 2, kind: input, shape index: {}]
  %s3 = inlined_call_operand.vmem [shape: bf16[4,8,32], index: 3, kind: input, shape index: {}]
  %s4 = inlined_call_operand.hbm [shape: f32[4,1,8], index: 4, kind: input, shape index: {}]
  %s5 = inlined_call_operand.hbm [shape: bf16[4,8,32], index: 5, kind: input, shape index: {}]
  %s6 = inlined_call_operand.hbm [shape: f32[4,1,8], index: 6, kind: input, shape index: {}]
  %s7 = inlined_call_operand.hbm [shape: bf16[4,8,32], index: 7, kind: input, shape index: {}]
  %s8 = inlined_call_operand.hbm [shape: f32[4,1,8], index: 8, kind: input, shape index: {}]
  %s9 = inlined_call_operand.vmem [shape: bf16[4,8,32], index: 9, kind: input, shape index: {}]
  %s10 = inlined_call_operand.hbm [shape: f32[1,32], index: 10, kind: input, shape index: {}]
  %s11 = inlined_call_operand.hbm [shape: f32[1,32], index: 11, kind: input, shape index: {}]
  %s12 = inlined_call_operand.hbm [shape: f32[1,32], index: 12, kind: input, shape index: {}]
  %s13 = inlined_call_operand.vmem [shape: bf16[32,64], index: 13, kind: input, shape index: {}]
  %s14 = inlined_call_operand.vmem [shape: f32[1,64], index: 14, kind: input, shape index: {}]
  %s15 = inlined_call_operand.vmem [shape: bf16[64,32], index: 15, kind: input, shape index: {}]
  %s16 = inlined_call_operand.vmem [shape: f32[1,32], index: 16, kind: input, shape index: {}]
  %s17 = inlined_call_operand.hbm [shape: f32[4,8,32], index: 17, kind: output, shape index: {}]
  %s18 = sld [smem:[#allocation0]]
  $region137: #{tpu_custom_call.1} parent=0
    _
  %s20 = ssub.s32 1, %s18
  %s21 = scalar_select 0, %s20, %s18
  $region1: #{tpu_custom_call.1} parent=0
    #allocation3 [shape = 'u8[512]{0}', space=vmem, size = 0x400, scoped, tag = 'input window, operand 2, single buffered']
    #allocation4 [shape = 's32[2]{0}', space=sflag, size = 0x8, scoped, tag = 'scoped memory for tpu_custom_call.1']
    #allocation5 [shape = 's32[2]{0}', space=sflag, size = 0x8, scoped, tag = 'scoped memory for tpu_custom_call.1']
    #allocation6 [shape = 'u8[2048]{0}', space=vmem, size = 0x800, scoped, tag = 'input window, operand 4, single buffered']
    #allocation7 [shape = 's32[1]{0}', space=sflag, size = 0x4, scoped, tag = 'scoped memory for tpu_custom_call.1']
    #allocation8 [shape = 'u8[8192]{0}', space=vmem, size = 0x2000, scoped, tag = 'input window, operand 5, single buffered']
    #allocation9 [shape = 'u8[2048]{0}', space=vmem, size = 0x800, scoped, tag = 'input window, operand 6, single buffered']
    #allocation10 [shape = 's32[1]{0}', space=sflag, size = 0x4, scoped, tag = 'scoped memory for tpu_custom_call.1']
    #allocation11 [shape = 'u8[8192]{0}', space=vmem, size = 0x2000, scoped, tag = 'input window, operand 7, single buffered']
    #allocation12 [shape = 'u8[2048]{0}', space=vmem, size = 0x800, scoped, tag = 'input window, operand 8, single buffered']
    #allocation13 [shape = 's32[1]{0}', space=sflag, size = 0x4, scoped, tag = 'scoped memory for tpu_custom_call.1']
    #allocation14 [shape = 'u8[512]{0}', space=vmem, size = 0x400, scoped, tag = 'input window, operand 10, single buffered']
    #allocation15 [shape = 'u8[512]{0}', space=vmem, size = 0x400, scoped, tag = 'input window, operand 11, single buffered']
    #allocation16 [shape = 's32[1]{0}', space=sflag, size = 0x4, scoped, tag = 'scoped memory for tpu_custom_call.1']
    #allocation17 [shape = 'u8[512]{0}', space=vmem, size = 0x400, scoped, tag = 'input window, operand 12, single buffered']
    #allocation18 [shape = 'u8[16384]{0}', space=vmem, size = 0x4000, scoped, tag = 'output window, operand 0']
    %22 = vsyncpa [#allocation4], 0
    %23 = vsyncpa [#allocation7], 0
    %24 = vsyncpa [#allocation10], 0
    %25 = vsyncpa [#allocation13], 0
    %26 = vsyncpa [#allocation16], 0
    %27 = vsyncpa [#allocation5], 0
    %s28 = scalar_lea.sflag [#allocation5], 1
    %29 = vsyncpa %s28, 0
    loop: start=0, step=1, limit=4
    $region2: #{tpu_custom_call.1} parent=1 // loop_pre_header
      _
    $region3: #{tpu_custom_call.1} parent=1 // loop_header
      %s31 = sphi 0, %s35
      %p32 = scmp.ge.s32.totalorder %s31, 4
      %s41 = sphi 0, %s43
      %s44 = sphi 0, %s41
      %s45 = sphi 0, %s44
      %s61 = sphi 0, %s45
      %s65 = sphi 0, %s65
      %s67 = sphi 0, %s65
      %s68 = sphi 0, %s67
      %s82 = sphi 0, %s68
      %s86 = sphi 0, %s86
      %s88 = sphi 0, %s86
      %s89 = sphi 0, %s88
      %s103 = sphi 0, %s89
      %s107 = sphi 0, %s107
      %s109 = sphi 0, %s107
      %s110 = sphi 0, %s109
      %s124 = sphi 0, %s110
      %s128 = sphi 0, %s128
      %s130 = sphi 0, %s128
      %s131 = sphi 0, %s130
      %s145 = sphi 0, %s131
      %s149 = sphi 0, %s149
      %s151 = sphi 0, %s149
      %s152 = sphi 0, %s151
      %s166 = sphi 0, %s152
      %s170 = sphi 0, %s170
      %s172 = sphi 0, %s170
      %s173 = sphi 0, %s172
      %s187 = sphi 0, %s173
      %s191 = sphi 0, %s191
      %s193 = sphi 0, %s191
      %s194 = sphi 0, %s193
      %s208 = sphi 0, %s194
      %s212 = sphi 0, %s212
      %s214 = sphi 0, %s212
      %s215 = sphi 0, %s214
      %s229 = sphi 0, %s215
      %s233 = sphi 0, %s233
      %s235 = sphi 0, %s233
      %s236 = sphi 0, %s235
      %s250 = sphi 0, %s236
      %s254 = sphi 0, %s254
      %s256 = sphi 0, %s254
      %s257 = sphi 0, %s256
      %s271 = sphi 0, %s257
      %s275 = sphi 0, %s275
      %s277 = sphi 0, %s275
      %s278 = sphi 0, %s277
      %s292 = sphi 0, %s278
      %s296 = sphi 0, %s296
      %s298 = sphi 0, %s296
      %s299 = sphi 0, %s298
      %s313 = sphi 0, %s299
      %s317 = sphi 0, %s317
      %s319 = sphi 0, %s317
      %s320 = sphi 0, %s319
      %s334 = sphi 0, %s320
      %s338 = sphi 0, %s338
      %s340 = sphi 0, %s338
      %s341 = sphi 0, %s340
      %s355 = sphi 0, %s341
      %s359 = sphi 0, %s359
      %s361 = sphi 0, %s359
      %s362 = sphi 0, %s361
      %s376 = sphi 0, %s362
      %s380 = sphi 0, %s380
      %s382 = sphi 0, %s380
      %s383 = sphi 0, %s382
      %s397 = sphi 0, %s383
      %s403 = sphi 0, %s405
      %s406 = sphi 0, %s403
      %s407 = sphi 0, %s406
      %s423 = sphi 0, %s407
    $region4: #{tpu_custom_call.1} parent=1 // loop_header_branch
      %34 = sbr.rel (%p32) target = $region8
    $region5: #{tpu_custom_call.1} parent=1 // loop_body
      %s36 = ssub.s32 %s31, 1
      %s37 = ssub.s32 %s31, 2
      %s38 = sadd.s32 %s31, 1
      %s39 = ssub.s32 %s31, %s38
      %p40 = scmp.eq.s32.totalorder %s39, 0
      %s42 = sadd.s32 %s41, 1
      %s43 = scalar_select %p40, %s41, %s42
      %p46 = pneg %p40
      %p47 = scmp.eq.s32.totalorder %s31, 1
      %p48 = por %p46, %p47
      %p49 = scmp.ne.s32.totalorder %s41, %s44
      %p50 = scmp.eq.s32.totalorder %s31, 0
      %p51 = por %p49, %p50
      %p52 = scmp.ne.s32.totalorder %s41, %s44
      %p53 = scmp.eq.s32.totalorder %s36, 1
      %p54 = por %p52, %p53
      %p55 = scmp.ne.s32.totalorder %s44, %s45
      %p56 = scmp.eq.s32.totalorder %s36, 0
      %p57 = por %p55, %p56
      %p58 = scmp.ne.s32.totalorder %s44, %s45
      %p59 = scmp.eq.s32.totalorder %s37, 1
      %p60 = por %p58, %p59
      %p62 = scmp.ne.s32.totalorder %s45, %s61
      %p63 = scmp.eq.s32.totalorder %s37, 0
      %p64 = por %p62, %p63
      %s66 = sadd.s32 %s65, 1
      %p69 = scmp.eq.s32.totalorder %s31, 1
      %p70 = scmp.ne.s32.totalorder %s65, %s67
      %p71 = scmp.eq.s32.totalorder %s31, 0
      %p72 = por %p70, %p71
      %p73 = scmp.ne.s32.totalorder %s65, %s67
      %p74 = scmp.eq.s32.totalorder %s36, 1
      %p75 = por %p73, %p74
      %p76 = scmp.ne.s32.totalorder %s67, %s68
      %p77 = scmp.eq.s32.totalorder %s36, 0
      %p78 = por %p76, %p77
      %p79 = scmp.ne.s32.totalorder %s67, %s68
      %p80 = scmp.eq.s32.totalorder %s37, 1
      %p81 = por %p79, %p80
      %p83 = scmp.ne.s32.totalorder %s68, %s82
      %p84 = scmp.eq.s32.totalorder %s37, 0
      %p85 = por %p83, %p84
      %s87 = sadd.s32 %s86, 1
      %p90 = scmp.eq.s32.totalorder %s31, 1
      %p91 = scmp.ne.s32.totalorder %s86, %s88
      %p92 = scmp.eq.s32.totalorder %s31, 0
      %p93 = por %p91, %p92
      %p94 = scmp.ne.s32.totalorder %s86, %s88
      %p95 = scmp.eq.s32.totalorder %s36, 1
      %p96 = por %p94, %p95
      %p97 = scmp.ne.s32.totalorder %s88, %s89
      %p98 = scmp.eq.s32.totalorder %s36, 0
      %p99 = por %p97, %p98
      %p100 = scmp.ne.s32.totalorder %s88, %s89
      %p101 = scmp.eq.s32.totalorder %s37, 1
      %p102 = por %p100, %p101
      %p104 = scmp.ne.s32.totalorder %s89, %s103
      %p105 = scmp.eq.s32.totalorder %s37, 0
      %p106 = por %p104, %p105
      %s108 = sadd.s32 %s107, 1
      %p111 = scmp.eq.s32.totalorder %s31, 1
      %p112 = scmp.ne.s32.totalorder %s107, %s109
      %p113 = scmp.eq.s32.totalorder %s31, 0
      %p114 = por %p112, %p113
      %p115 = scmp.ne.s32.totalorder %s107, %s109
      %p116 = scmp.eq.s32.totalorder %s36, 1
      %p117 = por %p115, %p116
      %p118 = scmp.ne.s32.totalorder %s109, %s110
      %p119 = scmp.eq.s32.totalorder %s36, 0
      %p120 = por %p118, %p119
      %p121 = scmp.ne.s32.totalorder %s109, %s110
      %p122 = scmp.eq.s32.totalorder %s37, 1
      %p123 = por %p121, %p122
      %p125 = scmp.ne.s32.totalorder %s110, %s124
      %p126 = scmp.eq.s32.totalorder %s37, 0
      %p127 = por %p125, %p126
      %s129 = sadd.s32 %s128, 1
      %p132 = scmp.eq.s32.totalorder %s31, 1
      %p133 = scmp.ne.s32.totalorder %s128, %s130
      %p134 = scmp.eq.s32.totalorder %s31, 0
      %p135 = por %p133, %p134
      %p136 = scmp.ne.s32.totalorder %s128, %s130
      %p137 = scmp.eq.s32.totalorder %s36, 1
      %p138 = por %p136, %p137
      %p139 = scmp.ne.s32.totalorder %s130, %s131
      %p140 = scmp.eq.s32.totalorder %s36, 0
      %p141 = por %p139, %p140
      %p142 = scmp.ne.s32.totalorder %s130, %s131
      %p143 = scmp.eq.s32.totalorder %s37, 1
      %p144 = por %p142, %p143
      %p146 = scmp.ne.s32.totalorder %s131, %s145
      %p147 = scmp.eq.s32.totalorder %s37, 0
      %p148 = por %p146, %p147
      %s150 = sadd.s32 %s149, 1
      %p153 = scmp.eq.s32.totalorder %s31, 1
      %p154 = scmp.ne.s32.totalorder %s149, %s151
      %p155 = scmp.eq.s32.totalorder %s31, 0
      %p156 = por %p154, %p155
      %p157 = scmp.ne.s32.totalorder %s149, %s151
      %p158 = scmp.eq.s32.totalorder %s36, 1
      %p159 = por %p157, %p158
      %p160 = scmp.ne.s32.totalorder %s151, %s152
      %p161 = scmp.eq.s32.totalorder %s36, 0
      %p162 = por %p160, %p161
      %p163 = scmp.ne.s32.totalorder %s151, %s152
      %p164 = scmp.eq.s32.totalorder %s37, 1
      %p165 = por %p163, %p164
      %p167 = scmp.ne.s32.totalorder %s152, %s166
      %p168 = scmp.eq.s32.totalorder %s37, 0
      %p169 = por %p167, %p168
      %s171 = sadd.s32 %s170, 1
      %p174 = scmp.eq.s32.totalorder %s31, 1
      %p175 = scmp.ne.s32.totalorder %s170, %s172
      %p176 = scmp.eq.s32.totalorder %s31, 0
      %p177 = por %p175, %p176
      %p178 = scmp.ne.s32.totalorder %s170, %s172
      %p179 = scmp.eq.s32.totalorder %s36, 1
      %p180 = por %p178, %p179
      %p181 = scmp.ne.s32.totalorder %s172, %s173
      %p182 = scmp.eq.s32.totalorder %s36, 0
      %p183 = por %p181, %p182
      %p184 = scmp.ne.s32.totalorder %s172, %s173
      %p185 = scmp.eq.s32.totalorder %s37, 1
      %p186 = por %p184, %p185
      %p188 = scmp.ne.s32.totalorder %s173, %s187
      %p189 = scmp.eq.s32.totalorder %s37, 0
      %p190 = por %p188, %p189
      %s192 = sadd.s32 %s191, 1
      %p195 = scmp.eq.s32.totalorder %s31, 1
      %p196 = scmp.ne.s32.totalorder %s191, %s193
      %p197 = scmp.eq.s32.totalorder %s31, 0
      %p198 = por %p196, %p197
      %p199 = scmp.ne.s32.totalorder %s191, %s193
      %p200 = scmp.eq.s32.totalorder %s36, 1
      %p201 = por %p199, %p200
      %p202 = scmp.ne.s32.totalorder %s193, %s194
      %p203 = scmp.eq.s32.totalorder %s36, 0
      %p204 = por %p202, %p203
      %p205 = scmp.ne.s32.totalorder %s193, %s194
      %p206 = scmp.eq.s32.totalorder %s37, 1
      %p207 = por %p205, %p206
      %p209 = scmp.ne.s32.totalorder %s194, %s208
      %p210 = scmp.eq.s32.totalorder %s37, 0
      %p211 = por %p209, %p210
      %s213 = sadd.s32 %s212, 1
      %p216 = scmp.eq.s32.totalorder %s31, 1
      %p217 = scmp.ne.s32.totalorder %s212, %s214
      %p218 = scmp.eq.s32.totalorder %s31, 0
      %p219 = por %p217, %p218
      %p220 = scmp.ne.s32.totalorder %s212, %s214
      %p221 = scmp.eq.s32.totalorder %s36, 1
      %p222 = por %p220, %p221
      %p223 = scmp.ne.s32.totalorder %s214, %s215
      %p224 = scmp.eq.s32.totalorder %s36, 0
      %p225 = por %p223, %p224
      %p226 = scmp.ne.s32.totalorder %s214, %s215
      %p227 = scmp.eq.s32.totalorder %s37, 1
      %p228 = por %p226, %p227
      %p230 = scmp.ne.s32.totalorder %s215, %s229
      %p231 = scmp.eq.s32.totalorder %s37, 0
      %p232 = por %p230, %p231
      %s234 = sadd.s32 %s233, 1
      %p237 = scmp.eq.s32.totalorder %s31, 1
      %p238 = scmp.ne.s32.totalorder %s233, %s235
      %p239 = scmp.eq.s32.totalorder %s31, 0
      %p240 = por %p238, %p239
      %p241 = scmp.ne.s32.totalorder %s233, %s235
      %p242 = scmp.eq.s32.totalorder %s36, 1
      %p243 = por %p241, %p242
      %p244 = scmp.ne.s32.totalorder %s235, %s236
      %p245 = scmp.eq.s32.totalorder %s36, 0
      %p246 = por %p244, %p245
      %p247 = scmp.ne.s32.totalorder %s235, %s236
      %p248 = scmp.eq.s32.totalorder %s37, 1
      %p249 = por %p247, %p248
      %p251 = scmp.ne.s32.totalorder %s236, %s250
      %p252 = scmp.eq.s32.totalorder %s37, 0
      %p253 = por %p251, %p252
      %s255 = sadd.s32 %s254, 1
      %p258 = scmp.eq.s32.totalorder %s31, 1
      %p259 = scmp.ne.s32.totalorder %s254, %s256
      %p260 = scmp.eq.s32.totalorder %s31, 0
      %p261 = por %p259, %p260
      %p262 = scmp.ne.s32.totalorder %s254, %s256
      %p263 = scmp.eq.s32.totalorder %s36, 1
      %p264 = por %p262, %p263
      %p265 = scmp.ne.s32.totalorder %s256, %s257
      %p266 = scmp.eq.s32.totalorder %s36, 0
      %p267 = por %p265, %p266
      %p268 = scmp.ne.s32.totalorder %s256, %s257
      %p269 = scmp.eq.s32.totalorder %s37, 1
      %p270 = por %p268, %p269
      %p272 = scmp.ne.s32.totalorder %s257, %s271
      %p273 = scmp.eq.s32.totalorder %s37, 0
      %p274 = por %p272, %p273
      %s276 = sadd.s32 %s275, 1
      %p279 = scmp.eq.s32.totalorder %s31, 1
      %p280 = scmp.ne.s32.totalorder %s275, %s277
      %p281 = scmp.eq.s32.totalorder %s31, 0
      %p282 = por %p280, %p281
      %p283 = scmp.ne.s32.totalorder %s275, %s277
      %p284 = scmp.eq.s32.totalorder %s36, 1
      %p285 = por %p283, %p284
      %p286 = scmp.ne.s32.totalorder %s277, %s278
      %p287 = scmp.eq.s32.totalorder %s36, 0
      %p288 = por %p286, %p287
      %p289 = scmp.ne.s32.totalorder %s277, %s278
      %p290 = scmp.eq.s32.totalorder %s37, 1
      %p291 = por %p289, %p290
      %p293 = scmp.ne.s32.totalorder %s278, %s292
      %p294 = scmp.eq.s32.totalorder %s37, 0
      %p295 = por %p293, %p294
      %s297 = sadd.s32 %s296, 1
      %p300 = scmp.eq.s32.totalorder %s31, 1
      %p301 = scmp.ne.s32.totalorder %s296, %s298
      %p302 = scmp.eq.s32.totalorder %s31, 0
      %p303 = por %p301, %p302
      %p304 = scmp.ne.s32.totalorder %s296, %s298
      %p305 = scmp.eq.s32.totalorder %s36, 1
      %p306 = por %p304, %p305
      %p307 = scmp.ne.s32.totalorder %s298, %s299
      %p308 = scmp.eq.s32.totalorder %s36, 0
      %p309 = por %p307, %p308
      %p310 = scmp.ne.s32.totalorder %s298, %s299
      %p311 = scmp.eq.s32.totalorder %s37, 1
      %p312 = por %p310, %p311
      %p314 = scmp.ne.s32.totalorder %s299, %s313
      %p315 = scmp.eq.s32.totalorder %s37, 0
      %p316 = por %p314, %p315
      %s318 = sadd.s32 %s317, 1
      %p321 = scmp.eq.s32.totalorder %s31, 1
      %p322 = scmp.ne.s32.totalorder %s317, %s319
      %p323 = scmp.eq.s32.totalorder %s31, 0
      %p324 = por %p322, %p323
      %p325 = scmp.ne.s32.totalorder %s317, %s319
      %p326 = scmp.eq.s32.totalorder %s36, 1
      %p327 = por %p325, %p326
      %p328 = scmp.ne.s32.totalorder %s319, %s320
      %p329 = scmp.eq.s32.totalorder %s36, 0
      %p330 = por %p328, %p329
      %p331 = scmp.ne.s32.totalorder %s319, %s320
      %p332 = scmp.eq.s32.totalorder %s37, 1
      %p333 = por %p331, %p332
      %p335 = scmp.ne.s32.totalorder %s320, %s334
      %p336 = scmp.eq.s32.totalorder %s37, 0
      %p337 = por %p335, %p336
      %s339 = sadd.s32 %s338, 1
      %p342 = scmp.eq.s32.totalorder %s31, 1
      %p343 = scmp.ne.s32.totalorder %s338, %s340
      %p344 = scmp.eq.s32.totalorder %s31, 0
      %p345 = por %p343, %p344
      %p346 = scmp.ne.s32.totalorder %s338, %s340
      %p347 = scmp.eq.s32.totalorder %s36, 1
      %p348 = por %p346, %p347
      %p349 = scmp.ne.s32.totalorder %s340, %s341
      %p350 = scmp.eq.s32.totalorder %s36, 0
      %p351 = por %p349, %p350
      %p352 = scmp.ne.s32.totalorder %s340, %s341
      %p353 = scmp.eq.s32.totalorder %s37, 1
      %p354 = por %p352, %p353
      %p356 = scmp.ne.s32.totalorder %s341, %s355
      %p357 = scmp.eq.s32.totalorder %s37, 0
      %p358 = por %p356, %p357
      %s360 = sadd.s32 %s359, 1
      %p363 = scmp.eq.s32.totalorder %s31, 1
      %p364 = scmp.ne.s32.totalorder %s359, %s361
      %p365 = scmp.eq.s32.totalorder %s31, 0
      %p366 = por %p364, %p365
      %p367 = scmp.ne.s32.totalorder %s359, %s361
      %p368 = scmp.eq.s32.totalorder %s36, 1
      %p369 = por %p367, %p368
      %p370 = scmp.ne.s32.totalorder %s361, %s362
      %p371 = scmp.eq.s32.totalorder %s36, 0
      %p372 = por %p370, %p371
      %p373 = scmp.ne.s32.totalorder %s361, %s362
      %p374 = scmp.eq.s32.totalorder %s37, 1
      %p375 = por %p373, %p374
      %p377 = scmp.ne.s32.totalorder %s362, %s376
      %p378 = scmp.eq.s32.totalorder %s37, 0
      %p379 = por %p377, %p378
      %s381 = sadd.s32 %s380, 1
      %p384 = scmp.eq.s32.totalorder %s31, 1
      %p385 = scmp.ne.s32.totalorder %s380, %s382
      %p386 = scmp.eq.s32.totalorder %s31, 0
      %p387 = por %p385, %p386
      %p388 = scmp.ne.s32.totalorder %s380, %s382
      %p389 = scmp.eq.s32.totalorder %s36, 1
      %p390 = por %p388, %p389
      %p391 = scmp.ne.s32.totalorder %s382, %s383
      %p392 = scmp.eq.s32.totalorder %s36, 0
      %p393 = por %p391, %p392
      %p394 = scmp.ne.s32.totalorder %s382, %s383
      %p395 = scmp.eq.s32.totalorder %s37, 1
      %p396 = por %p394, %p395
      %p398 = scmp.ne.s32.totalorder %s383, %s397
      %p399 = scmp.eq.s32.totalorder %s37, 0
      %p400 = por %p398, %p399
      %s401 = ssub.s32 %s31, %s38
      %p402 = scmp.eq.s32.totalorder %s401, 0
      %s404 = sadd.s32 %s403, 1
      %s405 = scalar_select %p402, %s403, %s404
      %p408 = pneg %p402
      %p409 = scmp.eq.s32.totalorder %s31, 1
      %p410 = por %p408, %p409
      %p411 = scmp.ne.s32.totalorder %s403, %s406
      %p412 = scmp.eq.s32.totalorder %s31, 0
      %p413 = por %p411, %p412
      %p414 = scmp.ne.s32.totalorder %s403, %s406
      %p415 = scmp.eq.s32.totalorder %s36, 1
      %p416 = por %p414, %p415
      %p417 = scmp.ne.s32.totalorder %s406, %s407
      %p418 = scmp.eq.s32.totalorder %s36, 0
      %p419 = por %p417, %p418
      %p420 = scmp.ne.s32.totalorder %s406, %s407
      %p421 = scmp.eq.s32.totalorder %s37, 1
      %p422 = por %p420, %p421
      %p424 = scmp.ne.s32.totalorder %s407, %s423
      %p425 = scmp.eq.s32.totalorder %s37, 0
      %p426 = por %p424, %p425
      %p427 = scmp.le.s32.totalorder 1, %s31
      %p428 = scmp.lt.s32.totalorder %s31, 3
      %p429 = pnand %p427, %p428
      %p430 = pneg %p429
      // Predicated region
      $region9: #{tpu_custom_call.1} parent=5 // pred_check
        _
      $region10: #{tpu_custom_call.1} parent=5 // pred_check_branch
        %432 = sbr.rel (%p429) target = $region12
      $region11: #{tpu_custom_call.1} parent=5 // pred_region
        %s433 = ssub.s32 %s31, 1
        // Predicated region
        $region13: #{tpu_custom_call.1} parent=11 // pred_check
          %p434 = pneg %p78
        $region14: #{tpu_custom_call.1} parent=11 // pred_check_branch
          %436 = sbr.rel (%p434) target = $region16
        $region15: #{tpu_custom_call.1} parent=11 // pred_region
          _
        $region16: #{tpu_custom_call.1} parent=11 // pred_fallthru
          _
        // Predicated region
        $region17: #{tpu_custom_call.1} parent=11 // pred_check
          %p437 = pneg %p99
        $region18: #{tpu_custom_call.1} parent=11 // pred_check_branch
          %439 = sbr.rel (%p437) target = $region20
        $region19: #{tpu_custom_call.1} parent=11 // pred_region
          %s441 = ssub.s32 16, 16
          %442 = vsyncadd [#allocation4], %s441
          %s444 = sshll.u32 [#allocation3], 4
          %s445 = int_to_ptr.vmem [resolvable:$true] %s444
          %447 = dma.hbm_to_vmem [thread:$0]  %s2, 16, %s445, [#allocation4]
        $region20: #{tpu_custom_call.1} parent=11 // pred_fallthru
          _
        // Predicated region
        $region21: #{tpu_custom_call.1} parent=11 // pred_check
          %p448 = pneg %p120
        $region22: #{tpu_custom_call.1} parent=11 // pred_check_branch
          %450 = sbr.rel (%p448) target = $region24
        $region23: #{tpu_custom_call.1} parent=11 // pred_region
          _
        $region24: #{tpu_custom_call.1} parent=11 // pred_fallthru
          _
        // Predicated region
        $region25: #{tpu_custom_call.1} parent=11 // pred_check
          %p451 = pneg %p141
        $region26: #{tpu_custom_call.1} parent=11 // pred_check_branch
          %453 = sbr.rel (%p451) target = $region28
        $region27: #{tpu_custom_call.1} parent=11 // pred_region
          %s455 = ssub.s32 64, 64
          %456 = vsyncadd [#allocation7], %s455
          %s457 = sshll.u32 [#allocation6], 4
          %s458 = int_to_ptr.vmem [resolvable:$true] %s457
          %463 = dma.hbm_to_vmem [thread:$0]  %s4, 64, %s458, [#allocation7], 16, 16, 1
        $region28: #{tpu_custom_call.1} parent=11 // pred_fallthru
          _
        // Predicated region
        $region29: #{tpu_custom_call.1} parent=11 // pred_check
          %p464 = pneg %p162
        $region30: #{tpu_custom_call.1} parent=11 // pred_check_branch
          %466 = sbr.rel (%p464) target = $region32
        $region31: #{tpu_custom_call.1} parent=11 // pred_region
          %s468 = ssub.s32 256, 256
          %469 = vsyncadd [#allocation7], %s468
          %s470 = sshll.u32 [#allocation8], 4
          %s471 = int_to_ptr.vmem [resolvable:$true] %s470
          %476 = dma.hbm_to_vmem [thread:$0]  %s5, 256, %s471, [#allocation7], 64, 64, 4
        $region32: #{tpu_custom_call.1} parent=11 // pred_fallthru
          _
        // Predicated region
        $region33: #{tpu_custom_call.1} parent=11 // pred_check
          %p477 = pneg %p183
        $region34: #{tpu_custom_call.1} parent=11 // pred_check_branch
          %479 = sbr.rel (%p477) target = $region36
        $region35: #{tpu_custom_call.1} parent=11 // pred_region
          %s481 = ssub.s32 64, 64
          %482 = vsyncadd [#allocation10], %s481
          %s483 = sshll.u32 [#allocation9], 4
          %s484 = int_to_ptr.vmem [resolvable:$true] %s483
          %489 = dma.hbm_to_vmem [thread:$0]  %s6, 64, %s484, [#allocation10], 16, 16, 1
        $region36: #{tpu_custom_call.1} parent=11 // pred_fallthru
          _
        // Predicated region
        $region37: #{tpu_custom_call.1} parent=11 // pred_check
          %p490 = pneg %p204
        $region38: #{tpu_custom_call.1} parent=11 // pred_check_branch
          %492 = sbr.rel (%p490) target = $region40
        $region39: #{tpu_custom_call.1} parent=11 // pred_region
          %s494 = ssub.s32 256, 256
          %495 = vsyncadd [#allocation10], %s494
          %s496 = sshll.u32 [#allocation11], 4
          %s497 = int_to_ptr.vmem [resolvable:$true] %s496
          %502 = dma.hbm_to_vmem [thread:$0]  %s7, 256, %s497, [#allocation10], 64, 64, 4
        $region40: #{tpu_custom_call.1} parent=11 // pred_fallthru
          _
        // Predicated region
        $region41: #{tpu_custom_call.1} parent=11 // pred_check
          %p503 = pneg %p225
        $region42: #{tpu_custom_call.1} parent=11 // pred_check_branch
          %505 = sbr.rel (%p503) target = $region44
        $region43: #{tpu_custom_call.1} parent=11 // pred_region
          %s507 = ssub.s32 64, 64
          %508 = vsyncadd [#allocation13], %s507
          %s509 = sshll.u32 [#allocation12], 4
          %s510 = int_to_ptr.vmem [resolvable:$true] %s509
          %515 = dma.hbm_to_vmem [thread:$0]  %s8, 64, %s510, [#allocation13], 16, 16, 1
        $region44: #{tpu_custom_call.1} parent=11 // pred_fallthru
          _
        // Predicated region
        $region45: #{tpu_custom_call.1} parent=11 // pred_check
          %p516 = pneg %p246
        $region46: #{tpu_custom_call.1} parent=11 // pred_check_branch
          %518 = sbr.rel (%p516) target = $region48
        $region47: #{tpu_custom_call.1} parent=11 // pred_region
          _
        $region48: #{tpu_custom_call.1} parent=11 // pred_fallthru
          _
        // Predicated region
        $region49: #{tpu_custom_call.1} parent=11 // pred_check
          %p519 = pneg %p267
        $region50: #{tpu_custom_call.1} parent=11 // pred_check_branch
          %521 = sbr.rel (%p519) target = $region52
        $region51: #{tpu_custom_call.1} parent=11 // pred_region
          %s523 = ssub.s32 16, 16
          %524 = vsyncadd [#allocation13], %s523
          %s526 = sshll.u32 [#allocation14], 4
          %s527 = int_to_ptr.vmem [resolvable:$true] %s526
          %529 = dma.hbm_to_vmem [thread:$0]  %s10, 16, %s527, [#allocation13]
        $region52: #{tpu_custom_call.1} parent=11 // pred_fallthru
          _
        // Predicated region
        $region53: #{tpu_custom_call.1} parent=11 // pred_check
          %p530 = pneg %p288
        $region54: #{tpu_custom_call.1} parent=11 // pred_check_branch
          %532 = sbr.rel (%p530) target = $region56
        $region55: #{tpu_custom_call.1} parent=11 // pred_region
          %s534 = ssub.s32 16, 16
          %535 = vsyncadd [#allocation16], %s534
          %s537 = sshll.u32 [#allocation15], 4
          %s538 = int_to_ptr.vmem [resolvable:$true] %s537
          %540 = dma.hbm_to_vmem [thread:$0]  %s11, 16, %s538, [#allocation16]
        $region56: #{tpu_custom_call.1} parent=11 // pred_fallthru
          _
        // Predicated region
        $region57: #{tpu_custom_call.1} parent=11 // pred_check
          %p541 = pneg %p309
        $region58: #{tpu_custom_call.1} parent=11 // pred_check_branch
          %543 = sbr.rel (%p541) target = $region60
        $region59: #{tpu_custom_call.1} parent=11 // pred_region
          %s545 = ssub.s32 16, 16
          %546 = vsyncadd [#allocation16], %s545
          %s548 = sshll.u32 [#allocation17], 4
          %s549 = int_to_ptr.vmem [resolvable:$true] %s548
          %551 = dma.hbm_to_vmem [thread:$0]  %s12, 16, %s549, [#allocation16]
        $region60: #{tpu_custom_call.1} parent=11 // pred_fallthru
          _
        // Predicated region
        $region61: #{tpu_custom_call.1} parent=11 // pred_check
          %p552 = pneg %p330
        $region62: #{tpu_custom_call.1} parent=11 // pred_check_branch
          %554 = sbr.rel (%p552) target = $region64
        $region63: #{tpu_custom_call.1} parent=11 // pred_region
          _
        $region64: #{tpu_custom_call.1} parent=11 // pred_fallthru
          _
        // Predicated region
        $region65: #{tpu_custom_call.1} parent=11 // pred_check
          %p555 = pneg %p351
        $region66: #{tpu_custom_call.1} parent=11 // pred_check_branch
          %557 = sbr.rel (%p555) target = $region68
        $region67: #{tpu_custom_call.1} parent=11 // pred_region
          _
        $region68: #{tpu_custom_call.1} parent=11 // pred_fallthru
          _
        // Predicated region
        $region69: #{tpu_custom_call.1} parent=11 // pred_check
          %p558 = pneg %p372
        $region70: #{tpu_custom_call.1} parent=11 // pred_check_branch
          %560 = sbr.rel (%p558) target = $region72
        $region71: #{tpu_custom_call.1} parent=11 // pred_region
          _
        $region72: #{tpu_custom_call.1} parent=11 // pred_fallthru
          _
        // Predicated region
        $region73: #{tpu_custom_call.1} parent=11 // pred_check
          %p561 = pneg %p393
        $region74: #{tpu_custom_call.1} parent=11 // pred_check_branch
          %563 = sbr.rel (%p561) target = $region76
        $region75: #{tpu_custom_call.1} parent=11 // pred_region
          _
        $region76: #{tpu_custom_call.1} parent=11 // pred_fallthru
          _
      $region12: #{tpu_custom_call.1} parent=5 // pred_fallthru
        _
      %p564 = scmp.lt.s32.totalorder %s31, 2
      // Predicated region
      $region77: #{tpu_custom_call.1} parent=5 // pred_check
        %p565 = pneg %p564
      $region78: #{tpu_custom_call.1} parent=5 // pred_check_branch
        %567 = sbr.rel (%p565) target = $region80
      $region79: #{tpu_custom_call.1} parent=5 // pred_region
        // Predicated region
        $region81: #{tpu_custom_call.1} parent=79 // pred_check
          %p568 = pneg %p51
        $region82: #{tpu_custom_call.1} parent=79 // pred_check_branch
          %570 = sbr.rel (%p568) target = $region84
        $region83: #{tpu_custom_call.1} parent=79 // pred_region
          %s571 = smul.u32 2, %s31
          %p572 = scmp.lt.s32.totalorder %s571, 3
          %s573 = scalar_select %p572, %s571, 3
          %s574 = smul.addr %s573, 8
          %s575 = scalar_lea.vmem %s0, %s574
          %s576 = smul.u32 2, %s31
        $region84: #{tpu_custom_call.1} parent=79 // pred_fallthru
          _
      $region80: #{tpu_custom_call.1} parent=5 // pred_fallthru
        _
      %p577 = scmp.le.s32.totalorder 1, %s31
      %p578 = scmp.lt.s32.totalorder %s31, 3
      %p579 = pnand %p577, %p578
      %p580 = pneg %p579
      // Predicated region
      $region85: #{tpu_custom_call.1} parent=5 // pred_check
        _
      $region86: #{tpu_custom_call.1} parent=5 // pred_check_branch
        %582 = sbr.rel (%p579) target = $region88
      $region87: #{tpu_custom_call.1} parent=5 // pred_region
        %s583 = ssub.s32 %s31, 1
        // Predicated region
        $region89: #{tpu_custom_call.1} parent=87 // pred_check
          %p584 = pneg %p99
        $region90: #{tpu_custom_call.1} parent=87 // pred_check_branch
          %586 = sbr.rel (%p584) target = $region92
        $region91: #{tpu_custom_call.1} parent=87 // pred_region
          %587 = dma.done [#allocation4], 16
        $region92: #{tpu_custom_call.1} parent=87 // pred_fallthru
          _
        // Predicated region
        $region93: #{tpu_custom_call.1} parent=87 // pred_check
          %p588 = pneg %p141
        $region94: #{tpu_custom_call.1} parent=87 // pred_check_branch
          %590 = sbr.rel (%p588) target = $region96
        $region95: #{tpu_custom_call.1} parent=87 // pred_region
          %591 = dma.done [#allocation7], 64
        $region96: #{tpu_custom_call.1} parent=87 // pred_fallthru
          _
        // Predicated region
        $region97: #{tpu_custom_call.1} parent=87 // pred_check
          %p592 = pneg %p162
        $region98: #{tpu_custom_call.1} parent=87 // pred_check_branch
          %594 = sbr.rel (%p592) target = $region100
        $region99: #{tpu_custom_call.1} parent=87 // pred_region
          %595 = dma.done [#allocation7], 256
        $region100: #{tpu_custom_call.1} parent=87 // pred_fallthru
          _
        // Predicated region
        $region101: #{tpu_custom_call.1} parent=87 // pred_check
          %p596 = pneg %p183
        $region102: #{tpu_custom_call.1} parent=87 // pred_check_branch
          %598 = sbr.rel (%p596) target = $region104
        $region103: #{tpu_custom_call.1} parent=87 // pred_region
          %599 = dma.done [#allocation10], 64
        $region104: #{tpu_custom_call.1} parent=87 // pred_fallthru
          _
        // Predicated region
        $region105: #{tpu_custom_call.1} parent=87 // pred_check
          %p600 = pneg %p204
        $region106: #{tpu_custom_call.1} parent=87 // pred_check_branch
          %602 = sbr.rel (%p600) target = $region108
        $region107: #{tpu_custom_call.1} parent=87 // pred_region
          %603 = dma.done [#allocation10], 256
        $region108: #{tpu_custom_call.1} parent=87 // pred_fallthru
          _
        // Predicated region
        $region109: #{tpu_custom_call.1} parent=87 // pred_check
          %p604 = pneg %p225
        $region110: #{tpu_custom_call.1} parent=87 // pred_check_branch
          %606 = sbr.rel (%p604) target = $region112
        $region111: #{tpu_custom_call.1} parent=87 // pred_region
          %607 = dma.done [#allocation13], 64
        $region112: #{tpu_custom_call.1} parent=87 // pred_fallthru
          _
        // Predicated region
        $region113: #{tpu_custom_call.1} parent=87 // pred_check
          %p608 = pneg %p267
        $region114: #{tpu_custom_call.1} parent=87 // pred_check_branch
          %610 = sbr.rel (%p608) target = $region116
        $region115: #{tpu_custom_call.1} parent=87 // pred_region
          %611 = dma.done [#allocation13], 16
        $region116: #{tpu_custom_call.1} parent=87 // pred_fallthru
          _
        // Predicated region
        $region117: #{tpu_custom_call.1} parent=87 // pred_check
          %p612 = pneg %p288
        $region118: #{tpu_custom_call.1} parent=87 // pred_check_branch
          %614 = sbr.rel (%p612) target = $region120
        $region119: #{tpu_custom_call.1} parent=87 // pred_region
          %615 = dma.done [#allocation16], 16
        $region120: #{tpu_custom_call.1} parent=87 // pred_fallthru
          _
        // Predicated region
        $region121: #{tpu_custom_call.1} parent=87 // pred_check
          %p616 = pneg %p309
        $region122: #{tpu_custom_call.1} parent=87 // pred_check_branch
          %618 = sbr.rel (%p616) target = $region124
        $region123: #{tpu_custom_call.1} parent=87 // pred_region
          %619 = dma.done [#allocation16], 16
        $region124: #{tpu_custom_call.1} parent=87 // pred_fallthru
          _
        %s620 = smul.u32 2, %s36
        %p621 = scmp.lt.s32.totalorder %s620, 3
        %s622 = scalar_select %p621, %s620, 3
        %s623 = smul.addr %s622, 8
        %s624 = scalar_lea.vmem %s0, %s623
        %p625 = pneg %p57
        %p626 = pneg %p54
        %p627 = pneg %p78
        %p628 = pneg %p75
        %p629 = pneg %p99
        %p630 = pneg %p96
        %p631 = pneg %p120
        %p632 = pneg %p117
        %p633 = pneg %p141
        %p634 = pneg %p138
        %p635 = pneg %p162
        %p636 = pneg %p159
        %p637 = pneg %p183
        %p638 = pneg %p180
        %p639 = pneg %p204
        %p640 = pneg %p201
        %p641 = pneg %p225
        %p642 = pneg %p222
        %p643 = pneg %p246
        %p644 = pneg %p243
        %p645 = pneg %p267
        %p646 = pneg %p264
        %p647 = pneg %p288
        %p648 = pneg %p285
        %p649 = pneg %p309
        %p650 = pneg %p306
        %p651 = pneg %p330
        %p652 = pneg %p327
        %p653 = pneg %p351
        %p654 = pneg %p348
        %p655 = pneg %p372
        %p656 = pneg %p369
        %p657 = pneg %p393
        %p658 = pneg %p390
        %p659 = pneg %p419
        %p660 = pneg %p416
        %s661 = sand.u32 %s406, 1
        %s662 = scalar_lea.sflag [#allocation5], %s661
        %s663 = sand.u32 %s406, 1
        %s664 = smul.addr %s663, 16
        %s665 = scalar_lea.vmem [#allocation18], %s664
        %s666 = smul.u32 2, %s36
        %p667 = scmp.lt.s32.totalorder %s666, 3
        %s668 = scalar_select %p667, %s666, 3
        %s669 = smul.addr %s668, 8
        %s670 = scalar_lea.vmem %s0, %s669
        %s671 = smul.u32 2, %s36
        %s672 = smul.u32 2, %s36
        %v674 = vld [vmem:[%s670] sm:$0xff]
        %v675 = vld [vmem:[%s670 + $0x8] sm:$0xff]
        %v676 = vld [vmem:[%s1] sm:$0x1]
        %v677 = vld [vmem:[#allocation3] sm:$0x1]
        %vm678 = vcmask 261120
        %v679 = vsel %vm678, %v674, 0.0
        %680 = vadd.xlane.f32.xlu0 %v679
        %v681 = vpop.xlane.xlu0 %680
        %v682 = vsel %vm678, %v675, 0.0
        %683 = vadd.xlane.f32.xlu0 %v682
        %v684 = vpop.xlane.xlu0 %683
        %v685 = vrcp.pop 32.0
        %v686 = vmul.f32 %v681, %v685
        %v687 = vmul.f32 %v684, %v685
        %v688 = vsub.f32 %v674, %v686
        %v689 = vsub.f32 %v675, %v687
        %v690 = vmul.f32 %v688, %v688
        %v691 = vmul.f32 %v689, %v689
        %v692 = vsel %vm678, %v690, 0.0
        %693 = vadd.xlane.f32.xlu0 %v692
        %v694 = vpop.xlane.xlu0 %693
        %v695 = vsel %vm678, %v691, 0.0
        %696 = vadd.xlane.f32.xlu0 %v695
        %v697 = vpop.xlane.xlu0 %696
        %v698 = vmul.f32 %v694, %v685
        %v699 = vmul.f32 %v697, %v685
        %v700 = vadd.f32 %v698, 1e-05
        %v701 = vadd.f32 %v699, 1e-05
        %v702 = vrsqrt.pop %v700
        %v703 = vrsqrt.pop %v701
        %v704 = vmul.f32 %v688, %v702
        %v705 = vmul.f32 %v689, %v703
        %v707 = vlaneseq
        %v708 = vshrl.u32 %v707, 7
        %v709 = vsub.s32 0, %v708
        %v710 = vrot.slane %v676, %v709
        %v712 = vmul.f32 %v704, %v710
        %v713 = vmul.f32 %v705, %v710
        %v715 = vlaneseq
        %v716 = vshrl.u32 %v715, 7
        %v717 = vsub.s32 0, %v716
        %v718 = vrot.slane %v677, %v717
        %v720 = vadd.f32 %v712, %v718
        %v721 = vadd.f32 %v713, %v718
        %v722 = vpack.c.bf16 %v720, %v720
        %v723 = vpack.c.bf16 %v721, %v721
        %v724 = vld [vmem:[%s3] sm:$0xf]
        %v725 = vld [vmem:[#allocation6] sm:$0x1]
        %v727 = vlaneseq
        %v728 = vshrl.u32 %v727, 7
        %v729 = vsub.s32 0, %v728
        %v730 = vrot.slane %v725, %v729
        %v733 = vsel %vm678, %v722, 0
        %v736 = vsel %vm678, %v724, 0
        %738 = vmatprep.subr.bf16.mxu0 0
        %739 = vmatpush1.bf16.xpose.msra.mxu0 %v736
        %740 = vmatprep.subr.bf16.mxu0 0
        %741 = vmatpush1.bf16.xpose.msra.mxu0 0
        %742 = vmatprep.subr.bf16.mxu0 0
        %743 = vmatpush1.bf16.xpose.msra.mxu0 0
        %744 = vmatprep.subr.bf16.mxu0 0
        %745 = vmatpush1.bf16.xpose.msra.mxu0 0
        %746 = vmatprep.subr.bf16.mxu0 0
        %747 = vmatpush1.bf16.xpose.msra.mxu0 0
        %748 = vmatprep.subr.bf16.mxu0 0
        %749 = vmatpush1.bf16.xpose.msra.mxu0 0
        %750 = vmatprep.subr.bf16.mxu0 0
        %751 = vmatpush1.bf16.xpose.msra.mxu0 0
        %752 = vmatprep.subr.bf16.mxu0 0
        %753 = vmatpush1.bf16.xpose.msra.mxu0 0
        %754 = vmatprep.subr.bf16.mxu0 0
        %755 = vmatpush1.bf16.xpose.msra.mxu0 0
        %756 = vmatprep.subr.bf16.mxu0 0
        %757 = vmatpush1.bf16.xpose.msra.mxu0 0
        %758 = vmatprep.subr.bf16.mxu0 0
        %759 = vmatpush1.bf16.xpose.msra.mxu0 0
        %760 = vmatprep.subr.bf16.mxu0 0
        %761 = vmatpush1.bf16.xpose.msra.mxu0 0
        %762 = vmatprep.subr.bf16.mxu0 0
        %763 = vmatpush1.bf16.xpose.msra.mxu0 0
        %764 = vmatprep.subr.bf16.mxu0 0
        %765 = vmatpush1.bf16.xpose.msra.mxu0 0
        %766 = vmatprep.subr.bf16.mxu0 0
        %767 = vmatpush1.bf16.xpose.msra.mxu0 0
        %768 = vmatprep.subr.bf16.mxu0 0
        %769 = vmatpush1.bf16.xpose.msra.mxu0 0
        %770 = vmatprep.mubr.bf16.mxu0 0
        %771 = vmatmul.mubr.bf16.gmra.mrb[0].mxu0 %v733
        %v772 = vpop.f32.mrb[0].mxu0
        %v773 = vadd.f32 %v730, %v772
        %v774 = vpop.f32.mrb[0].mxu0
        %v775 = vpop.f32.mrb[0].mxu0
        %v776 = vpop.f32.mrb[0].mxu0
        %777 = vdwg.mxu0
        %v778 = vld [vmem:[#allocation8] sm:$0xf]
        %v779 = vld [vmem:[#allocation9] sm:$0x1]
        %v781 = vlaneseq
        %v782 = vshrl.u32 %v781, 7
        %v783 = vsub.s32 0, %v782
        %v784 = vrot.slane %v779, %v783
        %v787 = vsel %vm678, %v778, 0
        %789 = vmatprep.subr.bf16.mxu0 0
        %790 = vmatpush1.bf16.xpose.msra.mxu0 %v787
        %791 = vmatprep.subr.bf16.mxu0 0
        %792 = vmatpush1.bf16.xpose.msra.mxu0 0
        %793 = vmatprep.subr.bf16.mxu0 0
        %794 = vmatpush1.bf16.xpose.msra.mxu0 0
        %795 = vmatprep.subr.bf16.mxu0 0
        %796 = vmatpush1.bf16.xpose.msra.mxu0 0
        %797 = vmatprep.subr.bf16.mxu0 0
        %798 = vmatpush1.bf16.xpose.msra.mxu0 0
        %799 = vmatprep.subr.bf16.mxu0 0
        %800 = vmatpush1.bf16.xpose.msra.mxu0 0
        %801 = vmatprep.subr.bf16.mxu0 0
        %802 = vmatpush1.bf16.xpose.msra.mxu0 0
        %803 = vmatprep.subr.bf16.mxu0 0
        %804 = vmatpush1.bf16.xpose.msra.mxu0 0
        %805 = vmatprep.subr.bf16.mxu0 0
        %806 = vmatpush1.bf16.xpose.msra.mxu0 0
        %807 = vmatprep.subr.bf16.mxu0 0
        %808 = vmatpush1.bf16.xpose.msra.mxu0 0
        %809 = vmatprep.subr.bf16.mxu0 0
        %810 = vmatpush1.bf16.xpose.msra.mxu0 0
        %811 = vmatprep.subr.bf16.mxu0 0
        %812 = vmatpush1.bf16.xpose.msra.mxu0 0
        %813 = vmatprep.subr.bf16.mxu0 0
        %814 = vmatpush1.bf16.xpose.msra.mxu0 0
        %815 = vmatprep.subr.bf16.mxu0 0
        %816 = vmatpush1.bf16.xpose.msra.mxu0 0
        %817 = vmatprep.subr.bf16.mxu0 0
        %818 = vmatpush1.bf16.xpose.msra.mxu0 0
        %819 = vmatprep.subr.bf16.mxu0 0
        %820 = vmatpush1.bf16.xpose.msra.mxu0 0
        %821 = vmatprep.mubr.bf16.mxu0 0
        %822 = vmatmul.mubr.bf16.gmra.mrb[0].mxu0 %v733
        %v823 = vpop.f32.mrb[0].mxu0
        %v824 = vadd.f32 %v784, %v823
        %v825 = vpop.f32.mrb[0].mxu0
        %v826 = vpop.f32.mrb[0].mxu0
        %v827 = vpop.f32.mrb[0].mxu0
        %828 = vdwg.mxu0
        %v829 = vld [vmem:[#allocation11] sm:$0xf]
        %v830 = vld [vmem:[#allocation12] sm:$0x1]
        %v832 = vlaneseq
        %v833 = vshrl.u32 %v832, 7
        %v834 = vsub.s32 0, %v833
        %v835 = vrot.slane %v830, %v834
        %v838 = vsel %vm678, %v829, 0
        %840 = vmatprep.subr.bf16.mxu0 0
        %841 = vmatpush1.bf16.xpose.msra.mxu0 %v838
        %842 = vmatprep.subr.bf16.mxu0 0
        %843 = vmatpush1.bf16.xpose.msra.mxu0 0
        %844 = vmatprep.subr.bf16.mxu0 0
        %845 = vmatpush1.bf16.xpose.msra.mxu0 0
        %846 = vmatprep.subr.bf16.mxu0 0
        %847 = vmatpush1.bf16.xpose.msra.mxu0 0
        %848 = vmatprep.subr.bf16.mxu0 0
        %849 = vmatpush1.bf16.xpose.msra.mxu0 0
        %850 = vmatprep.subr.bf16.mxu0 0
        %851 = vmatpush1.bf16.xpose.msra.mxu0 0
        %852 = vmatprep.subr.bf16.mxu0 0
        %853 = vmatpush1.bf16.xpose.msra.mxu0 0
        %854 = vmatprep.subr.bf16.mxu0 0
        %855 = vmatpush1.bf16.xpose.msra.mxu0 0
        %856 = vmatprep.subr.bf16.mxu0 0
        %857 = vmatpush1.bf16.xpose.msra.mxu0 0
        %858 = vmatprep.subr.bf16.mxu0 0
        %859 = vmatpush1.bf16.xpose.msra.mxu0 0
        %860 = vmatprep.subr.bf16.mxu0 0
        %861 = vmatpush1.bf16.xpose.msra.mxu0 0
        %862 = vmatprep.subr.bf16.mxu0 0
        %863 = vmatpush1.bf16.xpose.msra.mxu0 0
        %864 = vmatprep.subr.bf16.mxu0 0
        %865 = vmatpush1.bf16.xpose.msra.mxu0 0
        %866 = vmatprep.subr.bf16.mxu0 0
        %867 = vmatpush1.bf16.xpose.msra.mxu0 0
        %868 = vmatprep.subr.bf16.mxu0 0
        %869 = vmatpush1.bf16.xpose.msra.mxu0 0
        %870 = vmatprep.subr.bf16.mxu0 0
        %871 = vmatpush1.bf16.xpose.msra.mxu0 0
        %872 = vmatprep.mubr.bf16.mxu0 0
        %873 = vmatmul.mubr.bf16.gmra.mrb[0].mxu0 %v733
        %v874 = vpop.f32.mrb[0].mxu0
        %v875 = vadd.f32 %v835, %v874
        %v876 = vpop.f32.mrb[0].mxu0
        %v877 = vpop.f32.mrb[0].mxu0
        %v878 = vpop.f32.mrb[0].mxu0
        %879 = vdwg.mxu0
        %v880 = vpack.c.bf16 %v773, %v773
        %v881 = vpack.c.bf16 %v824, %v824
        %vm882 = vcmask 64512
        %v884 = vsel %vm882, %v880, 0
        %v887 = vsel %vm882, %v881, 0
        %889 = vmatprep.subr.bf16.mxu0 0
        %890 = vmatpush1.bf16.xpose.msra.mxu0 %v887
        %891 = vmatprep.subr.bf16.mxu0 0
        %892 = vmatpush1.bf16.xpose.msra.mxu0 0
        %893 = vmatprep.subr.bf16.mxu0 0
        %894 = vmatpush1.bf16.xpose.msra.mxu0 0
        %895 = vmatprep.subr.bf16.mxu0 0
        %896 = vmatpush1.bf16.xpose.msra.mxu0 0
        %897 = vmatprep.subr.bf16.mxu0 0
        %898 = vmatpush1.bf16.xpose.msra.mxu0 0
        %899 = vmatprep.subr.bf16.mxu0 0
        %900 = vmatpush1.bf16.xpose.msra.mxu0 0
        %901 = vmatprep.subr.bf16.mxu0 0
        %902 = vmatpush1.bf16.xpose.msra.mxu0 0
        %903 = vmatprep.subr.bf16.mxu0 0
        %904 = vmatpush1.bf16.xpose.msra.mxu0 0
        %905 = vmatprep.subr.bf16.mxu0 0
        %906 = vmatpush1.bf16.xpose.msra.mxu0 0
        %907 = vmatprep.subr.bf16.mxu0 0
        %908 = vmatpush1.bf16.xpose.msra.mxu0 0
        %909 = vmatprep.subr.bf16.mxu0 0
        %910 = vmatpush1.bf16.xpose.msra.mxu0 0
        %911 = vmatprep.subr.bf16.mxu0 0
        %912 = vmatpush1.bf16.xpose.msra.mxu0 0
        %913 = vmatprep.subr.bf16.mxu0 0
        %914 = vmatpush1.bf16.xpose.msra.mxu0 0
        %915 = vmatprep.subr.bf16.mxu0 0
        %916 = vmatpush1.bf16.xpose.msra.mxu0 0
        %917 = vmatprep.subr.bf16.mxu0 0
        %918 = vmatpush1.bf16.xpose.msra.mxu0 0
        %919 = vmatprep.subr.bf16.mxu0 0
        %920 = vmatpush1.bf16.xpose.msra.mxu0 0
        %921 = vmatprep.mubr.bf16.mxu0 0
        %922 = vmatmul.mubr.bf16.gmra.mrb[0].mxu0 %v884
        %v923 = vpop.f32.mrb[0].mxu0
        %v924 = vadd.f32 0.0, %v923
        %v925 = vpop.f32.mrb[0].mxu0
        %v926 = vpop.f32.mrb[0].mxu0
        %v927 = vpop.f32.mrb[0].mxu0
        %928 = vdwg.mxu0
        %v929 = vsel %vm882, %v924, -inf
        %930 = vmax.xlane.f32.xlu0 %v929
        %v931 = vpop.xlane.xlu0 %930
        %v932 = vsub.f32 %v924, %v931
        %v933 = vmul.f32 %v932, 1.442695
        %v934 = vpow.pop %v933
        %v935 = vsel %vm882, %v934, 0.0
        %936 = vadd.xlane.f32.xlu0 %v935
        %v937 = vpop.xlane.xlu0 %936
        %v938 = vrcp.pop %v937
        %v939 = vmul.f32 %v934, %v938
        %v940 = vpack.c.bf16 %v939, %v939
        %v941 = vpack.c.bf16 %v875, %v875
        %v943 = vsel %vm882, %v940, 0
        %vm945 = vcmask 1043456
        %v947 = vsel %vm945, %v941, 0
        %949 = vmatprep.subr.bf16.mxu0 0
        %950 = vmatpush1.bf16.msra.mxu0 %v947
        %951 = vmatprep.subr.bf16.mxu0 0
        %952 = vmatpush1.bf16.msra.mxu0 0
        %953 = vmatprep.subr.bf16.mxu0 0
        %954 = vmatpush1.bf16.msra.mxu0 0
        %955 = vmatprep.subr.bf16.mxu0 0
        %956 = vmatpush1.bf16.msra.mxu0 0
        %957 = vmatprep.subr.bf16.mxu0 0
        %958 = vmatpush1.bf16.msra.mxu0 0
        %959 = vmatprep.subr.bf16.mxu0 0
        %960 = vmatpush1.bf16.msra.mxu0 0
        %961 = vmatprep.subr.bf16.mxu0 0
        %962 = vmatpush1.bf16.msra.mxu0 0
        %963 = vmatprep.subr.bf16.mxu0 0
        %964 = vmatpush1.bf16.msra.mxu0 0
        %965 = vmatprep.subr.bf16.mxu0 0
        %966 = vmatpush1.bf16.msra.mxu0 0
        %967 = vmatprep.subr.bf16.mxu0 0
        %968 = vmatpush1.bf16.msra.mxu0 0
        %969 = vmatprep.subr.bf16.mxu0 0
        %970 = vmatpush1.bf16.msra.mxu0 0
        %971 = vmatprep.subr.bf16.mxu0 0
        %972 = vmatpush1.bf16.msra.mxu0 0
        %973 = vmatprep.subr.bf16.mxu0 0
        %974 = vmatpush1.bf16.msra.mxu0 0
        %975 = vmatprep.subr.bf16.mxu0 0
        %976 = vmatpush1.bf16.msra.mxu0 0
        %977 = vmatprep.subr.bf16.mxu0 0
        %978 = vmatpush1.bf16.msra.mxu0 0
        %979 = vmatprep.subr.bf16.mxu0 0
        %980 = vmatpush1.bf16.msra.mxu0 0
        %981 = vmatprep.mubr.bf16.mxu0 0
        %982 = vmatmul.mubr.bf16.gmra.mrb[0].mxu0 %v943
        %v983 = vpop.f32.mrb[0].mxu0
        %v984 = vadd.f32 0.0, %v983
        %v985 = vpop.f32.mrb[0].mxu0
        %v986 = vpop.f32.mrb[0].mxu0
        %v987 = vpop.f32.mrb[0].mxu0
        %988 = vdwg.mxu0
        %v989 = vpack.c.bf16 %v984, %v984
        %v990 = vld [vmem:[%s9] sm:$0xf]
        %s991 = scalar_lea.vmem %s3, 4
        %v992 = vld [vmem:[%s991] sm:$0xf]
        %s993 = scalar_lea.vmem [#allocation6], 1
        %v994 = vld [vmem:[%s993] sm:$0x1]
        %v996 = vlaneseq
        %v997 = vshrl.u32 %v996, 7
        %v998 = vsub.s32 0, %v997
        %v999 = vrot.slane %v994, %v998
        %v1002 = vsel %vm678, %v992, 0
        %1004 = vmatprep.subr.bf16.mxu0 0
        %1005 = vmatpush1.bf16.xpose.msra.mxu0 %v1002
        %1006 = vmatprep.subr.bf16.mxu0 0
        %1007 = vmatpush1.bf16.xpose.msra.mxu0 0
        %1008 = vmatprep.subr.bf16.mxu0 0
        %1009 = vmatpush1.bf16.xpose.msra.mxu0 0
        %1010 = vmatprep.subr.bf16.mxu0 0
        %1011 = vmatpush1.bf16.xpose.msra.mxu0 0
        %1012 = vmatprep.subr.bf16.mxu0 0
        %1013 = vmatpush1.bf16.xpose.msra.mxu0 0
        %1014 = vmatprep.subr.bf16.mxu0 0
        %1015 = vmatpush1.bf16.xpose.msra.mxu0 0
        %1016 = vmatprep.subr.bf16.mxu0 0
        %1017 = vmatpush1.bf16.xpose.msra.mxu0 0
        %1018 = vmatprep.subr.bf16.mxu0 0
        %1019 = vmatpush1.bf16.xpose.msra.mxu0 0
        %1020 = vmatprep.subr.bf16.mxu0 0
        %1021 = vmatpush1.bf16.xpose.msra.mxu0 0
        %1022 = vmatprep.subr.bf16.mxu0 0
        %1023 = vmatpush1.bf16.xpose.msra.mxu0 0
        %1024 = vmatprep.subr.bf16.mxu0 0
        %1025 = vmatpush1.bf16.xpose.msra.mxu0 0
        %1026 = vmatprep.subr.bf16.mxu0 0
        %1027 = vmatpush1.bf16.xpose.msra.mxu0 0
        %1028 = vmatprep.subr.bf16.mxu0 0
        %1029 = vmatpush1.bf16.xpose.msra.mxu0 0
        %1030 = vmatprep.subr.bf16.mxu0 0
        %1031 = vmatpush1.bf16.xpose.msra.mxu0 0
        %1032 = vmatprep.subr.bf16.mxu0 0
        %1033 = vmatpush1.bf16.xpose.msra.mxu0 0
        %1034 = vmatprep.subr.bf16.mxu0 0
        %1035 = vmatpush1.bf16.xpose.msra.mxu0 0
        %1036 = vmatprep.mubr.bf16.mxu0 0
        %1037 = vmatmul.mubr.bf16.gmra.mrb[0].mxu0 %v733
        %v1038 = vpop.f32.mrb[0].mxu0
        %v1039 = vadd.f32 %v999, %v1038
        %v1040 = vpop.f32.mrb[0].mxu0
        %v1041 = vpop.f32.mrb[0].mxu0
        %v1042 = vpop.f32.mrb[0].mxu0
        %1043 = vdwg.mxu0
        %s1044 = scalar_lea.vmem [#allocation8], 4
        %v1045 = vld [vmem:[%s1044] sm:$0xf]
        %s1046 = scalar_lea.vmem [#allocation9], 1
        %v1047 = vld [vmem:[%s1046] sm:$0x1]
        %v1049 = vlaneseq
        %v1050 = vshrl.u32 %v1049, 7
        %v1051 = vsub.s32 0, %v1050
        %v1052 = vrot.slane %v1047, %v1051
        %v1055 = vsel %vm678, %v1045, 0
        %1057 = vmatprep.subr.bf16.mxu0 0
        %1058 = vmatpush1.bf16.xpose.msra.mxu0 %v1055
        %1059 = vmatprep.subr.bf16.mxu0 0
        %1060 = vmatpush1.bf16.xpose.msra.mxu0 0
        %1061 = vmatprep.subr.bf16.mxu0 0
        %1062 = vmatpush1.bf16.xpose.msra.mxu0 0
        %1063 = vmatprep.subr.bf16.mxu0 0
        %1064 = vmatpush1.bf16.xpose.msra.mxu0 0
        %1065 = vmatprep.subr.bf16.mxu0 0
        %1066 = vmatpush1.bf16.xpose.msra.mxu0 0
        %1067 = vmatprep.subr.bf16.mxu0 0
        %1068 = vmatpush1.bf16.xpose.msra.mxu0 0
        %1069 = vmatprep.subr.bf16.mxu0 0
        %1070 = vmatpush1.bf16.xpose.msra.mxu0 0
        %1071 = vmatprep.subr.bf16.mxu0 0
        %1072 = vmatpush1.bf16.xpose.msra.mxu0 0
        %1073 = vmatprep.subr.bf16.mxu0 0
        %1074 = vmatpush1.bf16.xpose.msra.mxu0 0
        %1075 = vmatprep.subr.bf16.mxu0 0
        %1076 = vmatpush1.bf16.xpose.msra.mxu0 0
        %1077 = vmatprep.subr.bf16.mxu0 0
        %1078 = vmatpush1.bf16.xpose.msra.mxu0 0
        %1079 = vmatprep.subr.bf16.mxu0 0
        %1080 = vmatpush1.bf16.xpose.msra.mxu0 0
        %1081 = vmatprep.subr.bf16.mxu0 0
        %1082 = vmatpush1.bf16.xpose.msra.mxu0 0
        %1083 = vmatprep.subr.bf16.mxu0 0
        %1084 = vmatpush1.bf16.xpose.msra.mxu0 0
        %1085 = vmatprep.subr.bf16.mxu0 0
        %1086 = vmatpush1.bf16.xpose.msra.mxu0 0
        %1087 = vmatprep.subr.bf16.mxu0 0
        %1088 = vmatpush1.bf16.xpose.msra.mxu0 0
        %1089 = vmatprep.mubr.bf16.mxu0 0
        %1090 = vmatmul.mubr.bf16.gmra.mrb[0].mxu0 %v733
        %v1091 = vpop.f32.mrb[0].mxu0
        %v1092 = vadd.f32 %v1052, %v1091
        %v1093 = vpop.f32.mrb[0].mxu0
        %v1094 = vpop.f32.mrb[0].mxu0
        %v1095 = vpop.f32.mrb[0].mxu0
        %1096 = vdwg.mxu0
        %s1097 = scalar_lea.vmem [#allocation11], 4
        %v1098 = vld [vmem:[%s1097] sm:$0xf]
        %s1099 = scalar_lea.vmem [#allocation12], 1
        %v1100 = vld [vmem:[%s1099] sm:$0x1]
        %v1102 = vlaneseq
        %v1103 = vshrl.u32 %v1102, 7
        %v1104 = vsub.s32 0, %v1103
        %v1105 = vrot.slane %v1100, %v1104
        %v1108 = vsel %vm678, %v1098, 0
        %1110 = vmatprep.subr.bf16.mxu0 0
        %1111 = vmatpush1.bf16.xpose.msra.mxu0 %v1108
        %1112 = vmatprep.subr.bf16.mxu0 0
        %1113 = vmatpush1.bf16.xpose.msra.mxu0 0
        %1114 = vmatprep.subr.bf16.mxu0 0
        %1115 = vmatpush1.bf16.xpose.msra.mxu0 0
        %1116 = vmatprep.subr.bf16.mxu0 0
        %1117 = vmatpush1.bf16.xpose.msra.mxu0 0
        %1118 = vmatprep.subr.bf16.mxu0 0
        %1119 = vmatpush1.bf16.xpose.msra.mxu0 0
        %1120 = vmatprep.subr.bf16.mxu0 0
        %1121 = vmatpush1.bf16.xpose.msra.mxu0 0
        %1122 = vmatprep.subr.bf16.mxu0 0
        %1123 = vmatpush1.bf16.xpose.msra.mxu0 0
        %1124 = vmatprep.subr.bf16.mxu0 0
        %1125 = vmatpush1.bf16.xpose.msra.mxu0 0
        %1126 = vmatprep.subr.bf16.mxu0 0
        %1127 = vmatpush1.bf16.xpose.msra.mxu0 0
        %1128 = vmatprep.subr.bf16.mxu0 0
        %1129 = vmatpush1.bf16.xpose.msra.mxu0 0
        %1130 = vmatprep.subr.bf16.mxu0 0
        %1131 = vmatpush1.bf16.xpose.msra.mxu0 0
        %1132 = vmatprep.subr.bf16.mxu0 0
        %1133 = vmatpush1.bf16.xpose.msra.mxu0 0
        %1134 = vmatprep.subr.bf16.mxu0 0
        %1135 = vmatpush1.bf16.xpose.msra.mxu0 0
        %1136 = vmatprep.subr.bf16.mxu0 0
        %1137 = vmatpush1.bf16.xpose.msra.mxu0 0
        %1138 = vmatprep.subr.bf16.mxu0 0
        %1139 = vmatpush1.bf16.xpose.msra.mxu0 0
        %1140 = vmatprep.subr.bf16.mxu0 0
        %1141 = vmatpush1.bf16.xpose.msra.mxu0 0
        %1142 = vmatprep.mubr.bf16.mxu0 0
        %1143 = vmatmul.mubr.bf16.gmra.mrb[0].mxu0 %v733
        %v1144 = vpop.f32.mrb[0].mxu0
        %v1145 = vadd.f32 %v1105, %v1144
        %v1146 = vpop.f32.mrb[0].mxu0
        %v1147 = vpop.f32.mrb[0].mxu0
        %v1148 = vpop.f32.mrb[0].mxu0
        %1149 = vdwg.mxu0
        %v1150 = vpack.c.bf16 %v1039, %v1039
        %v1151 = vpack.c.bf16 %v1092, %v1092
        %v1153 = vsel %vm882, %v1150, 0
        %v1156 = vsel %vm882, %v1151, 0
        %1158 = vmatprep.subr.bf16.mxu0 0
        %1159 = vmatpush1.bf16.xpose.msra.mxu0 %v1156
        %1160 = vmatprep.subr.bf16.mxu0 0
        %1161 = vmatpush1.bf16.xpose.msra.mxu0 0
        %1162 = vmatprep.subr.bf16.mxu0 0
        %1163 = vmatpush1.bf16.xpose.msra.mxu0 0
        %1164 = vmatprep.subr.bf16.mxu0 0
        %1165 = vmatpush1.bf16.xpose.msra.mxu0 0
        %1166 = vmatprep.subr.bf16.mxu0 0
        %1167 = vmatpush1.bf16.xpose.msra.mxu0 0
        %1168 = vmatprep.subr.bf16.mxu0 0
        %1169 = vmatpush1.bf16.xpose.msra.mxu0 0
        %1170 = vmatprep.subr.bf16.mxu0 0
        %1171 = vmatpush1.bf16.xpose.msra.mxu0 0
        %1172 = vmatprep.subr.bf16.mxu0 0
        %1173 = vmatpush1.bf16.xpose.msra.mxu0 0
        %1174 = vmatprep.subr.bf16.mxu0 0
        %1175 = vmatpush1.bf16.xpose.msra.mxu0 0
        %1176 = vmatprep.subr.bf16.mxu0 0
        %1177 = vmatpush1.bf16.xpose.msra.mxu0 0
        %1178 = vmatprep.subr.bf16.mxu0 0
        %1179 = vmatpush1.bf16.xpose.msra.mxu0 0
        %1180 = vmatprep.subr.bf16.mxu0 0
        %1181 = vmatpush1.bf16.xpose.msra.mxu0 0
        %1182 = vmatprep.subr.bf16.mxu0 0
        %1183 = vmatpush1.bf16.xpose.msra.mxu0 0
        %1184 = vmatprep.subr.bf16.mxu0 0
        %1185 = vmatpush1.bf16.xpose.msra.mxu0 0
        %1186 = vmatprep.subr.bf16.mxu0 0
        %1187 = vmatpush1.bf16.xpose.msra.mxu0 0
        %1188 = vmatprep.subr.bf16.mxu0 0
        %1189 = vmatpush1.bf16.xpose.msra.mxu0 0
        %1190 = vmatprep.mubr.bf16.mxu0 0
        %1191 = vmatmul.mubr.bf16.gmra.mrb[0].mxu0 %v1153
        %v1192 = vpop.f32.mrb[0].mxu0
        %v1193 = vadd.f32 0.0, %v1192
        %v1194 = vpop.f32.mrb[0].mxu0
        %v1195 = vpop.f32.mrb[0].mxu0
        %v1196 = vpop.f32.mrb[0].mxu0
        %1197 = vdwg.mxu0
        %v1198 = vsel %vm882, %v1193, -inf
        %1199 = vmax.xlane.f32.xlu0 %v1198
        %v1200 = vpop.xlane.xlu0 %1199
        %v1201 = vsub.f32 %v1193, %v1200
        %v1202 = vmul.f32 %v1201, 1.442695
        %v1203 = vpow.pop %v1202
        %v1204 = vsel %vm882, %v1203, 0.0
        %1205 = vadd.xlane.f32.xlu0 %v1204
        %v1206 = vpop.xlane.xlu0 %1205
        %v1207 = vrcp.pop %v1206
        %v1208 = vmul.f32 %v1203, %v1207
        %v1209 = vpack.c.bf16 %v1208, %v1208
        %v1210 = vpack.c.bf16 %v1145, %v1145
        %v1212 = vsel %vm882, %v1209, 0
        %v1215 = vsel %vm945, %v1210, 0
        %1217 = vmatprep.subr.bf16.mxu0 0
        %1218 = vmatpush1.bf16.msra.mxu0 %v1215
        %1219 = vmatprep.subr.bf16.mxu0 0
        %1220 = vmatpush1.bf16.msra.mxu0 0
        %1221 = vmatprep.subr.bf16.mxu0 0
        %1222 = vmatpush1.bf16.msra.mxu0 0
        %1223 = vmatprep.subr.bf16.mxu0 0
        %1224 = vmatpush1.bf16.msra.mxu0 0
        %1225 = vmatprep.subr.bf16.mxu0 0
        %1226 = vmatpush1.bf16.msra.mxu0 0
        %1227 = vmatprep.subr.bf16.mxu0 0
        %1228 = vmatpush1.bf16.msra.mxu0 0
        %1229 = vmatprep.subr.bf16.mxu0 0
        %1230 = vmatpush1.bf16.msra.mxu0 0
        %1231 = vmatprep.subr.bf16.mxu0 0
        %1232 = vmatpush1.bf16.msra.mxu0 0
        %1233 = vmatprep.subr.bf16.mxu0 0
        %1234 = vmatpush1.bf16.msra.mxu0 0
        %1235 = vmatprep.subr.bf16.mxu0 0
        %1236 = vmatpush1.bf16.msra.mxu0 0
        %1237 = vmatprep.subr.bf16.mxu0 0
        %1238 = vmatpush1.bf16.msra.mxu0 0
        %1239 = vmatprep.subr.bf16.mxu0 0
        %1240 = vmatpush1.bf16.msra.mxu0 0
        %1241 = vmatprep.subr.bf16.mxu0 0
        %1242 = vmatpush1.bf16.msra.mxu0 0
        %1243 = vmatprep.subr.bf16.mxu0 0
        %1244 = vmatpush1.bf16.msra.mxu0 0
        %1245 = vmatprep.subr.bf16.mxu0 0
        %1246 = vmatpush1.bf16.msra.mxu0 0
        %1247 = vmatprep.subr.bf16.mxu0 0
        %1248 = vmatpush1.bf16.msra.mxu0 0
        %1249 = vmatprep.mubr.bf16.mxu0 0
        %1250 = vmatmul.mubr.bf16.gmra.mrb[0].mxu0 %v1212
        %v1251 = vpop.f32.mrb[0].mxu0
        %v1252 = vadd.f32 0.0, %v1251
        %v1253 = vpop.f32.mrb[0].mxu0
        %v1254 = vpop.f32.mrb[0].mxu0
        %v1255 = vpop.f32.mrb[0].mxu0
        %1256 = vdwg.mxu0
        %v1257 = vpack.c.bf16 %v1252, %v1252
        %s1258 = scalar_lea.vmem %s9, 4
        %v1259 = vld [vmem:[%s1258] sm:$0xf]
        %v1261 = vsel %vm882, %v1257, 0
        %v1264 = vsel %vm945, %v1259, 0
        %1266 = vmatprep.subr.bf16.mxu0 0
        %1267 = vmatpush1.bf16.msra.mxu0 %v1264
        %1268 = vmatprep.subr.bf16.mxu0 0
        %1269 = vmatpush1.bf16.msra.mxu0 0
        %1270 = vmatprep.subr.bf16.mxu0 0
        %1271 = vmatpush1.bf16.msra.mxu0 0
        %1272 = vmatprep.subr.bf16.mxu0 0
        %1273 = vmatpush1.bf16.msra.mxu0 0
        %1274 = vmatprep.subr.bf16.mxu0 0
        %1275 = vmatpush1.bf16.msra.mxu0 0
        %1276 = vmatprep.subr.bf16.mxu0 0
        %1277 = vmatpush1.bf16.msra.mxu0 0
        %1278 = vmatprep.subr.bf16.mxu0 0
        %1279 = vmatpush1.bf16.msra.mxu0 0
        %1280 = vmatprep.subr.bf16.mxu0 0
        %1281 = vmatpush1.bf16.msra.mxu0 0
        %1282 = vmatprep.subr.bf16.mxu0 0
        %1283 = vmatpush1.bf16.msra.mxu0 0
        %1284 = vmatprep.subr.bf16.mxu0 0
        %1285 = vmatpush1.bf16.msra.mxu0 0
        %1286 = vmatprep.subr.bf16.mxu0 0
        %1287 = vmatpush1.bf16.msra.mxu0 0
        %1288 = vmatprep.subr.bf16.mxu0 0
        %1289 = vmatpush1.bf16.msra.mxu0 0
        %1290 = vmatprep.subr.bf16.mxu0 0
        %1291 = vmatpush1.bf16.msra.mxu0 0
        %1292 = vmatprep.subr.bf16.mxu0 0
        %1293 = vmatpush1.bf16.msra.mxu0 0
        %1294 = vmatprep.subr.bf16.mxu0 0
        %1295 = vmatpush1.bf16.msra.mxu0 0
        %1296 = vmatprep.subr.bf16.mxu0 0
        %1297 = vmatpush1.bf16.msra.mxu0 0
        %1298 = vmatprep.mubr.bf16.mxu0 0
        %1299 = vmatmul.mubr.bf16.gmra.mrb[0].mxu0 %v1261
        %v1300 = vpop.f32.mrb[0].mxu0
        %v1301 = vadd.f32 0.0, %v1300
        %v1302 = vpop.f32.mrb[0].mxu0
        %v1303 = vpop.f32.mrb[0].mxu0
        %v1304 = vpop.f32.mrb[0].mxu0
        %1305 = vdwg.mxu0
        %v1307 = vsel %vm882, %v989, 0
        %v1310 = vsel %vm945, %v990, 0
        %1312 = vmatprep.subr.bf16.mxu0 0
        %1313 = vmatpush1.bf16.msra.mxu0 %v1310
        %1314 = vmatprep.subr.bf16.mxu0 0
        %1315 = vmatpush1.bf16.msra.mxu0 0
        %1316 = vmatprep.subr.bf16.mxu0 0
        %1317 = vmatpush1.bf16.msra.mxu0 0
        %1318 = vmatprep.subr.bf16.mxu0 0
        %1319 = vmatpush1.bf16.msra.mxu0 0
        %1320 = vmatprep.subr.bf16.mxu0 0
        %1321 = vmatpush1.bf16.msra.mxu0 0
        %1322 = vmatprep.subr.bf16.mxu0 0
        %1323 = vmatpush1.bf16.msra.mxu0 0
        %1324 = vmatprep.subr.bf16.mxu0 0
        %1325 = vmatpush1.bf16.msra.mxu0 0
        %1326 = vmatprep.subr.bf16.mxu0 0
        %1327 = vmatpush1.bf16.msra.mxu0 0
        %1328 = vmatprep.subr.bf16.mxu0 0
        %1329 = vmatpush1.bf16.msra.mxu0 0
        %1330 = vmatprep.subr.bf16.mxu0 0
        %1331 = vmatpush1.bf16.msra.mxu0 0
        %1332 = vmatprep.subr.bf16.mxu0 0
        %1333 = vmatpush1.bf16.msra.mxu0 0
        %1334 = vmatprep.subr.bf16.mxu0 0
        %1335 = vmatpush1.bf16.msra.mxu0 0
        %1336 = vmatprep.subr.bf16.mxu0 0
        %1337 = vmatpush1.bf16.msra.mxu0 0
        %1338 = vmatprep.subr.bf16.mxu0 0
        %1339 = vmatpush1.bf16.msra.mxu0 0
        %1340 = vmatprep.subr.bf16.mxu0 0
        %1341 = vmatpush1.bf16.msra.mxu0 0
        %1342 = vmatprep.subr.bf16.mxu0 0
        %1343 = vmatpush1.bf16.msra.mxu0 0
        %1344 = vmatprep.mubr.bf16.mxu0 0
        %1345 = vmatmul.mubr.bf16.gmra.mrb[0].mxu0 %v1307
        %v1346 = vpop.f32.mrb[0].mxu0
        %v1347 = vadd.f32 %v1301, %v1346
        %v1348 = vpop.f32.mrb[0].mxu0
        %v1349 = vpop.f32.mrb[0].mxu0
        %v1350 = vpop.f32.mrb[0].mxu0
        %1351 = vdwg.mxu0
        %s1352 = scalar_lea.vmem %s3, 8
        %v1353 = vld [vmem:[%s1352] sm:$0xf]
        %s1354 = scalar_lea.vmem [#allocation6], 2
        %v1355 = vld [vmem:[%s1354] sm:$0x1]
        %v1357 = vlaneseq
        %v1358 = vshrl.u32 %v1357, 7
        %v1359 = vsub.s32 0, %v1358
        %v1360 = vrot.slane %v1355, %v1359
        %v1363 = vsel %vm678, %v1353, 0
        %1365 = vmatprep.subr.bf16.mxu0 0
        %1366 = vmatpush1.bf16.xpose.msra.mxu0 %v1363
        %1367 = vmatprep.subr.bf16.mxu0 0
        %1368 = vmatpush1.bf16.xpose.msra.mxu0 0
        %1369 = vmatprep.subr.bf16.mxu0 0
        %1370 = vmatpush1.bf16.xpose.msra.mxu0 0
        %1371 = vmatprep.subr.bf16.mxu0 0
        %1372 = vmatpush1.bf16.xpose.msra.mxu0 0
        %1373 = vmatprep.subr.bf16.mxu0 0
        %1374 = vmatpush1.bf16.xpose.msra.mxu0 0
        %1375 = vmatprep.subr.bf16.mxu0 0
        %1376 = vmatpush1.bf16.xpose.msra.mxu0 0
        %1377 = vmatprep.subr.bf16.mxu0 0
        %1378 = vmatpush1.bf16.xpose.msra.mxu0 0
        %1379 = vmatprep.subr.bf16.mxu0 0
        %1380 = vmatpush1.bf16.xpose.msra.mxu0 0
        %1381 = vmatprep.subr.bf16.mxu0 0
        %1382 = vmatpush1.bf16.xpose.msra.mxu0 0
        %1383 = vmatprep.subr.bf16.mxu0 0
        %1384 = vmatpush1.bf16.xpose.msra.mxu0 0
        %1385 = vmatprep.subr.bf16.mxu0 0
        %1386 = vmatpush1.bf16.xpose.msra.mxu0 0
        %1387 = vmatprep.subr.bf16.mxu0 0
        %1388 = vmatpush1.bf16.xpose.msra.mxu0 0
        %1389 = vmatprep.subr.bf16.mxu0 0
        %1390 = vmatpush1.bf16.xpose.msra.mxu0 0
        %1391 = vmatprep.subr.bf16.mxu0 0
        %1392 = vmatpush1.bf16.xpose.msra.mxu0 0
        %1393 = vmatprep.subr.bf16.mxu0 0
        %1394 = vmatpush1.bf16.xpose.msra.mxu0 0
        %1395 = vmatprep.subr.bf16.mxu0 0
        %1396 = vmatpush1.bf16.xpose.msra.mxu0 0
        %1397 = vmatprep.mubr.bf16.mxu0 0
        %1398 = vmatmul.mubr.bf16.gmra.mrb[0].mxu0 %v733
        %v1399 = vpop.f32.mrb[0].mxu0
        %v1400 = vadd.f32 %v1360, %v1399
        %v1401 = vpop.f32.mrb[0].mxu0
        %v1402 = vpop.f32.mrb[0].mxu0
        %v1403 = vpop.f32.mrb[0].mxu0
        %1404 = vdwg.mxu0
        %s1405 = scalar_lea.vmem [#allocation8], 8
        %v1406 = vld [vmem:[%s1405] sm:$0xf]
        %s1407 = scalar_lea.vmem [#allocation9], 2
        %v1408 = vld [vmem:[%s1407] sm:$0x1]
        %v1410 = vlaneseq
        %v1411 = vshrl.u32 %v1410, 7
        %v1412 = vsub.s32 0, %v1411
        %v1413 = vrot.slane %v1408, %v1412
        %v1416 = vsel %vm678, %v1406, 0
        %1418 = vmatprep.subr.bf16.mxu0 0
        %1419 = vmatpush1.bf16.xpose.msra.mxu0 %v1416
        %1420 = vmatprep.subr.bf16.mxu0 0
        %1421 = vmatpush1.bf16.xpose.msra.mxu0 0
        %1422 = vmatprep.subr.bf16.mxu0 0
        %1423 = vmatpush1.bf16.xpose.msra.mxu0 0
        %1424 = vmatprep.subr.bf16.mxu0 0
        %1425 = vmatpush1.bf16.xpose.msra.mxu0 0
        %1426 = vmatprep.subr.bf16.mxu0 0
        %1427 = vmatpush1.bf16.xpose.msra.mxu0 0
        %1428 = vmatprep.subr.bf16.mxu0 0
        %1429 = vmatpush1.bf16.xpose.msra.mxu0 0
        %1430 = vmatprep.subr.bf16.mxu0 0
        %1431 = vmatpush1.bf16.xpose.msra.mxu0 0
        %1432 = vmatprep.subr.bf16.mxu0 0
        %1433 = vmatpush1.bf16.xpose.msra.mxu0 0
        %1434 = vmatprep.subr.bf16.mxu0 0
        %1435 = vmatpush1.bf16.xpose.msra.mxu0 0
        %1436 = vmatprep.subr.bf16.mxu0 0
        %1437 = vmatpush1.bf16.xpose.msra.mxu0 0
        %1438 = vmatprep.subr.bf16.mxu0 0
        %1439 = vmatpush1.bf16.xpose.msra.mxu0 0
        %1440 = vmatprep.subr.bf16.mxu0 0
        %1441 = vmatpush1.bf16.xpose.msra.mxu0 0
        %1442 = vmatprep.subr.bf16.mxu0 0
        %1443 = vmatpush1.bf16.xpose.msra.mxu0 0
        %1444 = vmatprep.subr.bf16.mxu0 0
        %1445 = vmatpush1.bf16.xpose.msra.mxu0 0
        %1446 = vmatprep.subr.bf16.mxu0 0
        %1447 = vmatpush1.bf16.xpose.msra.mxu0 0
        %1448 = vmatprep.subr.bf16.mxu0 0
        %1449 = vmatpush1.bf16.xpose.msra.mxu0 0
        %1450 = vmatprep.mubr.bf16.mxu0 0
        %1451 = vmatmul.mubr.bf16.gmra.mrb[0].mxu0 %v733
        %v1452 = vpop.f32.mrb[0].mxu0
        %v1453 = vadd.f32 %v1413, %v1452
        %v1454 = vpop.f32.mrb[0].mxu0
        %v1455 = vpop.f32.mrb[0].mxu0
        %v1456 = vpop.f32.mrb[0].mxu0
        %1457 = vdwg.mxu0
        %s1458 = scalar_lea.vmem [#allocation11], 8
        %v1459 = vld [vmem:[%s1458] sm:$0xf]
        %s1460 = scalar_lea.vmem [#allocation12], 2
        %v1461 = vld [vmem:[%s1460] sm:$0x1]
        %v1463 = vlaneseq
        %v1464 = vshrl.u32 %v1463, 7
        %v1465 = vsub.s32 0, %v1464
        %v1466 = vrot.slane %v1461, %v1465
        %v1469 = vsel %vm678, %v1459, 0
        %1471 = vmatprep.subr.bf16.mxu0 0
        %1472 = vmatpush1.bf16.xpose.msra.mxu0 %v1469
        %1473 = vmatprep.subr.bf16.mxu0 0
        %1474 = vmatpush1.bf16.xpose.msra.mxu0 0
        %1475 = vmatprep.subr.bf16.mxu0 0
        %1476 = vmatpush1.bf16.xpose.msra.mxu0 0
        %1477 = vmatprep.subr.bf16.mxu0 0
        %1478 = vmatpush1.bf16.xpose.msra.mxu0 0
        %1479 = vmatprep.subr.bf16.mxu0 0
        %1480 = vmatpush1.bf16.xpose.msra.mxu0 0
        %1481 = vmatprep.subr.bf16.mxu0 0
        %1482 = vmatpush1.bf16.xpose.msra.mxu0 0
        %1483 = vmatprep.subr.bf16.mxu0 0
        %1484 = vmatpush1.bf16.xpose.msra.mxu0 0
        %1485 = vmatprep.subr.bf16.mxu0 0
        %1486 = vmatpush1.bf16.xpose.msra.mxu0 0
        %1487 = vmatprep.subr.bf16.mxu0 0
        %1488 = vmatpush1.bf16.xpose.msra.mxu0 0
        %1489 = vmatprep.subr.bf16.mxu0 0
        %1490 = vmatpush1.bf16.xpose.msra.mxu0 0
        %1491 = vmatprep.subr.bf16.mxu0 0
        %1492 = vmatpush1.bf16.xpose.msra.mxu0 0
        %1493 = vmatprep.subr.bf16.mxu0 0
        %1494 = vmatpush1.bf16.xpose.msra.mxu0 0
        %1495 = vmatprep.subr.bf16.mxu0 0
        %1496 = vmatpush1.bf16.xpose.msra.mxu0 0
        %1497 = vmatprep.subr.bf16.mxu0 0
        %1498 = vmatpush1.bf16.xpose.msra.mxu0 0
        %1499 = vmatprep.subr.bf16.mxu0 0
        %1500 = vmatpush1.bf16.xpose.msra.mxu0 0
        %1501 = vmatprep.subr.bf16.mxu0 0
        %1502 = vmatpush1.bf16.xpose.msra.mxu0 0
        %1503 = vmatprep.mubr.bf16.mxu0 0
        %1504 = vmatmul.mubr.bf16.gmra.mrb[0].mxu0 %v733
        %v1505 = vpop.f32.mrb[0].mxu0
        %v1506 = vadd.f32 %v1466, %v1505
        %v1507 = vpop.f32.mrb[0].mxu0
        %v1508 = vpop.f32.mrb[0].mxu0
        %v1509 = vpop.f32.mrb[0].mxu0
        %1510 = vdwg.mxu0
        %v1511 = vpack.c.bf16 %v1400, %v1400
        %v1512 = vpack.c.bf16 %v1453, %v1453
        %v1514 = vsel %vm882, %v1511, 0
        %v1517 = vsel %vm882, %v1512, 0
        %1519 = vmatprep.subr.bf16.mxu0 0
        %1520 = vmatpush1.bf16.xpose.msra.mxu0 %v1517
        %1521 = vmatprep.subr.bf16.mxu0 0
        %1522 = vmatpush1.bf16.xpose.msra.mxu0 0
        %1523 = vmatprep.subr.bf16.mxu0 0
        %1524 = vmatpush1.bf16.xpose.msra.mxu0 0
        %1525 = vmatprep.subr.bf16.mxu0 0
        %1526 = vmatpush1.bf16.xpose.msra.mxu0 0
        %1527 = vmatprep.subr.bf16.mxu0 0
        %1528 = vmatpush1.bf16.xpose.msra.mxu0 0
        %1529 = vmatprep.subr.bf16.mxu0 0
        %1530 = vmatpush1.bf16.xpose.msra.mxu0 0
        %1531 = vmatprep.subr.bf16.mxu0 0
        %1532 = vmatpush1.bf16.xpose.msra.mxu0 0
        %1533 = vmatprep.subr.bf16.mxu0 0
        %1534 = vmatpush1.bf16.xpose.msra.mxu0 0
        %1535 = vmatprep.subr.bf16.mxu0 0
        %1536 = vmatpush1.bf16.xpose.msra.mxu0 0
        %1537 = vmatprep.subr.bf16.mxu0 0
        %1538 = vmatpush1.bf16.xpose.msra.mxu0 0
        %1539 = vmatprep.subr.bf16.mxu0 0
        %1540 = vmatpush1.bf16.xpose.msra.mxu0 0
        %1541 = vmatprep.subr.bf16.mxu0 0
        %1542 = vmatpush1.bf16.xpose.msra.mxu0 0
        %1543 = vmatprep.subr.bf16.mxu0 0
        %1544 = vmatpush1.bf16.xpose.msra.mxu0 0
        %1545 = vmatprep.subr.bf16.mxu0 0
        %1546 = vmatpush1.bf16.xpose.msra.mxu0 0
        %1547 = vmatprep.subr.bf16.mxu0 0
        %1548 = vmatpush1.bf16.xpose.msra.mxu0 0
        %1549 = vmatprep.subr.bf16.mxu0 0
        %1550 = vmatpush1.bf16.xpose.msra.mxu0 0
        %1551 = vmatprep.mubr.bf16.mxu0 0
        %1552 = vmatmul.mubr.bf16.gmra.mrb[0].mxu0 %v1514
        %v1553 = vpop.f32.mrb[0].mxu0
        %v1554 = vadd.f32 0.0, %v1553
        %v1555 = vpop.f32.mrb[0].mxu0
        %v1556 = vpop.f32.mrb[0].mxu0
        %v1557 = vpop.f32.mrb[0].mxu0
        %1558 = vdwg.mxu0
        %v1559 = vsel %vm882, %v1554, -inf
        %1560 = vmax.xlane.f32.xlu0 %v1559
        %v1561 = vpop.xlane.xlu0 %1560
        %v1562 = vsub.f32 %v1554, %v1561
        %v1563 = vmul.f32 %v1562, 1.442695
        %v1564 = vpow.pop %v1563
        %v1565 = vsel %vm882, %v1564, 0.0
        %1566 = vadd.xlane.f32.xlu0 %v1565
        %v1567 = vpop.xlane.xlu0 %1566
        %v1568 = vrcp.pop %v1567
        %v1569 = vmul.f32 %v1564, %v1568
        %v1570 = vpack.c.bf16 %v1569, %v1569
        %v1571 = vpack.c.bf16 %v1506, %v1506
        %v1573 = vsel %vm882, %v1570, 0
        %v1576 = vsel %vm945, %v1571, 0
        %1578 = vmatprep.subr.bf16.mxu0 0
        %1579 = vmatpush1.bf16.msra.mxu0 %v1576
        %1580 = vmatprep.subr.bf16.mxu0 0
        %1581 = vmatpush1.bf16.msra.mxu0 0
        %1582 = vmatprep.subr.bf16.mxu0 0
        %1583 = vmatpush1.bf16.msra.mxu0 0
        %1584 = vmatprep.subr.bf16.mxu0 0
        %1585 = vmatpush1.bf16.msra.mxu0 0
        %1586 = vmatprep.subr.bf16.mxu0 0
        %1587 = vmatpush1.bf16.msra.mxu0 0
        %1588 = vmatprep.subr.bf16.mxu0 0
        %1589 = vmatpush1.bf16.msra.mxu0 0
        %1590 = vmatprep.subr.bf16.mxu0 0
        %1591 = vmatpush1.bf16.msra.mxu0 0
        %1592 = vmatprep.subr.bf16.mxu0 0
        %1593 = vmatpush1.bf16.msra.mxu0 0
        %1594 = vmatprep.subr.bf16.mxu0 0
        %1595 = vmatpush1.bf16.msra.mxu0 0
        %1596 = vmatprep.subr.bf16.mxu0 0
        %1597 = vmatpush1.bf16.msra.mxu0 0
        %1598 = vmatprep.subr.bf16.mxu0 0
        %1599 = vmatpush1.bf16.msra.mxu0 0
        %1600 = vmatprep.subr.bf16.mxu0 0
        %1601 = vmatpush1.bf16.msra.mxu0 0
        %1602 = vmatprep.subr.bf16.mxu0 0
        %1603 = vmatpush1.bf16.msra.mxu0 0
        %1604 = vmatprep.subr.bf16.mxu0 0
        %1605 = vmatpush1.bf16.msra.mxu0 0
        %1606 = vmatprep.subr.bf16.mxu0 0
        %1607 = vmatpush1.bf16.msra.mxu0 0
        %1608 = vmatprep.subr.bf16.mxu0 0
        %1609 = vmatpush1.bf16.msra.mxu0 0
        %1610 = vmatprep.mubr.bf16.mxu0 0
        %1611 = vmatmul.mubr.bf16.gmra.mrb[0].mxu0 %v1573
        %v1612 = vpop.f32.mrb[0].mxu0
        %v1613 = vadd.f32 0.0, %v1612
        %v1614 = vpop.f32.mrb[0].mxu0
        %v1615 = vpop.f32.mrb[0].mxu0
        %v1616 = vpop.f32.mrb[0].mxu0
        %1617 = vdwg.mxu0
        %v1618 = vpack.c.bf16 %v1613, %v1613
        %s1619 = scalar_lea.vmem %s9, 8
        %v1620 = vld [vmem:[%s1619] sm:$0xf]
        %v1622 = vsel %vm882, %v1618, 0
        %v1625 = vsel %vm945, %v1620, 0
        %1627 = vmatprep.subr.bf16.mxu0 0
        %1628 = vmatpush1.bf16.msra.mxu0 %v1625
        %1629 = vmatprep.subr.bf16.mxu0 0
        %1630 = vmatpush1.bf16.msra.mxu0 0
        %1631 = vmatprep.subr.bf16.mxu0 0
        %1632 = vmatpush1.bf16.msra.mxu0 0
        %1633 = vmatprep.subr.bf16.mxu0 0
        %1634 = vmatpush1.bf16.msra.mxu0 0
        %1635 = vmatprep.subr.bf16.mxu0 0
        %1636 = vmatpush1.bf16.msra.mxu0 0
        %1637 = vmatprep.subr.bf16.mxu0 0
        %1638 = vmatpush1.bf16.msra.mxu0 0
        %1639 = vmatprep.subr.bf16.mxu0 0
        %1640 = vmatpush1.bf16.msra.mxu0 0
        %1641 = vmatprep.subr.bf16.mxu0 0
        %1642 = vmatpush1.bf16.msra.mxu0 0
        %1643 = vmatprep.subr.bf16.mxu0 0
        %1644 = vmatpush1.bf16.msra.mxu0 0
        %1645 = vmatprep.subr.bf16.mxu0 0
        %1646 = vmatpush1.bf16.msra.mxu0 0
        %1647 = vmatprep.subr.bf16.mxu0 0
        %1648 = vmatpush1.bf16.msra.mxu0 0
        %1649 = vmatprep.subr.bf16.mxu0 0
        %1650 = vmatpush1.bf16.msra.mxu0 0
        %1651 = vmatprep.subr.bf16.mxu0 0
        %1652 = vmatpush1.bf16.msra.mxu0 0
        %1653 = vmatprep.subr.bf16.mxu0 0
        %1654 = vmatpush1.bf16.msra.mxu0 0
        %1655 = vmatprep.subr.bf16.mxu0 0
        %1656 = vmatpush1.bf16.msra.mxu0 0
        %1657 = vmatprep.subr.bf16.mxu0 0
        %1658 = vmatpush1.bf16.msra.mxu0 0
        %1659 = vmatprep.mubr.bf16.mxu0 0
        %1660 = vmatmul.mubr.bf16.gmra.mrb[0].mxu0 %v1622
        %v1661 = vpop.f32.mrb[0].mxu0
        %v1662 = vadd.f32 0.0, %v1661
        %v1663 = vpop.f32.mrb[0].mxu0
        %v1664 = vpop.f32.mrb[0].mxu0
        %v1665 = vpop.f32.mrb[0].mxu0
        %1666 = vdwg.mxu0
        %v1667 = vadd.f32 %v1347, %v1662
        %s1668 = scalar_lea.vmem %s3, 12
        %v1669 = vld [vmem:[%s1668] sm:$0xf]
        %s1670 = scalar_lea.vmem [#allocation6], 3
        %v1671 = vld [vmem:[%s1670] sm:$0x1]
        %v1673 = vlaneseq
        %v1674 = vshrl.u32 %v1673, 7
        %v1675 = vsub.s32 0, %v1674
        %v1676 = vrot.slane %v1671, %v1675
        %v1679 = vsel %vm678, %v1669, 0
        %1681 = vmatprep.subr.bf16.mxu0 0
        %1682 = vmatpush1.bf16.xpose.msra.mxu0 %v1679
        %1683 = vmatprep.subr.bf16.mxu0 0
        %1684 = vmatpush1.bf16.xpose.msra.mxu0 0
        %1685 = vmatprep.subr.bf16.mxu0 0
        %1686 = vmatpush1.bf16.xpose.msra.mxu0 0
        %1687 = vmatprep.subr.bf16.mxu0 0
        %1688 = vmatpush1.bf16.xpose.msra.mxu0 0
        %1689 = vmatprep.subr.bf16.mxu0 0
        %1690 = vmatpush1.bf16.xpose.msra.mxu0 0
        %1691 = vmatprep.subr.bf16.mxu0 0
        %1692 = vmatpush1.bf16.xpose.msra.mxu0 0
        %1693 = vmatprep.subr.bf16.mxu0 0
        %1694 = vmatpush1.bf16.xpose.msra.mxu0 0
        %1695 = vmatprep.subr.bf16.mxu0 0
        %1696 = vmatpush1.bf16.xpose.msra.mxu0 0
        %1697 = vmatprep.subr.bf16.mxu0 0
        %1698 = vmatpush1.bf16.xpose.msra.mxu0 0
        %1699 = vmatprep.subr.bf16.mxu0 0
        %1700 = vmatpush1.bf16.xpose.msra.mxu0 0
        %1701 = vmatprep.subr.bf16.mxu0 0
        %1702 = vmatpush1.bf16.xpose.msra.mxu0 0
        %1703 = vmatprep.subr.bf16.mxu0 0
        %1704 = vmatpush1.bf16.xpose.msra.mxu0 0
        %1705 = vmatprep.subr.bf16.mxu0 0
        %1706 = vmatpush1.bf16.xpose.msra.mxu0 0
        %1707 = vmatprep.subr.bf16.mxu0 0
        %1708 = vmatpush1.bf16.xpose.msra.mxu0 0
        %1709 = vmatprep.subr.bf16.mxu0 0
        %1710 = vmatpush1.bf16.xpose.msra.mxu0 0
        %1711 = vmatprep.subr.bf16.mxu0 0
        %1712 = vmatpush1.bf16.xpose.msra.mxu0 0
        %1713 = vmatprep.mubr.bf16.mxu0 0
        %1714 = vmatmul.mubr.bf16.gmra.mrb[0].mxu0 %v733
        %v1715 = vpop.f32.mrb[0].mxu0
        %v1716 = vadd.f32 %v1676, %v1715
        %v1717 = vpop.f32.mrb[0].mxu0
        %v1718 = vpop.f32.mrb[0].mxu0
        %v1719 = vpop.f32.mrb[0].mxu0
        %1720 = vdwg.mxu0
        %s1721 = scalar_lea.vmem [#allocation8], 12
        %v1722 = vld [vmem:[%s1721] sm:$0xf]
        %s1723 = scalar_lea.vmem [#allocation9], 3
        %v1724 = vld [vmem:[%s1723] sm:$0x1]
        %v1726 = vlaneseq
        %v1727 = vshrl.u32 %v1726, 7
        %v1728 = vsub.s32 0, %v1727
        %v1729 = vrot.slane %v1724, %v1728
        %v1732 = vsel %vm678, %v1722, 0
        %1734 = vmatprep.subr.bf16.mxu0 0
        %1735 = vmatpush1.bf16.xpose.msra.mxu0 %v1732
        %1736 = vmatprep.subr.bf16.mxu0 0
        %1737 = vmatpush1.bf16.xpose.msra.mxu0 0
        %1738 = vmatprep.subr.bf16.mxu0 0
        %1739 = vmatpush1.bf16.xpose.msra.mxu0 0
        %1740 = vmatprep.subr.bf16.mxu0 0
        %1741 = vmatpush1.bf16.xpose.msra.mxu0 0
        %1742 = vmatprep.subr.bf16.mxu0 0
        %1743 = vmatpush1.bf16.xpose.msra.mxu0 0
        %1744 = vmatprep.subr.bf16.mxu0 0
        %1745 = vmatpush1.bf16.xpose.msra.mxu0 0
        %1746 = vmatprep.subr.bf16.mxu0 0
        %1747 = vmatpush1.bf16.xpose.msra.mxu0 0
        %1748 = vmatprep.subr.bf16.mxu0 0
        %1749 = vmatpush1.bf16.xpose.msra.mxu0 0
        %1750 = vmatprep.subr.bf16.mxu0 0
        %1751 = vmatpush1.bf16.xpose.msra.mxu0 0
        %1752 = vmatprep.subr.bf16.mxu0 0
        %1753 = vmatpush1.bf16.xpose.msra.mxu0 0
        %1754 = vmatprep.subr.bf16.mxu0 0
        %1755 = vmatpush1.bf16.xpose.msra.mxu0 0
        %1756 = vmatprep.subr.bf16.mxu0 0
        %1757 = vmatpush1.bf16.xpose.msra.mxu0 0
        %1758 = vmatprep.subr.bf16.mxu0 0
        %1759 = vmatpush1.bf16.xpose.msra.mxu0 0
        %1760 = vmatprep.subr.bf16.mxu0 0
        %1761 = vmatpush1.bf16.xpose.msra.mxu0 0
        %1762 = vmatprep.subr.bf16.mxu0 0
        %1763 = vmatpush1.bf16.xpose.msra.mxu0 0
        %1764 = vmatprep.subr.bf16.mxu0 0
        %1765 = vmatpush1.bf16.xpose.msra.mxu0 0
        %1766 = vmatprep.mubr.bf16.mxu0 0
        %1767 = vmatmul.mubr.bf16.gmra.mrb[0].mxu0 %v733
        %v1768 = vpop.f32.mrb[0].mxu0
        %v1769 = vadd.f32 %v1729, %v1768
        %v1770 = vpop.f32.mrb[0].mxu0
        %v1771 = vpop.f32.mrb[0].mxu0
        %v1772 = vpop.f32.mrb[0].mxu0
        %1773 = vdwg.mxu0
        %s1774 = scalar_lea.vmem [#allocation11], 12
        %v1775 = vld [vmem:[%s1774] sm:$0xf]
        %s1776 = scalar_lea.vmem [#allocation12], 3
        %v1777 = vld [vmem:[%s1776] sm:$0x1]
        %v1779 = vlaneseq
        %v1780 = vshrl.u32 %v1779, 7
        %v1781 = vsub.s32 0, %v1780
        %v1782 = vrot.slane %v1777, %v1781
        %v1785 = vsel %vm678, %v1775, 0
        %1787 = vmatprep.subr.bf16.mxu0 0
        %1788 = vmatpush1.bf16.xpose.msra.mxu0 %v1785
        %1789 = vmatprep.subr.bf16.mxu0 0
        %1790 = vmatpush1.bf16.xpose.msra.mxu0 0
        %1791 = vmatprep.subr.bf16.mxu0 0
        %1792 = vmatpush1.bf16.xpose.msra.mxu0 0
        %1793 = vmatprep.subr.bf16.mxu0 0
        %1794 = vmatpush1.bf16.xpose.msra.mxu0 0
        %1795 = vmatprep.subr.bf16.mxu0 0
        %1796 = vmatpush1.bf16.xpose.msra.mxu0 0
        %1797 = vmatprep.subr.bf16.mxu0 0
        %1798 = vmatpush1.bf16.xpose.msra.mxu0 0
        %1799 = vmatprep.subr.bf16.mxu0 0
        %1800 = vmatpush1.bf16.xpose.msra.mxu0 0
        %1801 = vmatprep.subr.bf16.mxu0 0
        %1802 = vmatpush1.bf16.xpose.msra.mxu0 0
        %1803 = vmatprep.subr.bf16.mxu0 0
        %1804 = vmatpush1.bf16.xpose.msra.mxu0 0
        %1805 = vmatprep.subr.bf16.mxu0 0
        %1806 = vmatpush1.bf16.xpose.msra.mxu0 0
        %1807 = vmatprep.subr.bf16.mxu0 0
        %1808 = vmatpush1.bf16.xpose.msra.mxu0 0
        %1809 = vmatprep.subr.bf16.mxu0 0
        %1810 = vmatpush1.bf16.xpose.msra.mxu0 0
        %1811 = vmatprep.subr.bf16.mxu0 0
        %1812 = vmatpush1.bf16.xpose.msra.mxu0 0
        %1813 = vmatprep.subr.bf16.mxu0 0
        %1814 = vmatpush1.bf16.xpose.msra.mxu0 0
        %1815 = vmatprep.subr.bf16.mxu0 0
        %1816 = vmatpush1.bf16.xpose.msra.mxu0 0
        %1817 = vmatprep.subr.bf16.mxu0 0
        %1818 = vmatpush1.bf16.xpose.msra.mxu0 0
        %1819 = vmatprep.mubr.bf16.mxu0 0
        %1820 = vmatmul.mubr.bf16.gmra.mrb[0].mxu0 %v733
        %v1821 = vpop.f32.mrb[0].mxu0
        %v1822 = vadd.f32 %v1782, %v1821
        %v1823 = vpop.f32.mrb[0].mxu0
        %v1824 = vpop.f32.mrb[0].mxu0
        %v1825 = vpop.f32.mrb[0].mxu0
        %1826 = vdwg.mxu0
        %v1827 = vpack.c.bf16 %v1716, %v1716
        %v1828 = vpack.c.bf16 %v1769, %v1769
        %v1830 = vsel %vm882, %v1827, 0
        %v1833 = vsel %vm882, %v1828, 0
        %1835 = vmatprep.subr.bf16.mxu0 0
        %1836 = vmatpush1.bf16.xpose.msra.mxu0 %v1833
        %1837 = vmatprep.subr.bf16.mxu0 0
        %1838 = vmatpush1.bf16.xpose.msra.mxu0 0
        %1839 = vmatprep.subr.bf16.mxu0 0
        %1840 = vmatpush1.bf16.xpose.msra.mxu0 0
        %1841 = vmatprep.subr.bf16.mxu0 0
        %1842 = vmatpush1.bf16.xpose.msra.mxu0 0
        %1843 = vmatprep.subr.bf16.mxu0 0
        %1844 = vmatpush1.bf16.xpose.msra.mxu0 0
        %1845 = vmatprep.subr.bf16.mxu0 0
        %1846 = vmatpush1.bf16.xpose.msra.mxu0 0
        %1847 = vmatprep.subr.bf16.mxu0 0
        %1848 = vmatpush1.bf16.xpose.msra.mxu0 0
        %1849 = vmatprep.subr.bf16.mxu0 0
        %1850 = vmatpush1.bf16.xpose.msra.mxu0 0
        %1851 = vmatprep.subr.bf16.mxu0 0
        %1852 = vmatpush1.bf16.xpose.msra.mxu0 0
        %1853 = vmatprep.subr.bf16.mxu0 0
        %1854 = vmatpush1.bf16.xpose.msra.mxu0 0
        %1855 = vmatprep.subr.bf16.mxu0 0
        %1856 = vmatpush1.bf16.xpose.msra.mxu0 0
        %1857 = vmatprep.subr.bf16.mxu0 0
        %1858 = vmatpush1.bf16.xpose.msra.mxu0 0
        %1859 = vmatprep.subr.bf16.mxu0 0
        %1860 = vmatpush1.bf16.xpose.msra.mxu0 0
        %1861 = vmatprep.subr.bf16.mxu0 0
        %1862 = vmatpush1.bf16.xpose.msra.mxu0 0
        %1863 = vmatprep.subr.bf16.mxu0 0
        %1864 = vmatpush1.bf16.xpose.msra.mxu0 0
        %1865 = vmatprep.subr.bf16.mxu0 0
        %1866 = vmatpush1.bf16.xpose.msra.mxu0 0
        %1867 = vmatprep.mubr.bf16.mxu0 0
        %1868 = vmatmul.mubr.bf16.gmra.mrb[0].mxu0 %v1830
        %v1869 = vpop.f32.mrb[0].mxu0
        %v1870 = vadd.f32 0.0, %v1869
        %v1871 = vpop.f32.mrb[0].mxu0
        %v1872 = vpop.f32.mrb[0].mxu0
        %v1873 = vpop.f32.mrb[0].mxu0
        %1874 = vdwg.mxu0
        %v1875 = vsel %vm882, %v1870, -inf
        %1876 = vmax.xlane.f32.xlu0 %v1875
        %v1877 = vpop.xlane.xlu0 %1876
        %v1878 = vsub.f32 %v1870, %v1877
        %v1879 = vmul.f32 %v1878, 1.442695
        %v1880 = vpow.pop %v1879
        %v1881 = vsel %vm882, %v1880, 0.0
        %1882 = vadd.xlane.f32.xlu0 %v1881
        %v1883 = vpop.xlane.xlu0 %1882
        %v1884 = vrcp.pop %v1883
        %v1885 = vmul.f32 %v1880, %v1884
        %v1886 = vpack.c.bf16 %v1885, %v1885
        %v1887 = vpack.c.bf16 %v1822, %v1822
        %v1889 = vsel %vm882, %v1886, 0
        %v1892 = vsel %vm945, %v1887, 0
        %1894 = vmatprep.subr.bf16.mxu0 0
        %1895 = vmatpush1.bf16.msra.mxu0 %v1892
        %1896 = vmatprep.subr.bf16.mxu0 0
        %1897 = vmatpush1.bf16.msra.mxu0 0
        %1898 = vmatprep.subr.bf16.mxu0 0
        %1899 = vmatpush1.bf16.msra.mxu0 0
        %1900 = vmatprep.subr.bf16.mxu0 0
        %1901 = vmatpush1.bf16.msra.mxu0 0
        %1902 = vmatprep.subr.bf16.mxu0 0
        %1903 = vmatpush1.bf16.msra.mxu0 0
        %1904 = vmatprep.subr.bf16.mxu0 0
        %1905 = vmatpush1.bf16.msra.mxu0 0
        %1906 = vmatprep.subr.bf16.mxu0 0
        %1907 = vmatpush1.bf16.msra.mxu0 0
        %1908 = vmatprep.subr.bf16.mxu0 0
        %1909 = vmatpush1.bf16.msra.mxu0 0
        %1910 = vmatprep.subr.bf16.mxu0 0
        %1911 = vmatpush1.bf16.msra.mxu0 0
        %1912 = vmatprep.subr.bf16.mxu0 0
        %1913 = vmatpush1.bf16.msra.mxu0 0
        %1914 = vmatprep.subr.bf16.mxu0 0
        %1915 = vmatpush1.bf16.msra.mxu0 0
        %1916 = vmatprep.subr.bf16.mxu0 0
        %1917 = vmatpush1.bf16.msra.mxu0 0
        %1918 = vmatprep.subr.bf16.mxu0 0
        %1919 = vmatpush1.bf16.msra.mxu0 0
        %1920 = vmatprep.subr.bf16.mxu0 0
        %1921 = vmatpush1.bf16.msra.mxu0 0
        %1922 = vmatprep.subr.bf16.mxu0 0
        %1923 = vmatpush1.bf16.msra.mxu0 0
        %1924 = vmatprep.subr.bf16.mxu0 0
        %1925 = vmatpush1.bf16.msra.mxu0 0
        %1926 = vmatprep.mubr.bf16.mxu0 0
        %1927 = vmatmul.mubr.bf16.gmra.mrb[0].mxu0 %v1889
        %v1928 = vpop.f32.mrb[0].mxu0
        %v1929 = vadd.f32 0.0, %v1928
        %v1930 = vpop.f32.mrb[0].mxu0
        %v1931 = vpop.f32.mrb[0].mxu0
        %v1932 = vpop.f32.mrb[0].mxu0
        %1933 = vdwg.mxu0
        %v1934 = vpack.c.bf16 %v1929, %v1929
        %s1935 = scalar_lea.vmem %s9, 12
        %v1936 = vld [vmem:[%s1935] sm:$0xf]
        %v1938 = vsel %vm882, %v1934, 0
        %v1941 = vsel %vm945, %v1936, 0
        %1943 = vmatprep.subr.bf16.mxu0 0
        %1944 = vmatpush1.bf16.msra.mxu0 %v1941
        %1945 = vmatprep.subr.bf16.mxu0 0
        %1946 = vmatpush1.bf16.msra.mxu0 0
        %1947 = vmatprep.subr.bf16.mxu0 0
        %1948 = vmatpush1.bf16.msra.mxu0 0
        %1949 = vmatprep.subr.bf16.mxu0 0
        %1950 = vmatpush1.bf16.msra.mxu0 0
        %1951 = vmatprep.subr.bf16.mxu0 0
        %1952 = vmatpush1.bf16.msra.mxu0 0
        %1953 = vmatprep.subr.bf16.mxu0 0
        %1954 = vmatpush1.bf16.msra.mxu0 0
        %1955 = vmatprep.subr.bf16.mxu0 0
        %1956 = vmatpush1.bf16.msra.mxu0 0
        %1957 = vmatprep.subr.bf16.mxu0 0
        %1958 = vmatpush1.bf16.msra.mxu0 0
        %1959 = vmatprep.subr.bf16.mxu0 0
        %1960 = vmatpush1.bf16.msra.mxu0 0
        %1961 = vmatprep.subr.bf16.mxu0 0
        %1962 = vmatpush1.bf16.msra.mxu0 0
        %1963 = vmatprep.subr.bf16.mxu0 0
        %1964 = vmatpush1.bf16.msra.mxu0 0
        %1965 = vmatprep.subr.bf16.mxu0 0
        %1966 = vmatpush1.bf16.msra.mxu0 0
        %1967 = vmatprep.subr.bf16.mxu0 0
        %1968 = vmatpush1.bf16.msra.mxu0 0
        %1969 = vmatprep.subr.bf16.mxu0 0
        %1970 = vmatpush1.bf16.msra.mxu0 0
        %1971 = vmatprep.subr.bf16.mxu0 0
        %1972 = vmatpush1.bf16.msra.mxu0 0
        %1973 = vmatprep.subr.bf16.mxu0 0
        %1974 = vmatpush1.bf16.msra.mxu0 0
        %1975 = vmatprep.mubr.bf16.mxu0 0
        %1976 = vmatmul.mubr.bf16.gmra.mrb[0].mxu0 %v1938
        %v1977 = vpop.f32.mrb[0].mxu0
        %v1978 = vadd.f32 0.0, %v1977
        %v1979 = vpop.f32.mrb[0].mxu0
        %v1980 = vpop.f32.mrb[0].mxu0
        %v1981 = vpop.f32.mrb[0].mxu0
        %1982 = vdwg.mxu0
        %v1983 = vadd.f32 %v1667, %v1978
        %v1984 = vadd.f32 %v674, %v1983
        %v1985 = vld [vmem:[#allocation14] sm:$0x1]
        %v1987 = vlaneseq
        %v1988 = vshrl.u32 %v1987, 7
        %v1989 = vsub.s32 0, %v1988
        %v1990 = vrot.slane %v1985, %v1989
        %v1992 = vadd.f32 %v1984, %v1990
        %1993 = vst.msk [vmem:[#allocation2] sm:$0xff] %vm678, %v1992
        %v1994 = vld [vmem:[%s3] sm:$0xf]
        %v1995 = vld [vmem:[#allocation6] sm:$0x1]
        %v1997 = vlaneseq
        %v1998 = vshrl.u32 %v1997, 7
        %v1999 = vsub.s32 0, %v1998
        %v2000 = vrot.slane %v1995, %v1999
        %v2003 = vsel %vm678, %v723, 0
        %v2006 = vsel %vm678, %v1994, 0
        %2008 = vmatprep.subr.bf16.mxu0 0
        %2009 = vmatpush1.bf16.xpose.msra.mxu0 %v2006
        %2010 = vmatprep.subr.bf16.mxu0 0
        %2011 = vmatpush1.bf16.xpose.msra.mxu0 0
        %2012 = vmatprep.subr.bf16.mxu0 0
        %2013 = vmatpush1.bf16.xpose.msra.mxu0 0
        %2014 = vmatprep.subr.bf16.mxu0 0
        %2015 = vmatpush1.bf16.xpose.msra.mxu0 0
        %2016 = vmatprep.subr.bf16.mxu0 0
        %2017 = vmatpush1.bf16.xpose.msra.mxu0 0
        %2018 = vmatprep.subr.bf16.mxu0 0
        %2019 = vmatpush1.bf16.xpose.msra.mxu0 0
        %2020 = vmatprep.subr.bf16.mxu0 0
        %2021 = vmatpush1.bf16.xpose.msra.mxu0 0
        %2022 = vmatprep.subr.bf16.mxu0 0
        %2023 = vmatpush1.bf16.xpose.msra.mxu0 0
        %2024 = vmatprep.subr.bf16.mxu0 0
        %2025 = vmatpush1.bf16.xpose.msra.mxu0 0
        %2026 = vmatprep.subr.bf16.mxu0 0
        %2027 = vmatpush1.bf16.xpose.msra.mxu0 0
        %2028 = vmatprep.subr.bf16.mxu0 0
        %2029 = vmatpush1.bf16.xpose.msra.mxu0 0
        %2030 = vmatprep.subr.bf16.mxu0 0
        %2031 = vmatpush1.bf16.xpose.msra.mxu0 0
        %2032 = vmatprep.subr.bf16.mxu0 0
        %2033 = vmatpush1.bf16.xpose.msra.mxu0 0
        %2034 = vmatprep.subr.bf16.mxu0 0
        %2035 = vmatpush1.bf16.xpose.msra.mxu0 0
        %2036 = vmatprep.subr.bf16.mxu0 0
        %2037 = vmatpush1.bf16.xpose.msra.mxu0 0
        %2038 = vmatprep.subr.bf16.mxu0 0
        %2039 = vmatpush1.bf16.xpose.msra.mxu0 0
        %2040 = vmatprep.mubr.bf16.mxu0 0
        %2041 = vmatmul.mubr.bf16.gmra.mrb[0].mxu0 %v2003
        %v2042 = vpop.f32.mrb[0].mxu0
        %v2043 = vadd.f32 %v2000, %v2042
        %v2044 = vpop.f32.mrb[0].mxu0
        %v2045 = vpop.f32.mrb[0].mxu0
        %v2046 = vpop.f32.mrb[0].mxu0
        %2047 = vdwg.mxu0
        %v2048 = vld [vmem:[#allocation8] sm:$0xf]
        %v2049 = vld [vmem:[#allocation9] sm:$0x1]
        %v2051 = vlaneseq
        %v2052 = vshrl.u32 %v2051, 7
        %v2053 = vsub.s32 0, %v2052
        %v2054 = vrot.slane %v2049, %v2053
        %v2057 = vsel %vm678, %v2048, 0
        %2059 = vmatprep.subr.bf16.mxu0 0
        %2060 = vmatpush1.bf16.xpose.msra.mxu0 %v2057
        %2061 = vmatprep.subr.bf16.mxu0 0
        %2062 = vmatpush1.bf16.xpose.msra.mxu0 0
        %2063 = vmatprep.subr.bf16.mxu0 0
        %2064 = vmatpush1.bf16.xpose.msra.mxu0 0
        %2065 = vmatprep.subr.bf16.mxu0 0
        %2066 = vmatpush1.bf16.xpose.msra.mxu0 0
        %2067 = vmatprep.subr.bf16.mxu0 0
        %2068 = vmatpush1.bf16.xpose.msra.mxu0 0
        %2069 = vmatprep.subr.bf16.mxu0 0
        %2070 = vmatpush1.bf16.xpose.msra.mxu0 0
        %2071 = vmatprep.subr.bf16.mxu0 0
        %2072 = vmatpush1.bf16.xpose.msra.mxu0 0
        %2073 = vmatprep.subr.bf16.mxu0 0
        %2074 = vmatpush1.bf16.xpose.msra.mxu0 0
        %2075 = vmatprep.subr.bf16.mxu0 0
        %2076 = vmatpush1.bf16.xpose.msra.mxu0 0
        %2077 = vmatprep.subr.bf16.mxu0 0
        %2078 = vmatpush1.bf16.xpose.msra.mxu0 0
        %2079 = vmatprep.subr.bf16.mxu0 0
        %2080 = vmatpush1.bf16.xpose.msra.mxu0 0
        %2081 = vmatprep.subr.bf16.mxu0 0
        %2082 = vmatpush1.bf16.xpose.msra.mxu0 0
        %2083 = vmatprep.subr.bf16.mxu0 0
        %2084 = vmatpush1.bf16.xpose.msra.mxu0 0
        %2085 = vmatprep.subr.bf16.mxu0 0
        %2086 = vmatpush1.bf16.xpose.msra.mxu0 0
        %2087 = vmatprep.subr.bf16.mxu0 0
        %2088 = vmatpush1.bf16.xpose.msra.mxu0 0
        %2089 = vmatprep.subr.bf16.mxu0 0
        %2090 = vmatpush1.bf16.xpose.msra.mxu0 0
        %2091 = vmatprep.mubr.bf16.mxu0 0
        %2092 = vmatmul.mubr.bf16.gmra.mrb[0].mxu0 %v2003
        %v2093 = vpop.f32.mrb[0].mxu0
        %v2094 = vadd.f32 %v2054, %v2093
        %v2095 = vpop.f32.mrb[0].mxu0
        %v2096 = vpop.f32.mrb[0].mxu0
        %v2097 = vpop.f32.mrb[0].mxu0
        %2098 = vdwg.mxu0
        %v2099 = vld [vmem:[#allocation11] sm:$0xf]
        %v2100 = vld [vmem:[#allocation12] sm:$0x1]
        %v2102 = vlaneseq
        %v2103 = vshrl.u32 %v2102, 7
        %v2104 = vsub.s32 0, %v2103
        %v2105 = vrot.slane %v2100, %v2104
        %v2108 = vsel %vm678, %v2099, 0
        %2110 = vmatprep.subr.bf16.mxu0 0
        %2111 = vmatpush1.bf16.xpose.msra.mxu0 %v2108
        %2112 = vmatprep.subr.bf16.mxu0 0
        %2113 = vmatpush1.bf16.xpose.msra.mxu0 0
        %2114 = vmatprep.subr.bf16.mxu0 0
        %2115 = vmatpush1.bf16.xpose.msra.mxu0 0
        %2116 = vmatprep.subr.bf16.mxu0 0
        %2117 = vmatpush1.bf16.xpose.msra.mxu0 0
        %2118 = vmatprep.subr.bf16.mxu0 0
        %2119 = vmatpush1.bf16.xpose.msra.mxu0 0
        %2120 = vmatprep.subr.bf16.mxu0 0
        %2121 = vmatpush1.bf16.xpose.msra.mxu0 0
        %2122 = vmatprep.subr.bf16.mxu0 0
        %2123 = vmatpush1.bf16.xpose.msra.mxu0 0
        %2124 = vmatprep.subr.bf16.mxu0 0
        %2125 = vmatpush1.bf16.xpose.msra.mxu0 0
        %2126 = vmatprep.subr.bf16.mxu0 0
        %2127 = vmatpush1.bf16.xpose.msra.mxu0 0
        %2128 = vmatprep.subr.bf16.mxu0 0
        %2129 = vmatpush1.bf16.xpose.msra.mxu0 0
        %2130 = vmatprep.subr.bf16.mxu0 0
        %2131 = vmatpush1.bf16.xpose.msra.mxu0 0
        %2132 = vmatprep.subr.bf16.mxu0 0
        %2133 = vmatpush1.bf16.xpose.msra.mxu0 0
        %2134 = vmatprep.subr.bf16.mxu0 0
        %2135 = vmatpush1.bf16.xpose.msra.mxu0 0
        %2136 = vmatprep.subr.bf16.mxu0 0
        %2137 = vmatpush1.bf16.xpose.msra.mxu0 0
        %2138 = vmatprep.subr.bf16.mxu0 0
        %2139 = vmatpush1.bf16.xpose.msra.mxu0 0
        %2140 = vmatprep.subr.bf16.mxu0 0
        %2141 = vmatpush1.bf16.xpose.msra.mxu0 0
        %2142 = vmatprep.mubr.bf16.mxu0 0
        %2143 = vmatmul.mubr.bf16.gmra.mrb[0].mxu0 %v2003
        %v2144 = vpop.f32.mrb[0].mxu0
        %v2145 = vadd.f32 %v2105, %v2144
        %v2146 = vpop.f32.mrb[0].mxu0
        %v2147 = vpop.f32.mrb[0].mxu0
        %v2148 = vpop.f32.mrb[0].mxu0
        %2149 = vdwg.mxu0
        %v2150 = vpack.c.bf16 %v2043, %v2043
        %v2151 = vpack.c.bf16 %v2094, %v2094
        %v2153 = vsel %vm882, %v2150, 0
        %v2156 = vsel %vm882, %v2151, 0
        %2158 = vmatprep.subr.bf16.mxu0 0
        %2159 = vmatpush1.bf16.xpose.msra.mxu0 %v2156
        %2160 = vmatprep.subr.bf16.mxu0 0
        %2161 = vmatpush1.bf16.xpose.msra.mxu0 0
        %2162 = vmatprep.subr.bf16.mxu0 0
        %2163 = vmatpush1.bf16.xpose.msra.mxu0 0
        %2164 = vmatprep.subr.bf16.mxu0 0
        %2165 = vmatpush1.bf16.xpose.msra.mxu0 0
        %2166 = vmatprep.subr.bf16.mxu0 0
        %2167 = vmatpush1.bf16.xpose.msra.mxu0 0
        %2168 = vmatprep.subr.bf16.mxu0 0
        %2169 = vmatpush1.bf16.xpose.msra.mxu0 0
        %2170 = vmatprep.subr.bf16.mxu0 0
        %2171 = vmatpush1.bf16.xpose.msra.mxu0 0
        %2172 = vmatprep.subr.bf16.mxu0 0
        %2173 = vmatpush1.bf16.xpose.msra.mxu0 0
        %2174 = vmatprep.subr.bf16.mxu0 0
        %2175 = vmatpush1.bf16.xpose.msra.mxu0 0
        %2176 = vmatprep.subr.bf16.mxu0 0
        %2177 = vmatpush1.bf16.xpose.msra.mxu0 0
        %2178 = vmatprep.subr.bf16.mxu0 0
        %2179 = vmatpush1.bf16.xpose.msra.mxu0 0
        %2180 = vmatprep.subr.bf16.mxu0 0
        %2181 = vmatpush1.bf16.xpose.msra.mxu0 0
        %2182 = vmatprep.subr.bf16.mxu0 0
        %2183 = vmatpush1.bf16.xpose.msra.mxu0 0
        %2184 = vmatprep.subr.bf16.mxu0 0
        %2185 = vmatpush1.bf16.xpose.msra.mxu0 0
        %2186 = vmatprep.subr.bf16.mxu0 0
        %2187 = vmatpush1.bf16.xpose.msra.mxu0 0
        %2188 = vmatprep.subr.bf16.mxu0 0
        %2189 = vmatpush1.bf16.xpose.msra.mxu0 0
        %2190 = vmatprep.mubr.bf16.mxu0 0
        %2191 = vmatmul.mubr.bf16.gmra.mrb[0].mxu0 %v2153
        %v2192 = vpop.f32.mrb[0].mxu0
        %v2193 = vadd.f32 0.0, %v2192
        %v2194 = vpop.f32.mrb[0].mxu0
        %v2195 = vpop.f32.mrb[0].mxu0
        %v2196 = vpop.f32.mrb[0].mxu0
        %2197 = vdwg.mxu0
        %v2198 = vsel %vm882, %v2193, -inf
        %2199 = vmax.xlane.f32.xlu0 %v2198
        %v2200 = vpop.xlane.xlu0 %2199
        %v2201 = vsub.f32 %v2193, %v2200
        %v2202 = vmul.f32 %v2201, 1.442695
        %v2203 = vpow.pop %v2202
        %v2204 = vsel %vm882, %v2203, 0.0
        %2205 = vadd.xlane.f32.xlu0 %v2204
        %v2206 = vpop.xlane.xlu0 %2205
        %v2207 = vrcp.pop %v2206
        %v2208 = vmul.f32 %v2203, %v2207
        %v2209 = vpack.c.bf16 %v2208, %v2208
        %v2210 = vpack.c.bf16 %v2145, %v2145
        %v2212 = vsel %vm882, %v2209, 0
        %v2215 = vsel %vm945, %v2210, 0
        %2217 = vmatprep.subr.bf16.mxu0 0
        %2218 = vmatpush1.bf16.msra.mxu0 %v2215
        %2219 = vmatprep.subr.bf16.mxu0 0
        %2220 = vmatpush1.bf16.msra.mxu0 0
        %2221 = vmatprep.subr.bf16.mxu0 0
        %2222 = vmatpush1.bf16.msra.mxu0 0
        %2223 = vmatprep.subr.bf16.mxu0 0
        %2224 = vmatpush1.bf16.msra.mxu0 0
        %2225 = vmatprep.subr.bf16.mxu0 0
        %2226 = vmatpush1.bf16.msra.mxu0 0
        %2227 = vmatprep.subr.bf16.mxu0 0
        %2228 = vmatpush1.bf16.msra.mxu0 0
        %2229 = vmatprep.subr.bf16.mxu0 0
        %2230 = vmatpush1.bf16.msra.mxu0 0
        %2231 = vmatprep.subr.bf16.mxu0 0
        %2232 = vmatpush1.bf16.msra.mxu0 0
        %2233 = vmatprep.subr.bf16.mxu0 0
        %2234 = vmatpush1.bf16.msra.mxu0 0
        %2235 = vmatprep.subr.bf16.mxu0 0
        %2236 = vmatpush1.bf16.msra.mxu0 0
        %2237 = vmatprep.subr.bf16.mxu0 0
        %2238 = vmatpush1.bf16.msra.mxu0 0
        %2239 = vmatprep.subr.bf16.mxu0 0
        %2240 = vmatpush1.bf16.msra.mxu0 0
        %2241 = vmatprep.subr.bf16.mxu0 0
        %2242 = vmatpush1.bf16.msra.mxu0 0
        %2243 = vmatprep.subr.bf16.mxu0 0
        %2244 = vmatpush1.bf16.msra.mxu0 0
        %2245 = vmatprep.subr.bf16.mxu0 0
        %2246 = vmatpush1.bf16.msra.mxu0 0
        %2247 = vmatprep.subr.bf16.mxu0 0
        %2248 = vmatpush1.bf16.msra.mxu0 0
        %2249 = vmatprep.mubr.bf16.mxu0 0
        %2250 = vmatmul.mubr.bf16.gmra.mrb[0].mxu0 %v2212
        %v2251 = vpop.f32.mrb[0].mxu0
        %v2252 = vadd.f32 0.0, %v2251
        %v2253 = vpop.f32.mrb[0].mxu0
        %v2254 = vpop.f32.mrb[0].mxu0
        %v2255 = vpop.f32.mrb[0].mxu0
        %2256 = vdwg.mxu0
        %v2257 = vpack.c.bf16 %v2252, %v2252
        %v2258 = vld [vmem:[%s9] sm:$0xf]
        %v2259 = vld [vmem:[%s991] sm:$0xf]
        %v2260 = vld [vmem:[%s993] sm:$0x1]
        %v2262 = vlaneseq
        %v2263 = vshrl.u32 %v2262, 7
        %v2264 = vsub.s32 0, %v2263
        %v2265 = vrot.slane %v2260, %v2264
        %v2268 = vsel %vm678, %v2259, 0
        %2270 = vmatprep.subr.bf16.mxu0 0
        %2271 = vmatpush1.bf16.xpose.msra.mxu0 %v2268
        %2272 = vmatprep.subr.bf16.mxu0 0
        %2273 = vmatpush1.bf16.xpose.msra.mxu0 0
        %2274 = vmatprep.subr.bf16.mxu0 0
        %2275 = vmatpush1.bf16.xpose.msra.mxu0 0
        %2276 = vmatprep.subr.bf16.mxu0 0
        %2277 = vmatpush1.bf16.xpose.msra.mxu0 0
        %2278 = vmatprep.subr.bf16.mxu0 0
        %2279 = vmatpush1.bf16.xpose.msra.mxu0 0
        %2280 = vmatprep.subr.bf16.mxu0 0
        %2281 = vmatpush1.bf16.xpose.msra.mxu0 0
        %2282 = vmatprep.subr.bf16.mxu0 0
        %2283 = vmatpush1.bf16.xpose.msra.mxu0 0
        %2284 = vmatprep.subr.bf16.mxu0 0
        %2285 = vmatpush1.bf16.xpose.msra.mxu0 0
        %2286 = vmatprep.subr.bf16.mxu0 0
        %2287 = vmatpush1.bf16.xpose.msra.mxu0 0
        %2288 = vmatprep.subr.bf16.mxu0 0
        %2289 = vmatpush1.bf16.xpose.msra.mxu0 0
        %2290 = vmatprep.subr.bf16.mxu0 0
        %2291 = vmatpush1.bf16.xpose.msra.mxu0 0
        %2292 = vmatprep.subr.bf16.mxu0 0
        %2293 = vmatpush1.bf16.xpose.msra.mxu0 0
        %2294 = vmatprep.subr.bf16.mxu0 0
        %2295 = vmatpush1.bf16.xpose.msra.mxu0 0
        %2296 = vmatprep.subr.bf16.mxu0 0
        %2297 = vmatpush1.bf16.xpose.msra.mxu0 0
        %2298 = vmatprep.subr.bf16.mxu0 0
        %2299 = vmatpush1.bf16.xpose.msra.mxu0 0
        %2300 = vmatprep.subr.bf16.mxu0 0
        %2301 = vmatpush1.bf16.xpose.msra.mxu0 0
        %2302 = vmatprep.mubr.bf16.mxu0 0
        %2303 = vmatmul.mubr.bf16.gmra.mrb[0].mxu0 %v2003
        %v2304 = vpop.f32.mrb[0].mxu0
        %v2305 = vadd.f32 %v2265, %v2304
        %v2306 = vpop.f32.mrb[0].mxu0
        %v2307 = vpop.f32.mrb[0].mxu0
        %v2308 = vpop.f32.mrb[0].mxu0
        %2309 = vdwg.mxu0
        %v2310 = vld [vmem:[%s1044] sm:$0xf]
        %v2311 = vld [vmem:[%s1046] sm:$0x1]
        %v2313 = vlaneseq
        %v2314 = vshrl.u32 %v2313, 7
        %v2315 = vsub.s32 0, %v2314
        %v2316 = vrot.slane %v2311, %v2315
        %v2319 = vsel %vm678, %v2310, 0
        %2321 = vmatprep.subr.bf16.mxu0 0
        %2322 = vmatpush1.bf16.xpose.msra.mxu0 %v2319
        %2323 = vmatprep.subr.bf16.mxu0 0
        %2324 = vmatpush1.bf16.xpose.msra.mxu0 0
        %2325 = vmatprep.subr.bf16.mxu0 0
        %2326 = vmatpush1.bf16.xpose.msra.mxu0 0
        %2327 = vmatprep.subr.bf16.mxu0 0
        %2328 = vmatpush1.bf16.xpose.msra.mxu0 0
        %2329 = vmatprep.subr.bf16.mxu0 0
        %2330 = vmatpush1.bf16.xpose.msra.mxu0 0
        %2331 = vmatprep.subr.bf16.mxu0 0
        %2332 = vmatpush1.bf16.xpose.msra.mxu0 0
        %2333 = vmatprep.subr.bf16.mxu0 0
        %2334 = vmatpush1.bf16.xpose.msra.mxu0 0
        %2335 = vmatprep.subr.bf16.mxu0 0
        %2336 = vmatpush1.bf16.xpose.msra.mxu0 0
        %2337 = vmatprep.subr.bf16.mxu0 0
        %2338 = vmatpush1.bf16.xpose.msra.mxu0 0
        %2339 = vmatprep.subr.bf16.mxu0 0
        %2340 = vmatpush1.bf16.xpose.msra.mxu0 0
        %2341 = vmatprep.subr.bf16.mxu0 0
        %2342 = vmatpush1.bf16.xpose.msra.mxu0 0
        %2343 = vmatprep.subr.bf16.mxu0 0
        %2344 = vmatpush1.bf16.xpose.msra.mxu0 0
        %2345 = vmatprep.subr.bf16.mxu0 0
        %2346 = vmatpush1.bf16.xpose.msra.mxu0 0
        %2347 = vmatprep.subr.bf16.mxu0 0
        %2348 = vmatpush1.bf16.xpose.msra.mxu0 0
        %2349 = vmatprep.subr.bf16.mxu0 0
        %2350 = vmatpush1.bf16.xpose.msra.mxu0 0
        %2351 = vmatprep.subr.bf16.mxu0 0
        %2352 = vmatpush1.bf16.xpose.msra.mxu0 0
        %2353 = vmatprep.mubr.bf16.mxu0 0
        %2354 = vmatmul.mubr.bf16.gmra.mrb[0].mxu0 %v2003
        %v2355 = vpop.f32.mrb[0].mxu0
        %v2356 = vadd.f32 %v2316, %v2355
        %v2357 = vpop.f32.mrb[0].mxu0
        %v2358 = vpop.f32.mrb[0].mxu0
        %v2359 = vpop.f32.mrb[0].mxu0
        %2360 = vdwg.mxu0
        %v2361 = vld [vmem:[%s1097] sm:$0xf]
        %v2362 = vld [vmem:[%s1099] sm:$0x1]
        %v2364 = vlaneseq
        %v2365 = vshrl.u32 %v2364, 7
        %v2366 = vsub.s32 0, %v2365
        %v2367 = vrot.slane %v2362, %v2366
        %v2370 = vsel %vm678, %v2361, 0
        %2372 = vmatprep.subr.bf16.mxu0 0
        %2373 = vmatpush1.bf16.xpose.msra.mxu0 %v2370
        %2374 = vmatprep.subr.bf16.mxu0 0
        %2375 = vmatpush1.bf16.xpose.msra.mxu0 0
        %2376 = vmatprep.subr.bf16.mxu0 0
        %2377 = vmatpush1.bf16.xpose.msra.mxu0 0
        %2378 = vmatprep.subr.bf16.mxu0 0
        %2379 = vmatpush1.bf16.xpose.msra.mxu0 0
        %2380 = vmatprep.subr.bf16.mxu0 0
        %2381 = vmatpush1.bf16.xpose.msra.mxu0 0
        %2382 = vmatprep.subr.bf16.mxu0 0
        %2383 = vmatpush1.bf16.xpose.msra.mxu0 0
        %2384 = vmatprep.subr.bf16.mxu0 0
        %2385 = vmatpush1.bf16.xpose.msra.mxu0 0
        %2386 = vmatprep.subr.bf16.mxu0 0
        %2387 = vmatpush1.bf16.xpose.msra.mxu0 0
        %2388 = vmatprep.subr.bf16.mxu0 0
        %2389 = vmatpush1.bf16.xpose.msra.mxu0 0
        %2390 = vmatprep.subr.bf16.mxu0 0
        %2391 = vmatpush1.bf16.xpose.msra.mxu0 0
        %2392 = vmatprep.subr.bf16.mxu0 0
        %2393 = vmatpush1.bf16.xpose.msra.mxu0 0
        %2394 = vmatprep.subr.bf16.mxu0 0
        %2395 = vmatpush1.bf16.xpose.msra.mxu0 0
        %2396 = vmatprep.subr.bf16.mxu0 0
        %2397 = vmatpush1.bf16.xpose.msra.mxu0 0
        %2398 = vmatprep.subr.bf16.mxu0 0
        %2399 = vmatpush1.bf16.xpose.msra.mxu0 0
        %2400 = vmatprep.subr.bf16.mxu0 0
        %2401 = vmatpush1.bf16.xpose.msra.mxu0 0
        %2402 = vmatprep.subr.bf16.mxu0 0
        %2403 = vmatpush1.bf16.xpose.msra.mxu0 0
        %2404 = vmatprep.mubr.bf16.mxu0 0
        %2405 = vmatmul.mubr.bf16.gmra.mrb[0].mxu0 %v2003
        %v2406 = vpop.f32.mrb[0].mxu0
        %v2407 = vadd.f32 %v2367, %v2406
        %v2408 = vpop.f32.mrb[0].mxu0
        %v2409 = vpop.f32.mrb[0].mxu0
        %v2410 = vpop.f32.mrb[0].mxu0
        %2411 = vdwg.mxu0
        %v2412 = vpack.c.bf16 %v2305, %v2305
        %v2413 = vpack.c.bf16 %v2356, %v2356
        %v2415 = vsel %vm882, %v2412, 0
        %v2418 = vsel %vm882, %v2413, 0
        %2420 = vmatprep.subr.bf16.mxu0 0
        %2421 = vmatpush1.bf16.xpose.msra.mxu0 %v2418
        %2422 = vmatprep.subr.bf16.mxu0 0
        %2423 = vmatpush1.bf16.xpose.msra.mxu0 0
        %2424 = vmatprep.subr.bf16.mxu0 0
        %2425 = vmatpush1.bf16.xpose.msra.mxu0 0
        %2426 = vmatprep.subr.bf16.mxu0 0
        %2427 = vmatpush1.bf16.xpose.msra.mxu0 0
        %2428 = vmatprep.subr.bf16.mxu0 0
        %2429 = vmatpush1.bf16.xpose.msra.mxu0 0
        %2430 = vmatprep.subr.bf16.mxu0 0
        %2431 = vmatpush1.bf16.xpose.msra.mxu0 0
        %2432 = vmatprep.subr.bf16.mxu0 0
        %2433 = vmatpush1.bf16.xpose.msra.mxu0 0
        %2434 = vmatprep.subr.bf16.mxu0 0
        %2435 = vmatpush1.bf16.xpose.msra.mxu0 0
        %2436 = vmatprep.subr.bf16.mxu0 0
        %2437 = vmatpush1.bf16.xpose.msra.mxu0 0
        %2438 = vmatprep.subr.bf16.mxu0 0
        %2439 = vmatpush1.bf16.xpose.msra.mxu0 0
        %2440 = vmatprep.subr.bf16.mxu0 0
        %2441 = vmatpush1.bf16.xpose.msra.mxu0 0
        %2442 = vmatprep.subr.bf16.mxu0 0
        %2443 = vmatpush1.bf16.xpose.msra.mxu0 0
        %2444 = vmatprep.subr.bf16.mxu0 0
        %2445 = vmatpush1.bf16.xpose.msra.mxu0 0
        %2446 = vmatprep.subr.bf16.mxu0 0
        %2447 = vmatpush1.bf16.xpose.msra.mxu0 0
        %2448 = vmatprep.subr.bf16.mxu0 0
        %2449 = vmatpush1.bf16.xpose.msra.mxu0 0
        %2450 = vmatprep.subr.bf16.mxu0 0
        %2451 = vmatpush1.bf16.xpose.msra.mxu0 0
        %2452 = vmatprep.mubr.bf16.mxu0 0
        %2453 = vmatmul.mubr.bf16.gmra.mrb[0].mxu0 %v2415
        %v2454 = vpop.f32.mrb[0].mxu0
        %v2455 = vadd.f32 0.0, %v2454
        %v2456 = vpop.f32.mrb[0].mxu0
        %v2457 = vpop.f32.mrb[0].mxu0
        %v2458 = vpop.f32.mrb[0].mxu0
        %2459 = vdwg.mxu0
        %v2460 = vsel %vm882, %v2455, -inf
        %2461 = vmax.xlane.f32.xlu0 %v2460
        %v2462 = vpop.xlane.xlu0 %2461
        %v2463 = vsub.f32 %v2455, %v2462
        %v2464 = vmul.f32 %v2463, 1.442695
        %v2465 = vpow.pop %v2464
        %v2466 = vsel %vm882, %v2465, 0.0
        %2467 = vadd.xlane.f32.xlu0 %v2466
        %v2468 = vpop.xlane.xlu0 %2467
        %v2469 = vrcp.pop %v2468
        %v2470 = vmul.f32 %v2465, %v2469
        %v2471 = vpack.c.bf16 %v2470, %v2470
        %v2472 = vpack.c.bf16 %v2407, %v2407
        %v2474 = vsel %vm882, %v2471, 0
        %v2477 = vsel %vm945, %v2472, 0
        %2479 = vmatprep.subr.bf16.mxu0 0
        %2480 = vmatpush1.bf16.msra.mxu0 %v2477
        %2481 = vmatprep.subr.bf16.mxu0 0
        %2482 = vmatpush1.bf16.msra.mxu0 0
        %2483 = vmatprep.subr.bf16.mxu0 0
        %2484 = vmatpush1.bf16.msra.mxu0 0
        %2485 = vmatprep.subr.bf16.mxu0 0
        %2486 = vmatpush1.bf16.msra.mxu0 0
        %2487 = vmatprep.subr.bf16.mxu0 0
        %2488 = vmatpush1.bf16.msra.mxu0 0
        %2489 = vmatprep.subr.bf16.mxu0 0
        %2490 = vmatpush1.bf16.msra.mxu0 0
        %2491 = vmatprep.subr.bf16.mxu0 0
        %2492 = vmatpush1.bf16.msra.mxu0 0
        %2493 = vmatprep.subr.bf16.mxu0 0
        %2494 = vmatpush1.bf16.msra.mxu0 0
        %2495 = vmatprep.subr.bf16.mxu0 0
        %2496 = vmatpush1.bf16.msra.mxu0 0
        %2497 = vmatprep.subr.bf16.mxu0 0
        %2498 = vmatpush1.bf16.msra.mxu0 0
        %2499 = vmatprep.subr.bf16.mxu0 0
        %2500 = vmatpush1.bf16.msra.mxu0 0
        %2501 = vmatprep.subr.bf16.mxu0 0
        %2502 = vmatpush1.bf16.msra.mxu0 0
        %2503 = vmatprep.subr.bf16.mxu0 0
        %2504 = vmatpush1.bf16.msra.mxu0 0
        %2505 = vmatprep.subr.bf16.mxu0 0
        %2506 = vmatpush1.bf16.msra.mxu0 0
        %2507 = vmatprep.subr.bf16.mxu0 0
        %2508 = vmatpush1.bf16.msra.mxu0 0
        %2509 = vmatprep.subr.bf16.mxu0 0
        %2510 = vmatpush1.bf16.msra.mxu0 0
        %2511 = vmatprep.mubr.bf16.mxu0 0
        %2512 = vmatmul.mubr.bf16.gmra.mrb[0].mxu0 %v2474
        %v2513 = vpop.f32.mrb[0].mxu0
        %v2514 = vadd.f32 0.0, %v2513
        %v2515 = vpop.f32.mrb[0].mxu0
        %v2516 = vpop.f32.mrb[0].mxu0
        %v2517 = vpop.f32.mrb[0].mxu0
        %2518 = vdwg.mxu0
        %v2519 = vpack.c.bf16 %v2514, %v2514
        %v2520 = vld [vmem:[%s1258] sm:$0xf]
        %v2522 = vsel %vm882, %v2519, 0
        %v2525 = vsel %vm945, %v2520, 0
        %2527 = vmatprep.subr.bf16.mxu0 0
        %2528 = vmatpush1.bf16.msra.mxu0 %v2525
        %2529 = vmatprep.subr.bf16.mxu0 0
        %2530 = vmatpush1.bf16.msra.mxu0 0
        %2531 = vmatprep.subr.bf16.mxu0 0
        %2532 = vmatpush1.bf16.msra.mxu0 0
        %2533 = vmatprep.subr.bf16.mxu0 0
        %2534 = vmatpush1.bf16.msra.mxu0 0
        %2535 = vmatprep.subr.bf16.mxu0 0
        %2536 = vmatpush1.bf16.msra.mxu0 0
        %2537 = vmatprep.subr.bf16.mxu0 0
        %2538 = vmatpush1.bf16.msra.mxu0 0
        %2539 = vmatprep.subr.bf16.mxu0 0
        %2540 = vmatpush1.bf16.msra.mxu0 0
        %2541 = vmatprep.subr.bf16.mxu0 0
        %2542 = vmatpush1.bf16.msra.mxu0 0
        %2543 = vmatprep.subr.bf16.mxu0 0
        %2544 = vmatpush1.bf16.msra.mxu0 0
        %2545 = vmatprep.subr.bf16.mxu0 0
        %2546 = vmatpush1.bf16.msra.mxu0 0
        %2547 = vmatprep.subr.bf16.mxu0 0
        %2548 = vmatpush1.bf16.msra.mxu0 0
        %2549 = vmatprep.subr.bf16.mxu0 0
        %2550 = vmatpush1.bf16.msra.mxu0 0
        %2551 = vmatprep.subr.bf16.mxu0 0
        %2552 = vmatpush1.bf16.msra.mxu0 0
        %2553 = vmatprep.subr.bf16.mxu0 0
        %2554 = vmatpush1.bf16.msra.mxu0 0
        %2555 = vmatprep.subr.bf16.mxu0 0
        %2556 = vmatpush1.bf16.msra.mxu0 0
        %2557 = vmatprep.subr.bf16.mxu0 0
        %2558 = vmatpush1.bf16.msra.mxu0 0
        %2559 = vmatprep.mubr.bf16.mxu0 0
        %2560 = vmatmul.mubr.bf16.gmra.mrb[0].mxu0 %v2522
        %v2561 = vpop.f32.mrb[0].mxu0
        %v2562 = vadd.f32 0.0, %v2561
        %v2563 = vpop.f32.mrb[0].mxu0
        %v2564 = vpop.f32.mrb[0].mxu0
        %v2565 = vpop.f32.mrb[0].mxu0
        %2566 = vdwg.mxu0
        %v2568 = vsel %vm882, %v2257, 0
        %v2571 = vsel %vm945, %v2258, 0
        %2573 = vmatprep.subr.bf16.mxu0 0
        %2574 = vmatpush1.bf16.msra.mxu0 %v2571
        %2575 = vmatprep.subr.bf16.mxu0 0
        %2576 = vmatpush1.bf16.msra.mxu0 0
        %2577 = vmatprep.subr.bf16.mxu0 0
        %2578 = vmatpush1.bf16.msra.mxu0 0
        %2579 = vmatprep.subr.bf16.mxu0 0
        %2580 = vmatpush1.bf16.msra.mxu0 0
        %2581 = vmatprep.subr.bf16.mxu0 0
        %2582 = vmatpush1.bf16.msra.mxu0 0
        %2583 = vmatprep.subr.bf16.mxu0 0
        %2584 = vmatpush1.bf16.msra.mxu0 0
        %2585 = vmatprep.subr.bf16.mxu0 0
        %2586 = vmatpush1.bf16.msra.mxu0 0
        %2587 = vmatprep.subr.bf16.mxu0 0
        %2588 = vmatpush1.bf16.msra.mxu0 0
        %2589 = vmatprep.subr.bf16.mxu0 0
        %2590 = vmatpush1.bf16.msra.mxu0 0
        %2591 = vmatprep.subr.bf16.mxu0 0
        %2592 = vmatpush1.bf16.msra.mxu0 0
        %2593 = vmatprep.subr.bf16.mxu0 0
        %2594 = vmatpush1.bf16.msra.mxu0 0
        %2595 = vmatprep.subr.bf16.mxu0 0
        %2596 = vmatpush1.bf16.msra.mxu0 0
        %2597 = vmatprep.subr.bf16.mxu0 0
        %2598 = vmatpush1.bf16.msra.mxu0 0
        %2599 = vmatprep.subr.bf16.mxu0 0
        %2600 = vmatpush1.bf16.msra.mxu0 0
        %2601 = vmatprep.subr.bf16.mxu0 0
        %2602 = vmatpush1.bf16.msra.mxu0 0
        %2603 = vmatprep.subr.bf16.mxu0 0
        %2604 = vmatpush1.bf16.msra.mxu0 0
        %2605 = vmatprep.mubr.bf16.mxu0 0
        %2606 = vmatmul.mubr.bf16.gmra.mrb[0].mxu0 %v2568
        %v2607 = vpop.f32.mrb[0].mxu0
        %v2608 = vadd.f32 %v2562, %v2607
        %v2609 = vpop.f32.mrb[0].mxu0
        %v2610 = vpop.f32.mrb[0].mxu0
        %v2611 = vpop.f32.mrb[0].mxu0
        %2612 = vdwg.mxu0
        %v2613 = vld [vmem:[%s1352] sm:$0xf]
        %v2614 = vld [vmem:[%s1354] sm:$0x1]
        %v2616 = vlaneseq
        %v2617 = vshrl.u32 %v2616, 7
        %v2618 = vsub.s32 0, %v2617
        %v2619 = vrot.slane %v2614, %v2618
        %v2622 = vsel %vm678, %v2613, 0
        %2624 = vmatprep.subr.bf16.mxu0 0
        %2625 = vmatpush1.bf16.xpose.msra.mxu0 %v2622
        %2626 = vmatprep.subr.bf16.mxu0 0
        %2627 = vmatpush1.bf16.xpose.msra.mxu0 0
        %2628 = vmatprep.subr.bf16.mxu0 0
        %2629 = vmatpush1.bf16.xpose.msra.mxu0 0
        %2630 = vmatprep.subr.bf16.mxu0 0
        %2631 = vmatpush1.bf16.xpose.msra.mxu0 0
        %2632 = vmatprep.subr.bf16.mxu0 0
        %2633 = vmatpush1.bf16.xpose.msra.mxu0 0
        %2634 = vmatprep.subr.bf16.mxu0 0
        %2635 = vmatpush1.bf16.xpose.msra.mxu0 0
        %2636 = vmatprep.subr.bf16.mxu0 0
        %2637 = vmatpush1.bf16.xpose.msra.mxu0 0
        %2638 = vmatprep.subr.bf16.mxu0 0
        %2639 = vmatpush1.bf16.xpose.msra.mxu0 0
        %2640 = vmatprep.subr.bf16.mxu0 0
        %2641 = vmatpush1.bf16.xpose.msra.mxu0 0
        %2642 = vmatprep.subr.bf16.mxu0 0
        %2643 = vmatpush1.bf16.xpose.msra.mxu0 0
        %2644 = vmatprep.subr.bf16.mxu0 0
        %2645 = vmatpush1.bf16.xpose.msra.mxu0 0
        %2646 = vmatprep.subr.bf16.mxu0 0
        %2647 = vmatpush1.bf16.xpose.msra.mxu0 0
        %2648 = vmatprep.subr.bf16.mxu0 0
        %2649 = vmatpush1.bf16.xpose.msra.mxu0 0
        %2650 = vmatprep.subr.bf16.mxu0 0
        %2651 = vmatpush1.bf16.xpose.msra.mxu0 0
        %2652 = vmatprep.subr.bf16.mxu0 0
        %2653 = vmatpush1.bf16.xpose.msra.mxu0 0
        %2654 = vmatprep.subr.bf16.mxu0 0
        %2655 = vmatpush1.bf16.xpose.msra.mxu0 0
        %2656 = vmatprep.mubr.bf16.mxu0 0
        %2657 = vmatmul.mubr.bf16.gmra.mrb[0].mxu0 %v2003
        %v2658 = vpop.f32.mrb[0].mxu0
        %v2659 = vadd.f32 %v2619, %v2658
        %v2660 = vpop.f32.mrb[0].mxu0
        %v2661 = vpop.f32.mrb[0].mxu0
        %v2662 = vpop.f32.mrb[0].mxu0
        %2663 = vdwg.mxu0
        %v2664 = vld [vmem:[%s1405] sm:$0xf]
        %v2665 = vld [vmem:[%s1407] sm:$0x1]
        %v2667 = vlaneseq
        %v2668 = vshrl.u32 %v2667, 7
        %v2669 = vsub.s32 0, %v2668
        %v2670 = vrot.slane %v2665, %v2669
        %v2673 = vsel %vm678, %v2664, 0
        %2675 = vmatprep.subr.bf16.mxu0 0
        %2676 = vmatpush1.bf16.xpose.msra.mxu0 %v2673
        %2677 = vmatprep.subr.bf16.mxu0 0
        %2678 = vmatpush1.bf16.xpose.msra.mxu0 0
        %2679 = vmatprep.subr.bf16.mxu0 0
        %2680 = vmatpush1.bf16.xpose.msra.mxu0 0
        %2681 = vmatprep.subr.bf16.mxu0 0
        %2682 = vmatpush1.bf16.xpose.msra.mxu0 0
        %2683 = vmatprep.subr.bf16.mxu0 0
        %2684 = vmatpush1.bf16.xpose.msra.mxu0 0
        %2685 = vmatprep.subr.bf16.mxu0 0
        %2686 = vmatpush1.bf16.xpose.msra.mxu0 0
        %2687 = vmatprep.subr.bf16.mxu0 0
        %2688 = vmatpush1.bf16.xpose.msra.mxu0 0
        %2689 = vmatprep.subr.bf16.mxu0 0
        %2690 = vmatpush1.bf16.xpose.msra.mxu0 0
        %2691 = vmatprep.subr.bf16.mxu0 0
        %2692 = vmatpush1.bf16.xpose.msra.mxu0 0
        %2693 = vmatprep.subr.bf16.mxu0 0
        %2694 = vmatpush1.bf16.xpose.msra.mxu0 0
        %2695 = vmatprep.subr.bf16.mxu0 0
        %2696 = vmatpush1.bf16.xpose.msra.mxu0 0
        %2697 = vmatprep.subr.bf16.mxu0 0
        %2698 = vmatpush1.bf16.xpose.msra.mxu0 0
        %2699 = vmatprep.subr.bf16.mxu0 0
        %2700 = vmatpush1.bf16.xpose.msra.mxu0 0
        %2701 = vmatprep.subr.bf16.mxu0 0
        %2702 = vmatpush1.bf16.xpose.msra.mxu0 0
        %2703 = vmatprep.subr.bf16.mxu0 0
        %2704 = vmatpush1.bf16.xpose.msra.mxu0 0
        %2705 = vmatprep.subr.bf16.mxu0 0
        %2706 = vmatpush1.bf16.xpose.msra.mxu0 0
        %2707 = vmatprep.mubr.bf16.mxu0 0
        %2708 = vmatmul.mubr.bf16.gmra.mrb[0].mxu0 %v2003
        %v2709 = vpop.f32.mrb[0].mxu0
        %v2710 = vadd.f32 %v2670, %v2709
        %v2711 = vpop.f32.mrb[0].mxu0
        %v2712 = vpop.f32.mrb[0].mxu0
        %v2713 = vpop.f32.mrb[0].mxu0
        %2714 = vdwg.mxu0
        %v2715 = vld [vmem:[%s1458] sm:$0xf]
        %v2716 = vld [vmem:[%s1460] sm:$0x1]
        %v2718 = vlaneseq
        %v2719 = vshrl.u32 %v2718, 7
        %v2720 = vsub.s32 0, %v2719
        %v2721 = vrot.slane %v2716, %v2720
        %v2724 = vsel %vm678, %v2715, 0
        %2726 = vmatprep.subr.bf16.mxu0 0
        %2727 = vmatpush1.bf16.xpose.msra.mxu0 %v2724
        %2728 = vmatprep.subr.bf16.mxu0 0
        %2729 = vmatpush1.bf16.xpose.msra.mxu0 0
        %2730 = vmatprep.subr.bf16.mxu0 0
        %2731 = vmatpush1.bf16.xpose.msra.mxu0 0
        %2732 = vmatprep.subr.bf16.mxu0 0
        %2733 = vmatpush1.bf16.xpose.msra.mxu0 0
        %2734 = vmatprep.subr.bf16.mxu0 0
        %2735 = vmatpush1.bf16.xpose.msra.mxu0 0
        %2736 = vmatprep.subr.bf16.mxu0 0
        %2737 = vmatpush1.bf16.xpose.msra.mxu0 0
        %2738 = vmatprep.subr.bf16.mxu0 0
        %2739 = vmatpush1.bf16.xpose.msra.mxu0 0
        %2740 = vmatprep.subr.bf16.mxu0 0
        %2741 = vmatpush1.bf16.xpose.msra.mxu0 0
        %2742 = vmatprep.subr.bf16.mxu0 0
        %2743 = vmatpush1.bf16.xpose.msra.mxu0 0
        %2744 = vmatprep.subr.bf16.mxu0 0
        %2745 = vmatpush1.bf16.xpose.msra.mxu0 0
        %2746 = vmatprep.subr.bf16.mxu0 0
        %2747 = vmatpush1.bf16.xpose.msra.mxu0 0
        %2748 = vmatprep.subr.bf16.mxu0 0
        %2749 = vmatpush1.bf16.xpose.msra.mxu0 0
        %2750 = vmatprep.subr.bf16.mxu0 0
        %2751 = vmatpush1.bf16.xpose.msra.mxu0 0
        %2752 = vmatprep.subr.bf16.mxu0 0
        %2753 = vmatpush1.bf16.xpose.msra.mxu0 0
        %2754 = vmatprep.subr.bf16.mxu0 0
        %2755 = vmatpush1.bf16.xpose.msra.mxu0 0
        %2756 = vmatprep.subr.bf16.mxu0 0
        %2757 = vmatpush1.bf16.xpose.msra.mxu0 0
        %2758 = vmatprep.mubr.bf16.mxu0 0
        %2759 = vmatmul.mubr.bf16.gmra.mrb[0].mxu0 %v2003
        %v2760 = vpop.f32.mrb[0].mxu0
        %v2761 = vadd.f32 %v2721, %v2760
        %v2762 = vpop.f32.mrb[0].mxu0
        %v2763 = vpop.f32.mrb[0].mxu0
        %v2764 = vpop.f32.mrb[0].mxu0
        %2765 = vdwg.mxu0
        %v2766 = vpack.c.bf16 %v2659, %v2659
        %v2767 = vpack.c.bf16 %v2710, %v2710
        %v2769 = vsel %vm882, %v2766, 0
        %v2772 = vsel %vm882, %v2767, 0
        %2774 = vmatprep.subr.bf16.mxu0 0
        %2775 = vmatpush1.bf16.xpose.msra.mxu0 %v2772
        %2776 = vmatprep.subr.bf16.mxu0 0
        %2777 = vmatpush1.bf16.xpose.msra.mxu0 0
        %2778 = vmatprep.subr.bf16.mxu0 0
        %2779 = vmatpush1.bf16.xpose.msra.mxu0 0
        %2780 = vmatprep.subr.bf16.mxu0 0
        %2781 = vmatpush1.bf16.xpose.msra.mxu0 0
        %2782 = vmatprep.subr.bf16.mxu0 0
        %2783 = vmatpush1.bf16.xpose.msra.mxu0 0
        %2784 = vmatprep.subr.bf16.mxu0 0
        %2785 = vmatpush1.bf16.xpose.msra.mxu0 0
        %2786 = vmatprep.subr.bf16.mxu0 0
        %2787 = vmatpush1.bf16.xpose.msra.mxu0 0
        %2788 = vmatprep.subr.bf16.mxu0 0
        %2789 = vmatpush1.bf16.xpose.msra.mxu0 0
        %2790 = vmatprep.subr.bf16.mxu0 0
        %2791 = vmatpush1.bf16.xpose.msra.mxu0 0
        %2792 = vmatprep.subr.bf16.mxu0 0
        %2793 = vmatpush1.bf16.xpose.msra.mxu0 0
        %2794 = vmatprep.subr.bf16.mxu0 0
        %2795 = vmatpush1.bf16.xpose.msra.mxu0 0
        %2796 = vmatprep.subr.bf16.mxu0 0
        %2797 = vmatpush1.bf16.xpose.msra.mxu0 0
        %2798 = vmatprep.subr.bf16.mxu0 0
        %2799 = vmatpush1.bf16.xpose.msra.mxu0 0
        %2800 = vmatprep.subr.bf16.mxu0 0
        %2801 = vmatpush1.bf16.xpose.msra.mxu0 0
        %2802 = vmatprep.subr.bf16.mxu0 0
        %2803 = vmatpush1.bf16.xpose.msra.mxu0 0
        %2804 = vmatprep.subr.bf16.mxu0 0
        %2805 = vmatpush1.bf16.xpose.msra.mxu0 0
        %2806 = vmatprep.mubr.bf16.mxu0 0
        %2807 = vmatmul.mubr.bf16.gmra.mrb[0].mxu0 %v2769
        %v2808 = vpop.f32.mrb[0].mxu0
        %v2809 = vadd.f32 0.0, %v2808
        %v2810 = vpop.f32.mrb[0].mxu0
        %v2811 = vpop.f32.mrb[0].mxu0
        %v2812 = vpop.f32.mrb[0].mxu0
        %2813 = vdwg.mxu0
        %v2814 = vsel %vm882, %v2809, -inf
        %2815 = vmax.xlane.f32.xlu0 %v2814
        %v2816 = vpop.xlane.xlu0 %2815
        %v2817 = vsub.f32 %v2809, %v2816
        %v2818 = vmul.f32 %v2817, 1.442695
        %v2819 = vpow.pop %v2818
        %v2820 = vsel %vm882, %v2819, 0.0
        %2821 = vadd.xlane.f32.xlu0 %v2820
        %v2822 = vpop.xlane.xlu0 %2821
        %v2823 = vrcp.pop %v2822
        %v2824 = vmul.f32 %v2819, %v2823
        %v2825 = vpack.c.bf16 %v2824, %v2824
        %v2826 = vpack.c.bf16 %v2761, %v2761
        %v2828 = vsel %vm882, %v2825, 0
        %v2831 = vsel %vm945, %v2826, 0
        %2833 = vmatprep.subr.bf16.mxu0 0
        %2834 = vmatpush1.bf16.msra.mxu0 %v2831
        %2835 = vmatprep.subr.bf16.mxu0 0
        %2836 = vmatpush1.bf16.msra.mxu0 0
        %2837 = vmatprep.subr.bf16.mxu0 0
        %2838 = vmatpush1.bf16.msra.mxu0 0
        %2839 = vmatprep.subr.bf16.mxu0 0
        %2840 = vmatpush1.bf16.msra.mxu0 0
        %2841 = vmatprep.subr.bf16.mxu0 0
        %2842 = vmatpush1.bf16.msra.mxu0 0
        %2843 = vmatprep.subr.bf16.mxu0 0
        %2844 = vmatpush1.bf16.msra.mxu0 0
        %2845 = vmatprep.subr.bf16.mxu0 0
        %2846 = vmatpush1.bf16.msra.mxu0 0
        %2847 = vmatprep.subr.bf16.mxu0 0
        %2848 = vmatpush1.bf16.msra.mxu0 0
        %2849 = vmatprep.subr.bf16.mxu0 0
        %2850 = vmatpush1.bf16.msra.mxu0 0
        %2851 = vmatprep.subr.bf16.mxu0 0
        %2852 = vmatpush1.bf16.msra.mxu0 0
        %2853 = vmatprep.subr.bf16.mxu0 0
        %2854 = vmatpush1.bf16.msra.mxu0 0
        %2855 = vmatprep.subr.bf16.mxu0 0
        %2856 = vmatpush1.bf16.msra.mxu0 0
        %2857 = vmatprep.subr.bf16.mxu0 0
        %2858 = vmatpush1.bf16.msra.mxu0 0
        %2859 = vmatprep.subr.bf16.mxu0 0
        %2860 = vmatpush1.bf16.msra.mxu0 0
        %2861 = vmatprep.subr.bf16.mxu0 0
        %2862 = vmatpush1.bf16.msra.mxu0 0
        %2863 = vmatprep.subr.bf16.mxu0 0
        %2864 = vmatpush1.bf16.msra.mxu0 0
        %2865 = vmatprep.mubr.bf16.mxu0 0
        %2866 = vmatmul.mubr.bf16.gmra.mrb[0].mxu0 %v2828
        %v2867 = vpop.f32.mrb[0].mxu0
        %v2868 = vadd.f32 0.0, %v2867
        %v2869 = vpop.f32.mrb[0].mxu0
        %v2870 = vpop.f32.mrb[0].mxu0
        %v2871 = vpop.f32.mrb[0].mxu0
        %2872 = vdwg.mxu0
        %v2873 = vpack.c.bf16 %v2868, %v2868
        %v2874 = vld [vmem:[%s1619] sm:$0xf]
        %v2876 = vsel %vm882, %v2873, 0
        %v2879 = vsel %vm945, %v2874, 0
        %2881 = vmatprep.subr.bf16.mxu0 0
        %2882 = vmatpush1.bf16.msra.mxu0 %v2879
        %2883 = vmatprep.subr.bf16.mxu0 0
        %2884 = vmatpush1.bf16.msra.mxu0 0
        %2885 = vmatprep.subr.bf16.mxu0 0
        %2886 = vmatpush1.bf16.msra.mxu0 0
        %2887 = vmatprep.subr.bf16.mxu0 0
        %2888 = vmatpush1.bf16.msra.mxu0 0
        %2889 = vmatprep.subr.bf16.mxu0 0
        %2890 = vmatpush1.bf16.msra.mxu0 0
        %2891 = vmatprep.subr.bf16.mxu0 0
        %2892 = vmatpush1.bf16.msra.mxu0 0
        %2893 = vmatprep.subr.bf16.mxu0 0
        %2894 = vmatpush1.bf16.msra.mxu0 0
        %2895 = vmatprep.subr.bf16.mxu0 0
        %2896 = vmatpush1.bf16.msra.mxu0 0
        %2897 = vmatprep.subr.bf16.mxu0 0
        %2898 = vmatpush1.bf16.msra.mxu0 0
        %2899 = vmatprep.subr.bf16.mxu0 0
        %2900 = vmatpush1.bf16.msra.mxu0 0
        %2901 = vmatprep.subr.bf16.mxu0 0
        %2902 = vmatpush1.bf16.msra.mxu0 0
        %2903 = vmatprep.subr.bf16.mxu0 0
        %2904 = vmatpush1.bf16.msra.mxu0 0
        %2905 = vmatprep.subr.bf16.mxu0 0
        %2906 = vmatpush1.bf16.msra.mxu0 0
        %2907 = vmatprep.subr.bf16.mxu0 0
        %2908 = vmatpush1.bf16.msra.mxu0 0
        %2909 = vmatprep.subr.bf16.mxu0 0
        %2910 = vmatpush1.bf16.msra.mxu0 0
        %2911 = vmatprep.subr.bf16.mxu0 0
        %2912 = vmatpush1.bf16.msra.mxu0 0
        %2913 = vmatprep.mubr.bf16.mxu0 0
        %2914 = vmatmul.mubr.bf16.gmra.mrb[0].mxu0 %v2876
        %v2915 = vpop.f32.mrb[0].mxu0
        %v2916 = vadd.f32 0.0, %v2915
        %v2917 = vpop.f32.mrb[0].mxu0
        %v2918 = vpop.f32.mrb[0].mxu0
        %v2919 = vpop.f32.mrb[0].mxu0
        %2920 = vdwg.mxu0
        %v2921 = vadd.f32 %v2608, %v2916
        %v2922 = vld [vmem:[%s1668] sm:$0xf]
        %v2923 = vld [vmem:[%s1670] sm:$0x1]
        %v2925 = vlaneseq
        %v2926 = vshrl.u32 %v2925, 7
        %v2927 = vsub.s32 0, %v2926
        %v2928 = vrot.slane %v2923, %v2927
        %v2931 = vsel %vm678, %v2922, 0
        %2933 = vmatprep.subr.bf16.mxu0 0
        %2934 = vmatpush1.bf16.xpose.msra.mxu0 %v2931
        %2935 = vmatprep.subr.bf16.mxu0 0
        %2936 = vmatpush1.bf16.xpose.msra.mxu0 0
        %2937 = vmatprep.subr.bf16.mxu0 0
        %2938 = vmatpush1.bf16.xpose.msra.mxu0 0
        %2939 = vmatprep.subr.bf16.mxu0 0
        %2940 = vmatpush1.bf16.xpose.msra.mxu0 0
        %2941 = vmatprep.subr.bf16.mxu0 0
        %2942 = vmatpush1.bf16.xpose.msra.mxu0 0
        %2943 = vmatprep.subr.bf16.mxu0 0
        %2944 = vmatpush1.bf16.xpose.msra.mxu0 0
        %2945 = vmatprep.subr.bf16.mxu0 0
        %2946 = vmatpush1.bf16.xpose.msra.mxu0 0
        %2947 = vmatprep.subr.bf16.mxu0 0
        %2948 = vmatpush1.bf16.xpose.msra.mxu0 0
        %2949 = vmatprep.subr.bf16.mxu0 0
        %2950 = vmatpush1.bf16.xpose.msra.mxu0 0
        %2951 = vmatprep.subr.bf16.mxu0 0
        %2952 = vmatpush1.bf16.xpose.msra.mxu0 0
        %2953 = vmatprep.subr.bf16.mxu0 0
        %2954 = vmatpush1.bf16.xpose.msra.mxu0 0
        %2955 = vmatprep.subr.bf16.mxu0 0
        %2956 = vmatpush1.bf16.xpose.msra.mxu0 0
        %2957 = vmatprep.subr.bf16.mxu0 0
        %2958 = vmatpush1.bf16.xpose.msra.mxu0 0
        %2959 = vmatprep.subr.bf16.mxu0 0
        %2960 = vmatpush1.bf16.xpose.msra.mxu0 0
        %2961 = vmatprep.subr.bf16.mxu0 0
        %2962 = vmatpush1.bf16.xpose.msra.mxu0 0
        %2963 = vmatprep.subr.bf16.mxu0 0
        %2964 = vmatpush1.bf16.xpose.msra.mxu0 0
        %2965 = vmatprep.mubr.bf16.mxu0 0
        %2966 = vmatmul.mubr.bf16.gmra.mrb[0].mxu0 %v2003
        %v2967 = vpop.f32.mrb[0].mxu0
        %v2968 = vadd.f32 %v2928, %v2967
        %v2969 = vpop.f32.mrb[0].mxu0
        %v2970 = vpop.f32.mrb[0].mxu0
        %v2971 = vpop.f32.mrb[0].mxu0
        %2972 = vdwg.mxu0
        %v2973 = vld [vmem:[%s1721] sm:$0xf]
        %v2974 = vld [vmem:[%s1723] sm:$0x1]
        %v2976 = vlaneseq
        %v2977 = vshrl.u32 %v2976, 7
        %v2978 = vsub.s32 0, %v2977
        %v2979 = vrot.slane %v2974, %v2978
        %v2982 = vsel %vm678, %v2973, 0
        %2984 = vmatprep.subr.bf16.mxu0 0
        %2985 = vmatpush1.bf16.xpose.msra.mxu0 %v2982
        %2986 = vmatprep.subr.bf16.mxu0 0
        %2987 = vmatpush1.bf16.xpose.msra.mxu0 0
        %2988 = vmatprep.subr.bf16.mxu0 0
        %2989 = vmatpush1.bf16.xpose.msra.mxu0 0
        %2990 = vmatprep.subr.bf16.mxu0 0
        %2991 = vmatpush1.bf16.xpose.msra.mxu0 0
        %2992 = vmatprep.subr.bf16.mxu0 0
        %2993 = vmatpush1.bf16.xpose.msra.mxu0 0
        %2994 = vmatprep.subr.bf16.mxu0 0
        %2995 = vmatpush1.bf16.xpose.msra.mxu0 0
        %2996 = vmatprep.subr.bf16.mxu0 0
        %2997 = vmatpush1.bf16.xpose.msra.mxu0 0
        %2998 = vmatprep.subr.bf16.mxu0 0
        %2999 = vmatpush1.bf16.xpose.msra.mxu0 0
        %3000 = vmatprep.subr.bf16.mxu0 0
        %3001 = vmatpush1.bf16.xpose.msra.mxu0 0
        %3002 = vmatprep.subr.bf16.mxu0 0
        %3003 = vmatpush1.bf16.xpose.msra.mxu0 0
        %3004 = vmatprep.subr.bf16.mxu0 0
        %3005 = vmatpush1.bf16.xpose.msra.mxu0 0
        %3006 = vmatprep.subr.bf16.mxu0 0
        %3007 = vmatpush1.bf16.xpose.msra.mxu0 0
        %3008 = vmatprep.subr.bf16.mxu0 0
        %3009 = vmatpush1.bf16.xpose.msra.mxu0 0
        %3010 = vmatprep.subr.bf16.mxu0 0
        %3011 = vmatpush1.bf16.xpose.msra.mxu0 0
        %3012 = vmatprep.subr.bf16.mxu0 0
        %3013 = vmatpush1.bf16.xpose.msra.mxu0 0
        %3014 = vmatprep.subr.bf16.mxu0 0
        %3015 = vmatpush1.bf16.xpose.msra.mxu0 0
        %3016 = vmatprep.mubr.bf16.mxu0 0
        %3017 = vmatmul.mubr.bf16.gmra.mrb[0].mxu0 %v2003
        %v3018 = vpop.f32.mrb[0].mxu0
        %v3019 = vadd.f32 %v2979, %v3018
        %v3020 = vpop.f32.mrb[0].mxu0
        %v3021 = vpop.f32.mrb[0].mxu0
        %v3022 = vpop.f32.mrb[0].mxu0
        %3023 = vdwg.mxu0
        %v3024 = vld [vmem:[%s1774] sm:$0xf]
        %v3025 = vld [vmem:[%s1776] sm:$0x1]
        %v3027 = vlaneseq
        %v3028 = vshrl.u32 %v3027, 7
        %v3029 = vsub.s32 0, %v3028
        %v3030 = vrot.slane %v3025, %v3029
        %v3033 = vsel %vm678, %v3024, 0
        %3035 = vmatprep.subr.bf16.mxu0 0
        %3036 = vmatpush1.bf16.xpose.msra.mxu0 %v3033
        %3037 = vmatprep.subr.bf16.mxu0 0
        %3038 = vmatpush1.bf16.xpose.msra.mxu0 0
        %3039 = vmatprep.subr.bf16.mxu0 0
        %3040 = vmatpush1.bf16.xpose.msra.mxu0 0
        %3041 = vmatprep.subr.bf16.mxu0 0
        %3042 = vmatpush1.bf16.xpose.msra.mxu0 0
        %3043 = vmatprep.subr.bf16.mxu0 0
        %3044 = vmatpush1.bf16.xpose.msra.mxu0 0
        %3045 = vmatprep.subr.bf16.mxu0 0
        %3046 = vmatpush1.bf16.xpose.msra.mxu0 0
        %3047 = vmatprep.subr.bf16.mxu0 0
        %3048 = vmatpush1.bf16.xpose.msra.mxu0 0
        %3049 = vmatprep.subr.bf16.mxu0 0
        %3050 = vmatpush1.bf16.xpose.msra.mxu0 0
        %3051 = vmatprep.subr.bf16.mxu0 0
        %3052 = vmatpush1.bf16.xpose.msra.mxu0 0
        %3053 = vmatprep.subr.bf16.mxu0 0
        %3054 = vmatpush1.bf16.xpose.msra.mxu0 0
        %3055 = vmatprep.subr.bf16.mxu0 0
        %3056 = vmatpush1.bf16.xpose.msra.mxu0 0
        %3057 = vmatprep.subr.bf16.mxu0 0
        %3058 = vmatpush1.bf16.xpose.msra.mxu0 0
        %3059 = vmatprep.subr.bf16.mxu0 0
        %3060 = vmatpush1.bf16.xpose.msra.mxu0 0
        %3061 = vmatprep.subr.bf16.mxu0 0
        %3062 = vmatpush1.bf16.xpose.msra.mxu0 0
        %3063 = vmatprep.subr.bf16.mxu0 0
        %3064 = vmatpush1.bf16.xpose.msra.mxu0 0
        %3065 = vmatprep.subr.bf16.mxu0 0
        %3066 = vmatpush1.bf16.xpose.msra.mxu0 0
        %3067 = vmatprep.mubr.bf16.mxu0 0
        %3068 = vmatmul.mubr.bf16.gmra.mrb[0].mxu0 %v2003
        %v3069 = vpop.f32.mrb[0].mxu0
        %v3070 = vadd.f32 %v3030, %v3069
        %v3071 = vpop.f32.mrb[0].mxu0
        %v3072 = vpop.f32.mrb[0].mxu0
        %v3073 = vpop.f32.mrb[0].mxu0
        %3074 = vdwg.mxu0
        %v3075 = vpack.c.bf16 %v2968, %v2968
        %v3076 = vpack.c.bf16 %v3019, %v3019
        %v3078 = vsel %vm882, %v3075, 0
        %v3081 = vsel %vm882, %v3076, 0
        %3083 = vmatprep.subr.bf16.mxu0 0
        %3084 = vmatpush1.bf16.xpose.msra.mxu0 %v3081
        %3085 = vmatprep.subr.bf16.mxu0 0
        %3086 = vmatpush1.bf16.xpose.msra.mxu0 0
        %3087 = vmatprep.subr.bf16.mxu0 0
        %3088 = vmatpush1.bf16.xpose.msra.mxu0 0
        %3089 = vmatprep.subr.bf16.mxu0 0
        %3090 = vmatpush1.bf16.xpose.msra.mxu0 0
        %3091 = vmatprep.subr.bf16.mxu0 0
        %3092 = vmatpush1.bf16.xpose.msra.mxu0 0
        %3093 = vmatprep.subr.bf16.mxu0 0
        %3094 = vmatpush1.bf16.xpose.msra.mxu0 0
        %3095 = vmatprep.subr.bf16.mxu0 0
        %3096 = vmatpush1.bf16.xpose.msra.mxu0 0
        %3097 = vmatprep.subr.bf16.mxu0 0
        %3098 = vmatpush1.bf16.xpose.msra.mxu0 0
        %3099 = vmatprep.subr.bf16.mxu0 0
        %3100 = vmatpush1.bf16.xpose.msra.mxu0 0
        %3101 = vmatprep.subr.bf16.mxu0 0
        %3102 = vmatpush1.bf16.xpose.msra.mxu0 0
        %3103 = vmatprep.subr.bf16.mxu0 0
        %3104 = vmatpush1.bf16.xpose.msra.mxu0 0
        %3105 = vmatprep.subr.bf16.mxu0 0
        %3106 = vmatpush1.bf16.xpose.msra.mxu0 0
        %3107 = vmatprep.subr.bf16.mxu0 0
        %3108 = vmatpush1.bf16.xpose.msra.mxu0 0
        %3109 = vmatprep.subr.bf16.mxu0 0
        %3110 = vmatpush1.bf16.xpose.msra.mxu0 0
        %3111 = vmatprep.subr.bf16.mxu0 0
        %3112 = vmatpush1.bf16.xpose.msra.mxu0 0
        %3113 = vmatprep.subr.bf16.mxu0 0
        %3114 = vmatpush1.bf16.xpose.msra.mxu0 0
        %3115 = vmatprep.mubr.bf16.mxu0 0
        %3116 = vmatmul.mubr.bf16.gmra.mrb[0].mxu0 %v3078
        %v3117 = vpop.f32.mrb[0].mxu0
        %v3118 = vadd.f32 0.0, %v3117
        %v3119 = vpop.f32.mrb[0].mxu0
        %v3120 = vpop.f32.mrb[0].mxu0
        %v3121 = vpop.f32.mrb[0].mxu0
        %3122 = vdwg.mxu0
        %v3123 = vsel %vm882, %v3118, -inf
        %3124 = vmax.xlane.f32.xlu0 %v3123
        %v3125 = vpop.xlane.xlu0 %3124
        %v3126 = vsub.f32 %v3118, %v3125
        %v3127 = vmul.f32 %v3126, 1.442695
        %v3128 = vpow.pop %v3127
        %v3129 = vsel %vm882, %v3128, 0.0
        %3130 = vadd.xlane.f32.xlu0 %v3129
        %v3131 = vpop.xlane.xlu0 %3130
        %v3132 = vrcp.pop %v3131
        %v3133 = vmul.f32 %v3128, %v3132
        %v3134 = vpack.c.bf16 %v3133, %v3133
        %v3135 = vpack.c.bf16 %v3070, %v3070
        %v3137 = vsel %vm882, %v3134, 0
        %v3140 = vsel %vm945, %v3135, 0
        %3142 = vmatprep.subr.bf16.mxu0 0
        %3143 = vmatpush1.bf16.msra.mxu0 %v3140
        %3144 = vmatprep.subr.bf16.mxu0 0
        %3145 = vmatpush1.bf16.msra.mxu0 0
        %3146 = vmatprep.subr.bf16.mxu0 0
        %3147 = vmatpush1.bf16.msra.mxu0 0
        %3148 = vmatprep.subr.bf16.mxu0 0
        %3149 = vmatpush1.bf16.msra.mxu0 0
        %3150 = vmatprep.subr.bf16.mxu0 0
        %3151 = vmatpush1.bf16.msra.mxu0 0
        %3152 = vmatprep.subr.bf16.mxu0 0
        %3153 = vmatpush1.bf16.msra.mxu0 0
        %3154 = vmatprep.subr.bf16.mxu0 0
        %3155 = vmatpush1.bf16.msra.mxu0 0
        %3156 = vmatprep.subr.bf16.mxu0 0
        %3157 = vmatpush1.bf16.msra.mxu0 0
        %3158 = vmatprep.subr.bf16.mxu0 0
        %3159 = vmatpush1.bf16.msra.mxu0 0
        %3160 = vmatprep.subr.bf16.mxu0 0
        %3161 = vmatpush1.bf16.msra.mxu0 0
        %3162 = vmatprep.subr.bf16.mxu0 0
        %3163 = vmatpush1.bf16.msra.mxu0 0
        %3164 = vmatprep.subr.bf16.mxu0 0
        %3165 = vmatpush1.bf16.msra.mxu0 0
        %3166 = vmatprep.subr.bf16.mxu0 0
        %3167 = vmatpush1.bf16.msra.mxu0 0
        %3168 = vmatprep.subr.bf16.mxu0 0
        %3169 = vmatpush1.bf16.msra.mxu0 0
        %3170 = vmatprep.subr.bf16.mxu0 0
        %3171 = vmatpush1.bf16.msra.mxu0 0
        %3172 = vmatprep.subr.bf16.mxu0 0
        %3173 = vmatpush1.bf16.msra.mxu0 0
        %3174 = vmatprep.mubr.bf16.mxu0 0
        %3175 = vmatmul.mubr.bf16.gmra.mrb[0].mxu0 %v3137
        %v3176 = vpop.f32.mrb[0].mxu0
        %v3177 = vadd.f32 0.0, %v3176
        %v3178 = vpop.f32.mrb[0].mxu0
        %v3179 = vpop.f32.mrb[0].mxu0
        %v3180 = vpop.f32.mrb[0].mxu0
        %3181 = vdwg.mxu0
        %v3182 = vpack.c.bf16 %v3177, %v3177
        %v3183 = vld [vmem:[%s1935] sm:$0xf]
        %v3185 = vsel %vm882, %v3182, 0
        %v3188 = vsel %vm945, %v3183, 0
        %3190 = vmatprep.subr.bf16.mxu0 0
        %3191 = vmatpush1.bf16.msra.mxu0 %v3188
        %3192 = vmatprep.subr.bf16.mxu0 0
        %3193 = vmatpush1.bf16.msra.mxu0 0
        %3194 = vmatprep.subr.bf16.mxu0 0
        %3195 = vmatpush1.bf16.msra.mxu0 0
        %3196 = vmatprep.subr.bf16.mxu0 0
        %3197 = vmatpush1.bf16.msra.mxu0 0
        %3198 = vmatprep.subr.bf16.mxu0 0
        %3199 = vmatpush1.bf16.msra.mxu0 0
        %3200 = vmatprep.subr.bf16.mxu0 0
        %3201 = vmatpush1.bf16.msra.mxu0 0
        %3202 = vmatprep.subr.bf16.mxu0 0
        %3203 = vmatpush1.bf16.msra.mxu0 0
        %3204 = vmatprep.subr.bf16.mxu0 0
        %3205 = vmatpush1.bf16.msra.mxu0 0
        %3206 = vmatprep.subr.bf16.mxu0 0
        %3207 = vmatpush1.bf16.msra.mxu0 0
        %3208 = vmatprep.subr.bf16.mxu0 0
        %3209 = vmatpush1.bf16.msra.mxu0 0
        %3210 = vmatprep.subr.bf16.mxu0 0
        %3211 = vmatpush1.bf16.msra.mxu0 0
        %3212 = vmatprep.subr.bf16.mxu0 0
        %3213 = vmatpush1.bf16.msra.mxu0 0
        %3214 = vmatprep.subr.bf16.mxu0 0
        %3215 = vmatpush1.bf16.msra.mxu0 0
        %3216 = vmatprep.subr.bf16.mxu0 0
        %3217 = vmatpush1.bf16.msra.mxu0 0
        %3218 = vmatprep.subr.bf16.mxu0 0
        %3219 = vmatpush1.bf16.msra.mxu0 0
        %3220 = vmatprep.subr.bf16.mxu0 0
        %3221 = vmatpush1.bf16.msra.mxu0 0
        %3222 = vmatprep.mubr.bf16.mxu0 0
        %3223 = vmatmul.mubr.bf16.gmra.mrb[0].mxu0 %v3185
        %v3224 = vpop.f32.mrb[0].mxu0
        %v3225 = vadd.f32 0.0, %v3224
        %v3226 = vpop.f32.mrb[0].mxu0
        %v3227 = vpop.f32.mrb[0].mxu0
        %v3228 = vpop.f32.mrb[0].mxu0
        %3229 = vdwg.mxu0
        %v3230 = vadd.f32 %v2921, %v3225
        %v3231 = vadd.f32 %v675, %v3230
        %v3232 = vld [vmem:[#allocation14] sm:$0x1]
        %v3234 = vlaneseq
        %v3235 = vshrl.u32 %v3234, 7
        %v3236 = vsub.s32 0, %v3235
        %v3237 = vrot.slane %v3232, %v3236
        %v3239 = vadd.f32 %v3231, %v3237
        %s3240 = scalar_lea.vmem [#allocation2], 8
        %3241 = vst.msk [vmem:[%s3240] sm:$0xff] %vm678, %v3239
        %v3242 = vld [vmem:[#allocation2] sm:$0xff]
        %v3243 = vld [vmem:[#allocation2 + $0x8] sm:$0xff]
        %v3244 = vld [vmem:[#allocation15] sm:$0x1]
        %v3245 = vld [vmem:[#allocation17] sm:$0x1]
        %v3246 = vsel %vm678, %v3242, 0.0
        %3247 = vadd.xlane.f32.xlu0 %v3246
        %v3248 = vpop.xlane.xlu0 %3247
        %v3249 = vsel %vm678, %v3243, 0.0
        %3250 = vadd.xlane.f32.xlu0 %v3249
        %v3251 = vpop.xlane.xlu0 %3250
        %v3252 = vmul.f32 %v3248, %v685
        %v3253 = vmul.f32 %v3251, %v685
        %v3254 = vsub.f32 %v3242, %v3252
        %v3255 = vsub.f32 %v3243, %v3253
        %v3256 = vmul.f32 %v3254, %v3254
        %v3257 = vmul.f32 %v3255, %v3255
        %v3258 = vsel %vm678, %v3256, 0.0
        %3259 = vadd.xlane.f32.xlu0 %v3258
        %v3260 = vpop.xlane.xlu0 %3259
        %v3261 = vsel %vm678, %v3257, 0.0
        %3262 = vadd.xlane.f32.xlu0 %v3261
        %v3263 = vpop.xlane.xlu0 %3262
        %v3264 = vmul.f32 %v3260, %v685
        %v3265 = vmul.f32 %v3263, %v685
        %v3266 = vadd.f32 %v3264, 1e-05
        %v3267 = vadd.f32 %v3265, 1e-05
        %v3268 = vrsqrt.pop %v3266
        %v3269 = vrsqrt.pop %v3267
        %v3270 = vmul.f32 %v3254, %v3268
        %v3271 = vmul.f32 %v3255, %v3269
        %v3273 = vlaneseq
        %v3274 = vshrl.u32 %v3273, 7
        %v3275 = vsub.s32 0, %v3274
        %v3276 = vrot.slane %v3244, %v3275
        %v3278 = vmul.f32 %v3270, %v3276
        %v3279 = vmul.f32 %v3271, %v3276
        %v3281 = vlaneseq
        %v3282 = vshrl.u32 %v3281, 7
        %v3283 = vsub.s32 0, %v3282
        %v3284 = vrot.slane %v3245, %v3283
        %v3286 = vadd.f32 %v3278, %v3284
        %v3287 = vadd.f32 %v3279, %v3284
        %v3288 = vpack.c.bf16 %v3287, %v3286
        %v3289 = vld [vmem:[%s13] sm:$0xf]
        %v3290 = vld [vmem:[%s13 + $0x4] sm:$0xf]
        %v3291 = vld [vmem:[%s13 + $0x8] sm:$0xf]
        %v3292 = vld [vmem:[%s13 + $0xc] sm:$0xf]
        %v3293 = vld [vmem:[%s14] sm:$0x1]
        %v3295 = vlaneseq
        %v3296 = vshrl.u32 %v3295, 7
        %v3297 = vsub.s32 0, %v3296
        %v3298 = vrot.slane %v3293, %v3297
        %v3304 = vunpack.c.l.b16 %v3289
        %v3305 = vunpack.c.l.b16 %v3290
        %v3306 = vunpack.c.l.b16 %v3291
        %v3307 = vunpack.c.l.b16 %v3292
        %v3308 = vpack.c.b16 %v3305, %v3304
        %v3309 = vpack.c.b16 %v3307, %v3306
        %v3313 = vsel %vm678, %v3288, 0
        %3315 = vmatprep.subr.bf16.mxu0 0
        %3316 = vmatpush1.bf16.msra.mxu0 %v3308
        %3317 = vmatprep.subr.bf16.mxu0 0
        %3318 = vmatpush1.bf16.msra.mxu0 %v3309
        %3319 = vmatprep.subr.bf16.mxu0 0
        %3320 = vmatpush1.bf16.msra.mxu0 0
        %3321 = vmatprep.subr.bf16.mxu0 0
        %3322 = vmatpush1.bf16.msra.mxu0 0
        %3323 = vmatprep.subr.bf16.mxu0 0
        %3324 = vmatpush1.bf16.msra.mxu0 0
        %3325 = vmatprep.subr.bf16.mxu0 0
        %3326 = vmatpush1.bf16.msra.mxu0 0
        %3327 = vmatprep.subr.bf16.mxu0 0
        %3328 = vmatpush1.bf16.msra.mxu0 0
        %3329 = vmatprep.subr.bf16.mxu0 0
        %3330 = vmatpush1.bf16.msra.mxu0 0
        %3331 = vmatprep.subr.bf16.mxu0 0
        %3332 = vmatpush1.bf16.msra.mxu0 0
        %3333 = vmatprep.subr.bf16.mxu0 0
        %3334 = vmatpush1.bf16.msra.mxu0 0
        %3335 = vmatprep.subr.bf16.mxu0 0
        %3336 = vmatpush1.bf16.msra.mxu0 0
        %3337 = vmatprep.subr.bf16.mxu0 0
        %3338 = vmatpush1.bf16.msra.mxu0 0
        %3339 = vmatprep.subr.bf16.mxu0 0
        %3340 = vmatpush1.bf16.msra.mxu0 0
        %3341 = vmatprep.subr.bf16.mxu0 0
        %3342 = vmatpush1.bf16.msra.mxu0 0
        %3343 = vmatprep.subr.bf16.mxu0 0
        %3344 = vmatpush1.bf16.msra.mxu0 0
        %3345 = vmatprep.subr.bf16.mxu0 0
        %3346 = vmatpush1.bf16.msra.mxu0 0
        %3347 = vmatprep.mubr.bf16.mxu0 0
        %3348 = vmatmul.mubr.bf16.gmra.mrb[0].mxu0 %v3313
        %v3349 = vpop.f32.mrb[0].mxu0
        %v3350 = vadd.f32 %v3298, %v3349
        %v3351 = vpop.f32.mrb[0].mxu0
        %v3352 = vpop.f32.mrb[0].mxu0
        %v3353 = vadd.f32 %v3298, %v3352
        %v3354 = vpop.f32.mrb[0].mxu0
        %3355 = vdwg.mxu0
        %v3356 = vmul.f32 %v3350, 0.5
        %v3357 = vmul.f32 %v3353, 0.5
        %v3358 = vmul.f32 %v3350, 0.70710677
        %v3359 = vmul.f32 %v3353, 0.70710677
        %v3360 = verf.f32.pop %v3358
        %v3361 = verf.f32.pop %v3359
        %v3362 = vadd.f32 %v3360, 1.0
        %v3363 = vadd.f32 %v3361, 1.0
        %v3364 = vmul.f32 %v3356, %v3362
        %v3365 = vmul.f32 %v3357, %v3363
        %v3366 = vpack.c.bf16 %v3365, %v3364
        %v3367 = vld [vmem:[%s15] sm:$0xf]
        %v3368 = vld [vmem:[%s15 + $0x4] sm:$0xf]
        %v3369 = vld [vmem:[%s15 + $0x8] sm:$0xf]
        %v3370 = vld [vmem:[%s15 + $0xc] sm:$0xf]
        %v3371 = vld [vmem:[%s15 + $0x10] sm:$0xf]
        %v3372 = vld [vmem:[%s15 + $0x14] sm:$0xf]
        %v3373 = vld [vmem:[%s15 + $0x18] sm:$0xf]
        %v3374 = vld [vmem:[%s15 + $0x1c] sm:$0xf]
        %v3375 = vld [vmem:[%s16] sm:$0x1]
        %v3377 = vlaneseq
        %v3378 = vshrl.u32 %v3377, 7
        %v3379 = vsub.s32 0, %v3378
        %v3380 = vrot.slane %v3375, %v3379
        %v3390 = vunpack.c.l.b16 %v3367
        %v3391 = vunpack.c.l.b16 %v3368
        %v3392 = vunpack.c.l.b16 %v3369
        %v3393 = vunpack.c.l.b16 %v3370
        %v3394 = vunpack.c.l.b16 %v3371
        %v3395 = vunpack.c.l.b16 %v3372
        %v3396 = vunpack.c.l.b16 %v3373
        %v3397 = vunpack.c.l.b16 %v3374
        %v3398 = vpack.c.b16 %v3391, %v3390
        %v3399 = vpack.c.b16 %v3393, %v3392
        %v3400 = vpack.c.b16 %v3395, %v3394
        %v3401 = vpack.c.b16 %v3397, %v3396
        %vm3406 = vcmask 523264
        %v3408 = vsel %vm3406, %v3366, 0
        %3410 = vmatprep.subr.bf16.mxu0 0
        %3411 = vmatpush1.bf16.msra.mxu0 %v3398
        %3412 = vmatprep.subr.bf16.mxu0 0
        %3413 = vmatpush1.bf16.msra.mxu0 %v3399
        %3414 = vmatprep.subr.bf16.mxu0 0
        %3415 = vmatpush1.bf16.msra.mxu0 %v3400
        %3416 = vmatprep.subr.bf16.mxu0 0
        %3417 = vmatpush1.bf16.msra.mxu0 %v3401
        %3418 = vmatprep.subr.bf16.mxu0 0
        %3419 = vmatpush1.bf16.msra.mxu0 0
        %3420 = vmatprep.subr.bf16.mxu0 0
        %3421 = vmatpush1.bf16.msra.mxu0 0
        %3422 = vmatprep.subr.bf16.mxu0 0
        %3423 = vmatpush1.bf16.msra.mxu0 0
        %3424 = vmatprep.subr.bf16.mxu0 0
        %3425 = vmatpush1.bf16.msra.mxu0 0
        %3426 = vmatprep.subr.bf16.mxu0 0
        %3427 = vmatpush1.bf16.msra.mxu0 0
        %3428 = vmatprep.subr.bf16.mxu0 0
        %3429 = vmatpush1.bf16.msra.mxu0 0
        %3430 = vmatprep.subr.bf16.mxu0 0
        %3431 = vmatpush1.bf16.msra.mxu0 0
        %3432 = vmatprep.subr.bf16.mxu0 0
        %3433 = vmatpush1.bf16.msra.mxu0 0
        %3434 = vmatprep.subr.bf16.mxu0 0
        %3435 = vmatpush1.bf16.msra.mxu0 0
        %3436 = vmatprep.subr.bf16.mxu0 0
        %3437 = vmatpush1.bf16.msra.mxu0 0
        %3438 = vmatprep.subr.bf16.mxu0 0
        %3439 = vmatpush1.bf16.msra.mxu0 0
        %3440 = vmatprep.subr.bf16.mxu0 0
        %3441 = vmatpush1.bf16.msra.mxu0 0
        %3442 = vmatprep.mubr.bf16.mxu0 0
        %3443 = vmatmul.mubr.bf16.gmra.mrb[0].mxu0 %v3408
        %v3444 = vpop.f32.mrb[0].mxu0
        %v3445 = vadd.f32 %v3380, %v3444
        %v3446 = vpop.f32.mrb[0].mxu0
        %v3447 = vpop.f32.mrb[0].mxu0
        %v3448 = vadd.f32 %v3380, %v3447
        %v3449 = vpop.f32.mrb[0].mxu0
        %3450 = vdwg.mxu0
        %v3451 = vadd.f32 %v3242, %v3445
        %v3452 = vadd.f32 %v3243, %v3448
        %3453 = vst.msk [vmem:[%s665] sm:$0xff] %vm678, %v3451
        %3454 = vst.msk [vmem:[%s665 + $0x8] sm:$0xff] %vm678, %v3452
        %s3455 = sand.u32 %s406, 1
        %s3456 = scalar_lea.sflag [#allocation5], %s3455
        %s3457 = sand.u32 %s406, 1
        %s3458 = smul.addr %s3457, 16
        %s3459 = scalar_lea.vmem [#allocation18], %s3458
        // Predicated region
        $region125: #{tpu_custom_call.1} parent=87 // pred_check
          %p3460 = pneg %p416
        $region126: #{tpu_custom_call.1} parent=87 // pred_check_branch
          %3462 = sbr.rel (%p3460) target = $region128
        $region127: #{tpu_custom_call.1} parent=87 // pred_region
          %s3463 = smul.u32 2, %s36
          %s3465 = ssub.s32 256, 256
          %3466 = vsyncadd %s3456, %s3465
          %s3467 = smul.addr %s3463, 128
          %s3468 = scalar_lea.hbm %s17, %s3467
          %s3469 = sshll.u32 %s3459, 4
          %s3470 = int_to_ptr.vmem [resolvable:$true] %s3469
          %3475 = dma.vmem_to_hbm [thread:$0]  %s3470, 256, %s3468, %s3456, 128, 128, 8
        $region128: #{tpu_custom_call.1} parent=87 // pred_fallthru
          _
      $region88: #{tpu_custom_call.1} parent=5 // pred_fallthru
        _
      %p3476 = scmp.le.s32.totalorder 2, %s31
      // Predicated region
      $region129: #{tpu_custom_call.1} parent=5 // pred_check
        %p3477 = pneg %p3476
      $region130: #{tpu_custom_call.1} parent=5 // pred_check_branch
        %3479 = sbr.rel (%p3477) target = $region132
      $region131: #{tpu_custom_call.1} parent=5 // pred_region
        %s3480 = ssub.s32 %s31, 2
        // Predicated region
        $region133: #{tpu_custom_call.1} parent=131 // pred_check
          %p3481 = pneg %p422
        $region134: #{tpu_custom_call.1} parent=131 // pred_check_branch
          %3483 = sbr.rel (%p3481) target = $region136
        $region135: #{tpu_custom_call.1} parent=131 // pred_region
          %s3484 = sand.u32 %s407, 1
          %s3485 = scalar_lea.sflag [#allocation5], %s3484
          %s3486 = sand.u32 %s407, 1
          %s3487 = smul.addr %s3486, 16
          %s3488 = scalar_lea.vmem [#allocation18], %s3487
          %3489 = dma.done %s3485, 256
        $region136: #{tpu_custom_call.1} parent=131 // pred_fallthru
          _
      $region132: #{tpu_custom_call.1} parent=5 // pred_fallthru
        _
    $region6: #{tpu_custom_call.1} parent=1 // loop_footer
      %s35 = sadd.s32 1, %s31
    $region7: #{tpu_custom_call.1} parent=1 // loop_footer_branch
      %30 = sbr.rel target = $region3
    $region8: #{tpu_custom_call.1} parent=1 // loop_exit
      _
    %3490 = vsyncpa [#allocation4], 1
    %s3491 = scalar_lea.sflag [#allocation4], 1
    %3492 = vsyncpa %s3491, 1
    %3493 = vsyncpa [#allocation7], 1
    %3494 = vsyncpa [#allocation10], 1
    %3495 = vsyncpa [#allocation13], 1
    %3496 = vsyncpa [#allocation16], 1
    %3497 = vsyncpa [#allocation5], 1
    %s3498 = scalar_lea.sflag [#allocation5], 1
    %3499 = vsyncpa %s3498, 1

// kernel: tpu_custom_call.1
$region0: #{tpu_custom_call.1}
  #allocation0 [shape = 'u32[]', space=smem, size = 0x4, offset = 0x4, fixed_abs, tag = 'smem constant byte address 0x4 - core index']
  #allocation1 [shape = 'u32[144,128]{1,0:T(1,128)}', space=vmem, size = 0x12000, scoped, tag = 'internal scratch']
  #allocation2 [shape = 'f32[2,8,32]{2,1,0:T(8,128)}', space=vmem, size = 0x2000, scoped, tag = 'scratch operand']
  %s0 = inlined_call_operand.vmem [shape: f32[4,8,32], index: 0, kind: input, shape index: {}]
  %s1 = inlined_call_operand.vmem [shape: f32[1,32], index: 1, kind: input, shape index: {}]
  %s2 = inlined_call_operand.hbm [shape: f32[1,32], index: 2, kind: input, shape index: {}]
  %s3 = inlined_call_operand.vmem [shape: bf16[4,8,32], index: 3, kind: input, shape index: {}]
  %s4 = inlined_call_operand.hbm [shape: f32[4,1,8], index: 4, kind: input, shape index: {}]
  %s5 = inlined_call_operand.hbm [shape: bf16[4,8,32], index: 5, kind: input, shape index: {}]
  %s6 = inlined_call_operand.hbm [shape: f32[4,1,8], index: 6, kind: input, shape index: {}]
  %s7 = inlined_call_operand.hbm [shape: bf16[4,8,32], index: 7, kind: input, shape index: {}]
  %s8 = inlined_call_operand.hbm [shape: f32[4,1,8], index: 8, kind: input, shape index: {}]
  %s9 = inlined_call_operand.vmem [shape: bf16[4,8,32], index: 9, kind: input, shape index: {}]
  %s10 = inlined_call_operand.hbm [shape: f32[1,32], index: 10, kind: input, shape index: {}]
  %s11 = inlined_call_operand.hbm [shape: f32[1,32], index: 11, kind: input, shape index: {}]
  %s12 = inlined_call_operand.hbm [shape: f32[1,32], index: 12, kind: input, shape index: {}]
  %s13 = inlined_call_operand.vmem [shape: bf16[32,64], index: 13, kind: input, shape index: {}]
  %s14 = inlined_call_operand.vmem [shape: f32[1,64], index: 14, kind: input, shape index: {}]
  %s15 = inlined_call_operand.vmem [shape: bf16[64,32], index: 15, kind: input, shape index: {}]
  %s16 = inlined_call_operand.vmem [shape: f32[1,32], index: 16, kind: input, shape index: {}]
  %s17 = inlined_call_operand.hbm [shape: f32[4,8,32], index: 17, kind: output, shape index: {}]
  %s18 = sld [smem:[#allocation0]]
  $region137: #{tpu_custom_call.1} parent=0
    _
  %s20 = ssub.s32 1, %s18
  %s21 = scalar_select 0, %s20, %s18
  $region1: #{tpu_custom_call.1} parent=0
    #allocation3 [shape = 'u8[512]{0}', space=vmem, size = 0x400, scoped, tag = 'input window, operand 2, single buffered']
    #allocation4 [shape = 's32[2]{0}', space=sflag, size = 0x8, scoped, tag = 'scoped memory for tpu_custom_call.1']
    #allocation5 [shape = 's32[2]{0}', space=sflag, size = 0x8, scoped, tag = 'scoped memory for tpu_custom_call.1']
    #allocation6 [shape = 'u8[2048]{0}', space=vmem, size = 0x800, scoped, tag = 'input window, operand 4, single buffered']
    #allocation7 [shape = 's32[1]{0}', space=sflag, size = 0x4, scoped, tag = 'scoped memory for tpu_custom_call.1']
    #allocation8 [shape = 'u8[8192]{0}', space=vmem, size = 0x2000, scoped, tag = 'input window, operand 5, single buffered']
    #allocation9 [shape = 'u8[2048]{0}', space=vmem, size = 0x800, scoped, tag = 'input window, operand 6, single buffered']
    #allocation10 [shape = 's32[1]{0}', space=sflag, size = 0x4, scoped, tag = 'scoped memory for tpu_custom_call.1']
    #allocation11 [shape = 'u8[8192]{0}', space=vmem, size = 0x2000, scoped, tag = 'input window, operand 7, single buffered']
    #allocation12 [shape = 'u8[2048]{0}', space=vmem, size = 0x800, scoped, tag = 'input window, operand 8, single buffered']
    #allocation13 [shape = 's32[1]{0}', space=sflag, size = 0x4, scoped, tag = 'scoped memory for tpu_custom_call.1']
    #allocation14 [shape = 'u8[512]{0}', space=vmem, size = 0x400, scoped, tag = 'input window, operand 10, single buffered']
    #allocation15 [shape = 'u8[512]{0}', space=vmem, size = 0x400, scoped, tag = 'input window, operand 11, single buffered']
    #allocation16 [shape = 's32[1]{0}', space=sflag, size = 0x4, scoped, tag = 'scoped memory for tpu_custom_call.1']
    #allocation17 [shape = 'u8[512]{0}', space=vmem, size = 0x400, scoped, tag = 'input window, operand 12, single buffered']
    #allocation18 [shape = 'u8[16384]{0}', space=vmem, size = 0x4000, scoped, tag = 'output window, operand 0']
    %22 = vsyncpa [#allocation4], 0
    %23 = vsyncpa [#allocation7], 0
    %24 = vsyncpa [#allocation10], 0
    %25 = vsyncpa [#allocation13], 0
    %26 = vsyncpa [#allocation16], 0
    %27 = vsyncpa [#allocation5], 0
    %s28 = scalar_lea.sflag [#allocation5], 1
    %29 = vsyncpa %s28, 0
    loop: start=0, step=1, limit=4
    $region2: #{tpu_custom_call.1} parent=1 // loop_pre_header
      _
    $region3: #{tpu_custom_call.1} parent=1 // loop_header
      %s31 = sphi 0, %s35
      %p32 = scmp.ge.s32.totalorder %s31, 4
      %s41 = sphi 0, %s43
      %s44 = sphi 0, %s41
      %s45 = sphi 0, %s44
      %s61 = sphi 0, %s45
      %s65 = sphi 0, %s65
      %s67 = sphi 0, %s65
      %s68 = sphi 0, %s67
      %s82 = sphi 0, %s68
      %s86 = sphi 0, %s86
      %s88 = sphi 0, %s86
      %s89 = sphi 0, %s88
      %s103 = sphi 0, %s89
      %s107 = sphi 0, %s107
      %s109 = sphi 0, %s107
      %s110 = sphi 0, %s109
      %s124 = sphi 0, %s110
      %s128 = sphi 0, %s128
      %s130 = sphi 0, %s128
      %s131 = sphi 0, %s130
      %s145 = sphi 0, %s131
      %s149 = sphi 0, %s149
      %s151 = sphi 0, %s149
      %s152 = sphi 0, %s151
      %s166 = sphi 0, %s152
      %s170 = sphi 0, %s170
      %s172 = sphi 0, %s170
      %s173 = sphi 0, %s172
      %s187 = sphi 0, %s173
      %s191 = sphi 0, %s191
      %s193 = sphi 0, %s191
      %s194 = sphi 0, %s193
      %s208 = sphi 0, %s194
      %s212 = sphi 0, %s212
      %s214 = sphi 0, %s212
      %s215 = sphi 0, %s214
      %s229 = sphi 0, %s215
      %s233 = sphi 0, %s233
      %s235 = sphi 0, %s233
      %s236 = sphi 0, %s235
      %s250 = sphi 0, %s236
      %s254 = sphi 0, %s254
      %s256 = sphi 0, %s254
      %s257 = sphi 0, %s256
      %s271 = sphi 0, %s257
      %s275 = sphi 0, %s275
      %s277 = sphi 0, %s275
      %s278 = sphi 0, %s277
      %s292 = sphi 0, %s278
      %s296 = sphi 0, %s296
      %s298 = sphi 0, %s296
      %s299 = sphi 0, %s298
      %s313 = sphi 0, %s299
      %s317 = sphi 0, %s317
      %s319 = sphi 0, %s317
      %s320 = sphi 0, %s319
      %s334 = sphi 0, %s320
      %s338 = sphi 0, %s338
      %s340 = sphi 0, %s338
      %s341 = sphi 0, %s340
      %s355 = sphi 0, %s341
      %s359 = sphi 0, %s359
      %s361 = sphi 0, %s359
      %s362 = sphi 0, %s361
      %s376 = sphi 0, %s362
      %s380 = sphi 0, %s380
      %s382 = sphi 0, %s380
      %s383 = sphi 0, %s382
      %s397 = sphi 0, %s383
      %s403 = sphi 0, %s405
      %s406 = sphi 0, %s403
      %s407 = sphi 0, %s406
      %s423 = sphi 0, %s407
    $region4: #{tpu_custom_call.1} parent=1 // loop_header_branch
      %34 = sbr.rel (%p32) target = $region8
    $region5: #{tpu_custom_call.1} parent=1 // loop_body
      %s36 = ssub.s32 %s31, 1
      %s37 = ssub.s32 %s31, 2
      %s38 = sadd.s32 %s31, 1
      %s39 = ssub.s32 %s31, %s38
      %p40 = scmp.eq.s32.totalorder %s39, 0
      %s42 = sadd.s32 %s41, 1
      %s43 = scalar_select %p40, %s41, %s42
      %p46 = pneg %p40
      %p47 = scmp.eq.s32.totalorder %s31, 1
      %p48 = por %p46, %p47
      %p49 = scmp.ne.s32.totalorder %s41, %s44
      %p50 = scmp.eq.s32.totalorder %s31, 0
      %p51 = por %p49, %p50
      %p52 = scmp.ne.s32.totalorder %s41, %s44
      %p53 = scmp.eq.s32.totalorder %s36, 1
      %p54 = por %p52, %p53
      %p55 = scmp.ne.s32.totalorder %s44, %s45
      %p56 = scmp.eq.s32.totalorder %s36, 0
      %p57 = por %p55, %p56
      %p58 = scmp.ne.s32.totalorder %s44, %s45
      %p59 = scmp.eq.s32.totalorder %s37, 1
      %p60 = por %p58, %p59
      %p62 = scmp.ne.s32.totalorder %s45, %s61
      %p63 = scmp.eq.s32.totalorder %s37, 0
      %p64 = por %p62, %p63
      %s66 = sadd.s32 %s65, 1
      %p69 = scmp.eq.s32.totalorder %s31, 1
      %p70 = scmp.ne.s32.totalorder %s65, %s67
      %p71 = scmp.eq.s32.totalorder %s31, 0
      %p72 = por %p70, %p71
      %p73 = scmp.ne.s32.totalorder %s65, %s67
      %p74 = scmp.eq.s32.totalorder %s36, 1
      %p75 = por %p73, %p74
      %p76 = scmp.ne.s32.totalorder %s67, %s68
      %p77 = scmp.eq.s32.totalorder %s36, 0
      %p78 = por %p76, %p77
      %p79 = scmp.ne.s32.totalorder %s67, %s68
      %p80 = scmp.eq.s32.totalorder %s37, 1
      %p81 = por %p79, %p80
      %p83 = scmp.ne.s32.totalorder %s68, %s82
      %p84 = scmp.eq.s32.totalorder %s37, 0
      %p85 = por %p83, %p84
      %s87 = sadd.s32 %s86, 1
      %p90 = scmp.eq.s32.totalorder %s31, 1
      %p91 = scmp.ne.s32.totalorder %s86, %s88
      %p92 = scmp.eq.s32.totalorder %s31, 0
      %p93 = por %p91, %p92
      %p94 = scmp.ne.s32.totalorder %s86, %s88
      %p95 = scmp.eq.s32.totalorder %s36, 1
      %p96 = por %p94, %p95
      %p97 = scmp.ne.s32.totalorder %s88, %s89
      %p98 = scmp.eq.s32.totalorder %s36, 0
      %p99 = por %p97, %p98
      %p100 = scmp.ne.s32.totalorder %s88, %s89
      %p101 = scmp.eq.s32.totalorder %s37, 1
      %p102 = por %p100, %p101
      %p104 = scmp.ne.s32.totalorder %s89, %s103
      %p105 = scmp.eq.s32.totalorder %s37, 0
      %p106 = por %p104, %p105
      %s108 = sadd.s32 %s107, 1
      %p111 = scmp.eq.s32.totalorder %s31, 1
      %p112 = scmp.ne.s32.totalorder %s107, %s109
      %p113 = scmp.eq.s32.totalorder %s31, 0
      %p114 = por %p112, %p113
      %p115 = scmp.ne.s32.totalorder %s107, %s109
      %p116 = scmp.eq.s32.totalorder %s36, 1
      %p117 = por %p115, %p116
      %p118 = scmp.ne.s32.totalorder %s109, %s110
      %p119 = scmp.eq.s32.totalorder %s36, 0
      %p120 = por %p118, %p119
      %p121 = scmp.ne.s32.totalorder %s109, %s110
      %p122 = scmp.eq.s32.totalorder %s37, 1
      %p123 = por %p121, %p122
      %p125 = scmp.ne.s32.totalorder %s110, %s124
      %p126 = scmp.eq.s32.totalorder %s37, 0
      %p127 = por %p125, %p126
      %s129 = sadd.s32 %s128, 1
      %p132 = scmp.eq.s32.totalorder %s31, 1
      %p133 = scmp.ne.s32.totalorder %s128, %s130
      %p134 = scmp.eq.s32.totalorder %s31, 0
      %p135 = por %p133, %p134
      %p136 = scmp.ne.s32.totalorder %s128, %s130
      %p137 = scmp.eq.s32.totalorder %s36, 1
      %p138 = por %p136, %p137
      %p139 = scmp.ne.s32.totalorder %s130, %s131
      %p140 = scmp.eq.s32.totalorder %s36, 0
      %p141 = por %p139, %p140
      %p142 = scmp.ne.s32.totalorder %s130, %s131
      %p143 = scmp.eq.s32.totalorder %s37, 1
      %p144 = por %p142, %p143
      %p146 = scmp.ne.s32.totalorder %s131, %s145
      %p147 = scmp.eq.s32.totalorder %s37, 0
      %p148 = por %p146, %p147
      %s150 = sadd.s32 %s149, 1
      %p153 = scmp.eq.s32.totalorder %s31, 1
      %p154 = scmp.ne.s32.totalorder %s149, %s151
      %p155 = scmp.eq.s32.totalorder %s31, 0
      %p156 = por %p154, %p155
      %p157 = scmp.ne.s32.totalorder %s149, %s151
      %p158 = scmp.eq.s32.totalorder %s36, 1
      %p159 = por %p157, %p158
      %p160 = scmp.ne.s32.totalorder %s151, %s152
      %p161 = scmp.eq.s32.totalorder %s36, 0
      %p162 = por %p160, %p161
      %p163 = scmp.ne.s32.totalorder %s151, %s152
      %p164 = scmp.eq.s32.totalorder %s37, 1
      %p165 = por %p163, %p164
      %p167 = scmp.ne.s32.totalorder %s152, %s166
      %p168 = scmp.eq.s32.totalorder %s37, 0
      %p169 = por %p167, %p168
      %s171 = sadd.s32 %s170, 1
      %p174 = scmp.eq.s32.totalorder %s31, 1
      %p175 = scmp.ne.s32.totalorder %s170, %s172
      %p176 = scmp.eq.s32.totalorder %s31, 0
      %p177 = por %p175, %p176
      %p178 = scmp.ne.s32.totalorder %s170, %s172
      %p179 = scmp.eq.s32.totalorder %s36, 1
      %p180 = por %p178, %p179
      %p181 = scmp.ne.s32.totalorder %s172, %s173
      %p182 = scmp.eq.s32.totalorder %s36, 0
      %p183 = por %p181, %p182
      %p184 = scmp.ne.s32.totalorder %s172, %s173
      %p185 = scmp.eq.s32.totalorder %s37, 1
      %p186 = por %p184, %p185
      %p188 = scmp.ne.s32.totalorder %s173, %s187
      %p189 = scmp.eq.s32.totalorder %s37, 0
      %p190 = por %p188, %p189
      %s192 = sadd.s32 %s191, 1
      %p195 = scmp.eq.s32.totalorder %s31, 1
      %p196 = scmp.ne.s32.totalorder %s191, %s193
      %p197 = scmp.eq.s32.totalorder %s31, 0
      %p198 = por %p196, %p197
      %p199 = scmp.ne.s32.totalorder %s191, %s193
      %p200 = scmp.eq.s32.totalorder %s36, 1
      %p201 = por %p199, %p200
      %p202 = scmp.ne.s32.totalorder %s193, %s194
      %p203 = scmp.eq.s32.totalorder %s36, 0
      %p204 = por %p202, %p203
      %p205 = scmp.ne.s32.totalorder %s193, %s194
      %p206 = scmp.eq.s32.totalorder %s37, 1
      %p207 = por %p205, %p206
      %p209 = scmp.ne.s32.totalorder %s194, %s208
      %p210 = scmp.eq.s32.totalorder %s37, 0
      %p211 = por %p209, %p210
      %s213 = sadd.s32 %s212, 1
      %p216 = scmp.eq.s32.totalorder %s31, 1
      %p217 = scmp.ne.s32.totalorder %s212, %s214
      %p218 = scmp.eq.s32.totalorder %s31, 0
      %p219 = por %p217, %p218
      %p220 = scmp.ne.s32.totalorder %s212, %s214
      %p221 = scmp.eq.s32.totalorder %s36, 1
      %p222 = por %p220, %p221
      %p223 = scmp.ne.s32.totalorder %s214, %s215
      %p224 = scmp.eq.s32.totalorder %s36, 0
      %p225 = por %p223, %p224
      %p226 = scmp.ne.s32.totalorder %s214, %s215
      %p227 = scmp.eq.s32.totalorder %s37, 1
      %p228 = por %p226, %p227
      %p230 = scmp.ne.s32.totalorder %s215, %s229
      %p231 = scmp.eq.s32.totalorder %s37, 0
      %p232 = por %p230, %p231
      %s234 = sadd.s32 %s233, 1
      %p237 = scmp.eq.s32.totalorder %s31, 1
      %p238 = scmp.ne.s32.totalorder %s233, %s235
      %p239 = scmp.eq.s32.totalorder %s31, 0
      %p240 = por %p238, %p239
      %p241 = scmp.ne.s32.totalorder %s233, %s235
      %p242 = scmp.eq.s32.totalorder %s36, 1
      %p243 = por %p241, %p242
      %p244 = scmp.ne.s32.totalorder %s235, %s236
      %p245 = scmp.eq.s32.totalorder %s36, 0
      %p246 = por %p244, %p245
      %p247 = scmp.ne.s32.totalorder %s235, %s236
      %p248 = scmp.eq.s32.totalorder %s37, 1
      %p249 = por %p247, %p248
      %p251 = scmp.ne.s32.totalorder %s236, %s250
      %p252 = scmp.eq.s32.totalorder %s37, 0
      %p253 = por %p251, %p252
      %s255 = sadd.s32 %s254, 1
      %p258 = scmp.eq.s32.totalorder %s31, 1
      %p259 = scmp.ne.s32.totalorder %s254, %s256
      %p260 = scmp.eq.s32.totalorder %s31, 0
      %p261 = por %p259, %p260
      %p262 = scmp.ne.s32.totalorder %s254, %s256
      %p263 = scmp.eq.s32.totalorder %s36, 1
      %p264 = por %p262, %p263
      %p265 = scmp.ne.s32.totalorder %s256, %s257
      %p266 = scmp.eq.s32.totalorder %s36, 0
      %p267 = por %p265, %p266
      %p268 = scmp.ne.s32.totalorder %s256, %s257
      %p269 = scmp.eq.s32.totalorder %s37, 1
      %p270 = por %p268, %p269
      %p272 = scmp.ne.s32.totalorder %s257, %s271
      %p273 = scmp.eq.s32.totalorder %s37, 0
      %p274 = por %p272, %p273
      %s276 = sadd.s32 %s275, 1
      %p279 = scmp.eq.s32.totalorder %s31, 1
      %p280 = scmp.ne.s32.totalorder %s275, %s277
      %p281 = scmp.eq.s32.totalorder %s31, 0
      %p282 = por %p280, %p281
      %p283 = scmp.ne.s32.totalorder %s275, %s277
      %p284 = scmp.eq.s32.totalorder %s36, 1
      %p285 = por %p283, %p284
      %p286 = scmp.ne.s32.totalorder %s277, %s278
      %p287 = scmp.eq.s32.totalorder %s36, 0
      %p288 = por %p286, %p287
      %p289 = scmp.ne.s32.totalorder %s277, %s278
      %p290 = scmp.eq.s32.totalorder %s37, 1
      %p291 = por %p289, %p290
      %p293 = scmp.ne.s32.totalorder %s278, %s292
      %p294 = scmp.eq.s32.totalorder %s37, 0
      %p295 = por %p293, %p294
      %s297 = sadd.s32 %s296, 1
      %p300 = scmp.eq.s32.totalorder %s31, 1
      %p301 = scmp.ne.s32.totalorder %s296, %s298
      %p302 = scmp.eq.s32.totalorder %s31, 0
      %p303 = por %p301, %p302
      %p304 = scmp.ne.s32.totalorder %s296, %s298
      %p305 = scmp.eq.s32.totalorder %s36, 1
      %p306 = por %p304, %p305
      %p307 = scmp.ne.s32.totalorder %s298, %s299
      %p308 = scmp.eq.s32.totalorder %s36, 0
      %p309 = por %p307, %p308
      %p310 = scmp.ne.s32.totalorder %s298, %s299
      %p311 = scmp.eq.s32.totalorder %s37, 1
      %p312 = por %p310, %p311
      %p314 = scmp.ne.s32.totalorder %s299, %s313
      %p315 = scmp.eq.s32.totalorder %s37, 0
      %p316 = por %p314, %p315
      %s318 = sadd.s32 %s317, 1
      %p321 = scmp.eq.s32.totalorder %s31, 1
      %p322 = scmp.ne.s32.totalorder %s317, %s319
      %p323 = scmp.eq.s32.totalorder %s31, 0
      %p324 = por %p322, %p323
      %p325 = scmp.ne.s32.totalorder %s317, %s319
      %p326 = scmp.eq.s32.totalorder %s36, 1
      %p327 = por %p325, %p326
      %p328 = scmp.ne.s32.totalorder %s319, %s320
      %p329 = scmp.eq.s32.totalorder %s36, 0
      %p330 = por %p328, %p329
      %p331 = scmp.ne.s32.totalorder %s319, %s320
      %p332 = scmp.eq.s32.totalorder %s37, 1
      %p333 = por %p331, %p332
      %p335 = scmp.ne.s32.totalorder %s320, %s334
      %p336 = scmp.eq.s32.totalorder %s37, 0
      %p337 = por %p335, %p336
      %s339 = sadd.s32 %s338, 1
      %p342 = scmp.eq.s32.totalorder %s31, 1
      %p343 = scmp.ne.s32.totalorder %s338, %s340
      %p344 = scmp.eq.s32.totalorder %s31, 0
      %p345 = por %p343, %p344
      %p346 = scmp.ne.s32.totalorder %s338, %s340
      %p347 = scmp.eq.s32.totalorder %s36, 1
      %p348 = por %p346, %p347
      %p349 = scmp.ne.s32.totalorder %s340, %s341
      %p350 = scmp.eq.s32.totalorder %s36, 0
      %p351 = por %p349, %p350
      %p352 = scmp.ne.s32.totalorder %s340, %s341
      %p353 = scmp.eq.s32.totalorder %s37, 1
      %p354 = por %p352, %p353
      %p356 = scmp.ne.s32.totalorder %s341, %s355
      %p357 = scmp.eq.s32.totalorder %s37, 0
      %p358 = por %p356, %p357
      %s360 = sadd.s32 %s359, 1
      %p363 = scmp.eq.s32.totalorder %s31, 1
      %p364 = scmp.ne.s32.totalorder %s359, %s361
      %p365 = scmp.eq.s32.totalorder %s31, 0
      %p366 = por %p364, %p365
      %p367 = scmp.ne.s32.totalorder %s359, %s361
      %p368 = scmp.eq.s32.totalorder %s36, 1
      %p369 = por %p367, %p368
      %p370 = scmp.ne.s32.totalorder %s361, %s362
      %p371 = scmp.eq.s32.totalorder %s36, 0
      %p372 = por %p370, %p371
      %p373 = scmp.ne.s32.totalorder %s361, %s362
      %p374 = scmp.eq.s32.totalorder %s37, 1
      %p375 = por %p373, %p374
      %p377 = scmp.ne.s32.totalorder %s362, %s376
      %p378 = scmp.eq.s32.totalorder %s37, 0
      %p379 = por %p377, %p378
      %s381 = sadd.s32 %s380, 1
      %p384 = scmp.eq.s32.totalorder %s31, 1
      %p385 = scmp.ne.s32.totalorder %s380, %s382
      %p386 = scmp.eq.s32.totalorder %s31, 0
      %p387 = por %p385, %p386
      %p388 = scmp.ne.s32.totalorder %s380, %s382
      %p389 = scmp.eq.s32.totalorder %s36, 1
      %p390 = por %p388, %p389
      %p391 = scmp.ne.s32.totalorder %s382, %s383
      %p392 = scmp.eq.s32.totalorder %s36, 0
      %p393 = por %p391, %p392
      %p394 = scmp.ne.s32.totalorder %s382, %s383
      %p395 = scmp.eq.s32.totalorder %s37, 1
      %p396 = por %p394, %p395
      %p398 = scmp.ne.s32.totalorder %s383, %s397
      %p399 = scmp.eq.s32.totalorder %s37, 0
      %p400 = por %p398, %p399
      %s401 = ssub.s32 %s31, %s38
      %p402 = scmp.eq.s32.totalorder %s401, 0
      %s404 = sadd.s32 %s403, 1
      %s405 = scalar_select %p402, %s403, %s404
      %p408 = pneg %p402
      %p409 = scmp.eq.s32.totalorder %s31, 1
      %p410 = por %p408, %p409
      %p411 = scmp.ne.s32.totalorder %s403, %s406
      %p412 = scmp.eq.s32.totalorder %s31, 0
      %p413 = por %p411, %p412
      %p414 = scmp.ne.s32.totalorder %s403, %s406
      %p415 = scmp.eq.s32.totalorder %s36, 1
      %p416 = por %p414, %p415
      %p417 = scmp.ne.s32.totalorder %s406, %s407
      %p418 = scmp.eq.s32.totalorder %s36, 0
      %p419 = por %p417, %p418
      %p420 = scmp.ne.s32.totalorder %s406, %s407
      %p421 = scmp.eq.s32.totalorder %s37, 1
      %p422 = por %p420, %p421
      %p424 = scmp.ne.s32.totalorder %s407, %s423
      %p425 = scmp.eq.s32.totalorder %s37, 0
      %p426 = por %p424, %p425
      %p427 = scmp.le.s32.totalorder 1, %s31
      %p428 = scmp.lt.s32.totalorder %s31, 3
      %p429 = pnand %p427, %p428
      %p430 = pneg %p429
      // Predicated region
      $region9: #{tpu_custom_call.1} parent=5 // pred_check
        _
      $region10: #{tpu_custom_call.1} parent=5 // pred_check_branch
        %432 = sbr.rel (%p429) target = $region12
      $region11: #{tpu_custom_call.1} parent=5 // pred_region
        %s433 = ssub.s32 %s31, 1
        // Predicated region
        $region13: #{tpu_custom_call.1} parent=11 // pred_check
          %p434 = pneg %p78
        $region14: #{tpu_custom_call.1} parent=11 // pred_check_branch
          %436 = sbr.rel (%p434) target = $region16
        $region15: #{tpu_custom_call.1} parent=11 // pred_region
          _
        $region16: #{tpu_custom_call.1} parent=11 // pred_fallthru
          _
        // Predicated region
        $region17: #{tpu_custom_call.1} parent=11 // pred_check
          %p437 = pneg %p99
        $region18: #{tpu_custom_call.1} parent=11 // pred_check_branch
          %439 = sbr.rel (%p437) target = $region20
        $region19: #{tpu_custom_call.1} parent=11 // pred_region
          %s441 = ssub.s32 16, 16
          %442 = vsyncadd [#allocation4], %s441
          %s444 = sshll.u32 [#allocation3], 4
          %s445 = int_to_ptr.vmem [resolvable:$true] %s444
          %447 = dma.hbm_to_vmem [thread:$0]  %s2, 16, %s445, [#allocation4]
        $region20: #{tpu_custom_call.1} parent=11 // pred_fallthru
          _
        // Predicated region
        $region21: #{tpu_custom_call.1} parent=11 // pred_check
          %p448 = pneg %p120
        $region22: #{tpu_custom_call.1} parent=11 // pred_check_branch
          %450 = sbr.rel (%p448) target = $region24
        $region23: #{tpu_custom_call.1} parent=11 // pred_region
          _
        $region24: #{tpu_custom_call.1} parent=11 // pred_fallthru
          _
        // Predicated region
        $region25: #{tpu_custom_call.1} parent=11 // pred_check
          %p451 = pneg %p141
        $region26: #{tpu_custom_call.1} parent=11 // pred_check_branch
          %453 = sbr.rel (%p451) target = $region28
        $region27: #{tpu_custom_call.1} parent=11 // pred_region
          %s455 = ssub.s32 64, 64
          %456 = vsyncadd [#allocation7], %s455
          %s457 = sshll.u32 [#allocation6], 4
          %s458 = int_to_ptr.vmem [resolvable:$true] %s457
          %463 = dma.hbm_to_vmem [thread:$0]  %s4, 64, %s458, [#allocation7], 16, 16, 1
        $region28: #{tpu_custom_call.1} parent=11 // pred_fallthru
          _
        // Predicated region
        $region29: #{tpu_custom_call.1} parent=11 // pred_check
          %p464 = pneg %p162
        $region30: #{tpu_custom_call.1} parent=11 // pred_check_branch
          %466 = sbr.rel (%p464) target = $region32
        $region31: #{tpu_custom_call.1} parent=11 // pred_region
          %s468 = ssub.s32 256, 256
          %469 = vsyncadd [#allocation7], %s468
          %s470 = sshll.u32 [#allocation8], 4
          %s471 = int_to_ptr.vmem [resolvable:$true] %s470
          %476 = dma.hbm_to_vmem [thread:$0]  %s5, 256, %s471, [#allocation7], 64, 64, 4
        $region32: #{tpu_custom_call.1} parent=11 // pred_fallthru
          _
        // Predicated region
        $region33: #{tpu_custom_call.1} parent=11 // pred_check
          %p477 = pneg %p183
        $region34: #{tpu_custom_call.1} parent=11 // pred_check_branch
          %479 = sbr.rel (%p477) target = $region36
        $region35: #{tpu_custom_call.1} parent=11 // pred_region
          %s481 = ssub.s32 64, 64
          %482 = vsyncadd [#allocation10], %s481
          %s483 = sshll.u32 [#allocation9], 4
          %s484 = int_to_ptr.vmem [resolvable:$true] %s483
          %489 = dma.hbm_to_vmem [thread:$0]  %s6, 64, %s484, [#allocation10], 16, 16, 1
        $region36: #{tpu_custom_call.1} parent=11 // pred_fallthru
          _
        // Predicated region
        $region37: #{tpu_custom_call.1} parent=11 // pred_check
          %p490 = pneg %p204
        $region38: #{tpu_custom_call.1} parent=11 // pred_check_branch
          %492 = sbr.rel (%p490) target = $region40
        $region39: #{tpu_custom_call.1} parent=11 // pred_region
          %s494 = ssub.s32 256, 256
          %495 = vsyncadd [#allocation10], %s494
          %s496 = sshll.u32 [#allocation11], 4
          %s497 = int_to_ptr.vmem [resolvable:$true] %s496
          %502 = dma.hbm_to_vmem [thread:$0]  %s7, 256, %s497, [#allocation10], 64, 64, 4
        $region40: #{tpu_custom_call.1} parent=11 // pred_fallthru
          _
        // Predicated region
        $region41: #{tpu_custom_call.1} parent=11 // pred_check
          %p503 = pneg %p225
        $region42: #{tpu_custom_call.1} parent=11 // pred_check_branch
          %505 = sbr.rel (%p503) target = $region44
        $region43: #{tpu_custom_call.1} parent=11 // pred_region
          %s507 = ssub.s32 64, 64
          %508 = vsyncadd [#allocation13], %s507
          %s509 = sshll.u32 [#allocation12], 4
          %s510 = int_to_ptr.vmem [resolvable:$true] %s509
          %515 = dma.hbm_to_vmem [thread:$0]  %s8, 64, %s510, [#allocation13], 16, 16, 1
        $region44: #{tpu_custom_call.1} parent=11 // pred_fallthru
          _
        // Predicated region
        $region45: #{tpu_custom_call.1} parent=11 // pred_check
          %p516 = pneg %p246
        $region46: #{tpu_custom_call.1} parent=11 // pred_check_branch
          %518 = sbr.rel (%p516) target = $region48
        $region47: #{tpu_custom_call.1} parent=11 // pred_region
          _
        $region48: #{tpu_custom_call.1} parent=11 // pred_fallthru
          _
        // Predicated region
        $region49: #{tpu_custom_call.1} parent=11 // pred_check
          %p519 = pneg %p267
        $region50: #{tpu_custom_call.1} parent=11 // pred_check_branch
          %521 = sbr.rel (%p519) target = $region52
        $region51: #{tpu_custom_call.1} parent=11 // pred_region
          %s523 = ssub.s32 16, 16
          %524 = vsyncadd [#allocation13], %s523
          %s526 = sshll.u32 [#allocation14], 4
          %s527 = int_to_ptr.vmem [resolvable:$true] %s526
          %529 = dma.hbm_to_vmem [thread:$0]  %s10, 16, %s527, [#allocation13]
        $region52: #{tpu_custom_call.1} parent=11 // pred_fallthru
          _
        // Predicated region
        $region53: #{tpu_custom_call.1} parent=11 // pred_check
          %p530 = pneg %p288
        $region54: #{tpu_custom_call.1} parent=11 // pred_check_branch
          %532 = sbr.rel (%p530) target = $region56
        $region55: #{tpu_custom_call.1} parent=11 // pred_region
          %s534 = ssub.s32 16, 16
          %535 = vsyncadd [#allocation16], %s534
          %s537 = sshll.u32 [#allocation15], 4
          %s538 = int_to_ptr.vmem [resolvable:$true] %s537
          %540 = dma.hbm_to_vmem [thread:$0]  %s11, 16, %s538, [#allocation16]
        $region56: #{tpu_custom_call.1} parent=11 // pred_fallthru
          _
        // Predicated region
        $region57: #{tpu_custom_call.1} parent=11 // pred_check
          %p541 = pneg %p309
        $region58: #{tpu_custom_call.1} parent=11 // pred_check_branch
          %543 = sbr.rel (%p541) target = $region60
        $region59: #{tpu_custom_call.1} parent=11 // pred_region
          %s545 = ssub.s32 16, 16
          %546 = vsyncadd [#allocation16], %s545
          %s548 = sshll.u32 [#allocation17], 4
          %s549 = int_to_ptr.vmem [resolvable:$true] %s548
          %551 = dma.hbm_to_vmem [thread:$0]  %s12, 16, %s549, [#allocation16]
        $region60: #{tpu_custom_call.1} parent=11 // pred_fallthru
          _
        // Predicated region
        $region61: #{tpu_custom_call.1} parent=11 // pred_check
          %p552 = pneg %p330
        $region62: #{tpu_custom_call.1} parent=11 // pred_check_branch
          %554 = sbr.rel (%p552) target = $region64
        $region63: #{tpu_custom_call.1} parent=11 // pred_region
          _
        $region64: #{tpu_custom_call.1} parent=11 // pred_fallthru
          _
        // Predicated region
        $region65: #{tpu_custom_call.1} parent=11 // pred_check
          %p555 = pneg %p351
        $region66: #{tpu_custom_call.1} parent=11 // pred_check_branch
          %557 = sbr.rel (%p555) target = $region68
        $region67: #{tpu_custom_call.1} parent=11 // pred_region
          _
        $region68: #{tpu_custom_call.1} parent=11 // pred_fallthru
          _
        // Predicated region
        $region69: #{tpu_custom_call.1} parent=11 // pred_check
          %p558 = pneg %p372
        $region70: #{tpu_custom_call.1} parent=11 // pred_check_branch
          %560 = sbr.rel (%p558) target = $region72
        $region71: #{tpu_custom_call.1} parent=11 // pred_region
          _
        $region72: #{tpu_custom_call.1} parent=11 // pred_fallthru
          _
        // Predicated region
        $region73: #{tpu_custom_call.1} parent=11 // pred_check
          %p561 = pneg %p393
        $region74: #{tpu_custom_call.1} parent=11 // pred_check_branch
          %563 = sbr.rel (%p561) target = $region76
        $region75: #{tpu_custom_call.1} parent=11 // pred_region
          _
        $region76: #{tpu_custom_call.1} parent=11 // pred_fallthru
          _
      $region12: #{tpu_custom_call.1} parent=5 // pred_fallthru
        _
      %p564 = scmp.lt.s32.totalorder %s31, 2
      // Predicated region
      $region77: #{tpu_custom_call.1} parent=5 // pred_check
        %p565 = pneg %p564
      $region78: #{tpu_custom_call.1} parent=5 // pred_check_branch
        %567 = sbr.rel (%p565) target = $region80
      $region79: #{tpu_custom_call.1} parent=5 // pred_region
        // Predicated region
        $region81: #{tpu_custom_call.1} parent=79 // pred_check
          %p568 = pneg %p51
        $region82: #{tpu_custom_call.1} parent=79 // pred_check_branch
          %570 = sbr.rel (%p568) target = $region84
        $region83: #{tpu_custom_call.1} parent=79 // pred_region
          %s571 = smul.u32 2, %s31
          %p572 = scmp.lt.s32.totalorder %s571, 3
          %s573 = scalar_select %p572, %s571, 3
          %s574 = smul.addr %s573, 8
          %s575 = scalar_lea.vmem %s0, %s574
          %s576 = smul.u32 2, %s31
        $region84: #{tpu_custom_call.1} parent=79 // pred_fallthru
          _
      $region80: #{tpu_custom_call.1} parent=5 // pred_fallthru
        _
      %p577 = scmp.le.s32.totalorder 1, %s31
      %p578 = scmp.lt.s32.totalorder %s31, 3
      %p579 = pnand %p577, %p578
      %p580 = pneg %p579
      // Predicated region
      $region85: #{tpu_custom_call.1} parent=5 // pred_check
        _
      $region86: #{tpu_custom_call.1} parent=5 // pred_check_branch
        %582 = sbr.rel (%p579) target = $region88
      $region87: #{tpu_custom_call.1} parent=5 // pred_region
        %s583 = ssub.s32 %s31, 1
        // Predicated region
        $region89: #{tpu_custom_call.1} parent=87 // pred_check
          %p584 = pneg %p99
        $region90: #{tpu_custom_call.1} parent=87 // pred_check_branch
          %586 = sbr.rel (%p584) target = $region92
        $region91: #{tpu_custom_call.1} parent=87 // pred_region
          %587 = dma.done [#allocation4], 16
        $region92: #{tpu_custom_call.1} parent=87 // pred_fallthru
          _
        // Predicated region
        $region93: #{tpu_custom_call.1} parent=87 // pred_check
          %p588 = pneg %p141
        $region94: #{tpu_custom_call.1} parent=87 // pred_check_branch
          %590 = sbr.rel (%p588) target = $region96
        $region95: #{tpu_custom_call.1} parent=87 // pred_region
          %591 = dma.done [#allocation7], 64
        $region96: #{tpu_custom_call.1} parent=87 // pred_fallthru
          _
        // Predicated region
        $region97: #{tpu_custom_call.1} parent=87 // pred_check
          %p592 = pneg %p162
        $region98: #{tpu_custom_call.1} parent=87 // pred_check_branch
          %594 = sbr.rel (%p592) target = $region100
        $region99: #{tpu_custom_call.1} parent=87 // pred_region
          %595 = dma.done [#allocation7], 256
        $region100: #{tpu_custom_call.1} parent=87 // pred_fallthru
          _
        // Predicated region
        $region101: #{tpu_custom_call.1} parent=87 // pred_check
          %p596 = pneg %p183
        $region102: #{tpu_custom_call.1} parent=87 // pred_check_branch
          %598 = sbr.rel (%p596) target = $region104
        $region103: #{tpu_custom_call.1} parent=87 // pred_region
          %599 = dma.done [#allocation10], 64
        $region104: #{tpu_custom_call.1} parent=87 // pred_fallthru
          _
        // Predicated region
        $region105: #{tpu_custom_call.1} parent=87 // pred_check
          %p600 = pneg %p204
        $region106: #{tpu_custom_call.1} parent=87 // pred_check_branch
          %602 = sbr.rel (%p600) target = $region108
        $region107: #{tpu_custom_call.1} parent=87 // pred_region
          %603 = dma.done [#allocation10], 256
        $region108: #{tpu_custom_call.1} parent=87 // pred_fallthru
          _
        // Predicated region
        $region109: #{tpu_custom_call.1} parent=87 // pred_check
          %p604 = pneg %p225
        $region110: #{tpu_custom_call.1} parent=87 // pred_check_branch
          %606 = sbr.rel (%p604) target = $region112
        $region111: #{tpu_custom_call.1} parent=87 // pred_region
          %607 = dma.done [#allocation13], 64
        $region112: #{tpu_custom_call.1} parent=87 // pred_fallthru
          _
        // Predicated region
        $region113: #{tpu_custom_call.1} parent=87 // pred_check
          %p608 = pneg %p267
        $region114: #{tpu_custom_call.1} parent=87 // pred_check_branch
          %610 = sbr.rel (%p608) target = $region116
        $region115: #{tpu_custom_call.1} parent=87 // pred_region
          %611 = dma.done [#allocation13], 16
        $region116: #{tpu_custom_call.1} parent=87 // pred_fallthru
          _
        // Predicated region
        $region117: #{tpu_custom_call.1} parent=87 // pred_check
          %p612 = pneg %p288
        $region118: #{tpu_custom_call.1} parent=87 // pred_check_branch
          %614 = sbr.rel (%p612) target = $region120
        $region119: #{tpu_custom_call.1} parent=87 // pred_region
          %615 = dma.done [#allocation16], 16
        $region120: #{tpu_custom_call.1} parent=87 // pred_fallthru
          _
        // Predicated region
        $region121: #{tpu_custom_call.1} parent=87 // pred_check
          %p616 = pneg %p309
        $region122: #{tpu_custom_call.1} parent=87 // pred_check_branch
          %618 = sbr.rel (%p616) target = $region124
        $region123: #{tpu_custom_call.1} parent=87 // pred_region
          %619 = dma.done [#allocation16], 16
        $region124: #{tpu_custom_call.1} parent=87 // pred_fallthru
          _
        %s620 = smul.u32 2, %s36
        %p621 = scmp.lt.s32.totalorder %s620, 3
        %s622 = scalar_select %p621, %s620, 3
        %s623 = smul.addr %s622, 8
        %s624 = scalar_lea.vmem %s0, %s623
        %p625 = pneg %p57
        %p626 = pneg %p54
        %p627 = pneg %p78
        %p628 = pneg %p75
        %p629 = pneg %p99
        %p630 = pneg %p96
        %p631 = pneg %p120
        %p632 = pneg %p117
        %p633 = pneg %p141
        %p634 = pneg %p138
        %p635 = pneg %p162
        %p636 = pneg %p159
        %p637 = pneg %p183
        %p638 = pneg %p180
        %p639 = pneg %p204
        %p640 = pneg %p201
        %p641 = pneg %p225
        %p642 = pneg %p222
        %p643 = pneg %p246
        %p644 = pneg %p243
        %p645 = pneg %p267
        %p646 = pneg %p264
        %p647 = pneg %p288
        %p648 = pneg %p285
        %p649 = pneg %p309
        %p650 = pneg %p306
        %p651 = pneg %p330
        %p652 = pneg %p327
        %p653 = pneg %p351
        %p654 = pneg %p348
        %p655 = pneg %p372
        %p656 = pneg %p369
        %p657 = pneg %p393
        %p658 = pneg %p390
        %p659 = pneg %p419
        %p660 = pneg %p416
        %s661 = sand.u32 %s406, 1
        %s662 = scalar_lea.sflag [#allocation5], %s661
        %s663 = sand.u32 %s406, 1
        %s664 = smul.addr %s663, 16
        %s665 = scalar_lea.vmem [#allocation18], %s664
        %s666 = smul.u32 2, %s36
        %p667 = scmp.lt.s32.totalorder %s666, 3
        %s668 = scalar_select %p667, %s666, 3
        %s669 = smul.addr %s668, 8
        %s670 = scalar_lea.vmem %s0, %s669
        %s671 = smul.u32 2, %s36
        %s672 = smul.u32 2, %s36
        %v674 = vld [vmem:[%s670] sm:$0xff]
        %v675 = vld [vmem:[%s670 + $0x8] sm:$0xff]
        %v676 = vld [vmem:[%s1] sm:$0x1]
        %v677 = vld [vmem:[#allocation3] sm:$0x1]
        %vm678 = vcmask 261120
        %v679 = vsel %vm678, %v674, 0.0
        %680 = vadd.xlane.f32.xlu0 %v679
        %v681 = vpop.xlane.xlu0 %680
        %v682 = vsel %vm678, %v675, 0.0
        %683 = vadd.xlane.f32.xlu0 %v682
        %v684 = vpop.xlane.xlu0 %683
        %v685 = vrcp.pop 32.0
        %v686 = vmul.f32 %v681, %v685
        %v687 = vmul.f32 %v684, %v685
        %v688 = vsub.f32 %v674, %v686
        %v689 = vsub.f32 %v675, %v687
        %v690 = vmul.f32 %v688, %v688
        %v691 = vmul.f32 %v689, %v689
        %v692 = vsel %vm678, %v690, 0.0
        %693 = vadd.xlane.f32.xlu0 %v692
        %v694 = vpop.xlane.xlu0 %693
        %v695 = vsel %vm678, %v691, 0.0
        %696 = vadd.xlane.f32.xlu0 %v695
        %v697 = vpop.xlane.xlu0 %696
        %v698 = vmul.f32 %v694, %v685
        %v699 = vmul.f32 %v697, %v685
        %v700 = vadd.f32 %v698, 1e-05
        %v701 = vadd.f32 %v699, 1e-05
        %v702 = vrsqrt.pop %v700
        %v703 = vrsqrt.pop %v701
        %v704 = vmul.f32 %v688, %v702
        %v705 = vmul.f32 %v689, %v703
        %v707 = vlaneseq
        %v708 = vshrl.u32 %v707, 7
        %v709 = vsub.s32 0, %v708
        %v710 = vrot.slane %v676, %v709
        %v712 = vmul.f32 %v704, %v710
        %v713 = vmul.f32 %v705, %v710
        %v715 = vlaneseq
        %v716 = vshrl.u32 %v715, 7
        %v717 = vsub.s32 0, %v716
        %v718 = vrot.slane %v677, %v717
        %v720 = vadd.f32 %v712, %v718
        %v721 = vadd.f32 %v713, %v718
        %v722 = vpack.c.bf16 %v720, %v720
        %v723 = vpack.c.bf16 %v721, %v721
        %v724 = vld [vmem:[%s3] sm:$0xf]
        %v725 = vld [vmem:[#allocation6] sm:$0x1]
        %v727 = vlaneseq
        %v728 = vshrl.u32 %v727, 7
        %v729 = vsub.s32 0, %v728
        %v730 = vrot.slane %v725, %v729
        %v733 = vsel %vm678, %v722, 0
        %v736 = vsel %vm678, %v724, 0
        %738 = vmatprep.subr.bf16.mxu0 0
        %739 = vmatpush1.bf16.xpose.msra.mxu0 %v736
        %740 = vmatprep.subr.bf16.mxu0 0
        %741 = vmatpush1.bf16.xpose.msra.mxu0 0
        %742 = vmatprep.subr.bf16.mxu0 0
        %743 = vmatpush1.bf16.xpose.msra.mxu0 0
        %744 = vmatprep.subr.bf16.mxu0 0
        %745 = vmatpush1.bf16.xpose.msra.mxu0 0
        %746 = vmatprep.subr.bf16.mxu0 0
        %747 = vmatpush1.bf16.xpose.msra.mxu0 0
        %748 = vmatprep.subr.bf16.mxu0 0
        %749 = vmatpush1.bf16.xpose.msra.mxu0 0
        %750 = vmatprep.subr.bf16.mxu0 0
        %751 = vmatpush1.bf16.xpose.msra.mxu0 0
        %752 = vmatprep.subr.bf16.mxu0 0
        %753 = vmatpush1.bf16.xpose.msra.mxu0 0
        %754 = vmatprep.subr.bf16.mxu0 0
        %755 = vmatpush1.bf16.xpose.msra.mxu0 0
        %756 = vmatprep.subr.bf16.mxu0 0
        %757 = vmatpush1.bf16.xpose.msra.mxu0 0
        %758 = vmatprep.subr.bf16.mxu0 0
        %759 = vmatpush1.bf16.xpose.msra.mxu0 0
        %760 = vmatprep.subr.bf16.mxu0 0
        %761 = vmatpush1.bf16.xpose.msra.mxu0 0
        %762 = vmatprep.subr.bf16.mxu0 0
        %763 = vmatpush1.bf16.xpose.msra.mxu0 0
        %764 = vmatprep.subr.bf16.mxu0 0
        %765 = vmatpush1.bf16.xpose.msra.mxu0 0
        %766 = vmatprep.subr.bf16.mxu0 0
        %767 = vmatpush1.bf16.xpose.msra.mxu0 0
        %768 = vmatprep.subr.bf16.mxu0 0
        %769 = vmatpush1.bf16.xpose.msra.mxu0 0
        %770 = vmatprep.mubr.bf16.mxu0 0
        %771 = vmatmul.mubr.bf16.gmra.mrb[0].mxu0 %v733
        %v772 = vpop.f32.mrb[0].mxu0
        %v773 = vadd.f32 %v730, %v772
        %v774 = vpop.f32.mrb[0].mxu0
        %v775 = vpop.f32.mrb[0].mxu0
        %v776 = vpop.f32.mrb[0].mxu0
        %777 = vdwg.mxu0
        %v778 = vld [vmem:[#allocation8] sm:$0xf]
        %v779 = vld [vmem:[#allocation9] sm:$0x1]
        %v781 = vlaneseq
        %v782 = vshrl.u32 %v781, 7
        %v783 = vsub.s32 0, %v782
        %v784 = vrot.slane %v779, %v783
        %v787 = vsel %vm678, %v778, 0
        %789 = vmatprep.subr.bf16.mxu0 0
        %790 = vmatpush1.bf16.xpose.msra.mxu0 %v787
        %791 = vmatprep.subr.bf16.mxu0 0
        %792 = vmatpush1.bf16.xpose.msra.mxu0 0
        %793 = vmatprep.subr.bf16.mxu0 0
        %794 = vmatpush1.bf16.xpose.msra.mxu0 0
        %795 = vmatprep.subr.bf16.mxu0 0
        %796 = vmatpush1.bf16.xpose.msra.mxu0 0
        %797 = vmatprep.subr.bf16.mxu0 0
        %798 = vmatpush1.bf16.xpose.msra.mxu0 0
        %799 = vmatprep.subr.bf16.mxu0 0
        %800 = vmatpush1.bf16.xpose.msra.mxu0 0
        %801 = vmatprep.subr.bf16.mxu0 0
        %802 = vmatpush1.bf16.xpose.msra.mxu0 0
        %803 = vmatprep.subr.bf16.mxu0 0
        %804 = vmatpush1.bf16.xpose.msra.mxu0 0
        %805 = vmatprep.subr.bf16.mxu0 0
        %806 = vmatpush1.bf16.xpose.msra.mxu0 0
        %807 = vmatprep.subr.bf16.mxu0 0
        %808 = vmatpush1.bf16.xpose.msra.mxu0 0
        %809 = vmatprep.subr.bf16.mxu0 0
        %810 = vmatpush1.bf16.xpose.msra.mxu0 0
        %811 = vmatprep.subr.bf16.mxu0 0
        %812 = vmatpush1.bf16.xpose.msra.mxu0 0
        %813 = vmatprep.subr.bf16.mxu0 0
        %814 = vmatpush1.bf16.xpose.msra.mxu0 0
        %815 = vmatprep.subr.bf16.mxu0 0
        %816 = vmatpush1.bf16.xpose.msra.mxu0 0
        %817 = vmatprep.subr.bf16.mxu0 0
        %818 = vmatpush1.bf16.xpose.msra.mxu0 0
        %819 = vmatprep.subr.bf16.mxu0 0
        %820 = vmatpush1.bf16.xpose.msra.mxu0 0
        %821 = vmatprep.mubr.bf16.mxu0 0
        %822 = vmatmul.mubr.bf16.gmra.mrb[0].mxu0 %v733
        %v823 = vpop.f32.mrb[0].mxu0
        %v824 = vadd.f32 %v784, %v823
        %v825 = vpop.f32.mrb[0].mxu0
        %v826 = vpop.f32.mrb[0].mxu0
        %v827 = vpop.f32.mrb[0].mxu0
        %828 = vdwg.mxu0
        %v829 = vld [vmem:[#allocation11] sm:$0xf]
        %v830 = vld [vmem:[#allocation12] sm:$0x1]
        %v832 = vlaneseq
        %v833 = vshrl.u32 %v832, 7
        %v834 = vsub.s32 0, %v833
        %v835 = vrot.slane %v830, %v834
        %v838 = vsel %vm678, %v829, 0
        %840 = vmatprep.subr.bf16.mxu0 0
        %841 = vmatpush1.bf16.xpose.msra.mxu0 %v838
        %842 = vmatprep.subr.bf16.mxu0 0
        %843 = vmatpush1.bf16.xpose.msra.mxu0 0
        %844 = vmatprep.subr.bf16.mxu0 0
        %845 = vmatpush1.bf16.xpose.msra.mxu0 0
        %846 = vmatprep.subr.bf16.mxu0 0
        %847 = vmatpush1.bf16.xpose.msra.mxu0 0
        %848 = vmatprep.subr.bf16.mxu0 0
        %849 = vmatpush1.bf16.xpose.msra.mxu0 0
        %850 = vmatprep.subr.bf16.mxu0 0
        %851 = vmatpush1.bf16.xpose.msra.mxu0 0
        %852 = vmatprep.subr.bf16.mxu0 0
        %853 = vmatpush1.bf16.xpose.msra.mxu0 0
        %854 = vmatprep.subr.bf16.mxu0 0
        %855 = vmatpush1.bf16.xpose.msra.mxu0 0
        %856 = vmatprep.subr.bf16.mxu0 0
        %857 = vmatpush1.bf16.xpose.msra.mxu0 0
        %858 = vmatprep.subr.bf16.mxu0 0
        %859 = vmatpush1.bf16.xpose.msra.mxu0 0
        %860 = vmatprep.subr.bf16.mxu0 0
        %861 = vmatpush1.bf16.xpose.msra.mxu0 0
        %862 = vmatprep.subr.bf16.mxu0 0
        %863 = vmatpush1.bf16.xpose.msra.mxu0 0
        %864 = vmatprep.subr.bf16.mxu0 0
        %865 = vmatpush1.bf16.xpose.msra.mxu0 0
        %866 = vmatprep.subr.bf16.mxu0 0
        %867 = vmatpush1.bf16.xpose.msra.mxu0 0
        %868 = vmatprep.subr.bf16.mxu0 0
        %869 = vmatpush1.bf16.xpose.msra.mxu0 0
        %870 = vmatprep.subr.bf16.mxu0 0
        %871 = vmatpush1.bf16.xpose.msra.mxu0 0
        %872 = vmatprep.mubr.bf16.mxu0 0
        %873 = vmatmul.mubr.bf16.gmra.mrb[0].mxu0 %v733
        %v874 = vpop.f32.mrb[0].mxu0
        %v875 = vadd.f32 %v835, %v874
        %v876 = vpop.f32.mrb[0].mxu0
        %v877 = vpop.f32.mrb[0].mxu0
        %v878 = vpop.f32.mrb[0].mxu0
        %879 = vdwg.mxu0
        %v880 = vpack.c.bf16 %v773, %v773
        %v881 = vpack.c.bf16 %v824, %v824
        %vm882 = vcmask 64512
        %v884 = vsel %vm882, %v880, 0
        %v887 = vsel %vm882, %v881, 0
        %889 = vmatprep.subr.bf16.mxu0 0
        %890 = vmatpush1.bf16.xpose.msra.mxu0 %v887
        %891 = vmatprep.subr.bf16.mxu0 0
        %892 = vmatpush1.bf16.xpose.msra.mxu0 0
        %893 = vmatprep.subr.bf16.mxu0 0
        %894 = vmatpush1.bf16.xpose.msra.mxu0 0
        %895 = vmatprep.subr.bf16.mxu0 0
        %896 = vmatpush1.bf16.xpose.msra.mxu0 0
        %897 = vmatprep.subr.bf16.mxu0 0
        %898 = vmatpush1.bf16.xpose.msra.mxu0 0
        %899 = vmatprep.subr.bf16.mxu0 0
        %900 = vmatpush1.bf16.xpose.msra.mxu0 0
        %901 = vmatprep.subr.bf16.mxu0 0
        %902 = vmatpush1.bf16.xpose.msra.mxu0 0
        %903 = vmatprep.subr.bf16.mxu0 0
        %904 = vmatpush1.bf16.xpose.msra.mxu0 0
        %905 = vmatprep.subr.bf16.mxu0 0
        %906 = vmatpush1.bf16.xpose.msra.mxu0 0
        %907 = vmatprep.subr.bf16.mxu0 0
        %908 = vmatpush1.bf16.xpose.msra.mxu0 0
        %909 = vmatprep.subr.bf16.mxu0 0
        %910 = vmatpush1.bf16.xpose.msra.mxu0 0
        %911 = vmatprep.subr.bf16.mxu0 0
        %912 = vmatpush1.bf16.xpose.msra.mxu0 0
        %913 = vmatprep.subr.bf16.mxu0 0
        %914 = vmatpush1.bf16.xpose.msra.mxu0 0
        %915 = vmatprep.subr.bf16.mxu0 0
        %916 = vmatpush1.bf16.xpose.msra.mxu0 0
        %917 = vmatprep.subr.bf16.mxu0 0
        %918 = vmatpush1.bf16.xpose.msra.mxu0 0
        %919 = vmatprep.subr.bf16.mxu0 0
        %920 = vmatpush1.bf16.xpose.msra.mxu0 0
        %921 = vmatprep.mubr.bf16.mxu0 0
        %922 = vmatmul.mubr.bf16.gmra.mrb[0].mxu0 %v884
        %v923 = vpop.f32.mrb[0].mxu0
        %v924 = vadd.f32 0.0, %v923
        %v925 = vpop.f32.mrb[0].mxu0
        %v926 = vpop.f32.mrb[0].mxu0
        %v927 = vpop.f32.mrb[0].mxu0
        %928 = vdwg.mxu0
        %v929 = vsel %vm882, %v924, -inf
        %930 = vmax.xlane.f32.xlu0 %v929
        %v931 = vpop.xlane.xlu0 %930
        %v932 = vsub.f32 %v924, %v931
        %v933 = vmul.f32 %v932, 1.442695
        %v934 = vpow.pop %v933
        %v935 = vsel %vm882, %v934, 0.0
        %936 = vadd.xlane.f32.xlu0 %v935
        %v937 = vpop.xlane.xlu0 %936
        %v938 = vrcp.pop %v937
        %v939 = vmul.f32 %v934, %v938
        %v940 = vpack.c.bf16 %v939, %v939
        %v941 = vpack.c.bf16 %v875, %v875
        %v943 = vsel %vm882, %v940, 0
        %vm945 = vcmask 1043456
        %v947 = vsel %vm945, %v941, 0
        %949 = vmatprep.subr.bf16.mxu0 0
        %950 = vmatpush1.bf16.msra.mxu0 %v947
        %951 = vmatprep.subr.bf16.mxu0 0
        %952 = vmatpush1.bf16.msra.mxu0 0
        %953 = vmatprep.subr.bf16.mxu0 0
        %954 = vmatpush1.bf16.msra.mxu0 0
        %955 = vmatprep.subr.bf16.mxu0 0
        %956 = vmatpush1.bf16.msra.mxu0 0
        %957 = vmatprep.subr.bf16.mxu0 0
        %958 = vmatpush1.bf16.msra.mxu0 0
        %959 = vmatprep.subr.bf16.mxu0 0
        %960 = vmatpush1.bf16.msra.mxu0 0
        %961 = vmatprep.subr.bf16.mxu0 0
        %962 = vmatpush1.bf16.msra.mxu0 0
        %963 = vmatprep.subr.bf16.mxu0 0
        %964 = vmatpush1.bf16.msra.mxu0 0
        %965 = vmatprep.subr.bf16.mxu0 0
        %966 = vmatpush1.bf16.msra.mxu0 0
        %967 = vmatprep.subr.bf16.mxu0 0
        %968 = vmatpush1.bf16.msra.mxu0 0
        %969 = vmatprep.subr.bf16.mxu0 0
        %970 = vmatpush1.bf16.msra.mxu0 0
        %971 = vmatprep.subr.bf16.mxu0 0
        %972 = vmatpush1.bf16.msra.mxu0 0
        %973 = vmatprep.subr.bf16.mxu0 0
        %974 = vmatpush1.bf16.msra.mxu0 0
        %975 = vmatprep.subr.bf16.mxu0 0
        %976 = vmatpush1.bf16.msra.mxu0 0
        %977 = vmatprep.subr.bf16.mxu0 0
        %978 = vmatpush1.bf16.msra.mxu0 0
        %979 = vmatprep.subr.bf16.mxu0 0
        %980 = vmatpush1.bf16.msra.mxu0 0
        %981 = vmatprep.mubr.bf16.mxu0 0
        %982 = vmatmul.mubr.bf16.gmra.mrb[0].mxu0 %v943
        %v983 = vpop.f32.mrb[0].mxu0
        %v984 = vadd.f32 0.0, %v983
        %v985 = vpop.f32.mrb[0].mxu0
        %v986 = vpop.f32.mrb[0].mxu0
        %v987 = vpop.f32.mrb[0].mxu0
        %988 = vdwg.mxu0
        %v989 = vpack.c.bf16 %v984, %v984
        %v990 = vld [vmem:[%s9] sm:$0xf]
        %s991 = scalar_lea.vmem %s3, 4
        %v992 = vld [vmem:[%s991] sm:$0xf]
        %s993 = scalar_lea.vmem [#allocation6], 1
        %v994 = vld [vmem:[%s993] sm:$0x1]
        %v996 = vlaneseq
        %v997 = vshrl.u32 %v996, 7
        %v998 = vsub.s32 0, %v997
        %v999 = vrot.slane %v994, %v998
        %v1002 = vsel %vm678, %v992, 0
        %1004 = vmatprep.subr.bf16.mxu0 0
        %1005 = vmatpush1.bf16.xpose.msra.mxu0 %v1002
        %1006 = vmatprep.subr.bf16.mxu0 0
        %1007 = vmatpush1.bf16.xpose.msra.mxu0 0
        %1008 = vmatprep.subr.bf16.mxu0 0
        %1009 = vmatpush1.bf16.xpose.msra.mxu0 0
        %1010 = vmatprep.subr.bf16.mxu0 0
        %1011 = vmatpush1.bf16.xpose.msra.mxu0 0
        %1012 = vmatprep.subr.bf16.mxu0 0
        %1013 = vmatpush1.bf16.xpose.msra.mxu0 0
        %1014 = vmatprep.subr.bf16.mxu0 0
        %1015 = vmatpush1.bf16.xpose.msra.mxu0 0
        %1016 = vmatprep.subr.bf16.mxu0 0
        %1017 = vmatpush1.bf16.xpose.msra.mxu0 0
        %1018 = vmatprep.subr.bf16.mxu0 0
        %1019 = vmatpush1.bf16.xpose.msra.mxu0 0
        %1020 = vmatprep.subr.bf16.mxu0 0
        %1021 = vmatpush1.bf16.xpose.msra.mxu0 0
        %1022 = vmatprep.subr.bf16.mxu0 0
        %1023 = vmatpush1.bf16.xpose.msra.mxu0 0
        %1024 = vmatprep.subr.bf16.mxu0 0
        %1025 = vmatpush1.bf16.xpose.msra.mxu0 0
        %1026 = vmatprep.subr.bf16.mxu0 0
        %1027 = vmatpush1.bf16.xpose.msra.mxu0 0
        %1028 = vmatprep.subr.bf16.mxu0 0
        %1029 = vmatpush1.bf16.xpose.msra.mxu0 0
        %1030 = vmatprep.subr.bf16.mxu0 0
        %1031 = vmatpush1.bf16.xpose.msra.mxu0 0
        %1032 = vmatprep.subr.bf16.mxu0 0
        %1033 = vmatpush1.bf16.xpose.msra.mxu0 0
        %1034 = vmatprep.subr.bf16.mxu0 0
        %1035 = vmatpush1.bf16.xpose.msra.mxu0 0
        %1036 = vmatprep.mubr.bf16.mxu0 0
        %1037 = vmatmul.mubr.bf16.gmra.mrb[0].mxu0 %v733
        %v1038 = vpop.f32.mrb[0].mxu0
        %v1039 = vadd.f32 %v999, %v1038
        %v1040 = vpop.f32.mrb[0].mxu0
        %v1041 = vpop.f32.mrb[0].mxu0
        %v1042 = vpop.f32.mrb[0].mxu0
        %1043 = vdwg.mxu0
        %s1044 = scalar_lea.vmem [#allocation8], 4
        %v1045 = vld [vmem:[%s1044] sm:$0xf]
        %s1046 = scalar_lea.vmem [#allocation9], 1
        %v1047 = vld [vmem:[%s1046] sm:$0x1]
        %v1049 = vlaneseq
        %v1050 = vshrl.u32 %v1049, 7
        %v1051 = vsub.s32 0, %v1050
        %v1052 = vrot.slane %v1047, %v1051
        %v1055 = vsel %vm678, %v1045, 0
        %1057 = vmatprep.subr.bf16.mxu0 0
        %1058 = vmatpush1.bf16.xpose.msra.mxu0 %v1055
        %1059 = vmatprep.subr.bf16.mxu0 0
        %1060 = vmatpush1.bf16.xpose.msra.mxu0 0
        %1061 = vmatprep.subr.bf16.mxu0 0
        %1062 = vmatpush1.bf16.xpose.msra.mxu0 0
        %1063 = vmatprep.subr.bf16.mxu0 0
        %1064 = vmatpush1.bf16.xpose.msra.mxu0 0
        %1065 = vmatprep.subr.bf16.mxu0 0
        %1066 = vmatpush1.bf16.xpose.msra.mxu0 0
        %1067 = vmatprep.subr.bf16.mxu0 0
        %1068 = vmatpush1.bf16.xpose.msra.mxu0 0
        %1069 = vmatprep.subr.bf16.mxu0 0
        %1070 = vmatpush1.bf16.xpose.msra.mxu0 0
        %1071 = vmatprep.subr.bf16.mxu0 0
        %1072 = vmatpush1.bf16.xpose.msra.mxu0 0
        %1073 = vmatprep.subr.bf16.mxu0 0
        %1074 = vmatpush1.bf16.xpose.msra.mxu0 0
        %1075 = vmatprep.subr.bf16.mxu0 0
        %1076 = vmatpush1.bf16.xpose.msra.mxu0 0
        %1077 = vmatprep.subr.bf16.mxu0 0
        %1078 = vmatpush1.bf16.xpose.msra.mxu0 0
        %1079 = vmatprep.subr.bf16.mxu0 0
        %1080 = vmatpush1.bf16.xpose.msra.mxu0 0
        %1081 = vmatprep.subr.bf16.mxu0 0
        %1082 = vmatpush1.bf16.xpose.msra.mxu0 0
        %1083 = vmatprep.subr.bf16.mxu0 0
        %1084 = vmatpush1.bf16.xpose.msra.mxu0 0
        %1085 = vmatprep.subr.bf16.mxu0 0
        %1086 = vmatpush1.bf16.xpose.msra.mxu0 0
        %1087 = vmatprep.subr.bf16.mxu0 0
        %1088 = vmatpush1.bf16.xpose.msra.mxu0 0
        %1089 = vmatprep.mubr.bf16.mxu0 0
        %1090 = vmatmul.mubr.bf16.gmra.mrb[0].mxu0 %v733
        %v1091 = vpop.f32.mrb[0].mxu0
        %v1092 = vadd.f32 %v1052, %v1091
        %v1093 = vpop.f32.mrb[0].mxu0
        %v1094 = vpop.f32.mrb[0].mxu0
        %v1095 = vpop.f32.mrb[0].mxu0
        %1096 = vdwg.mxu0
        %s1097 = scalar_lea.vmem [#allocation11], 4
        %v1098 = vld [vmem:[%s1097] sm:$0xf]
        %s1099 = scalar_lea.vmem [#allocation12], 1
        %v1100 = vld [vmem:[%s1099] sm:$0x1]
        %v1102 = vlaneseq
        %v1103 = vshrl.u32 %v1102, 7
        %v1104 = vsub.s32 0, %v1103
        %v1105 = vrot.slane %v1100, %v1104
        %v1108 = vsel %vm678, %v1098, 0
        %1110 = vmatprep.subr.bf16.mxu0 0
        %1111 = vmatpush1.bf16.xpose.msra.mxu0 %v1108
        %1112 = vmatprep.subr.bf16.mxu0 0
        %1113 = vmatpush1.bf16.xpose.msra.mxu0 0
        %1114 = vmatprep.subr.bf16.mxu0 0
        %1115 = vmatpush1.bf16.xpose.msra.mxu0 0
        %1116 = vmatprep.subr.bf16.mxu0 0
        %1117 = vmatpush1.bf16.xpose.msra.mxu0 0
        %1118 = vmatprep.subr.bf16.mxu0 0
        %1119 = vmatpush1.bf16.xpose.msra.mxu0 0
        %1120 = vmatprep.subr.bf16.mxu0 0
        %1121 = vmatpush1.bf16.xpose.msra.mxu0 0
        %1122 = vmatprep.subr.bf16.mxu0 0
        %1123 = vmatpush1.bf16.xpose.msra.mxu0 0
        %1124 = vmatprep.subr.bf16.mxu0 0
        %1125 = vmatpush1.bf16.xpose.msra.mxu0 0
        %1126 = vmatprep.subr.bf16.mxu0 0
        %1127 = vmatpush1.bf16.xpose.msra.mxu0 0
        %1128 = vmatprep.subr.bf16.mxu0 0
        %1129 = vmatpush1.bf16.xpose.msra.mxu0 0
        %1130 = vmatprep.subr.bf16.mxu0 0
        %1131 = vmatpush1.bf16.xpose.msra.mxu0 0
        %1132 = vmatprep.subr.bf16.mxu0 0
        %1133 = vmatpush1.bf16.xpose.msra.mxu0 0
        %1134 = vmatprep.subr.bf16.mxu0 0
        %1135 = vmatpush1.bf16.xpose.msra.mxu0 0
        %1136 = vmatprep.subr.bf16.mxu0 0
        %1137 = vmatpush1.bf16.xpose.msra.mxu0 0
        %1138 = vmatprep.subr.bf16.mxu0 0
        %1139 = vmatpush1.bf16.xpose.msra.mxu0 0
        %1140 = vmatprep.subr.bf16.mxu0 0
        %1141 = vmatpush1.bf16.xpose.msra.mxu0 0
        %1142 = vmatprep.mubr.bf16.mxu0 0
        %1143 = vmatmul.mubr.bf16.gmra.mrb[0].mxu0 %v733
        %v1144 = vpop.f32.mrb[0].mxu0
        %v1145 = vadd.f32 %v1105, %v1144
        %v1146 = vpop.f32.mrb[0].mxu0
        %v1147 = vpop.f32.mrb[0].mxu0
        %v1148 = vpop.f32.mrb[0].mxu0
        %1149 = vdwg.mxu0
        %v1150 = vpack.c.bf16 %v1039, %v1039
        %v1151 = vpack.c.bf16 %v1092, %v1092
        %v1153 = vsel %vm882, %v1150, 0
        %v1156 = vsel %vm882, %v1151, 0
        %1158 = vmatprep.subr.bf16.mxu0 0
        %1159 = vmatpush1.bf16.xpose.msra.mxu0 %v1156
        %1160 = vmatprep.subr.bf16.mxu0 0
        %1161 = vmatpush1.bf16.xpose.msra.mxu0 0
        %1162 = vmatprep.subr.bf16.mxu0 0
        %1163 = vmatpush1.bf16.xpose.msra.mxu0 0
        %1164 = vmatprep.subr.bf16.mxu0 0
        %1165 = vmatpush1.bf16.xpose.msra.mxu0 0
        %1166 = vmatprep.subr.bf16.mxu0 0
        %1167 = vmatpush1.bf16.xpose.msra.mxu0 0
        %1168 = vmatprep.subr.bf16.mxu0 0
        %1169 = vmatpush1.bf16.xpose.msra.mxu0 0
        %1170 = vmatprep.subr.bf16.mxu0 0
        %1171 = vmatpush1.bf16.xpose.msra.mxu0 0
        %1172 = vmatprep.subr.bf16.mxu0 0
        %1173 = vmatpush1.bf16.xpose.msra.mxu0 0
        %1174 = vmatprep.subr.bf16.mxu0 0
        %1175 = vmatpush1.bf16.xpose.msra.mxu0 0
        %1176 = vmatprep.subr.bf16.mxu0 0
        %1177 = vmatpush1.bf16.xpose.msra.mxu0 0
        %1178 = vmatprep.subr.bf16.mxu0 0
        %1179 = vmatpush1.bf16.xpose.msra.mxu0 0
        %1180 = vmatprep.subr.bf16.mxu0 0
        %1181 = vmatpush1.bf16.xpose.msra.mxu0 0
        %1182 = vmatprep.subr.bf16.mxu0 0
        %1183 = vmatpush1.bf16.xpose.msra.mxu0 0
        %1184 = vmatprep.subr.bf16.mxu0 0
        %1185 = vmatpush1.bf16.xpose.msra.mxu0 0
        %1186 = vmatprep.subr.bf16.mxu0 0
        %1187 = vmatpush1.bf16.xpose.msra.mxu0 0
        %1188 = vmatprep.subr.bf16.mxu0 0
        %1189 = vmatpush1.bf16.xpose.msra.mxu0 0
        %1190 = vmatprep.mubr.bf16.mxu0 0
        %1191 = vmatmul.mubr.bf16.gmra.mrb[0].mxu0 %v1153
        %v1192 = vpop.f32.mrb[0].mxu0
        %v1193 = vadd.f32 0.0, %v1192
        %v1194 = vpop.f32.mrb[0].mxu0
        %v1195 = vpop.f32.mrb[0].mxu0
        %v1196 = vpop.f32.mrb[0].mxu0
        %1197 = vdwg.mxu0
        %v1198 = vsel %vm882, %v1193, -inf
        %1199 = vmax.xlane.f32.xlu0 %v1198
        %v1200 = vpop.xlane.xlu0 %1199
        %v1201 = vsub.f32 %v1193, %v1200
        %v1202 = vmul.f32 %v1201, 1.442695
        %v1203 = vpow.pop %v1202
        %v1204 = vsel %vm882, %v1203, 0.0
        %1205 = vadd.xlane.f32.xlu0 %v1204
        %v1206 = vpop.xlane.xlu0 %1205
        %v1207 = vrcp.pop %v1206
        %v1208 = vmul.f32 %v1203, %v1207
        %v1209 = vpack.c.bf16 %v1208, %v1208
        %v1210 = vpack.c.bf16 %v1145, %v1145
        %v1212 = vsel %vm882, %v1209, 0
        %v1215 = vsel %vm945, %v1210, 0
        %1217 = vmatprep.subr.bf16.mxu0 0
        %1218 = vmatpush1.bf16.msra.mxu0 %v1215
        %1219 = vmatprep.subr.bf16.mxu0 0
        %1220 = vmatpush1.bf16.msra.mxu0 0
        %1221 = vmatprep.subr.bf16.mxu0 0
        %1222 = vmatpush1.bf16.msra.mxu0 0
        %1223 = vmatprep.subr.bf16.mxu0 0
        %1224 = vmatpush1.bf16.msra.mxu0 0
        %1225 = vmatprep.subr.bf16.mxu0 0
        %1226 = vmatpush1.bf16.msra.mxu0 0
        %1227 = vmatprep.subr.bf16.mxu0 0
        %1228 = vmatpush1.bf16.msra.mxu0 0
        %1229 = vmatprep.subr.bf16.mxu0 0
        %1230 = vmatpush1.bf16.msra.mxu0 0
        %1231 = vmatprep.subr.bf16.mxu0 0
        %1232 = vmatpush1.bf16.msra.mxu0 0
        %1233 = vmatprep.subr.bf16.mxu0 0
        %1234 = vmatpush1.bf16.msra.mxu0 0
        %1235 = vmatprep.subr.bf16.mxu0 0
        %1236 = vmatpush1.bf16.msra.mxu0 0
        %1237 = vmatprep.subr.bf16.mxu0 0
        %1238 = vmatpush1.bf16.msra.mxu0 0
        %1239 = vmatprep.subr.bf16.mxu0 0
        %1240 = vmatpush1.bf16.msra.mxu0 0
        %1241 = vmatprep.subr.bf16.mxu0 0
        %1242 = vmatpush1.bf16.msra.mxu0 0
        %1243 = vmatprep.subr.bf16.mxu0 0
        %1244 = vmatpush1.bf16.msra.mxu0 0
        %1245 = vmatprep.subr.bf16.mxu0 0
        %1246 = vmatpush1.bf16.msra.mxu0 0
        %1247 = vmatprep.subr.bf16.mxu0 0
        %1248 = vmatpush1.bf16.msra.mxu0 0
        %1249 = vmatprep.mubr.bf16.mxu0 0
        %1250 = vmatmul.mubr.bf16.gmra.mrb[0].mxu0 %v1212
        %v1251 = vpop.f32.mrb[0].mxu0
        %v1252 = vadd.f32 0.0, %v1251
        %v1253 = vpop.f32.mrb[0].mxu0
        %v1254 = vpop.f32.mrb[0].mxu0
        %v1255 = vpop.f32.mrb[0].mxu0
        %1256 = vdwg.mxu0
        %v1257 = vpack.c.bf16 %v1252, %v1252
        %s1258 = scalar_lea.vmem %s9, 4
        %v1259 = vld [vmem:[%s1258] sm:$0xf]
        %v1261 = vsel %vm882, %v1257, 0
        %v1264 = vsel %vm945, %v1259, 0
        %1266 = vmatprep.subr.bf16.mxu0 0
        %1267 = vmatpush1.bf16.msra.mxu0 %v1264
        %1268 = vmatprep.subr.bf16.mxu0 0
        %1269 = vmatpush1.bf16.msra.mxu0 0
        %1270 = vmatprep.subr.bf16.mxu0 0
        %1271 = vmatpush1.bf16.msra.mxu0 0
        %1272 = vmatprep.subr.bf16.mxu0 0
        %1273 = vmatpush1.bf16.msra.mxu0 0
        %1274 = vmatprep.subr.bf16.mxu0 0
        %1275 = vmatpush1.bf16.msra.mxu0 0
        %1276 = vmatprep.subr.bf16.mxu0 0
        %1277 = vmatpush1.bf16.msra.mxu0 0
        %1278 = vmatprep.subr.bf16.mxu0 0
        %1279 = vmatpush1.bf16.msra.mxu0 0
        %1280 = vmatprep.subr.bf16.mxu0 0
        %1281 = vmatpush1.bf16.msra.mxu0 0
        %1282 = vmatprep.subr.bf16.mxu0 0
        %1283 = vmatpush1.bf16.msra.mxu0 0
        %1284 = vmatprep.subr.bf16.mxu0 0
        %1285 = vmatpush1.bf16.msra.mxu0 0
        %1286 = vmatprep.subr.bf16.mxu0 0
        %1287 = vmatpush1.bf16.msra.mxu0 0
        %1288 = vmatprep.subr.bf16.mxu0 0
        %1289 = vmatpush1.bf16.msra.mxu0 0
        %1290 = vmatprep.subr.bf16.mxu0 0
        %1291 = vmatpush1.bf16.msra.mxu0 0
        %1292 = vmatprep.subr.bf16.mxu0 0
        %1293 = vmatpush1.bf16.msra.mxu0 0
        %1294 = vmatprep.subr.bf16.mxu0 0
        %1295 = vmatpush1.bf16.msra.mxu0 0
        %1296 = vmatprep.subr.bf16.mxu0 0
        %1297 = vmatpush1.bf16.msra.mxu0 0
        %1298 = vmatprep.mubr.bf16.mxu0 0
        %1299 = vmatmul.mubr.bf16.gmra.mrb[0].mxu0 %v1261
        %v1300 = vpop.f32.mrb[0].mxu0
        %v1301 = vadd.f32 0.0, %v1300
        %v1302 = vpop.f32.mrb[0].mxu0
        %v1303 = vpop.f32.mrb[0].mxu0
        %v1304 = vpop.f32.mrb[0].mxu0
        %1305 = vdwg.mxu0
        %v1307 = vsel %vm882, %v989, 0
        %v1310 = vsel %vm945, %v990, 0
        %1312 = vmatprep.subr.bf16.mxu0 0
        %1313 = vmatpush1.bf16.msra.mxu0 %v1310
        %1314 = vmatprep.subr.bf16.mxu0 0
        %1315 = vmatpush1.bf16.msra.mxu0 0
        %1316 = vmatprep.subr.bf16.mxu0 0
        %1317 = vmatpush1.bf16.msra.mxu0 0
        %1318 = vmatprep.subr.bf16.mxu0 0
        %1319 = vmatpush1.bf16.msra.mxu0 0
        %1320 = vmatprep.subr.bf16.mxu0 0
        %1321 = vmatpush1.bf16.msra.mxu0 0
        %1322 = vmatprep.subr.bf16.mxu0 0
        %1323 = vmatpush1.bf16.msra.mxu0 0
        %1324 = vmatprep.subr.bf16.mxu0 0
        %1325 = vmatpush1.bf16.msra.mxu0 0
        %1326 = vmatprep.subr.bf16.mxu0 0
        %1327 = vmatpush1.bf16.msra.mxu0 0
        %1328 = vmatprep.subr.bf16.mxu0 0
        %1329 = vmatpush1.bf16.msra.mxu0 0
        %1330 = vmatprep.subr.bf16.mxu0 0
        %1331 = vmatpush1.bf16.msra.mxu0 0
        %1332 = vmatprep.subr.bf16.mxu0 0
        %1333 = vmatpush1.bf16.msra.mxu0 0
        %1334 = vmatprep.subr.bf16.mxu0 0
        %1335 = vmatpush1.bf16.msra.mxu0 0
        %1336 = vmatprep.subr.bf16.mxu0 0
        %1337 = vmatpush1.bf16.msra.mxu0 0
        %1338 = vmatprep.subr.bf16.mxu0 0
        %1339 = vmatpush1.bf16.msra.mxu0 0
        %1340 = vmatprep.subr.bf16.mxu0 0
        %1341 = vmatpush1.bf16.msra.mxu0 0
        %1342 = vmatprep.subr.bf16.mxu0 0
        %1343 = vmatpush1.bf16.msra.mxu0 0
        %1344 = vmatprep.mubr.bf16.mxu0 0
        %1345 = vmatmul.mubr.bf16.gmra.mrb[0].mxu0 %v1307
        %v1346 = vpop.f32.mrb[0].mxu0
        %v1347 = vadd.f32 %v1301, %v1346
        %v1348 = vpop.f32.mrb[0].mxu0
        %v1349 = vpop.f32.mrb[0].mxu0
        %v1350 = vpop.f32.mrb[0].mxu0
        %1351 = vdwg.mxu0
        %s1352 = scalar_lea.vmem %s3, 8
        %v1353 = vld [vmem:[%s1352] sm:$0xf]
        %s1354 = scalar_lea.vmem [#allocation6], 2
        %v1355 = vld [vmem:[%s1354] sm:$0x1]
        %v1357 = vlaneseq
        %v1358 = vshrl.u32 %v1357, 7
        %v1359 = vsub.s32 0, %v1358
        %v1360 = vrot.slane %v1355, %v1359
        %v1363 = vsel %vm678, %v1353, 0
        %1365 = vmatprep.subr.bf16.mxu0 0
        %1366 = vmatpush1.bf16.xpose.msra.mxu0 %v1363
        %1367 = vmatprep.subr.bf16.mxu0 0
        %1368 = vmatpush1.bf16.xpose.msra.mxu0 0
        %1369 = vmatprep.subr.bf16.mxu0 0
        %1370 = vmatpush1.bf16.xpose.msra.mxu0 0
        %1371 = vmatprep.subr.bf16.mxu0 0
        %1372 = vmatpush1.bf16.xpose.msra.mxu0 0
        %1373 = vmatprep.subr.bf16.mxu0 0
        %1374 = vmatpush1.bf16.xpose.msra.mxu0 0
        %1375 = vmatprep.subr.bf16.mxu0 0
        %1376 = vmatpush1.bf16.xpose.msra.mxu0 0
        %1377 = vmatprep.subr.bf16.mxu0 0
        %1378 = vmatpush1.bf16.xpose.msra.mxu0 0
        %1379 = vmatprep.subr.bf16.mxu0 0
        %1380 = vmatpush1.bf16.xpose.msra.mxu0 0
        %1381 = vmatprep.subr.bf16.mxu0 0
        %1382 = vmatpush1.bf16.xpose.msra.mxu0 0
        %1383 = vmatprep.subr.bf16.mxu0 0
        %1384 = vmatpush1.bf16.xpose.msra.mxu0 0
        %1385 = vmatprep.subr.bf16.mxu0 0
        %1386 = vmatpush1.bf16.xpose.msra.mxu0 0
        %1387 = vmatprep.subr.bf16.mxu0 0
        %1388 = vmatpush1.bf16.xpose.msra.mxu0 0
        %1389 = vmatprep.subr.bf16.mxu0 0
        %1390 = vmatpush1.bf16.xpose.msra.mxu0 0
        %1391 = vmatprep.subr.bf16.mxu0 0
        %1392 = vmatpush1.bf16.xpose.msra.mxu0 0
        %1393 = vmatprep.subr.bf16.mxu0 0
        %1394 = vmatpush1.bf16.xpose.msra.mxu0 0
        %1395 = vmatprep.subr.bf16.mxu0 0
        %1396 = vmatpush1.bf16.xpose.msra.mxu0 0
        %1397 = vmatprep.mubr.bf16.mxu0 0
        %1398 = vmatmul.mubr.bf16.gmra.mrb[0].mxu0 %v733
        %v1399 = vpop.f32.mrb[0].mxu0
        %v1400 = vadd.f32 %v1360, %v1399
        %v1401 = vpop.f32.mrb[0].mxu0
        %v1402 = vpop.f32.mrb[0].mxu0
        %v1403 = vpop.f32.mrb[0].mxu0
        %1404 = vdwg.mxu0
        %s1405 = scalar_lea.vmem [#allocation8], 8
        %v1406 = vld [vmem:[%s1405] sm:$0xf]
        %s1407 = scalar_lea.vmem [#allocation9], 2
        %v1408 = vld [vmem:[%s1407] sm:$0x1]
        %v1410 = vlaneseq
        %v1411 = vshrl.u32 %v1410, 7
        %v1412 = vsub.s32 0, %v1411
        %v1413 = vrot.slane %v1408, %v1412
        %v1416 = vsel %vm678, %v1406, 0
        %1418 = vmatprep.subr.bf16.mxu0 0
        %1419 = vmatpush1.bf16.xpose.msra.mxu0 %v1416
        %1420 = vmatprep.subr.bf16.mxu0 0
        %1421 = vmatpush1.bf16.xpose.msra.mxu0 0
        %1422 = vmatprep.subr.bf16.mxu0 0
        %1423 = vmatpush1.bf16.xpose.msra.mxu0 0
        %1424 = vmatprep.subr.bf16.mxu0 0
        %1425 = vmatpush1.bf16.xpose.msra.mxu0 0
        %1426 = vmatprep.subr.bf16.mxu0 0
        %1427 = vmatpush1.bf16.xpose.msra.mxu0 0
        %1428 = vmatprep.subr.bf16.mxu0 0
        %1429 = vmatpush1.bf16.xpose.msra.mxu0 0
        %1430 = vmatprep.subr.bf16.mxu0 0
        %1431 = vmatpush1.bf16.xpose.msra.mxu0 0
        %1432 = vmatprep.subr.bf16.mxu0 0
        %1433 = vmatpush1.bf16.xpose.msra.mxu0 0
        %1434 = vmatprep.subr.bf16.mxu0 0
        %1435 = vmatpush1.bf16.xpose.msra.mxu0 0
        %1436 = vmatprep.subr.bf16.mxu0 0
        %1437 = vmatpush1.bf16.xpose.msra.mxu0 0
        %1438 = vmatprep.subr.bf16.mxu0 0
        %1439 = vmatpush1.bf16.xpose.msra.mxu0 0
        %1440 = vmatprep.subr.bf16.mxu0 0
        %1441 = vmatpush1.bf16.xpose.msra.mxu0 0
        %1442 = vmatprep.subr.bf16.mxu0 0
        %1443 = vmatpush1.bf16.xpose.msra.mxu0 0
        %1444 = vmatprep.subr.bf16.mxu0 0
        %1445 = vmatpush1.bf16.xpose.msra.mxu0 0
        %1446 = vmatprep.subr.bf16.mxu0 0
        %1447 = vmatpush1.bf16.xpose.msra.mxu0 0
        %1448 = vmatprep.subr.bf16.mxu0 0
        %1449 = vmatpush1.bf16.xpose.msra.mxu0 0
        %1450 = vmatprep.mubr.bf16.mxu0 0
        %1451 = vmatmul.mubr.bf16.gmra.mrb[0].mxu0 %v733
        %v1452 = vpop.f32.mrb[0].mxu0
        %v1453 = vadd.f32 %v1413, %v1452
        %v1454 = vpop.f32.mrb[0].mxu0
        %v1455 = vpop.f32.mrb[0].mxu0
        %v1456 = vpop.f32.mrb[0].mxu0
        %1457 = vdwg.mxu0
        %s1458 = scalar_lea.vmem [#allocation11], 8
        %v1459 = vld [vmem:[%s1458] sm:$0xf]
        %s1460 = scalar_lea.vmem [#allocation12], 2
        %v1461 = vld [vmem:[%s1460] sm:$0x1]
        %v1463 = vlaneseq
        %v1464 = vshrl.u32 %v1463, 7
        %v1465 = vsub.s32 0, %v1464
        %v1466 = vrot.slane %v1461, %v1465
        %v1469 = vsel %vm678, %v1459, 0
        %1471 = vmatprep.subr.bf16.mxu0 0
        %1472 = vmatpush1.bf16.xpose.msra.mxu0 %v1469
        %1473 = vmatprep.subr.bf16.mxu0 0
        %1474 = vmatpush1.bf16.xpose.msra.mxu0 0
        %1475 = vmatprep.subr.bf16.mxu0 0
        %1476 = vmatpush1.bf16.xpose.msra.mxu0 0
        %1477 = vmatprep.subr.bf16.mxu0 0
        %1478 = vmatpush1.bf16.xpose.msra.mxu0 0
        %1479 = vmatprep.subr.bf16.mxu0 0
        %1480 = vmatpush1.bf16.xpose.msra.mxu0 0
        %1481 = vmatprep.subr.bf16.mxu0 0
        %1482 = vmatpush1.bf16.xpose.msra.mxu0 0
        %1483 = vmatprep.subr.bf16.mxu0 0
        %1484 = vmatpush1.bf16.xpose.msra.mxu0 0
        %1485 = vmatprep.subr.bf16.mxu0 0
        %1486 = vmatpush1.bf16.xpose.msra.mxu0 0
        %1487 = vmatprep.subr.bf16.mxu0 0
        %1488 = vmatpush1.bf16.xpose.msra.mxu0 0
        %1489 = vmatprep.subr.bf16.mxu0 0
        %1490 = vmatpush1.bf16.xpose.msra.mxu0 0
        %1491 = vmatprep.subr.bf16.mxu0 0
        %1492 = vmatpush1.bf16.xpose.msra.mxu0 0
        %1493 = vmatprep.subr.bf16.mxu0 0
        %1494 = vmatpush1.bf16.xpose.msra.mxu0 0
        %1495 = vmatprep.subr.bf16.mxu0 0
        %1496 = vmatpush1.bf16.xpose.msra.mxu0 0
        %1497 = vmatprep.subr.bf16.mxu0 0
        %1498 = vmatpush1.bf16.xpose.msra.mxu0 0
        %1499 = vmatprep.subr.bf16.mxu0 0
        %1500 = vmatpush1.bf16.xpose.msra.mxu0 0
        %1501 = vmatprep.subr.bf16.mxu0 0
        %1502 = vmatpush1.bf16.xpose.msra.mxu0 0
        %1503 = vmatprep.mubr.bf16.mxu0 0
        %1504 = vmatmul.mubr.bf16.gmra.mrb[0].mxu0 %v733
        %v1505 = vpop.f32.mrb[0].mxu0
        %v1506 = vadd.f32 %v1466, %v1505
        %v1507 = vpop.f32.mrb[0].mxu0
        %v1508 = vpop.f32.mrb[0].mxu0
        %v1509 = vpop.f32.mrb[0].mxu0
        %1510 = vdwg.mxu0
        %v1511 = vpack.c.bf16 %v1400, %v1400
        %v1512 = vpack.c.bf16 %v1453, %v1453
        %v1514 = vsel %vm882, %v1511, 0
        %v1517 = vsel %vm882, %v1512, 0
        %1519 = vmatprep.subr.bf16.mxu0 0
        %1520 = vmatpush1.bf16.xpose.msra.mxu0 %v1517
        %1521 = vmatprep.subr.bf16.mxu0 0
        %1522 = vmatpush1.bf16.xpose.msra.mxu0 0
        %1523 = vmatprep.subr.bf16.mxu0 0
        %1524 = vmatpush1.bf16.xpose.msra.mxu0 0
        %1525 = vmatprep.subr.bf16.mxu0 0
        %1526 = vmatpush1.bf16.xpose.msra.mxu0 0
        %1527 = vmatprep.subr.bf16.mxu0 0
        %1528 = vmatpush1.bf16.xpose.msra.mxu0 0
        %1529 = vmatprep.subr.bf16.mxu0 0
        %1530 = vmatpush1.bf16.xpose.msra.mxu0 0
        %1531 = vmatprep.subr.bf16.mxu0 0
        %1532 = vmatpush1.bf16.xpose.msra.mxu0 0
        %1533 = vmatprep.subr.bf16.mxu0 0
        %1534 = vmatpush1.bf16.xpose.msra.mxu0 0
        %1535 = vmatprep.subr.bf16.mxu0 0
        %1536 = vmatpush1.bf16.xpose.msra.mxu0 0
        %1537 = vmatprep.subr.bf16.mxu0 0
        %1538 = vmatpush1.bf16.xpose.msra.mxu0 0
        %1539 = vmatprep.subr.bf16.mxu0 0
        %1540 = vmatpush1.bf16.xpose.msra.mxu0 0
        %1541 = vmatprep.subr.bf16.mxu0 0
        %1542 = vmatpush1.bf16.xpose.msra.mxu0 0
        %1543 = vmatprep.subr.bf16.mxu0 0
        %1544 = vmatpush1.bf16.xpose.msra.mxu0 0
        %1545 = vmatprep.subr.bf16.mxu0 0
        %1546 = vmatpush1.bf16.xpose.msra.mxu0 0
        %1547 = vmatprep.subr.bf16.mxu0 0
        %1548 = vmatpush1.bf16.xpose.msra.mxu0 0
        %1549 = vmatprep.subr.bf16.mxu0 0
        %1550 = vmatpush1.bf16.xpose.msra.mxu0 0
        %1551 = vmatprep.mubr.bf16.mxu0 0
        %1552 = vmatmul.mubr.bf16.gmra.mrb[0].mxu0 %v1514
        %v1553 = vpop.f32.mrb[0].mxu0
        %v1554 = vadd.f32 0.0, %v1553
        %v1555 = vpop.f32.mrb[0].mxu0
        %v1556 = vpop.f32.mrb[0].mxu0
        %v1557 = vpop.f32.mrb[0].mxu0
        %1558 = vdwg.mxu0
        %v1559 = vsel %vm882, %v1554, -inf
        %1560 = vmax.xlane.f32.xlu0 %v1559
        %v1561 = vpop.xlane.xlu0 %1560
        %v1562 = vsub.f32 %v1554, %v1561
        %v1563 = vmul.f32 %v1562, 1.442695
        %v1564 = vpow.pop %v1563
        %v1565 = vsel %vm882, %v1564, 0.0
        %1566 = vadd.xlane.f32.xlu0 %v1565
        %v1567 = vpop.xlane.xlu0 %1566
        %v1568 = vrcp.pop %v1567
        %v1569 = vmul.f32 %v1564, %v1568
        %v1570 = vpack.c.bf16 %v1569, %v1569
        %v1571 = vpack.c.bf16 %v1506, %v1506
        %v1573 = vsel %vm882, %v1570, 0
        %v1576 = vsel %vm945, %v1571, 0
        %1578 = vmatprep.subr.bf16.mxu0 0
        %1579 = vmatpush1.bf16.msra.mxu0 %v1576
        %1580 = vmatprep.subr.bf16.mxu0 0
        %1581 = vmatpush1.bf16.msra.mxu0 0
        %1582 = vmatprep.subr.bf16.mxu0 0
        %1583 = vmatpush1.bf16.msra.mxu0 0
        %1584 = vmatprep.subr.bf16.mxu0 0
        %1585 = vmatpush1.bf16.msra.mxu0 0
        %1586 = vmatprep.subr.bf16.mxu0 0
        %1587 = vmatpush1.bf16.msra.mxu0 0
        %1588 = vmatprep.subr.bf16.mxu0 0
        %1589 = vmatpush1.bf16.msra.mxu0 0
        %1590 = vmatprep.subr.bf16.mxu0 0
        %1591 = vmatpush1.bf16.msra.mxu0 0
        %1592 = vmatprep.subr.bf16.mxu0 0
        %1593 = vmatpush1.bf16.msra.mxu0 0
        %1594 = vmatprep.subr.bf16.mxu0 0
        %1595 = vmatpush1.bf16.msra.mxu0 0
        %1596 = vmatprep.subr.bf16.mxu0 0
        %1597 = vmatpush1.bf16.msra.mxu0 0
        %1598 = vmatprep.subr.bf16.mxu0 0
        %1599 = vmatpush1.bf16.msra.mxu0 0
        %1600 = vmatprep.subr.bf16.mxu0 0
        %1601 = vmatpush1.bf16.msra.mxu0 0
        %1602 = vmatprep.subr.bf16.mxu0 0
        %1603 = vmatpush1.bf16.msra.mxu0 0
        %1604 = vmatprep.subr.bf16.mxu0 0
        %1605 = vmatpush1.bf16.msra.mxu0 0
        %1606 = vmatprep.subr.bf16.mxu0 0
        %1607 = vmatpush1.bf16.msra.mxu0 0
        %1608 = vmatprep.subr.bf16.mxu0 0
        %1609 = vmatpush1.bf16.msra.mxu0 0
        %1610 = vmatprep.mubr.bf16.mxu0 0
        %1611 = vmatmul.mubr.bf16.gmra.mrb[0].mxu0 %v1573
        %v1612 = vpop.f32.mrb[0].mxu0
        %v1613 = vadd.f32 0.0, %v1612
        %v1614 = vpop.f32.mrb[0].mxu0
        %v1615 = vpop.f32.mrb[0].mxu0
        %v1616 = vpop.f32.mrb[0].mxu0
        %1617 = vdwg.mxu0
        %v1618 = vpack.c.bf16 %v1613, %v1613
        %s1619 = scalar_lea.vmem %s9, 8
        %v1620 = vld [vmem:[%s1619] sm:$0xf]
        %v1622 = vsel %vm882, %v1618, 0
        %v1625 = vsel %vm945, %v1620, 0
        %1627 = vmatprep.subr.bf16.mxu0 0
        %1628 = vmatpush1.bf16.msra.mxu0 %v1625
        %1629 = vmatprep.subr.bf16.mxu0 0
        %1630 = vmatpush1.bf16.msra.mxu0 0
        %1631 = vmatprep.subr.bf16.mxu0 0
        %1632 = vmatpush1.bf16.msra.mxu0 0
        %1633 = vmatprep.subr.bf16.mxu0 0
        %1634 = vmatpush1.bf16.msra.mxu0 0
        %1635 = vmatprep.subr.bf16.mxu0 0
        %1636 = vmatpush1.bf16.msra.mxu0 0
        %1637 = vmatprep.subr.bf16.mxu0 0
        %1638 = vmatpush1.bf16.msra.mxu0 0
        %1639 = vmatprep.subr.bf16.mxu0 0
        %1640 = vmatpush1.bf16.msra.mxu0 0
        %1641 = vmatprep.subr.bf16.mxu0 0
        %1642 = vmatpush1.bf16.msra.mxu0 0
        %1643 = vmatprep.subr.bf16.mxu0 0
        %1644 = vmatpush1.bf16.msra.mxu0 0
        %1645 = vmatprep.subr.bf16.mxu0 0
        %1646 = vmatpush1.bf16.msra.mxu0 0
        %1647 = vmatprep.subr.bf16.mxu0 0
        %1648 = vmatpush1.bf16.msra.mxu0 0
        %1649 = vmatprep.subr.bf16.mxu0 0
        %1650 = vmatpush1.bf16.msra.mxu0 0
        %1651 = vmatprep.subr.bf16.mxu0 0
        %1652 = vmatpush1.bf16.msra.mxu0 0
        %1653 = vmatprep.subr.bf16.mxu0 0
        %1654 = vmatpush1.bf16.msra.mxu0 0
        %1655 = vmatprep.subr.bf16.mxu0 0
        %1656 = vmatpush1.bf16.msra.mxu0 0
        %1657 = vmatprep.subr.bf16.mxu0 0
        %1658 = vmatpush1.bf16.msra.mxu0 0
        %1659 = vmatprep.mubr.bf16.mxu0 0
        %1660 = vmatmul.mubr.bf16.gmra.mrb[0].mxu0 %v1622
        %v1661 = vpop.f32.mrb[0].mxu0
        %v1662 = vadd.f32 0.0, %v1661
        %v1663 = vpop.f32.mrb[0].mxu0
        %v1664 = vpop.f32.mrb[0].mxu0
        %v1665 = vpop.f32.mrb[0].mxu0
        %1666 = vdwg.mxu0
        %v1667 = vadd.f32 %v1347, %v1662
        %s1668 = scalar_lea.vmem %s3, 12
        %v1669 = vld [vmem:[%s1668] sm:$0xf]
        %s1670 = scalar_lea.vmem [#allocation6], 3
        %v1671 = vld [vmem:[%s1670] sm:$0x1]
        %v1673 = vlaneseq
        %v1674 = vshrl.u32 %v1673, 7
        %v1675 = vsub.s32 0, %v1674
        %v1676 = vrot.slane %v1671, %v1675
        %v1679 = vsel %vm678, %v1669, 0
        %1681 = vmatprep.subr.bf16.mxu0 0
        %1682 = vmatpush1.bf16.xpose.msra.mxu0 %v1679
        %1683 = vmatprep.subr.bf16.mxu0 0
        %1684 = vmatpush1.bf16.xpose.msra.mxu0 0
        %1685 = vmatprep.subr.bf16.mxu0 0
        %1686 = vmatpush1.bf16.xpose.msra.mxu0 0
        %1687 = vmatprep.subr.bf16.mxu0 0
        %1688 = vmatpush1.bf16.xpose.msra.mxu0 0
        %1689 = vmatprep.subr.bf16.mxu0 0
        %1690 = vmatpush1.bf16.xpose.msra.mxu0 0
        %1691 = vmatprep.subr.bf16.mxu0 0
        %1692 = vmatpush1.bf16.xpose.msra.mxu0 0
        %1693 = vmatprep.subr.bf16.mxu0 0
        %1694 = vmatpush1.bf16.xpose.msra.mxu0 0
        %1695 = vmatprep.subr.bf16.mxu0 0
        %1696 = vmatpush1.bf16.xpose.msra.mxu0 0
        %1697 = vmatprep.subr.bf16.mxu0 0
        %1698 = vmatpush1.bf16.xpose.msra.mxu0 0
        %1699 = vmatprep.subr.bf16.mxu0 0
        %1700 = vmatpush1.bf16.xpose.msra.mxu0 0
        %1701 = vmatprep.subr.bf16.mxu0 0
        %1702 = vmatpush1.bf16.xpose.msra.mxu0 0
        %1703 = vmatprep.subr.bf16.mxu0 0
        %1704 = vmatpush1.bf16.xpose.msra.mxu0 0
        %1705 = vmatprep.subr.bf16.mxu0 0
        %1706 = vmatpush1.bf16.xpose.msra.mxu0 0
        %1707 = vmatprep.subr.bf16.mxu0 0
        %1708 = vmatpush1.bf16.xpose.msra.mxu0 0
        %1709 = vmatprep.subr.bf16.mxu0 0
        %1710 = vmatpush1.bf16.xpose.msra.mxu0 0
        %1711 = vmatprep.subr.bf16.mxu0 0
        %1712 = vmatpush1.bf16.xpose.msra.mxu0 0
        %1713 = vmatprep.mubr.bf16.mxu0 0
        %1714 = vmatmul.mubr.bf16.gmra.mrb[0].mxu0 %v733
        %v1715 = vpop.f32.mrb[0].mxu0
        %v1716 = vadd.f32 %v1676, %v1715
        %v1717 = vpop.f32.mrb[0].mxu0
        %v1718 = vpop.f32.mrb[0].mxu0
        %v1719 = vpop.f32.mrb[0].mxu0
        %1720 = vdwg.mxu0
        %s1721 = scalar_lea.vmem [#allocation8], 12
        %v1722 = vld [vmem:[%s1721] sm:$0xf]
        %s1723 = scalar_lea.vmem [#allocation9], 3
        %v1724 = vld [vmem:[%s1723] sm:$0x1]
        %v1726 = vlaneseq
        %v1727 = vshrl.u32 %v1726, 7
        %v1728 = vsub.s32 0, %v1727
        %v1729 = vrot.slane %v1724, %v1728
        %v1732 = vsel %vm678, %v1722, 0
        %1734 = vmatprep.subr.bf16.mxu0 0
        %1735 = vmatpush1.bf16.xpose.msra.mxu0 %v1732
        %1736 = vmatprep.subr.bf16.mxu0 0
        %1737 = vmatpush1.bf16.xpose.msra.mxu0 0
        %1738 = vmatprep.subr.bf16.mxu0 0
        %1739 = vmatpush1.bf16.xpose.msra.mxu0 0
        %1740 = vmatprep.subr.bf16.mxu0 0
        %1741 = vmatpush1.bf16.xpose.msra.mxu0 0
        %1742 = vmatprep.subr.bf16.mxu0 0
        %1743 = vmatpush1.bf16.xpose.msra.mxu0 0
        %1744 = vmatprep.subr.bf16.mxu0 0
        %1745 = vmatpush1.bf16.xpose.msra.mxu0 0
        %1746 = vmatprep.subr.bf16.mxu0 0
        %1747 = vmatpush1.bf16.xpose.msra.mxu0 0
        %1748 = vmatprep.subr.bf16.mxu0 0
        %1749 = vmatpush1.bf16.xpose.msra.mxu0 0
        %1750 = vmatprep.subr.bf16.mxu0 0
        %1751 = vmatpush1.bf16.xpose.msra.mxu0 0
        %1752 = vmatprep.subr.bf16.mxu0 0
        %1753 = vmatpush1.bf16.xpose.msra.mxu0 0
        %1754 = vmatprep.subr.bf16.mxu0 0
        %1755 = vmatpush1.bf16.xpose.msra.mxu0 0
        %1756 = vmatprep.subr.bf16.mxu0 0
        %1757 = vmatpush1.bf16.xpose.msra.mxu0 0
        %1758 = vmatprep.subr.bf16.mxu0 0
        %1759 = vmatpush1.bf16.xpose.msra.mxu0 0
        %1760 = vmatprep.subr.bf16.mxu0 0
        %1761 = vmatpush1.bf16.xpose.msra.mxu0 0
        %1762 = vmatprep.subr.bf16.mxu0 0
        %1763 = vmatpush1.bf16.xpose.msra.mxu0 0
        %1764 = vmatprep.subr.bf16.mxu0 0
        %1765 = vmatpush1.bf16.xpose.msra.mxu0 0
        %1766 = vmatprep.mubr.bf16.mxu0 0
        %1767 = vmatmul.mubr.bf16.gmra.mrb[0].mxu0 %v733
        %v1768 = vpop.f32.mrb[0].mxu0
        %v1769 = vadd.f32 %v1729, %v1768
        %v1770 = vpop.f32.mrb[0].mxu0
        %v1771 = vpop.f32.mrb[0].mxu0
        %v1772 = vpop.f32.mrb[0].mxu0
        %1773 = vdwg.mxu0
        %s1774 = scalar_lea.vmem [#allocation11], 12
        %v1775 = vld [vmem:[%s1774] sm:$0xf]
        %s1776 = scalar_lea.vmem [#allocation12], 3
        %v1777 = vld [vmem:[%s1776] sm:$0x1]
        %v1779 = vlaneseq
        %v1780 = vshrl.u32 %v1779, 7
        %v1781 = vsub.s32 0, %v1780
        %v1782 = vrot.slane %v1777, %v1781
        %v1785 = vsel %vm678, %v1775, 0
        %1787 = vmatprep.subr.bf16.mxu0 0
        %1788 = vmatpush1.bf16.xpose.msra.mxu0 %v1785
        %1789 = vmatprep.subr.bf16.mxu0 0
        %1790 = vmatpush1.bf16.xpose.msra.mxu0 0
        %1791 = vmatprep.subr.bf16.mxu0 0
        %1792 = vmatpush1.bf16.xpose.msra.mxu0 0
        %1793 = vmatprep.subr.bf16.mxu0 0
        %1794 = vmatpush1.bf16.xpose.msra.mxu0 0
        %1795 = vmatprep.subr.bf16.mxu0 0
        %1796 = vmatpush1.bf16.xpose.msra.mxu0 0
        %1797 = vmatprep.subr.bf16.mxu0 0
        %1798 = vmatpush1.bf16.xpose.msra.mxu0 0
        %1799 = vmatprep.subr.bf16.mxu0 0
        %1800 = vmatpush1.bf16.xpose.msra.mxu0 0
        %1801 = vmatprep.subr.bf16.mxu0 0
        %1802 = vmatpush1.bf16.xpose.msra.mxu0 0
        %1803 = vmatprep.subr.bf16.mxu0 0
        %1804 = vmatpush1.bf16.xpose.msra.mxu0 0
        %1805 = vmatprep.subr.bf16.mxu0 0
        %1806 = vmatpush1.bf16.xpose.msra.mxu0 0
        %1807 = vmatprep.subr.bf16.mxu0 0
        %1808 = vmatpush1.bf16.xpose.msra.mxu0 0
        %1809 = vmatprep.subr.bf16.mxu0 0
        %1810 = vmatpush1.bf16.xpose.msra.mxu0 0
        %1811 = vmatprep.subr.bf16.mxu0 0
        %1812 = vmatpush1.bf16.xpose.msra.mxu0 0
        %1813 = vmatprep.subr.bf16.mxu0 0
        %1814 = vmatpush1.bf16.xpose.msra.mxu0 0
        %1815 = vmatprep.subr.bf16.mxu0 0
        %1816 = vmatpush1.bf16.xpose.msra.mxu0 0
        %1817 = vmatprep.subr.bf16.mxu0 0
        %1818 = vmatpush1.bf16.xpose.msra.mxu0 0
        %1819 = vmatprep.mubr.bf16.mxu0 0
        %1820 = vmatmul.mubr.bf16.gmra.mrb[0].mxu0 %v733
        %v1821 = vpop.f32.mrb[0].mxu0
        %v1822 = vadd.f32 %v1782, %v1821
        %v1823 = vpop.f32.mrb[0].mxu0
        %v1824 = vpop.f32.mrb[0].mxu0
        %v1825 = vpop.f32.mrb[0].mxu0
        %1826 = vdwg.mxu0
        %v1827 = vpack.c.bf16 %v1716, %v1716
        %v1828 = vpack.c.bf16 %v1769, %v1769
        %v1830 = vsel %vm882, %v1827, 0
        %v1833 = vsel %vm882, %v1828, 0
        %1835 = vmatprep.subr.bf16.mxu0 0
        %1836 = vmatpush1.bf16.xpose.msra.mxu0 %v1833
        %1837 = vmatprep.subr.bf16.mxu0 0
        %1838 = vmatpush1.bf16.xpose.msra.mxu0 0
        %1839 = vmatprep.subr.bf16.mxu0 0
        %1840 = vmatpush1.bf16.xpose.msra.mxu0 0
        %1841 = vmatprep.subr.bf16.mxu0 0
        %1842 = vmatpush1.bf16.xpose.msra.mxu0 0
        %1843 = vmatprep.subr.bf16.mxu0 0
        %1844 = vmatpush1.bf16.xpose.msra.mxu0 0
        %1845 = vmatprep.subr.bf16.mxu0 0
        %1846 = vmatpush1.bf16.xpose.msra.mxu0 0
        %1847 = vmatprep.subr.bf16.mxu0 0
        %1848 = vmatpush1.bf16.xpose.msra.mxu0 0
        %1849 = vmatprep.subr.bf16.mxu0 0
        %1850 = vmatpush1.bf16.xpose.msra.mxu0 0
        %1851 = vmatprep.subr.bf16.mxu0 0
        %1852 = vmatpush1.bf16.xpose.msra.mxu0 0
        %1853 = vmatprep.subr.bf16.mxu0 0
        %1854 = vmatpush1.bf16.xpose.msra.mxu0 0
        %1855 = vmatprep.subr.bf16.mxu0 0
        %1856 = vmatpush1.bf16.xpose.msra.mxu0 0
        %1857 = vmatprep.subr.bf16.mxu0 0
        %1858 = vmatpush1.bf16.xpose.msra.mxu0 0
        %1859 = vmatprep.subr.bf16.mxu0 0
        %1860 = vmatpush1.bf16.xpose.msra.mxu0 0
        %1861 = vmatprep.subr.bf16.mxu0 0
        %1862 = vmatpush1.bf16.xpose.msra.mxu0 0
        %1863 = vmatprep.subr.bf16.mxu0 0
        %1864 = vmatpush1.bf16.xpose.msra.mxu0 0
        %1865 = vmatprep.subr.bf16.mxu0 0
        %1866 = vmatpush1.bf16.xpose.msra.mxu0 0
        %1867 = vmatprep.mubr.bf16.mxu0 0
        %1868 = vmatmul.mubr.bf16.gmra.mrb[0].mxu0 %v1830
        %v1869 = vpop.f32.mrb[0].mxu0
        %v1870 = vadd.f32 0.0, %v1869
        %v1871 = vpop.f32.mrb[0].mxu0
        %v1872 = vpop.f32.mrb[0].mxu0
        %v1873 = vpop.f32.mrb[0].mxu0
        %1874 = vdwg.mxu0
        %v1875 = vsel %vm882, %v1870, -inf
        %1876 = vmax.xlane.f32.xlu0 %v1875
        %v1877 = vpop.xlane.xlu0 %1876
        %v1878 = vsub.f32 %v1870, %v1877
        %v1879 = vmul.f32 %v1878, 1.442695
        %v1880 = vpow.pop %v1879
        %v1881 = vsel %vm882, %v1880, 0.0
        %1882 = vadd.xlane.f32.xlu0 %v1881
        %v1883 = vpop.xlane.xlu0 %1882
        %v1884 = vrcp.pop %v1883
        %v1885 = vmul.f32 %v1880, %v1884
        %v1886 = vpack.c.bf16 %v1885, %v1885
        %v1887 = vpack.c.bf16 %v1822, %v1822
        %v1889 = vsel %vm882, %v1886, 0
        %v1892 = vsel %vm945, %v1887, 0
        %1894 = vmatprep.subr.bf16.mxu0 0
        %1895 = vmatpush1.bf16.msra.mxu0 %v1892
        %1896 = vmatprep.subr.bf16.mxu0 0
        %1897 = vmatpush1.bf16.msra.mxu0 0
        %1898 = vmatprep.subr.bf16.mxu0 0
        %1899 = vmatpush1.bf16.msra.mxu0 0
        %1900 = vmatprep.subr.bf16.mxu0 0
        %1901 = vmatpush1.bf16.msra.mxu0 0
        %1902 = vmatprep.subr.bf16.mxu0 0
        %1903 = vmatpush1.bf16.msra.mxu0 0
        %1904 = vmatprep.subr.bf16.mxu0 0
        %1905 = vmatpush1.bf16.msra.mxu0 0
        %1906 = vmatprep.subr.bf16.mxu0 0
        %1907 = vmatpush1.bf16.msra.mxu0 0
        %1908 = vmatprep.subr.bf16.mxu0 0
        %1909 = vmatpush1.bf16.msra.mxu0 0
        %1910 = vmatprep.subr.bf16.mxu0 0
        %1911 = vmatpush1.bf16.msra.mxu0 0
        %1912 = vmatprep.subr.bf16.mxu0 0
        %1913 = vmatpush1.bf16.msra.mxu0 0
        %1914 = vmatprep.subr.bf16.mxu0 0
        %1915 = vmatpush1.bf16.msra.mxu0 0
        %1916 = vmatprep.subr.bf16.mxu0 0
        %1917 = vmatpush1.bf16.msra.mxu0 0
        %1918 = vmatprep.subr.bf16.mxu0 0
        %1919 = vmatpush1.bf16.msra.mxu0 0
        %1920 = vmatprep.subr.bf16.mxu0 0
        %1921 = vmatpush1.bf16.msra.mxu0 0
        %1922 = vmatprep.subr.bf16.mxu0 0
        %1923 = vmatpush1.bf16.msra.mxu0 0
        %1924 = vmatprep.subr.bf16.mxu0 0
        %1925 = vmatpush1.bf16.msra.mxu0 0
        %1926 = vmatprep.mubr.bf16.mxu0 0
        %1927 = vmatmul.mubr.bf16.gmra.mrb[0].mxu0 %v1889
        %v1928 = vpop.f32.mrb[0].mxu0
        %v1929 = vadd.f32 0.0, %v1928
        %v1930 = vpop.f32.mrb[0].mxu0
        %v1931 = vpop.f32.mrb[0].mxu0
        %v1932 = vpop.f32.mrb[0].mxu0
        %1933 = vdwg.mxu0
        %v1934 = vpack.c.bf16 %v1929, %v1929
        %s1935 = scalar_lea.vmem %s9, 12
        %v1936 = vld [vmem:[%s1935] sm:$0xf]
        %v1938 = vsel %vm882, %v1934, 0
        %v1941 = vsel %vm945, %v1936, 0
        %1943 = vmatprep.subr.bf16.mxu0 0
        %1944 = vmatpush1.bf16.msra.mxu0 %v1941
        %1945 = vmatprep.subr.bf16.mxu0 0
        %1946 = vmatpush1.bf16.msra.mxu0 0
        %1947 = vmatprep.subr.bf16.mxu0 0
        %1948 = vmatpush1.bf16.msra.mxu0 0
        %1949 = vmatprep.subr.bf16.mxu0 0
        %1950 = vmatpush1.bf16.msra.mxu0 0
        %1951 = vmatprep.subr.bf16.mxu0 0
        %1952 = vmatpush1.bf16.msra.mxu0 0
        %1953 = vmatprep.subr.bf16.mxu0 0
        %1954 = vmatpush1.bf16.msra.mxu0 0
        %1955 = vmatprep.subr.bf16.mxu0 0
        %1956 = vmatpush1.bf16.msra.mxu0 0
        %1957 = vmatprep.subr.bf16.mxu0 0
        %1958 = vmatpush1.bf16.msra.mxu0 0
        %1959 = vmatprep.subr.bf16.mxu0 0
        %1960 = vmatpush1.bf16.msra.mxu0 0
        %1961 = vmatprep.subr.bf16.mxu0 0
        %1962 = vmatpush1.bf16.msra.mxu0 0
        %1963 = vmatprep.subr.bf16.mxu0 0
        %1964 = vmatpush1.bf16.msra.mxu0 0
        %1965 = vmatprep.subr.bf16.mxu0 0
        %1966 = vmatpush1.bf16.msra.mxu0 0
        %1967 = vmatprep.subr.bf16.mxu0 0
        %1968 = vmatpush1.bf16.msra.mxu0 0
        %1969 = vmatprep.subr.bf16.mxu0 0
        %1970 = vmatpush1.bf16.msra.mxu0 0
        %1971 = vmatprep.subr.bf16.mxu0 0
        %1972 = vmatpush1.bf16.msra.mxu0 0
        %1973 = vmatprep.subr.bf16.mxu0 0
        %1974 = vmatpush1.bf16.msra.mxu0 0
        %1975 = vmatprep.mubr.bf16.mxu0 0
        %1976 = vmatmul.mubr.bf16.gmra.mrb[0].mxu0 %v1938
        %v1977 = vpop.f32.mrb[0].mxu0
        %v1978 = vadd.f32 0.0, %v1977
        %v1979 = vpop.f32.mrb[0].mxu0
        %v1980 = vpop.f32.mrb[0].mxu0
        %v1981 = vpop.f32.mrb[0].mxu0
        %1982 = vdwg.mxu0
        %v1983 = vadd.f32 %v1667, %v1978
        %v1984 = vadd.f32 %v674, %v1983
        %v1985 = vld [vmem:[#allocation14] sm:$0x1]
        %v1987 = vlaneseq
        %v1988 = vshrl.u32 %v1987, 7
        %v1989 = vsub.s32 0, %v1988
        %v1990 = vrot.slane %v1985, %v1989
        %v1992 = vadd.f32 %v1984, %v1990
        %1993 = vst.msk [vmem:[#allocation2] sm:$0xff] %vm678, %v1992
        %v1994 = vld [vmem:[%s3] sm:$0xf]
        %v1995 = vld [vmem:[#allocation6] sm:$0x1]
        %v1997 = vlaneseq
        %v1998 = vshrl.u32 %v1997, 7
        %v1999 = vsub.s32 0, %v1998
        %v2000 = vrot.slane %v1995, %v1999
        %v2003 = vsel %vm678, %v723, 0
        %v2006 = vsel %vm678, %v1994, 0
        %2008 = vmatprep.subr.bf16.mxu0 0
        %2009 = vmatpush1.bf16.xpose.msra.mxu0 %v2006
        %2010 = vmatprep.subr.bf16.mxu0 0
        %2011 = vmatpush1.bf16.xpose.msra.mxu0 0
        %2012 = vmatprep.subr.bf16.mxu0 0
        %2013 = vmatpush1.bf16.xpose.msra.mxu0 0
        %2014 = vmatprep.subr.bf16.mxu0 0
        %2015 = vmatpush1.bf16.xpose.msra.mxu0 0
        %2016 = vmatprep.subr.bf16.mxu0 0
        %2017 = vmatpush1.bf16.xpose.msra.mxu0 0
        %2018 = vmatprep.subr.bf16.mxu0 0
        %2019 = vmatpush1.bf16.xpose.msra.mxu0 0
        %2020 = vmatprep.subr.bf16.mxu0 0
        %2021 = vmatpush1.bf16.xpose.msra.mxu0 0
        %2022 = vmatprep.subr.bf16.mxu0 0
        %2023 = vmatpush1.bf16.xpose.msra.mxu0 0
        %2024 = vmatprep.subr.bf16.mxu0 0
        %2025 = vmatpush1.bf16.xpose.msra.mxu0 0
        %2026 = vmatprep.subr.bf16.mxu0 0
        %2027 = vmatpush1.bf16.xpose.msra.mxu0 0
        %2028 = vmatprep.subr.bf16.mxu0 0
        %2029 = vmatpush1.bf16.xpose.msra.mxu0 0
        %2030 = vmatprep.subr.bf16.mxu0 0
        %2031 = vmatpush1.bf16.xpose.msra.mxu0 0
        %2032 = vmatprep.subr.bf16.mxu0 0
        %2033 = vmatpush1.bf16.xpose.msra.mxu0 0
        %2034 = vmatprep.subr.bf16.mxu0 0
        %2035 = vmatpush1.bf16.xpose.msra.mxu0 0
        %2036 = vmatprep.subr.bf16.mxu0 0
        %2037 = vmatpush1.bf16.xpose.msra.mxu0 0
        %2038 = vmatprep.subr.bf16.mxu0 0
        %2039 = vmatpush1.bf16.xpose.msra.mxu0 0
        %2040 = vmatprep.mubr.bf16.mxu0 0
        %2041 = vmatmul.mubr.bf16.gmra.mrb[0].mxu0 %v2003
        %v2042 = vpop.f32.mrb[0].mxu0
        %v2043 = vadd.f32 %v2000, %v2042
        %v2044 = vpop.f32.mrb[0].mxu0
        %v2045 = vpop.f32.mrb[0].mxu0
        %v2046 = vpop.f32.mrb[0].mxu0
        %2047 = vdwg.mxu0
        %v2048 = vld [vmem:[#allocation8] sm:$0xf]
        %v2049 = vld [vmem:[#allocation9] sm:$0x1]
        %v2051 = vlaneseq
        %v2052 = vshrl.u32 %v2051, 7
        %v2053 = vsub.s32 0, %v2052
        %v2054 = vrot.slane %v2049, %v2053
        %v2057 = vsel %vm678, %v2048, 0
        %2059 = vmatprep.subr.bf16.mxu0 0
        %2060 = vmatpush1.bf16.xpose.msra.mxu0 %v2057
        %2061 = vmatprep.subr.bf16.mxu0 0
        %2062 = vmatpush1.bf16.xpose.msra.mxu0 0
        %2063 = vmatprep.subr.bf16.mxu0 0
        %2064 = vmatpush1.bf16.xpose.msra.mxu0 0
        %2065 = vmatprep.subr.bf16.mxu0 0
        %2066 = vmatpush1.bf16.xpose.msra.mxu0 0
        %2067 = vmatprep.subr.bf16.mxu0 0
        %2068 = vmatpush1.bf16.xpose.msra.mxu0 0
        %2069 = vmatprep.subr.bf16.mxu0 0
        %2070 = vmatpush1.bf16.xpose.msra.mxu0 0
        %2071 = vmatprep.subr.bf16.mxu0 0
        %2072 = vmatpush1.bf16.xpose.msra.mxu0 0
        %2073 = vmatprep.subr.bf16.mxu0 0
        %2074 = vmatpush1.bf16.xpose.msra.mxu0 0
        %2075 = vmatprep.subr.bf16.mxu0 0
        %2076 = vmatpush1.bf16.xpose.msra.mxu0 0
        %2077 = vmatprep.subr.bf16.mxu0 0
        %2078 = vmatpush1.bf16.xpose.msra.mxu0 0
        %2079 = vmatprep.subr.bf16.mxu0 0
        %2080 = vmatpush1.bf16.xpose.msra.mxu0 0
        %2081 = vmatprep.subr.bf16.mxu0 0
        %2082 = vmatpush1.bf16.xpose.msra.mxu0 0
        %2083 = vmatprep.subr.bf16.mxu0 0
        %2084 = vmatpush1.bf16.xpose.msra.mxu0 0
        %2085 = vmatprep.subr.bf16.mxu0 0
        %2086 = vmatpush1.bf16.xpose.msra.mxu0 0
        %2087 = vmatprep.subr.bf16.mxu0 0
        %2088 = vmatpush1.bf16.xpose.msra.mxu0 0
        %2089 = vmatprep.subr.bf16.mxu0 0
        %2090 = vmatpush1.bf16.xpose.msra.mxu0 0
        %2091 = vmatprep.mubr.bf16.mxu0 0
        %2092 = vmatmul.mubr.bf16.gmra.mrb[0].mxu0 %v2003
        %v2093 = vpop.f32.mrb[0].mxu0
        %v2094 = vadd.f32 %v2054, %v2093
        %v2095 = vpop.f32.mrb[0].mxu0
        %v2096 = vpop.f32.mrb[0].mxu0
        %v2097 = vpop.f32.mrb[0].mxu0
        %2098 = vdwg.mxu0
        %v2099 = vld [vmem:[#allocation11] sm:$0xf]
        %v2100 = vld [vmem:[#allocation12] sm:$0x1]
        %v2102 = vlaneseq
        %v2103 = vshrl.u32 %v2102, 7
        %v2104 = vsub.s32 0, %v2103
        %v2105 = vrot.slane %v2100, %v2104
        %v2108 = vsel %vm678, %v2099, 0
        %2110 = vmatprep.subr.bf16.mxu0 0
        %2111 = vmatpush1.bf16.xpose.msra.mxu0 %v2108
        %2112 = vmatprep.subr.bf16.mxu0 0
        %2113 = vmatpush1.bf16.xpose.msra.mxu0 0
        %2114 = vmatprep.subr.bf16.mxu0 0
        %2115 = vmatpush1.bf16.xpose.msra.mxu0 0
        %2116 = vmatprep.subr.bf16.mxu0 0
        %2117 = vmatpush1.bf16.xpose.msra.mxu0 0
        %2118 = vmatprep.subr.bf16.mxu0 0
        %2119 = vmatpush1.bf16.xpose.msra.mxu0 0
        %2120 = vmatprep.subr.bf16.mxu0 0
        %2121 = vmatpush1.bf16.xpose.msra.mxu0 0
        %2122 = vmatprep.subr.bf16.mxu0 0
        %2123 = vmatpush1.bf16.xpose.msra.mxu0 0
        %2124 = vmatprep.subr.bf16.mxu0 0
        %2125 = vmatpush1.bf16.xpose.msra.mxu0 0
        %2126 = vmatprep.subr.bf16.mxu0 0
        %2127 = vmatpush1.bf16.xpose.msra.mxu0 0
        %2128 = vmatprep.subr.bf16.mxu0 0
        %2129 = vmatpush1.bf16.xpose.msra.mxu0 0
        %2130 = vmatprep.subr.bf16.mxu0 0
        %2131 = vmatpush1.bf16.xpose.msra.mxu0 0
        %2132 = vmatprep.subr.bf16.mxu0 0
        %2133 = vmatpush1.bf16.xpose.msra.mxu0 0
        %2134 = vmatprep.subr.bf16.mxu0 0
        %2135 = vmatpush1.bf16.xpose.msra.mxu0 0
        %2136 = vmatprep.subr.bf16.mxu0 0
        %2137 = vmatpush1.bf16.xpose.msra.mxu0 0
        %2138 = vmatprep.subr.bf16.mxu0 0
        %2139 = vmatpush1.bf16.xpose.msra.mxu0 0
        %2140 = vmatprep.subr.bf16.mxu0 0
        %2141 = vmatpush1.bf16.xpose.msra.mxu0 0
        %2142 = vmatprep.mubr.bf16.mxu0 0
        %2143 = vmatmul.mubr.bf16.gmra.mrb[0].mxu0 %v2003
        %v2144 = vpop.f32.mrb[0].mxu0
        %v2145 = vadd.f32 %v2105, %v2144
        %v2146 = vpop.f32.mrb[0].mxu0
        %v2147 = vpop.f32.mrb[0].mxu0
        %v2148 = vpop.f32.mrb[0].mxu0
        %2149 = vdwg.mxu0
        %v2150 = vpack.c.bf16 %v2043, %v2043
        %v2151 = vpack.c.bf16 %v2094, %v2094
        %v2153 = vsel %vm882, %v2150, 0
        %v2156 = vsel %vm882, %v2151, 0
        %2158 = vmatprep.subr.bf16.mxu0 0
        %2159 = vmatpush1.bf16.xpose.msra.mxu0 %v2156
        %2160 = vmatprep.subr.bf16.mxu0 0
        %2161 = vmatpush1.bf16.xpose.msra.mxu0 0
        %2162 = vmatprep.subr.bf16.mxu0 0
        %2163 = vmatpush1.bf16.xpose.msra.mxu0 0
        %2164 = vmatprep.subr.bf16.mxu0 0
        %2165 = vmatpush1.bf16.xpose.msra.mxu0 0
        %2166 = vmatprep.subr.bf16.mxu0 0
        %2167 = vmatpush1.bf16.xpose.msra.mxu0 0
        %2168 = vmatprep.subr.bf16.mxu0 0
        %2169 = vmatpush1.bf16.xpose.msra.mxu0 0
        %2170 = vmatprep.subr.bf16.mxu0 0
        %2171 = vmatpush1.bf16.xpose.msra.mxu0 0
        %2172 = vmatprep.subr.bf16.mxu0 0
        %2173 = vmatpush1.bf16.xpose.msra.mxu0 0
        %2174 = vmatprep.subr.bf16.mxu0 0
        %2175 = vmatpush1.bf16.xpose.msra.mxu0 0
        %2176 = vmatprep.subr.bf16.mxu0 0
        %2177 = vmatpush1.bf16.xpose.msra.mxu0 0
        %2178 = vmatprep.subr.bf16.mxu0 0
        %2179 = vmatpush1.bf16.xpose.msra.mxu0 0
        %2180 = vmatprep.subr.bf16.mxu0 0
        %2181 = vmatpush1.bf16.xpose.msra.mxu0 0
        %2182 = vmatprep.subr.bf16.mxu0 0
        %2183 = vmatpush1.bf16.xpose.msra.mxu0 0
        %2184 = vmatprep.subr.bf16.mxu0 0
        %2185 = vmatpush1.bf16.xpose.msra.mxu0 0
        %2186 = vmatprep.subr.bf16.mxu0 0
        %2187 = vmatpush1.bf16.xpose.msra.mxu0 0
        %2188 = vmatprep.subr.bf16.mxu0 0
        %2189 = vmatpush1.bf16.xpose.msra.mxu0 0
        %2190 = vmatprep.mubr.bf16.mxu0 0
        %2191 = vmatmul.mubr.bf16.gmra.mrb[0].mxu0 %v2153
        %v2192 = vpop.f32.mrb[0].mxu0
        %v2193 = vadd.f32 0.0, %v2192
        %v2194 = vpop.f32.mrb[0].mxu0
        %v2195 = vpop.f32.mrb[0].mxu0
        %v2196 = vpop.f32.mrb[0].mxu0
        %2197 = vdwg.mxu0
        %v2198 = vsel %vm882, %v2193, -inf
        %2199 = vmax.xlane.f32.xlu0 %v2198
        %v2200 = vpop.xlane.xlu0 %2199
        %v2201 = vsub.f32 %v2193, %v2200
        %v2202 = vmul.f32 %v2201, 1.442695
        %v2203 = vpow.pop %v2202
        %v2204 = vsel %vm882, %v2203, 0.0
        %2205 = vadd.xlane.f32.xlu0 %v2204
        %v2206 = vpop.xlane.xlu0 %2205
        %v2207 = vrcp.pop %v2206
        %v2208 = vmul.f32 %v2203, %v2207
        %v2209 = vpack.c.bf16 %v2208, %v2208
        %v2210 = vpack.c.bf16 %v2145, %v2145
        %v2212 = vsel %vm882, %v2209, 0
        %v2215 = vsel %vm945, %v2210, 0
        %2217 = vmatprep.subr.bf16.mxu0 0
        %2218 = vmatpush1.bf16.msra.mxu0 %v2215
        %2219 = vmatprep.subr.bf16.mxu0 0
        %2220 = vmatpush1.bf16.msra.mxu0 0
        %2221 = vmatprep.subr.bf16.mxu0 0
        %2222 = vmatpush1.bf16.msra.mxu0 0
        %2223 = vmatprep.subr.bf16.mxu0 0
        %2224 = vmatpush1.bf16.msra.mxu0 0
        %2225 = vmatprep.subr.bf16.mxu0 0
        %2226 = vmatpush1.bf16.msra.mxu0 0
        %2227 = vmatprep.subr.bf16.mxu0 0
        %2228 = vmatpush1.bf16.msra.mxu0 0
        %2229 = vmatprep.subr.bf16.mxu0 0
        %2230 = vmatpush1.bf16.msra.mxu0 0
        %2231 = vmatprep.subr.bf16.mxu0 0
        %2232 = vmatpush1.bf16.msra.mxu0 0
        %2233 = vmatprep.subr.bf16.mxu0 0
        %2234 = vmatpush1.bf16.msra.mxu0 0
        %2235 = vmatprep.subr.bf16.mxu0 0
        %2236 = vmatpush1.bf16.msra.mxu0 0
        %2237 = vmatprep.subr.bf16.mxu0 0
        %2238 = vmatpush1.bf16.msra.mxu0 0
        %2239 = vmatprep.subr.bf16.mxu0 0
        %2240 = vmatpush1.bf16.msra.mxu0 0
        %2241 = vmatprep.subr.bf16.mxu0 0
        %2242 = vmatpush1.bf16.msra.mxu0 0
        %2243 = vmatprep.subr.bf16.mxu0 0
        %2244 = vmatpush1.bf16.msra.mxu0 0
        %2245 = vmatprep.subr.bf16.mxu0 0
        %2246 = vmatpush1.bf16.msra.mxu0 0
        %2247 = vmatprep.subr.bf16.mxu0 0
        %2248 = vmatpush1.bf16.msra.mxu0 0
        %2249 = vmatprep.mubr.bf16.mxu0 0
        %2250 = vmatmul.mubr.bf16.gmra.mrb[0].mxu0 %v2212
        %v2251 = vpop.f32.mrb[0].mxu0
        %v2252 = vadd.f32 0.0, %v2251
        %v2253 = vpop.f32.mrb[0].mxu0
        %v2254 = vpop.f32.mrb[0].mxu0
        %v2255 = vpop.f32.mrb[0].mxu0
        %2256 = vdwg.mxu0
        %v2257 = vpack.c.bf16 %v2252, %v2252
        %v2258 = vld [vmem:[%s9] sm:$0xf]
        %v2259 = vld [vmem:[%s991] sm:$0xf]
        %v2260 = vld [vmem:[%s993] sm:$0x1]
        %v2262 = vlaneseq
        %v2263 = vshrl.u32 %v2262, 7
        %v2264 = vsub.s32 0, %v2263
        %v2265 = vrot.slane %v2260, %v2264
        %v2268 = vsel %vm678, %v2259, 0
        %2270 = vmatprep.subr.bf16.mxu0 0
        %2271 = vmatpush1.bf16.xpose.msra.mxu0 %v2268
        %2272 = vmatprep.subr.bf16.mxu0 0
        %2273 = vmatpush1.bf16.xpose.msra.mxu0 0
        %2274 = vmatprep.subr.bf16.mxu0 0
        %2275 = vmatpush1.bf16.xpose.msra.mxu0 0
        %2276 = vmatprep.subr.bf16.mxu0 0
        %2277 = vmatpush1.bf16.xpose.msra.mxu0 0
        %2278 = vmatprep.subr.bf16.mxu0 0
        %2279 = vmatpush1.bf16.xpose.msra.mxu0 0
        %2280 = vmatprep.subr.bf16.mxu0 0
        %2281 = vmatpush1.bf16.xpose.msra.mxu0 0
        %2282 = vmatprep.subr.bf16.mxu0 0
        %2283 = vmatpush1.bf16.xpose.msra.mxu0 0
        %2284 = vmatprep.subr.bf16.mxu0 0
        %2285 = vmatpush1.bf16.xpose.msra.mxu0 0
        %2286 = vmatprep.subr.bf16.mxu0 0
        %2287 = vmatpush1.bf16.xpose.msra.mxu0 0
        %2288 = vmatprep.subr.bf16.mxu0 0
        %2289 = vmatpush1.bf16.xpose.msra.mxu0 0
        %2290 = vmatprep.subr.bf16.mxu0 0
        %2291 = vmatpush1.bf16.xpose.msra.mxu0 0
        %2292 = vmatprep.subr.bf16.mxu0 0
        %2293 = vmatpush1.bf16.xpose.msra.mxu0 0
        %2294 = vmatprep.subr.bf16.mxu0 0
        %2295 = vmatpush1.bf16.xpose.msra.mxu0 0
        %2296 = vmatprep.subr.bf16.mxu0 0
        %2297 = vmatpush1.bf16.xpose.msra.mxu0 0
        %2298 = vmatprep.subr.bf16.mxu0 0
        %2299 = vmatpush1.bf16.xpose.msra.mxu0 0
        %2300 = vmatprep.subr.bf16.mxu0 0
        %2301 = vmatpush1.bf16.xpose.msra.mxu0 0
        %2302 = vmatprep.mubr.bf16.mxu0 0
        %2303 = vmatmul.mubr.bf16.gmra.mrb[0].mxu0 %v2003
        %v2304 = vpop.f32.mrb[0].mxu0
        %v2305 = vadd.f32 %v2265, %v2304
        %v2306 = vpop.f32.mrb[0].mxu0
        %v2307 = vpop.f32.mrb[0].mxu0
        %v2308 = vpop.f32.mrb[0].mxu0
        %2309 = vdwg.mxu0
        %v2310 = vld [vmem:[%s1044] sm:$0xf]
        %v2311 = vld [vmem:[%s1046] sm:$0x1]
        %v2313 = vlaneseq
        %v2314 = vshrl.u32 %v2313, 7
        %v2315 = vsub.s32 0, %v2314
        %v2316 = vrot.slane %v2311, %v2315
        %v2319 = vsel %vm678, %v2310, 0
        %2321 = vmatprep.subr.bf16.mxu0 0
        %2322 = vmatpush1.bf16.xpose.msra.mxu0 %v2319
        %2323 = vmatprep.subr.bf16.mxu0 0
        %2324 = vmatpush1.bf16.xpose.msra.mxu0 0
        %2325 = vmatprep.subr.bf16.mxu0 0
        %2326 = vmatpush1.bf16.xpose.msra.mxu0 0
        %2327 = vmatprep.subr.bf16.mxu0 0
        %2328 = vmatpush1.bf16.xpose.msra.mxu0 0
        %2329 = vmatprep.subr.bf16.mxu0 0
        %2330 = vmatpush1.bf16.xpose.msra.mxu0 0
        %2331 = vmatprep.subr.bf16.mxu0 0
        %2332 = vmatpush1.bf16.xpose.msra.mxu0 0
        %2333 = vmatprep.subr.bf16.mxu0 0
        %2334 = vmatpush1.bf16.xpose.msra.mxu0 0
        %2335 = vmatprep.subr.bf16.mxu0 0
        %2336 = vmatpush1.bf16.xpose.msra.mxu0 0
        %2337 = vmatprep.subr.bf16.mxu0 0
        %2338 = vmatpush1.bf16.xpose.msra.mxu0 0
        %2339 = vmatprep.subr.bf16.mxu0 0
        %2340 = vmatpush1.bf16.xpose.msra.mxu0 0
        %2341 = vmatprep.subr.bf16.mxu0 0
        %2342 = vmatpush1.bf16.xpose.msra.mxu0 0
        %2343 = vmatprep.subr.bf16.mxu0 0
        %2344 = vmatpush1.bf16.xpose.msra.mxu0 0
        %2345 = vmatprep.subr.bf16.mxu0 0
        %2346 = vmatpush1.bf16.xpose.msra.mxu0 0
        %2347 = vmatprep.subr.bf16.mxu0 0
        %2348 = vmatpush1.bf16.xpose.msra.mxu0 0
        %2349 = vmatprep.subr.bf16.mxu0 0
        %2350 = vmatpush1.bf16.xpose.msra.mxu0 0
        %2351 = vmatprep.subr.bf16.mxu0 0
        %2352 = vmatpush1.bf16.xpose.msra.mxu0 0
        %2353 = vmatprep.mubr.bf16.mxu0 0
        %2354 = vmatmul.mubr.bf16.gmra.mrb[0].mxu0 %v2003
        %v2355 = vpop.f32.mrb[0].mxu0
        %v2356 = vadd.f32 %v2316, %v2355
        %v2357 = vpop.f32.mrb[0].mxu0
        %v2358 = vpop.f32.mrb[0].mxu0
        %v2359 = vpop.f32.mrb[0].mxu0
        %2360 = vdwg.mxu0
        %v2361 = vld [vmem:[%s1097] sm:$0xf]
        %v2362 = vld [vmem:[%s1099] sm:$0x1]
        %v2364 = vlaneseq
        %v2365 = vshrl.u32 %v2364, 7
        %v2366 = vsub.s32 0, %v2365
        %v2367 = vrot.slane %v2362, %v2366
        %v2370 = vsel %vm678, %v2361, 0
        %2372 = vmatprep.subr.bf16.mxu0 0
        %2373 = vmatpush1.bf16.xpose.msra.mxu0 %v2370
        %2374 = vmatprep.subr.bf16.mxu0 0
        %2375 = vmatpush1.bf16.xpose.msra.mxu0 0
        %2376 = vmatprep.subr.bf16.mxu0 0
        %2377 = vmatpush1.bf16.xpose.msra.mxu0 0
        %2378 = vmatprep.subr.bf16.mxu0 0
        %2379 = vmatpush1.bf16.xpose.msra.mxu0 0
        %2380 = vmatprep.subr.bf16.mxu0 0
        %2381 = vmatpush1.bf16.xpose.msra.mxu0 0
        %2382 = vmatprep.subr.bf16.mxu0 0
        %2383 = vmatpush1.bf16.xpose.msra.mxu0 0
        %2384 = vmatprep.subr.bf16.mxu0 0
        %2385 = vmatpush1.bf16.xpose.msra.mxu0 0
        %2386 = vmatprep.subr.bf16.mxu0 0
        %2387 = vmatpush1.bf16.xpose.msra.mxu0 0
        %2388 = vmatprep.subr.bf16.mxu0 0
        %2389 = vmatpush1.bf16.xpose.msra.mxu0 0
        %2390 = vmatprep.subr.bf16.mxu0 0
        %2391 = vmatpush1.bf16.xpose.msra.mxu0 0
        %2392 = vmatprep.subr.bf16.mxu0 0
        %2393 = vmatpush1.bf16.xpose.msra.mxu0 0
        %2394 = vmatprep.subr.bf16.mxu0 0
        %2395 = vmatpush1.bf16.xpose.msra.mxu0 0
        %2396 = vmatprep.subr.bf16.mxu0 0
        %2397 = vmatpush1.bf16.xpose.msra.mxu0 0
        %2398 = vmatprep.subr.bf16.mxu0 0
        %2399 = vmatpush1.bf16.xpose.msra.mxu0 0
        %2400 = vmatprep.subr.bf16.mxu0 0
        %2401 = vmatpush1.bf16.xpose.msra.mxu0 0
        %2402 = vmatprep.subr.bf16.mxu0 0
        %2403 = vmatpush1.bf16.xpose.msra.mxu0 0
        %2404 = vmatprep.mubr.bf16.mxu0 0
        %2405 = vmatmul.mubr.bf16.gmra.mrb[0].mxu0 %v2003
        %v2406 = vpop.f32.mrb[0].mxu0
        %v2407 = vadd.f32 %v2367, %v2406
        %v2408 = vpop.f32.mrb[0].mxu0
        %v2409 = vpop.f32.mrb[0].mxu0
        %v2410 = vpop.f32.mrb[0].mxu0
        %2411 = vdwg.mxu0
        %v2412 = vpack.c.bf16 %v2305, %v2305
        %v2413 = vpack.c.bf16 %v2356, %v2356
        %v2415 = vsel %vm882, %v2412, 0
        %v2418 = vsel %vm882, %v2413, 0
        %2420 = vmatprep.subr.bf16.mxu0 0
        %2421 = vmatpush1.bf16.xpose.msra.mxu0 %v2418
        %2422 = vmatprep.subr.bf16.mxu0 0
        %2423 = vmatpush1.bf16.xpose.msra.mxu0 0
        %2424 = vmatprep.subr.bf16.mxu0 0
        %2425 = vmatpush1.bf16.xpose.msra.mxu0 0
        %2426 = vmatprep.subr.bf16.mxu0 0
        %2427 = vmatpush1.bf16.xpose.msra.mxu0 0
        %2428 = vmatprep.subr.bf16.mxu0 0
        %2429 = vmatpush1.bf16.xpose.msra.mxu0 0
        %2430 = vmatprep.subr.bf16.mxu0 0
        %2431 = vmatpush1.bf16.xpose.msra.mxu0 0
        %2432 = vmatprep.subr.bf16.mxu0 0
        %2433 = vmatpush1.bf16.xpose.msra.mxu0 0
        %2434 = vmatprep.subr.bf16.mxu0 0
        %2435 = vmatpush1.bf16.xpose.msra.mxu0 0
        %2436 = vmatprep.subr.bf16.mxu0 0
        %2437 = vmatpush1.bf16.xpose.msra.mxu0 0
        %2438 = vmatprep.subr.bf16.mxu0 0
        %2439 = vmatpush1.bf16.xpose.msra.mxu0 0
        %2440 = vmatprep.subr.bf16.mxu0 0
        %2441 = vmatpush1.bf16.xpose.msra.mxu0 0
        %2442 = vmatprep.subr.bf16.mxu0 0
        %2443 = vmatpush1.bf16.xpose.msra.mxu0 0
        %2444 = vmatprep.subr.bf16.mxu0 0
        %2445 = vmatpush1.bf16.xpose.msra.mxu0 0
        %2446 = vmatprep.subr.bf16.mxu0 0
        %2447 = vmatpush1.bf16.xpose.msra.mxu0 0
        %2448 = vmatprep.subr.bf16.mxu0 0
        %2449 = vmatpush1.bf16.xpose.msra.mxu0 0
        %2450 = vmatprep.subr.bf16.mxu0 0
        %2451 = vmatpush1.bf16.xpose.msra.mxu0 0
        %2452 = vmatprep.mubr.bf16.mxu0 0
        %2453 = vmatmul.mubr.bf16.gmra.mrb[0].mxu0 %v2415
        %v2454 = vpop.f32.mrb[0].mxu0
        %v2455 = vadd.f32 0.0, %v2454
        %v2456 = vpop.f32.mrb[0].mxu0
        %v2457 = vpop.f32.mrb[0].mxu0
        %v2458 = vpop.f32.mrb[0].mxu0
        %2459 = vdwg.mxu0
        %v2460 = vsel %vm882, %v2455, -inf
        %2461 = vmax.xlane.f32.xlu0 %v2460
        %v2462 = vpop.xlane.xlu0 %2461
        %v2463 = vsub.f32 %v2455, %v2462
        %v2464 = vmul.f32 %v2463, 1.442695
        %v2465 = vpow.pop %v2464
        %v2466 = vsel %vm882, %v2465, 0.0
        %2467 = vadd.xlane.f32.xlu0 %v2466
        %v2468 = vpop.xlane.xlu0 %2467
        %v2469 = vrcp.pop %v2468
        %v2470 = vmul.f32 %v2465, %v2469
        %v2471 = vpack.c.bf16 %v2470, %v2470
        %v2472 = vpack.c.bf16 %v2407, %v2407
        %v2474 = vsel %vm882, %v2471, 0
        %v2477 = vsel %vm945, %v2472, 0
        %2479 = vmatprep.subr.bf16.mxu0 0
        %2480 = vmatpush1.bf16.msra.mxu0 %v2477
        %2481 = vmatprep.subr.bf16.mxu0 0
        %2482 = vmatpush1.bf16.msra.mxu0 0
        %2483 = vmatprep.subr.bf16.mxu0 0
        %2484 = vmatpush1.bf16.msra.mxu0 0
        %2485 = vmatprep.subr.bf16.mxu0 0
        %2486 = vmatpush1.bf16.msra.mxu0 0
        %2487 = vmatprep.subr.bf16.mxu0 0
        %2488 = vmatpush1.bf16.msra.mxu0 0
        %2489 = vmatprep.subr.bf16.mxu0 0
        %2490 = vmatpush1.bf16.msra.mxu0 0
        %2491 = vmatprep.subr.bf16.mxu0 0
        %2492 = vmatpush1.bf16.msra.mxu0 0
        %2493 = vmatprep.subr.bf16.mxu0 0
        %2494 = vmatpush1.bf16.msra.mxu0 0
        %2495 = vmatprep.subr.bf16.mxu0 0
        %2496 = vmatpush1.bf16.msra.mxu0 0
        %2497 = vmatprep.subr.bf16.mxu0 0
        %2498 = vmatpush1.bf16.msra.mxu0 0
        %2499 = vmatprep.subr.bf16.mxu0 0
        %2500 = vmatpush1.bf16.msra.mxu0 0
        %2501 = vmatprep.subr.bf16.mxu0 0
        %2502 = vmatpush1.bf16.msra.mxu0 0
        %2503 = vmatprep.subr.bf16.mxu0 0
        %2504 = vmatpush1.bf16.msra.mxu0 0
        %2505 = vmatprep.subr.bf16.mxu0 0
        %2506 = vmatpush1.bf16.msra.mxu0 0
        %2507 = vmatprep.subr.bf16.mxu0 0
        %2508 = vmatpush1.bf16.msra.mxu0 0
        %2509 = vmatprep.subr.bf16.mxu0 0
        %2510 = vmatpush1.bf16.msra.mxu0 0
        %2511 = vmatprep.mubr.bf16.mxu0 0
        %2512 = vmatmul.mubr.bf16.gmra.mrb[0].mxu0 %v2474
        %v2513 = vpop.f32.mrb[0].mxu0
        %v2514 = vadd.f32 0.0, %v2513
        %v2515 = vpop.f32.mrb[0].mxu0
        %v2516 = vpop.f32.mrb[0].mxu0
        %v2517 = vpop.f32.mrb[0].mxu0
        %2518 = vdwg.mxu0
        %v2519 = vpack.c.bf16 %v2514, %v2514
        %v2520 = vld [vmem:[%s1258] sm:$0xf]
        %v2522 = vsel %vm882, %v2519, 0
        %v2525 = vsel %vm945, %v2520, 0
        %2527 = vmatprep.subr.bf16.mxu0 0
        %2528 = vmatpush1.bf16.msra.mxu0 %v2525
        %2529 = vmatprep.subr.bf16.mxu0 0
        %2530 = vmatpush1.bf16.msra.mxu0 0
        %2531 = vmatprep.subr.bf16.mxu0 0
        %2532 = vmatpush1.bf16.msra.mxu0 0
        %2533 = vmatprep.subr.bf16.mxu0 0
        %2534 = vmatpush1.bf16.msra.mxu0 0
        %2535 = vmatprep.subr.bf16.mxu0 0
        %2536 = vmatpush1.bf16.msra.mxu0 0
        %2537 = vmatprep.subr.bf16.mxu0 0
        %2538 = vmatpush1.bf16.msra.mxu0 0
        %2539 = vmatprep.subr.bf16.mxu0 0
        %2540 = vmatpush1.bf16.msra.mxu0 0
        %2541 = vmatprep.subr.bf16.mxu0 0
        %2542 = vmatpush1.bf16.msra.mxu0 0
        %2543 = vmatprep.subr.bf16.mxu0 0
        %2544 = vmatpush1.bf16.msra.mxu0 0
        %2545 = vmatprep.subr.bf16.mxu0 0
        %2546 = vmatpush1.bf16.msra.mxu0 0
        %2547 = vmatprep.subr.bf16.mxu0 0
        %2548 = vmatpush1.bf16.msra.mxu0 0
        %2549 = vmatprep.subr.bf16.mxu0 0
        %2550 = vmatpush1.bf16.msra.mxu0 0
        %2551 = vmatprep.subr.bf16.mxu0 0
        %2552 = vmatpush1.bf16.msra.mxu0 0
        %2553 = vmatprep.subr.bf16.mxu0 0
        %2554 = vmatpush1.bf16.msra.mxu0 0
        %2555 = vmatprep.subr.bf16.mxu0 0
        %2556 = vmatpush1.bf16.msra.mxu0 0
        %2557 = vmatprep.subr.bf16.mxu0 0
        %2558 = vmatpush1.bf16.msra.mxu0 0
        %2559 = vmatprep.mubr.bf16.mxu0 0
        %2560 = vmatmul.mubr.bf16.gmra.mrb[0].mxu0 %v2522
        %v2561 = vpop.f32.mrb[0].mxu0
        %v2562 = vadd.f32 0.0, %v2561
        %v2563 = vpop.f32.mrb[0].mxu0
        %v2564 = vpop.f32.mrb[0].mxu0
        %v2565 = vpop.f32.mrb[0].mxu0
        %2566 = vdwg.mxu0
        %v2568 = vsel %vm882, %v2257, 0
        %v2571 = vsel %vm945, %v2258, 0
        %2573 = vmatprep.subr.bf16.mxu0 0
        %2574 = vmatpush1.bf16.msra.mxu0 %v2571
        %2575 = vmatprep.subr.bf16.mxu0 0
        %2576 = vmatpush1.bf16.msra.mxu0 0
        %2577 = vmatprep.subr.bf16.mxu0 0
        %2578 = vmatpush1.bf16.msra.mxu0 0
        %2579 = vmatprep.subr.bf16.mxu0 0
        %2580 = vmatpush1.bf16.msra.mxu0 0
        %2581 = vmatprep.subr.bf16.mxu0 0
        %2582 = vmatpush1.bf16.msra.mxu0 0
        %2583 = vmatprep.subr.bf16.mxu0 0
        %2584 = vmatpush1.bf16.msra.mxu0 0
        %2585 = vmatprep.subr.bf16.mxu0 0
        %2586 = vmatpush1.bf16.msra.mxu0 0
        %2587 = vmatprep.subr.bf16.mxu0 0
        %2588 = vmatpush1.bf16.msra.mxu0 0
        %2589 = vmatprep.subr.bf16.mxu0 0
        %2590 = vmatpush1.bf16.msra.mxu0 0
        %2591 = vmatprep.subr.bf16.mxu0 0
        %2592 = vmatpush1.bf16.msra.mxu0 0
        %2593 = vmatprep.subr.bf16.mxu0 0
        %2594 = vmatpush1.bf16.msra.mxu0 0
        %2595 = vmatprep.subr.bf16.mxu0 0
        %2596 = vmatpush1.bf16.msra.mxu0 0
        %2597 = vmatprep.subr.bf16.mxu0 0
        %2598 = vmatpush1.bf16.msra.mxu0 0
        %2599 = vmatprep.subr.bf16.mxu0 0
        %2600 = vmatpush1.bf16.msra.mxu0 0
        %2601 = vmatprep.subr.bf16.mxu0 0
        %2602 = vmatpush1.bf16.msra.mxu0 0
        %2603 = vmatprep.subr.bf16.mxu0 0
        %2604 = vmatpush1.bf16.msra.mxu0 0
        %2605 = vmatprep.mubr.bf16.mxu0 0
        %2606 = vmatmul.mubr.bf16.gmra.mrb[0].mxu0 %v2568
        %v2607 = vpop.f32.mrb[0].mxu0
        %v2608 = vadd.f32 %v2562, %v2607
        %v2609 = vpop.f32.mrb[0].mxu0
        %v2610 = vpop.f32.mrb[0].mxu0
        %v2611 = vpop.f32.mrb[0].mxu0
        %2612 = vdwg.mxu0
        %v2613 = vld [vmem:[%s1352] sm:$0xf]
        %v2614 = vld [vmem:[%s1354] sm:$0x1]
        %v2616 = vlaneseq
        %v2617 = vshrl.u32 %v2616, 7
        %v2618 = vsub.s32 0, %v2617
        %v2619 = vrot.slane %v2614, %v2618
        %v2622 = vsel %vm678, %v2613, 0
        %2624 = vmatprep.subr.bf16.mxu0 0
        %2625 = vmatpush1.bf16.xpose.msra.mxu0 %v2622
        %2626 = vmatprep.subr.bf16.mxu0 0
        %2627 = vmatpush1.bf16.xpose.msra.mxu0 0
        %2628 = vmatprep.subr.bf16.mxu0 0
        %2629 = vmatpush1.bf16.xpose.msra.mxu0 0
        %2630 = vmatprep.subr.bf16.mxu0 0
        %2631 = vmatpush1.bf16.xpose.msra.mxu0 0
        %2632 = vmatprep.subr.bf16.mxu0 0
        %2633 = vmatpush1.bf16.xpose.msra.mxu0 0
        %2634 = vmatprep.subr.bf16.mxu0 0
        %2635 = vmatpush1.bf16.xpose.msra.mxu0 0
        %2636 = vmatprep.subr.bf16.mxu0 0
        %2637 = vmatpush1.bf16.xpose.msra.mxu0 0
        %2638 = vmatprep.subr.bf16.mxu0 0
        %2639 = vmatpush1.bf16.xpose.msra.mxu0 0
        %2640 = vmatprep.subr.bf16.mxu0 0
        %2641 = vmatpush1.bf16.xpose.msra.mxu0 0
        %2642 = vmatprep.subr.bf16.mxu0 0
        %2643 = vmatpush1.bf16.xpose.msra.mxu0 0
        %2644 = vmatprep.subr.bf16.mxu0 0
        %2645 = vmatpush1.bf16.xpose.msra.mxu0 0
        %2646 = vmatprep.subr.bf16.mxu0 0
        %2647 = vmatpush1.bf16.xpose.msra.mxu0 0
        %2648 = vmatprep.subr.bf16.mxu0 0
        %2649 = vmatpush1.bf16.xpose.msra.mxu0 0
        %2650 = vmatprep.subr.bf16.mxu0 0
        %2651 = vmatpush1.bf16.xpose.msra.mxu0 0
        %2652 = vmatprep.subr.bf16.mxu0 0
        %2653 = vmatpush1.bf16.xpose.msra.mxu0 0
        %2654 = vmatprep.subr.bf16.mxu0 0
        %2655 = vmatpush1.bf16.xpose.msra.mxu0 0
        %2656 = vmatprep.mubr.bf16.mxu0 0
        %2657 = vmatmul.mubr.bf16.gmra.mrb[0].mxu0 %v2003
        %v2658 = vpop.f32.mrb[0].mxu0
        %v2659 = vadd.f32 %v2619, %v2658
        %v2660 = vpop.f32.mrb[0].mxu0
        %v2661 = vpop.f32.mrb[0].mxu0
        %v2662 = vpop.f32.mrb[0].mxu0
        %2663 = vdwg.mxu0
        %v2664 = vld [vmem:[%s1405] sm:$0xf]
        %v2665 = vld [vmem:[%s1407] sm:$0x1]
        %v2667 = vlaneseq
        %v2668 = vshrl.u32 %v2667, 7
        %v2669 = vsub.s32 0, %v2668
        %v2670 = vrot.slane %v2665, %v2669
        %v2673 = vsel %vm678, %v2664, 0
        %2675 = vmatprep.subr.bf16.mxu0 0
        %2676 = vmatpush1.bf16.xpose.msra.mxu0 %v2673
        %2677 = vmatprep.subr.bf16.mxu0 0
        %2678 = vmatpush1.bf16.xpose.msra.mxu0 0
        %2679 = vmatprep.subr.bf16.mxu0 0
        %2680 = vmatpush1.bf16.xpose.msra.mxu0 0
        %2681 = vmatprep.subr.bf16.mxu0 0
        %2682 = vmatpush1.bf16.xpose.msra.mxu0 0
        %2683 = vmatprep.subr.bf16.mxu0 0
        %2684 = vmatpush1.bf16.xpose.msra.mxu0 0
        %2685 = vmatprep.subr.bf16.mxu0 0
        %2686 = vmatpush1.bf16.xpose.msra.mxu0 0
        %2687 = vmatprep.subr.bf16.mxu0 0
        %2688 = vmatpush1.bf16.xpose.msra.mxu0 0
        %2689 = vmatprep.subr.bf16.mxu0 0
        %2690 = vmatpush1.bf16.xpose.msra.mxu0 0
        %2691 = vmatprep.subr.bf16.mxu0 0
        %2692 = vmatpush1.bf16.xpose.msra.mxu0 0
        %2693 = vmatprep.subr.bf16.mxu0 0
        %2694 = vmatpush1.bf16.xpose.msra.mxu0 0
        %2695 = vmatprep.subr.bf16.mxu0 0
        %2696 = vmatpush1.bf16.xpose.msra.mxu0 0
        %2697 = vmatprep.subr.bf16.mxu0 0
        %2698 = vmatpush1.bf16.xpose.msra.mxu0 0
        %2699 = vmatprep.subr.bf16.mxu0 0
        %2700 = vmatpush1.bf16.xpose.msra.mxu0 0
        %2701 = vmatprep.subr.bf16.mxu0 0
        %2702 = vmatpush1.bf16.xpose.msra.mxu0 0
        %2703 = vmatprep.subr.bf16.mxu0 0
        %2704 = vmatpush1.bf16.xpose.msra.mxu0 0
        %2705 = vmatprep.subr.bf16.mxu0 0
        %2706 = vmatpush1.bf16.xpose.msra.mxu0 0
        %2707 = vmatprep.mubr.bf16.mxu0 0
        %2708 = vmatmul.mubr.bf16.gmra.mrb[0].mxu0 %v2003
        %v2709 = vpop.f32.mrb[0].mxu0
        %v2710 = vadd.f32 %v2670, %v2709
        %v2711 = vpop.f32.mrb[0].mxu0
        %v2712 = vpop.f32.mrb[0].mxu0
        %v2713 = vpop.f32.mrb[0].mxu0
        %2714 = vdwg.mxu0
        %v2715 = vld [vmem:[%s1458] sm:$0xf]
        %v2716 = vld [vmem:[%s1460] sm:$0x1]
        %v2718 = vlaneseq
        %v2719 = vshrl.u32 %v2718, 7
        %v2720 = vsub.s32 0, %v2719
        %v2721 = vrot.slane %v2716, %v2720
        %v2724 = vsel %vm678, %v2715, 0
        %2726 = vmatprep.subr.bf16.mxu0 0
        %2727 = vmatpush1.bf16.xpose.msra.mxu0 %v2724
        %2728 = vmatprep.subr.bf16.mxu0 0
        %2729 = vmatpush1.bf16.xpose.msra.mxu0 0
        %2730 = vmatprep.subr.bf16.mxu0 0
        %2731 = vmatpush1.bf16.xpose.msra.mxu0 0
        %2732 = vmatprep.subr.bf16.mxu0 0
        %2733 = vmatpush1.bf16.xpose.msra.mxu0 0
        %2734 = vmatprep.subr.bf16.mxu0 0
        %2735 = vmatpush1.bf16.xpose.msra.mxu0 0
        %2736 = vmatprep.subr.bf16.mxu0 0
        %2737 = vmatpush1.bf16.xpose.msra.mxu0 0
        %2738 = vmatprep.subr.bf16.mxu0 0
        %2739 = vmatpush1.bf16.xpose.msra.mxu0 0
        %2740 = vmatprep.subr.bf16.mxu0 0
        %2741 = vmatpush1.bf16.xpose.msra.mxu0 0
        %2742 = vmatprep.subr.bf16.mxu0 0
        %2743 = vmatpush1.bf16.xpose.msra.mxu0 0
        %2744 = vmatprep.subr.bf16.mxu0 0
        %2745 = vmatpush1.bf16.xpose.msra.mxu0 0
        %2746 = vmatprep.subr.bf16.mxu0 0
        %2747 = vmatpush1.bf16.xpose.msra.mxu0 0
        %2748 = vmatprep.subr.bf16.mxu0 0
        %2749 = vmatpush1.bf16.xpose.msra.mxu0 0
        %2750 = vmatprep.subr.bf16.mxu0 0
        %2751 = vmatpush1.bf16.xpose.msra.mxu0 0
        %2752 = vmatprep.subr.bf16.mxu0 0
        %2753 = vmatpush1.bf16.xpose.msra.mxu0 0
        %2754 = vmatprep.subr.bf16.mxu0 0
        %2755 = vmatpush1.bf16.xpose.msra.mxu0 0
        %2756 = vmatprep.subr.bf16.mxu0 0
        %2757 = vmatpush1.bf16.xpose.msra.mxu0 0
        %2758 = vmatprep.mubr.bf16.mxu0 0
        %2759 = vmatmul.mubr.bf16.gmra.mrb[0].mxu0 %v2003
        %v2760 = vpop.f32.mrb[0].mxu0
        %v2761 = vadd.f32 %v2721, %v2760
        %v2762 = vpop.f32.mrb[0].mxu0
        %v2763 = vpop.f32.mrb[0].mxu0
        %v2764 = vpop.f32.mrb[0].mxu0
        %2765 = vdwg.mxu0
        %v2766 = vpack.c.bf16 %v2659, %v2659
        %v2767 = vpack.c.bf16 %v2710, %v2710
        %v2769 = vsel %vm882, %v2766, 0
        %v2772 = vsel %vm882, %v2767, 0
        %2774 = vmatprep.subr.bf16.mxu0 0
        %2775 = vmatpush1.bf16.xpose.msra.mxu0 %v2772
        %2776 = vmatprep.subr.bf16.mxu0 0
        %2777 = vmatpush1.bf16.xpose.msra.mxu0 0
        %2778 = vmatprep.subr.bf16.mxu0 0
        %2779 = vmatpush1.bf16.xpose.msra.mxu0 0
        %2780 = vmatprep.subr.bf16.mxu0 0
        %2781 = vmatpush1.bf16.xpose.msra.mxu0 0
        %2782 = vmatprep.subr.bf16.mxu0 0
        %2783 = vmatpush1.bf16.xpose.msra.mxu0 0
        %2784 = vmatprep.subr.bf16.mxu0 0
        %2785 = vmatpush1.bf16.xpose.msra.mxu0 0
        %2786 = vmatprep.subr.bf16.mxu0 0
        %2787 = vmatpush1.bf16.xpose.msra.mxu0 0
        %2788 = vmatprep.subr.bf16.mxu0 0
        %2789 = vmatpush1.bf16.xpose.msra.mxu0 0
        %2790 = vmatprep.subr.bf16.mxu0 0
        %2791 = vmatpush1.bf16.xpose.msra.mxu0 0
        %2792 = vmatprep.subr.bf16.mxu0 0
        %2793 = vmatpush1.bf16.xpose.msra.mxu0 0
        %2794 = vmatprep.subr.bf16.mxu0 0
        %2795 = vmatpush1.bf16.xpose.msra.mxu0 0
        %2796 = vmatprep.subr.bf16.mxu0 0
        %2797 = vmatpush1.bf16.xpose.msra.mxu0 0
        %2798 = vmatprep.subr.bf16.mxu0 0
        %2799 = vmatpush1.bf16.xpose.msra.mxu0 0
        %2800 = vmatprep.subr.bf16.mxu0 0
        %2801 = vmatpush1.bf16.xpose.msra.mxu0 0
        %2802 = vmatprep.subr.bf16.mxu0 0
        %2803 = vmatpush1.bf16.xpose.msra.mxu0 0
        %2804 = vmatprep.subr.bf16.mxu0 0
        %2805 = vmatpush1.bf16.xpose.msra.mxu0 0
        %2806 = vmatprep.mubr.bf16.mxu0 0
        %2807 = vmatmul.mubr.bf16.gmra.mrb[0].mxu0 %v2769
        %v2808 = vpop.f32.mrb[0].mxu0
        %v2809 = vadd.f32 0.0, %v2808
        %v2810 = vpop.f32.mrb[0].mxu0
        %v2811 = vpop.f32.mrb[0].mxu0
        %v2812 = vpop.f32.mrb[0].mxu0
        %2813 = vdwg.mxu0
        %v2814 = vsel %vm882, %v2809, -inf
        %2815 = vmax.xlane.f32.xlu0 %v2814
        %v2816 = vpop.xlane.xlu0 %2815
        %v2817 = vsub.f32 %v2809, %v2816
        %v2818 = vmul.f32 %v2817, 1.442695
        %v2819 = vpow.pop %v2818
        %v2820 = vsel %vm882, %v2819, 0.0
        %2821 = vadd.xlane.f32.xlu0 %v2820
        %v2822 = vpop.xlane.xlu0 %2821
        %v2823 = vrcp.pop %v2822
        %v2824 = vmul.f32 %v2819, %v2823
        %v2825 = vpack.c.bf16 %v2824, %v2824
        %v2826 = vpack.c.bf16 %v2761, %v2761
        %v2828 = vsel %vm882, %v2825, 0
        %v2831 = vsel %vm945, %v2826, 0
        %2833 = vmatprep.subr.bf16.mxu0 0
        %2834 = vmatpush1.bf16.msra.mxu0 %v2831
        %2835 = vmatprep.subr.bf16.mxu0 0
        %2836 = vmatpush1.bf16.msra.mxu0 0
        %2837 = vmatprep.subr.bf16.mxu0 0
        %2838 = vmatpush1.bf16.msra.mxu0 0
        %2839 = vmatprep.subr.bf16.mxu0 0
        %2840 = vmatpush1.bf16.msra.mxu0 0
        %2841 = vmatprep.subr.bf16.mxu0 0
        %2842 = vmatpush1.bf16.msra.mxu0 0
        %2843 = vmatprep.subr.bf16.mxu0 0
        %2844 = vmatpush1.bf16.msra.mxu0 0
        %2845 = vmatprep.subr.bf16.mxu0 0
        %2846 = vmatpush1.bf16.msra.mxu0 0
        %2847 = vmatprep.subr.bf16.mxu0 0
        %2848 = vmatpush1.bf16.msra.mxu0 0
        %2849 = vmatprep.subr.bf16.mxu0 0
        %2850 = vmatpush1.bf16.msra.mxu0 0
        %2851 = vmatprep.subr.bf16.mxu0 0
        %2852 = vmatpush1.bf16.msra.mxu0 0
        %2853 = vmatprep.subr.bf16.mxu0 0
        %2854 = vmatpush1.bf16.msra.mxu0 0
        %2855 = vmatprep.subr.bf16.mxu0 0
        %2856 = vmatpush1.bf16.msra.mxu0 0
        %2857 = vmatprep.subr.bf16.mxu0 0
        %2858 = vmatpush1.bf16.msra.mxu0 0
        %2859 = vmatprep.subr.bf16.mxu0 0
        %2860 = vmatpush1.bf16.msra.mxu0 0
        %2861 = vmatprep.subr.bf16.mxu0 0
        %2862 = vmatpush1.bf16.msra.mxu0 0
        %2863 = vmatprep.subr.bf16.mxu0 0
        %2864 = vmatpush1.bf16.msra.mxu0 0
        %2865 = vmatprep.mubr.bf16.mxu0 0
        %2866 = vmatmul.mubr.bf16.gmra.mrb[0].mxu0 %v2828
        %v2867 = vpop.f32.mrb[0].mxu0
        %v2868 = vadd.f32 0.0, %v2867
        %v2869 = vpop.f32.mrb[0].mxu0
        %v2870 = vpop.f32.mrb[0].mxu0
        %v2871 = vpop.f32.mrb[0].mxu0
        %2872 = vdwg.mxu0
        %v2873 = vpack.c.bf16 %v2868, %v2868
        %v2874 = vld [vmem:[%s1619] sm:$0xf]
        %v2876 = vsel %vm882, %v2873, 0
        %v2879 = vsel %vm945, %v2874, 0
        %2881 = vmatprep.subr.bf16.mxu0 0
        %2882 = vmatpush1.bf16.msra.mxu0 %v2879
        %2883 = vmatprep.subr.bf16.mxu0 0
        %2884 = vmatpush1.bf16.msra.mxu0 0
        %2885 = vmatprep.subr.bf16.mxu0 0
        %2886 = vmatpush1.bf16.msra.mxu0 0
        %2887 = vmatprep.subr.bf16.mxu0 0
        %2888 = vmatpush1.bf16.msra.mxu0 0
        %2889 = vmatprep.subr.bf16.mxu0 0
        %2890 = vmatpush1.bf16.msra.mxu0 0
        %2891 = vmatprep.subr.bf16.mxu0 0
        %2892 = vmatpush1.bf16.msra.mxu0 0
        %2893 = vmatprep.subr.bf16.mxu0 0
        %2894 = vmatpush1.bf16.msra.mxu0 0
        %2895 = vmatprep.subr.bf16.mxu0 0
        %2896 = vmatpush1.bf16.msra.mxu0 0
        %2897 = vmatprep.subr.bf16.mxu0 0
        %2898 = vmatpush1.bf16.msra.mxu0 0
        %2899 = vmatprep.subr.bf16.mxu0 0
        %2900 = vmatpush1.bf16.msra.mxu0 0
        %2901 = vmatprep.subr.bf16.mxu0 0
        %2902 = vmatpush1.bf16.msra.mxu0 0
        %2903 = vmatprep.subr.bf16.mxu0 0
        %2904 = vmatpush1.bf16.msra.mxu0 0
        %2905 = vmatprep.subr.bf16.mxu0 0
        %2906 = vmatpush1.bf16.msra.mxu0 0
        %2907 = vmatprep.subr.bf16.mxu0 0
        %2908 = vmatpush1.bf16.msra.mxu0 0
        %2909 = vmatprep.subr.bf16.mxu0 0
        %2910 = vmatpush1.bf16.msra.mxu0 0
        %2911 = vmatprep.subr.bf16.mxu0 0
        %2912 = vmatpush1.bf16.msra.mxu0 0
        %2913 = vmatprep.mubr.bf16.mxu0 0
        %2914 = vmatmul.mubr.bf16.gmra.mrb[0].mxu0 %v2876
        %v2915 = vpop.f32.mrb[0].mxu0
        %v2916 = vadd.f32 0.0, %v2915
        %v2917 = vpop.f32.mrb[0].mxu0
        %v2918 = vpop.f32.mrb[0].mxu0
        %v2919 = vpop.f32.mrb[0].mxu0
        %2920 = vdwg.mxu0
        %v2921 = vadd.f32 %v2608, %v2916
        %v2922 = vld [vmem:[%s1668] sm:$0xf]
        %v2923 = vld [vmem:[%s1670] sm:$0x1]
        %v2925 = vlaneseq
        %v2926 = vshrl.u32 %v2925, 7
        %v2927 = vsub.s32 0, %v2926
        %v2928 = vrot.slane %v2923, %v2927
        %v2931 = vsel %vm678, %v2922, 0
        %2933 = vmatprep.subr.bf16.mxu0 0
        %2934 = vmatpush1.bf16.xpose.msra.mxu0 %v2931
        %2935 = vmatprep.subr.bf16.mxu0 0
        %2936 = vmatpush1.bf16.xpose.msra.mxu0 0
        %2937 = vmatprep.subr.bf16.mxu0 0
        %2938 = vmatpush1.bf16.xpose.msra.mxu0 0
        %2939 = vmatprep.subr.bf16.mxu0 0
        %2940 = vmatpush1.bf16.xpose.msra.mxu0 0
        %2941 = vmatprep.subr.bf16.mxu0 0
        %2942 = vmatpush1.bf16.xpose.msra.mxu0 0
        %2943 = vmatprep.subr.bf16.mxu0 0
        %2944 = vmatpush1.bf16.xpose.msra.mxu0 0
        %2945 = vmatprep.subr.bf16.mxu0 0
        %2946 = vmatpush1.bf16.xpose.msra.mxu0 0
        %2947 = vmatprep.subr.bf16.mxu0 0
        %2948 = vmatpush1.bf16.xpose.msra.mxu0 0
        %2949 = vmatprep.subr.bf16.mxu0 0
        %2950 = vmatpush1.bf16.xpose.msra.mxu0 0
        %2951 = vmatprep.subr.bf16.mxu0 0
        %2952 = vmatpush1.bf16.xpose.msra.mxu0 0
        %2953 = vmatprep.subr.bf16.mxu0 0
        %2954 = vmatpush1.bf16.xpose.msra.mxu0 0
        %2955 = vmatprep.subr.bf16.mxu0 0
        %2956 = vmatpush1.bf16.xpose.msra.mxu0 0
        %2957 = vmatprep.subr.bf16.mxu0 0
        %2958 = vmatpush1.bf16.xpose.msra.mxu0 0
        %2959 = vmatprep.subr.bf16.mxu0 0
        %2960 = vmatpush1.bf16.xpose.msra.mxu0 0
        %2961 = vmatprep.subr.bf16.mxu0 0
        %2962 = vmatpush1.bf16.xpose.msra.mxu0 0
        %2963 = vmatprep.subr.bf16.mxu0 0
        %2964 = vmatpush1.bf16.xpose.msra.mxu0 0
        %2965 = vmatprep.mubr.bf16.mxu0 0
        %2966 = vmatmul.mubr.bf16.gmra.mrb[0].mxu0 %v2003
        %v2967 = vpop.f32.mrb[0].mxu0
        %v2968 = vadd.f32 %v2928, %v2967
        %v2969 = vpop.f32.mrb[0].mxu0
        %v2970 = vpop.f32.mrb[0].mxu0
        %v2971 = vpop.f32.mrb[0].mxu0
        %2972 = vdwg.mxu0
        %v2973 = vld [vmem:[%s1721] sm:$0xf]
        %v2974 = vld [vmem:[%s1723] sm:$0x1]
        %v2976 = vlaneseq
        %v2977 = vshrl.u32 %v2976, 7
        %v2978 = vsub.s32 0, %v2977
        %v2979 = vrot.slane %v2974, %v2978
        %v2982 = vsel %vm678, %v2973, 0
        %2984 = vmatprep.subr.bf16.mxu0 0
        %2985 = vmatpush1.bf16.xpose.msra.mxu0 %v2982
        %2986 = vmatprep.subr.bf16.mxu0 0
        %2987 = vmatpush1.bf16.xpose.msra.mxu0 0
        %2988 = vmatprep.subr.bf16.mxu0 0
        %2989 = vmatpush1.bf16.xpose.msra.mxu0 0
        %2990 = vmatprep.subr.bf16.mxu0 0
        %2991 = vmatpush1.bf16.xpose.msra.mxu0 0
        %2992 = vmatprep.subr.bf16.mxu0 0
        %2993 = vmatpush1.bf16.xpose.msra.mxu0 0
        %2994 = vmatprep.subr.bf16.mxu0 0
        %2995 = vmatpush1.bf16.xpose.msra.mxu0 0
        %2996 = vmatprep.subr.bf16.mxu0 0
        %2997 = vmatpush1.bf16.xpose.msra.mxu0 0
        %2998 = vmatprep.subr.bf16.mxu0 0
        %2999 = vmatpush1.bf16.xpose.msra.mxu0 0
        %3000 = vmatprep.subr.bf16.mxu0 0
        %3001 = vmatpush1.bf16.xpose.msra.mxu0 0
        %3002 = vmatprep.subr.bf16.mxu0 0
        %3003 = vmatpush1.bf16.xpose.msra.mxu0 0
        %3004 = vmatprep.subr.bf16.mxu0 0
        %3005 = vmatpush1.bf16.xpose.msra.mxu0 0
        %3006 = vmatprep.subr.bf16.mxu0 0
        %3007 = vmatpush1.bf16.xpose.msra.mxu0 0
        %3008 = vmatprep.subr.bf16.mxu0 0
        %3009 = vmatpush1.bf16.xpose.msra.mxu0 0
        %3010 = vmatprep.subr.bf16.mxu0 0
        %3011 = vmatpush1.bf16.xpose.msra.mxu0 0
        %3012 = vmatprep.subr.bf16.mxu0 0
        %3013 = vmatpush1.bf16.xpose.msra.mxu0 0
        %3014 = vmatprep.subr.bf16.mxu0 0
        %3015 = vmatpush1.bf16.xpose.msra.mxu0 0
        %3016 = vmatprep.mubr.bf16.mxu0 0
        %3017 = vmatmul.mubr.bf16.gmra.mrb[0].mxu0 %v2003
        %v3018 = vpop.f32.mrb[0].mxu0
        %v3019 = vadd.f32 %v2979, %v3018
        %v3020 = vpop.f32.mrb[0].mxu0
        %v3021 = vpop.f32.mrb[0].mxu0
        %v3022 = vpop.f32.mrb[0].mxu0
        %3023 = vdwg.mxu0
        %v3024 = vld [vmem:[%s1774] sm:$0xf]
        %v3025 = vld [vmem:[%s1776] sm:$0x1]
        %v3027 = vlaneseq
        %v3028 = vshrl.u32 %v3027, 7
        %v3029 = vsub.s32 0, %v3028
        %v3030 = vrot.slane %v3025, %v3029
        %v3033 = vsel %vm678, %v3024, 0
        %3035 = vmatprep.subr.bf16.mxu0 0
        %3036 = vmatpush1.bf16.xpose.msra.mxu0 %v3033
        %3037 = vmatprep.subr.bf16.mxu0 0
        %3038 = vmatpush1.bf16.xpose.msra.mxu0 0
        %3039 = vmatprep.subr.bf16.mxu0 0
        %3040 = vmatpush1.bf16.xpose.msra.mxu0 0
        %3041 = vmatprep.subr.bf16.mxu0 0
        %3042 = vmatpush1.bf16.xpose.msra.mxu0 0
        %3043 = vmatprep.subr.bf16.mxu0 0
        %3044 = vmatpush1.bf16.xpose.msra.mxu0 0
        %3045 = vmatprep.subr.bf16.mxu0 0
        %3046 = vmatpush1.bf16.xpose.msra.mxu0 0
        %3047 = vmatprep.subr.bf16.mxu0 0
        %3048 = vmatpush1.bf16.xpose.msra.mxu0 0
        %3049 = vmatprep.subr.bf16.mxu0 0
        %3050 = vmatpush1.bf16.xpose.msra.mxu0 0
        %3051 = vmatprep.subr.bf16.mxu0 0
        %3052 = vmatpush1.bf16.xpose.msra.mxu0 0
        %3053 = vmatprep.subr.bf16.mxu0 0
        %3054 = vmatpush1.bf16.xpose.msra.mxu0 0
        %3055 = vmatprep.subr.bf16.mxu0 0
        %3056 = vmatpush1.bf16.xpose.msra.mxu0 0
        %3057 = vmatprep.subr.bf16.mxu0 0
        %3058 = vmatpush1.bf16.xpose.msra.mxu0 0
        %3059 = vmatprep.subr.bf16.mxu0 0
        %3060 = vmatpush1.bf16.xpose.msra.mxu0 0
        %3061 = vmatprep.subr.bf16.mxu0 0
        %3062 = vmatpush1.bf16.xpose.msra.mxu0 0
        %3063 = vmatprep.subr.bf16.mxu0 0
        %3064 = vmatpush1.bf16.xpose.msra.mxu0 0
        %3065 = vmatprep.subr.bf16.mxu0 0
        %3066 = vmatpush1.bf16.xpose.msra.mxu0 0
        %3067 = vmatprep.mubr.bf16.mxu0 0
        %3068 = vmatmul.mubr.bf16.gmra.mrb[0].mxu0 %v2003
        %v3069 = vpop.f32.mrb[0].mxu0
        %v3070 = vadd.f32 %v3030, %v3069
        %v3071 = vpop.f32.mrb[0].mxu0
        %v3072 = vpop.f32.mrb[0].mxu0
        %v3073 = vpop.f32.mrb[0].mxu0
        %3074 = vdwg.mxu0
        %v3075 = vpack.c.bf16 %v2968, %v2968
        %v3076 = vpack.c.bf16 %v3019, %v3019
        %v3078 = vsel %vm882, %v3075, 0
        %v3081 = vsel %vm882, %v3076, 0
        %3083 = vmatprep.subr.bf16.mxu0 0
        %3084 = vmatpush1.bf16.xpose.msra.mxu0 %v3081
        %3085 = vmatprep.subr.bf16.mxu0 0
        %3086 = vmatpush1.bf16.xpose.msra.mxu0 0
        %3087 = vmatprep.subr.bf16.mxu0 0
        %3088 = vmatpush1.bf16.xpose.msra.mxu0 0
        %3089 = vmatprep.subr.bf16.mxu0 0
        %3090 = vmatpush1.bf16.xpose.msra.mxu0 0
        %3091 = vmatprep.subr.bf16.mxu0 0
        %3092 = vmatpush1.bf16.xpose.msra.mxu0 0
        %3093 = vmatprep.subr.bf16.mxu0 0
        %3094 = vmatpush1.bf16.xpose.msra.mxu0 0
        %3095 = vmatprep.subr.bf16.mxu0 0
        %3096 = vmatpush1.bf16.xpose.msra.mxu0 0
        %3097 = vmatprep.subr.bf16.mxu0 0
        %3098 = vmatpush1.bf16.xpose.msra.mxu0 0
        %3099 = vmatprep.subr.bf16.mxu0 0
        %3100 = vmatpush1.bf16.xpose.msra.mxu0 0
        %3101 = vmatprep.subr.bf16.mxu0 0
        %3102 = vmatpush1.bf16.xpose.msra.mxu0 0
        %3103 = vmatprep.subr.bf16.mxu0 0
        %3104 = vmatpush1.bf16.xpose.msra.mxu0 0
        %3105 = vmatprep.subr.bf16.mxu0 0
        %3106 = vmatpush1.bf16.xpose.msra.mxu0 0
        %3107 = vmatprep.subr.bf16.mxu0 0
        %3108 = vmatpush1.bf16.xpose.msra.mxu0 0
        %3109 = vmatprep.subr.bf16.mxu0 0
        %3110 = vmatpush1.bf16.xpose.msra.mxu0 0
        %3111 = vmatprep.subr.bf16.mxu0 0
        %3112 = vmatpush1.bf16.xpose.msra.mxu0 0
        %3113 = vmatprep.subr.bf16.mxu0 0
        %3114 = vmatpush1.bf16.xpose.msra.mxu0 0
        %3115 = vmatprep.mubr.bf16.mxu0 0
        %3116 = vmatmul.mubr.bf16.gmra.mrb[0].mxu0 %v3078
        %v3117 = vpop.f32.mrb[0].mxu0
        %v3118 = vadd.f32 0.0, %v3117
        %v3119 = vpop.f32.mrb[0].mxu0
        %v3120 = vpop.f32.mrb[0].mxu0
        %v3121 = vpop.f32.mrb[0].mxu0
        %3122 = vdwg.mxu0
        %v3123 = vsel %vm882, %v3118, -inf
        %3124 = vmax.xlane.f32.xlu0 %v3123
        %v3125 = vpop.xlane.xlu0 %3124
        %v3126 = vsub.f32 %v3118, %v3125
        %v3127 = vmul.f32 %v3126, 1.442695
        %v3128 = vpow.pop %v3127
        %v3129 = vsel %vm882, %v3128, 0.0
        %3130 = vadd.xlane.f32.xlu0 %v3129
        %v3131 = vpop.xlane.xlu0 %3130
        %v3132 = vrcp.pop %v3131
        %v3133 = vmul.f32 %v3128, %v3132
        %v3134 = vpack.c.bf16 %v3133, %v3133
        %v3135 = vpack.c.bf16 %v3070, %v3070
        %v3137 = vsel %vm882, %v3134, 0
        %v3140 = vsel %vm945, %v3135, 0
        %3142 = vmatprep.subr.bf16.mxu0 0
        %3143 = vmatpush1.bf16.msra.mxu0 %v3140
        %3144 = vmatprep.subr.bf16.mxu0 0
        %3145 = vmatpush1.bf16.msra.mxu0 0
        %3146 = vmatprep.subr.bf16.mxu0 0
        %3147 = vmatpush1.bf16.msra.mxu0 0
        %3148 = vmatprep.subr.bf16.mxu0 0
        %3149 = vmatpush1.bf16.msra.mxu0 0
        %3150 = vmatprep.subr.bf16.mxu0 0
        %3151 = vmatpush1.bf16.msra.mxu0 0
        %3152 = vmatprep.subr.bf16.mxu0 0
        %3153 = vmatpush1.bf16.msra.mxu0 0
        %3154 = vmatprep.subr.bf16.mxu0 0
        %3155 = vmatpush1.bf16.msra.mxu0 0
        %3156 = vmatprep.subr.bf16.mxu0 0
        %3157 = vmatpush1.bf16.msra.mxu0 0
        %3158 = vmatprep.subr.bf16.mxu0 0
        %3159 = vmatpush1.bf16.msra.mxu0 0
        %3160 = vmatprep.subr.bf16.mxu0 0
        %3161 = vmatpush1.bf16.msra.mxu0 0
        %3162 = vmatprep.subr.bf16.mxu0 0
        %3163 = vmatpush1.bf16.msra.mxu0 0
        %3164 = vmatprep.subr.bf16.mxu0 0
        %3165 = vmatpush1.bf16.msra.mxu0 0
        %3166 = vmatprep.subr.bf16.mxu0 0
        %3167 = vmatpush1.bf16.msra.mxu0 0
        %3168 = vmatprep.subr.bf16.mxu0 0
        %3169 = vmatpush1.bf16.msra.mxu0 0
        %3170 = vmatprep.subr.bf16.mxu0 0
        %3171 = vmatpush1.bf16.msra.mxu0 0
        %3172 = vmatprep.subr.bf16.mxu0 0
        %3173 = vmatpush1.bf16.msra.mxu0 0
        %3174 = vmatprep.mubr.bf16.mxu0 0
        %3175 = vmatmul.mubr.bf16.gmra.mrb[0].mxu0 %v3137
        %v3176 = vpop.f32.mrb[0].mxu0
        %v3177 = vadd.f32 0.0, %v3176
        %v3178 = vpop.f32.mrb[0].mxu0
        %v3179 = vpop.f32.mrb[0].mxu0
        %v3180 = vpop.f32.mrb[0].mxu0
        %3181 = vdwg.mxu0
        %v3182 = vpack.c.bf16 %v3177, %v3177
        %v3183 = vld [vmem:[%s1935] sm:$0xf]
        %v3185 = vsel %vm882, %v3182, 0
        %v3188 = vsel %vm945, %v3183, 0
        %3190 = vmatprep.subr.bf16.mxu0 0
        %3191 = vmatpush1.bf16.msra.mxu0 %v3188
        %3192 = vmatprep.subr.bf16.mxu0 0
        %3193 = vmatpush1.bf16.msra.mxu0 0
        %3194 = vmatprep.subr.bf16.mxu0 0
        %3195 = vmatpush1.bf16.msra.mxu0 0
        %3196 = vmatprep.subr.bf16.mxu0 0
        %3197 = vmatpush1.bf16.msra.mxu0 0
        %3198 = vmatprep.subr.bf16.mxu0 0
        %3199 = vmatpush1.bf16.msra.mxu0 0
        %3200 = vmatprep.subr.bf16.mxu0 0
        %3201 = vmatpush1.bf16.msra.mxu0 0
        %3202 = vmatprep.subr.bf16.mxu0 0
        %3203 = vmatpush1.bf16.msra.mxu0 0
        %3204 = vmatprep.subr.bf16.mxu0 0
        %3205 = vmatpush1.bf16.msra.mxu0 0
        %3206 = vmatprep.subr.bf16.mxu0 0
        %3207 = vmatpush1.bf16.msra.mxu0 0
        %3208 = vmatprep.subr.bf16.mxu0 0
        %3209 = vmatpush1.bf16.msra.mxu0 0
        %3210 = vmatprep.subr.bf16.mxu0 0
        %3211 = vmatpush1.bf16.msra.mxu0 0
        %3212 = vmatprep.subr.bf16.mxu0 0
        %3213 = vmatpush1.bf16.msra.mxu0 0
        %3214 = vmatprep.subr.bf16.mxu0 0
        %3215 = vmatpush1.bf16.msra.mxu0 0
        %3216 = vmatprep.subr.bf16.mxu0 0
        %3217 = vmatpush1.bf16.msra.mxu0 0
        %3218 = vmatprep.subr.bf16.mxu0 0
        %3219 = vmatpush1.bf16.msra.mxu0 0
        %3220 = vmatprep.subr.bf16.mxu0 0
        %3221 = vmatpush1.bf16.msra.mxu0 0
        %3222 = vmatprep.mubr.bf16.mxu0 0
        %3223 = vmatmul.mubr.bf16.gmra.mrb[0].mxu0 %v3185
        %v3224 = vpop.f32.mrb[0].mxu0
        %v3225 = vadd.f32 0.0, %v3224
        %v3226 = vpop.f32.mrb[0].mxu0
        %v3227 = vpop.f32.mrb[0].mxu0
        %v3228 = vpop.f32.mrb[0].mxu0
        %3229 = vdwg.mxu0
        %v3230 = vadd.f32 %v2921, %v3225
        %v3231 = vadd.f32 %v675, %v3230
        %v3232 = vld [vmem:[#allocation14] sm:$0x1]
        %v3234 = vlaneseq
        %v3235 = vshrl.u32 %v3234, 7
        %v3236 = vsub.s32 0, %v3235
        %v3237 = vrot.slane %v3232, %v3236
        %v3239 = vadd.f32 %v3231, %v3237
        %s3240 = scalar_lea.vmem [#allocation2], 8
        %3241 = vst.msk [vmem:[%s3240] sm:$0xff] %vm678, %v3239
        %v3242 = vld [vmem:[#allocation2] sm:$0xff]
        %v3243 = vld [vmem:[#allocation2 + $0x8] sm:$0xff]
        %v3244 = vld [vmem:[#allocation15] sm:$0x1]
        %v3245 = vld [vmem:[#allocation17] sm:$0x1]
        %v3246 = vsel %vm678, %v3242, 0.0
        %3247 = vadd.xlane.f32.xlu0 %v3246
        %v3248 = vpop.xlane.xlu0 %3247
        %v3249 = vsel %vm678, %v3243, 0.0
        %3250 = vadd.xlane.f32.xlu0 %v3249
        %v3251 = vpop.xlane.xlu0 %3250
        %v3252 = vmul.f32 %v3248, %v685
        %v3253 = vmul.f32 %v3251, %v685
        %v3254 = vsub.f32 %v3242, %v3252
        %v3255 = vsub.f32 %v3243, %v3253
        %v3256 = vmul.f32 %v3254, %v3254
        %v3257 = vmul.f32 %v3255, %v3255
        %v3258 = vsel %vm678, %v3256, 0.0
        %3259 = vadd.xlane.f32.xlu0 %v3258
        %v3260 = vpop.xlane.xlu0 %3259
        %v3261 = vsel %vm678, %v3257, 0.0
        %3262 = vadd.xlane.f32.xlu0 %v3261
        %v3263 = vpop.xlane.xlu0 %3262
        %v3264 = vmul.f32 %v3260, %v685
        %v3265 = vmul.f32 %v3263, %v685
        %v3266 = vadd.f32 %v3264, 1e-05
        %v3267 = vadd.f32 %v3265, 1e-05
        %v3268 = vrsqrt.pop %v3266
        %v3269 = vrsqrt.pop %v3267
        %v3270 = vmul.f32 %v3254, %v3268
        %v3271 = vmul.f32 %v3255, %v3269
        %v3273 = vlaneseq
        %v3274 = vshrl.u32 %v3273, 7
        %v3275 = vsub.s32 0, %v3274
        %v3276 = vrot.slane %v3244, %v3275
        %v3278 = vmul.f32 %v3270, %v3276
        %v3279 = vmul.f32 %v3271, %v3276
        %v3281 = vlaneseq
        %v3282 = vshrl.u32 %v3281, 7
        %v3283 = vsub.s32 0, %v3282
        %v3284 = vrot.slane %v3245, %v3283
        %v3286 = vadd.f32 %v3278, %v3284
        %v3287 = vadd.f32 %v3279, %v3284
        %v3288 = vpack.c.bf16 %v3287, %v3286
        %v3289 = vld [vmem:[%s13] sm:$0xf]
        %v3290 = vld [vmem:[%s13 + $0x4] sm:$0xf]
        %v3291 = vld [vmem:[%s13 + $0x8] sm:$0xf]
        %v3292 = vld [vmem:[%s13 + $0xc] sm:$0xf]
        %v3293 = vld [vmem:[%s14] sm:$0x1]
        %v3295 = vlaneseq
        %v3296 = vshrl.u32 %v3295, 7
        %v3297 = vsub.s32 0, %v3296
        %v3298 = vrot.slane %v3293, %v3297
        %v3304 = vunpack.c.l.b16 %v3289
        %v3305 = vunpack.c.l.b16 %v3290
        %v3306 = vunpack.c.l.b16 %v3291
        %v3307 = vunpack.c.l.b16 %v3292
        %v3308 = vpack.c.b16 %v3305, %v3304
        %v3309 = vpack.c.b16 %v3307, %v3306
        %v3313 = vsel %vm678, %v3288, 0
        %3315 = vmatprep.subr.bf16.mxu0 0
        %3316 = vmatpush1.bf16.msra.mxu0 %v3308
        %3317 = vmatprep.subr.bf16.mxu0 0
        %3318 = vmatpush1.bf16.msra.mxu0 %v3309
        %3319 = vmatprep.subr.bf16.mxu0 0
        %3320 = vmatpush1.bf16.msra.mxu0 0
        %3321 = vmatprep.subr.bf16.mxu0 0
        %3322 = vmatpush1.bf16.msra.mxu0 0
        %3323 = vmatprep.subr.bf16.mxu0 0
        %3324 = vmatpush1.bf16.msra.mxu0 0
        %3325 = vmatprep.subr.bf16.mxu0 0
        %3326 = vmatpush1.bf16.msra.mxu0 0
        %3327 = vmatprep.subr.bf16.mxu0 0
        %3328 = vmatpush1.bf16.msra.mxu0 0
        %3329 = vmatprep.subr.bf16.mxu0 0
        %3330 = vmatpush1.bf16.msra.mxu0 0
        %3331 = vmatprep.subr.bf16.mxu0 0
        %3332 = vmatpush1.bf16.msra.mxu0 0
        %3333 = vmatprep.subr.bf16.mxu0 0
        %3334 = vmatpush1.bf16.msra.mxu0 0
        %3335 = vmatprep.subr.bf16.mxu0 0
        %3336 = vmatpush1.bf16.msra.mxu0 0
        %3337 = vmatprep.subr.bf16.mxu0 0
        %3338 = vmatpush1.bf16.msra.mxu0 0
        %3339 = vmatprep.subr.bf16.mxu0 0
        %3340 = vmatpush1.bf16.msra.mxu0 0
        %3341 = vmatprep.subr.bf16.mxu0 0
        %3342 = vmatpush1.bf16.msra.mxu0 0
        %3343 = vmatprep.subr.bf16.mxu0 0
        %3344 = vmatpush1.bf16.msra.mxu0 0
        %3345 = vmatprep.subr.bf16.mxu0 0
        %3346 = vmatpush1.bf16.msra.mxu0 0
        %3347 = vmatprep.mubr.bf16.mxu0 0
        %3348 = vmatmul.mubr.bf16.gmra.mrb[0].mxu0 %v3313
        %v3349 = vpop.f32.mrb[0].mxu0
        %v3350 = vadd.f32 %v3298, %v3349
        %v3351 = vpop.f32.mrb[0].mxu0
        %v3352 = vpop.f32.mrb[0].mxu0
        %v3353 = vadd.f32 %v3298, %v3352
        %v3354 = vpop.f32.mrb[0].mxu0
        %3355 = vdwg.mxu0
        %v3356 = vmul.f32 %v3350, 0.5
        %v3357 = vmul.f32 %v3353, 0.5
        %v3358 = vmul.f32 %v3350, 0.70710677
        %v3359 = vmul.f32 %v3353, 0.70710677
        %v3360 = verf.f32.pop %v3358
        %v3361 = verf.f32.pop %v3359
        %v3362 = vadd.f32 %v3360, 1.0
        %v3363 = vadd.f32 %v3361, 1.0
        %v3364 = vmul.f32 %v3356, %v3362
        %v3365 = vmul.f32 %v3357, %v3363
        %v3366 = vpack.c.bf16 %v3365, %v3364
        %v3367 = vld [vmem:[%s15] sm:$0xf]
        %v3368 = vld [vmem:[%s15 + $0x4] sm:$0xf]
        %v3369 = vld [vmem:[%s15 + $0x8] sm:$0xf]
        %v3370 = vld [vmem:[%s15 + $0xc] sm:$0xf]
        %v3371 = vld [vmem:[%s15 + $0x10] sm:$0xf]
        %v3372 = vld [vmem:[%s15 + $0x14] sm:$0xf]
        %v3373 = vld [vmem:[%s15 + $0x18] sm:$0xf]
        %v3374 = vld [vmem:[%s15 + $0x1c] sm:$0xf]
        %v3375 = vld [vmem:[%s16] sm:$0x1]
        %v3377 = vlaneseq
        %v3378 = vshrl.u32 %v3377, 7
        %v3379 = vsub.s32 0, %v3378
        %v3380 = vrot.slane %v3375, %v3379
        %v3390 = vunpack.c.l.b16 %v3367
        %v3391 = vunpack.c.l.b16 %v3368
        %v3392 = vunpack.c.l.b16 %v3369
        %v3393 = vunpack.c.l.b16 %v3370
        %v3394 = vunpack.c.l.b16 %v3371
        %v3395 = vunpack.c.l.b16 %v3372
        %v3396 = vunpack.c.l.b16 %v3373
        %v3397 = vunpack.c.l.b16 %v3374
        %v3398 = vpack.c.b16 %v3391, %v3390
        %v3399 = vpack.c.b16 %v3393, %v3392
        %v3400 = vpack.c.b16 %v3395, %v3394
        %v3401 = vpack.c.b16 %v3397, %v3396
        %vm3406 = vcmask 523264
        %v3408 = vsel %vm3406, %v3366, 0
        %3410 = vmatprep.subr.bf16.mxu0 0
        %3411 = vmatpush1.bf16.msra.mxu0 %v3398
        %3412 = vmatprep.subr.bf16.mxu0 0
        %3413 = vmatpush1.bf16.msra.mxu0 %v3399
        %3414 = vmatprep.subr.bf16.mxu0 0
        %3415 = vmatpush1.bf16.msra.mxu0 %v3400
        %3416 = vmatprep.subr.bf16.mxu0 0
        %3417 = vmatpush1.bf16.msra.mxu0 %v3401
        %3418 = vmatprep.subr.bf16.mxu0 0
        %3419 = vmatpush1.bf16.msra.mxu0 0
        %3420 = vmatprep.subr.bf16.mxu0 0
        %3421 = vmatpush1.bf16.msra.mxu0 0
        %3422 = vmatprep.subr.bf16.mxu0 0
        %3423 = vmatpush1.bf16.msra.mxu0 0
        %3424 = vmatprep.subr.bf16.mxu0 0
        %3425 = vmatpush1.bf16.msra.mxu0 0
        %3426 = vmatprep.subr.bf16.mxu0 0
        %3427 = vmatpush1.bf16.msra.mxu0 0
        %3428 = vmatprep.subr.bf16.mxu0 0
        %3429 = vmatpush1.bf16.msra.mxu0 0
        %3430 = vmatprep.subr.bf16.mxu0 0
        %3431 = vmatpush1.bf16.msra.mxu0 0
        %3432 = vmatprep.subr.bf16.mxu0 0
        %3433 = vmatpush1.bf16.msra.mxu0 0
        %3434 = vmatprep.subr.bf16.mxu0 0
        %3435 = vmatpush1.bf16.msra.mxu0 0
        %3436 = vmatprep.subr.bf16.mxu0 0
        %3437 = vmatpush1.bf16.msra.mxu0 0
        %3438 = vmatprep.subr.bf16.mxu0 0
        %3439 = vmatpush1.bf16.msra.mxu0 0
        %3440 = vmatprep.subr.bf16.mxu0 0
        %3441 = vmatpush1.bf16.msra.mxu0 0
        %3442 = vmatprep.mubr.bf16.mxu0 0
        %3443 = vmatmul.mubr.bf16.gmra.mrb[0].mxu0 %v3408
        %v3444 = vpop.f32.mrb[0].mxu0
        %v3445 = vadd.f32 %v3380, %v3444
        %v3446 = vpop.f32.mrb[0].mxu0
        %v3447 = vpop.f32.mrb[0].mxu0
        %v3448 = vadd.f32 %v3380, %v3447
        %v3449 = vpop.f32.mrb[0].mxu0
        %3450 = vdwg.mxu0
        %v3451 = vadd.f32 %v3242, %v3445
        %v3452 = vadd.f32 %v3243, %v3448
        %3453 = vst.msk [vmem:[%s665] sm:$0xff] %vm678, %v3451
        %3454 = vst.msk [vmem:[%s665 + $0x8] sm:$0xff] %vm678, %v3452
        %s3455 = sand.u32 %s406, 1
        %s3456 = scalar_lea.sflag [#allocation5], %s3455
        %s3457 = sand.u32 %s406, 1
        %s3458 = smul.addr %s3457, 16
        %s3459 = scalar_lea.vmem [#allocation18], %s3458
        // Predicated region
        $region125: #{tpu_custom_call.1} parent=87 // pred_check
          %p3460 = pneg %p416
        $region126: #{tpu_custom_call.1} parent=87 // pred_check_branch
          %3462 = sbr.rel (%p3460) target = $region128
        $region127: #{tpu_custom_call.1} parent=87 // pred_region
          %s3463 = smul.u32 2, %s36
          %s3465 = ssub.s32 256, 256
          %3466 = vsyncadd %s3456, %s3465
          %s3467 = smul.addr %s3463, 128
          %s3468 = scalar_lea.hbm %s17, %s3467
          %s3469 = sshll.u32 %s3459, 4
          %s3470 = int_to_ptr.vmem [resolvable:$true] %s3469
          %3475 = dma.vmem_to_hbm [thread:$0]  %s3470, 256, %s3468, %s3456, 128, 128, 8
        $region128: #{tpu_custom_call.1} parent=87 // pred_fallthru
          _
      $region88: #{tpu_custom_call.1} parent=5 // pred_fallthru
        _
      %p3476 = scmp.le.s32.totalorder 2, %s31
      // Predicated region
      $region129: #{tpu_custom_call.1} parent=5 // pred_check
        %p3477 = pneg %p3476
      $region130: #{tpu_custom_call.1} parent=5 // pred_check_branch
        %3479 = sbr.rel (%p3477) target = $region132
      $region131: #{tpu_custom_call.1} parent=5 // pred_region
        %s3480 = ssub.s32 %s31, 2
        // Predicated region
        $region133: #{tpu_custom_call.1} parent=131 // pred_check
          %p3481 = pneg %p422
        $region134: #{tpu_custom_call.1} parent=131 // pred_check_branch
          %3483 = sbr.rel (%p3481) target = $region136
        $region135: #{tpu_custom_call.1} parent=131 // pred_region
          %s3484 = sand.u32 %s407, 1
          %s3485 = scalar_lea.sflag [#allocation5], %s3484
          %s3486 = sand.u32 %s407, 1
          %s3487 = smul.addr %s3486, 16
          %s3488 = scalar_lea.vmem [#allocation18], %s3487
          %3489 = dma.done %s3485, 256
        $region136: #{tpu_custom_call.1} parent=131 // pred_fallthru
          _
      $region132: #{tpu_custom_call.1} parent=5 // pred_fallthru
        _
    $region6: #{tpu_custom_call.1} parent=1 // loop_footer
      %s35 = sadd.s32 1, %s31
    $region7: #{tpu_custom_call.1} parent=1 // loop_footer_branch
      %30 = sbr.rel target = $region3
    $region8: #{tpu_custom_call.1} parent=1 // loop_exit
      _
    %3490 = vsyncpa [#allocation4], 1
    %s3491 = scalar_lea.sflag [#allocation4], 1
    %3492 = vsyncpa %s3491, 1
    %3493 = vsyncpa [#allocation7], 1
    %3494 = vsyncpa [#allocation10], 1
    %3495 = vsyncpa [#allocation13], 1
    %3496 = vsyncpa [#allocation16], 1
    %3497 = vsyncpa [#allocation5], 1
    %s3498 = scalar_lea.sflag [#allocation5], 1
    %3499 = vsyncpa %s3498, 1

</llo_original>
